<compile_context>
chip_gen: v6e
topology: v6e:2x2x1
jax: 0.10.0
libtpu: 0.0.40
codegen_flags: <defaults>
</compile_context>

<pallas_src>
import functools

import jax
import jax.numpy as jnp
from jax.experimental import pallas as pl
from jax.experimental.pallas import tpu as pltpu


# ----------------------------------------------------------------------------
# Generation-aware VMEM budget.
# ----------------------------------------------------------------------------
@functools.lru_cache(maxsize=1)
def _vmem_limit_bytes():
    cap = 64 * 1024 * 1024  # conservative default (v7x per-TC VMEM)
    try:
        cap = int(pltpu.get_tpu_info().vmem_capacity_bytes)
    except Exception:
        pass
    # Request ~45% of physical VMEM: ~29 MiB on v7x (64 MiB/TC), ~58 MiB on
    # v5e/v6e (128 MiB).  Leaves headroom for Mosaic's own scratch.
    return max(24 * 1024 * 1024, min(int(cap * 0.45), 96 * 1024 * 1024))


def _round_up(x, m):
    return ((x + m - 1) // m) * m


# ----------------------------------------------------------------------------
# Pallas kernels.
# a_ref: (TM, TK) bf16   w_ref: (TK, TN) bf16   b_ref: (1, TN) f32
# ----------------------------------------------------------------------------
def conv_mm_single_kernel(a_ref, w_ref, b_ref, o_ref, *, apply_act: bool,
                          alpha: float):
    """Single-K-step GEMM tile: dot + bias + LeakyReLU fused, no scratch."""
    y = jnp.dot(a_ref[...], w_ref[...], preferred_element_type=jnp.float32)
    y = y + b_ref[...]
    if apply_act:
        y = jnp.where(y >= 0, y, alpha * y)
    o_ref[...] = y.astype(o_ref.dtype)


def conv_mm_kernel(a_ref, w_ref, b_ref, o_ref, acc_ref, *, apply_act: bool,
                   alpha: float):
    """Multi-K-step GEMM tile with f32 VMEM accumulator (k innermost)."""
    k = pl.program_id(2)
    p = jnp.dot(a_ref[...], w_ref[...], preferred_element_type=jnp.float32)

    @pl.when(k == 0)
    def _first():
        acc_ref[...] = p

    @pl.when(k > 0)
    def _rest():
        acc_ref[...] += p

    @pl.when(k == pl.num_programs(2) - 1)
    def _finalize():
        y = acc_ref[...] + b_ref[...]
        if apply_act:
            y = jnp.where(y >= 0, y, alpha * y)
        o_ref[...] = y.astype(o_ref.dtype)


def matvec_kernel(a_ref, w_ref, b_ref, o_ref):
    """conv7 (N == 1) as a VPU multiply + lane reduce; output f32."""
    prod = a_ref[...].astype(jnp.float32) * w_ref[...].astype(jnp.float32)
    o_ref[...] = jnp.sum(prod, axis=-1, keepdims=True) + b_ref[0, 0]


# ----------------------------------------------------------------------------
# im2col (pure XLA glue: padding + strided slicing + reshape, no compute)
# x: (B, H, W, C) NHWC -> patches (B*Ho*Wo, k*k*C), feature order (di, dj, c)
# ----------------------------------------------------------------------------
def im2col(x, k, stride, pad):
    B, H, W, C = x.shape
    xp = jnp.pad(x, ((0, 0), (pad, pad), (pad, pad), (0, 0)))
    Ho = (H + 2 * pad - k) // stride + 1
    Wo = (W + 2 * pad - k) // stride + 1
    cols = []
    for di in range(k):
        for dj in range(k):
            patch = xp[:, di:di + Ho * stride:stride, dj:dj + Wo * stride:stride, :]
            cols.append(patch)                       # (B, Ho, Wo, C)
    patches = jnp.stack(cols, axis=3)                # (B, Ho, Wo, k*k, C)
    return patches.reshape(B * Ho * Wo, k * k * C), Ho, Wo


# ----------------------------------------------------------------------------
# Tile selection: biggest tiles that fit the (generation-aware) VMEM budget.
# ----------------------------------------------------------------------------
_TN_CANDIDATES = (1024, 512, 256, 128)
_TK_PARTIAL = (2048, 1024, 512, 256, 128)
_TM_CANDIDATES = (512, 256, 128, 64, 32, 16, 8)


def _pick_tiles(M, K, N, out_bytes, budget):
    Mpad = _round_up(M, 8)
    Npad = _round_up(N, 128)

    tile_m = 8
    for cand in _TM_CANDIDATES:
        if Mpad % cand == 0:
            tile_m = cand
            break
    m_blocks = Mpad // tile_m

    tn_opts = [t for t in _TN_CANDIDATES if t <= Npad and Npad % t == 0]
    # Keep >=2 blocks on the (parallel) N axis when there is only one M block,
    # so both v7x TensorCores get work.
    if m_blocks == 1 and Npad >= 256:
        capped = [t for t in tn_opts if 2 * t <= Npad]
        if capped:
            tn_opts = capped
    if not tn_opts:
        tn_opts = [128]

    # Prefer full-K (single grid step, no accumulator traffic, no K-pad copy).
    tk_opts = [K] + [t for t in _TK_PARTIAL if t < K]

    def cost(tm, tk, tn, nk):
        c = 2 * (tm * tk * 2 + tk * tn * 2 + tm * tn * out_bytes)  # dbl-buffered
        if nk > 1:
            c += tm * tn * 4                                       # f32 acc
        return c

    for tk in tk_opts:
        kpad = K if tk == K else _round_up(K, tk)
        nk = kpad // tk
        for tn in tn_opts:
            if cost(tile_m, tk, tn, nk) <= budget:
                return tile_m, tk, tn, Mpad, kpad, Npad

    # Fallback: minimal K/N tiles, shrink tile_m until it fits.
    tk, tn = 128, 128
    kpad = _round_up(K, tk)
    while tile_m > 8 and cost(tile_m, tk, tn, kpad // tk) > budget:
        tile_m //= 2
    Mpad = _round_up(M, tile_m)
    return tile_m, tk, tn, Mpad, kpad, Npad


# ----------------------------------------------------------------------------
# One stride-2 Conv2d layer (PyTorch OIHW weights) via im2col + Pallas GEMM.
# The input may carry zero-padded channels (Cin_x >= weight Cin); the weight's
# Cin rows are zero-padded to match.  The output may carry lane padding
# (returned channel count is a multiple of 128) when that is cheap.
# ----------------------------------------------------------------------------
def conv2d_pallas(x_nhwc, w_oihw, bias, *, stride, pad, apply_act, alpha=0.2,
                  out_dtype=jnp.bfloat16):
    x_nhwc = x_nhwc.astype(jnp.bfloat16)
    B, H, W, Cin_x = x_nhwc.shape
    Cout, Cin_w, K, _ = w_oihw.shape
    assert Cin_x >= Cin_w

    patches, Ho, Wo = im2col(x_nhwc, K, stride, pad)   # (M, K*K*Cin_x) bf16
    M, Kdim = patches.shape

    out_bytes = jnp.dtype(out_dtype).itemsize
    vmem_limit = _vmem_limit_bytes()
    budget = int(vmem_limit * 0.85)
    tile_m, tile_k, tile_n, Mpad, Kpad, Npad = _pick_tiles(
        M, Kdim, Cout, out_bytes, budget)

    if (Mpad, Kpad) != (M, Kdim):
        patches = jnp.pad(patches, ((0, Mpad - M), (0, Kpad - Kdim)))

    # (Cout, Cin, kH, kW) -> zero-pad Cin to the activation's channel count
    # -> (kH, kW, Cin_x, Cout) -> (K*K*Cin_x, Cout); matches im2col (di,dj,c).
    w_p = w_oihw
    if Cin_x != Cin_w:
        w_p = jnp.pad(w_p, ((0, 0), (0, Cin_x - Cin_w), (0, 0), (0, 0)))
    w2 = jnp.transpose(w_p, (2, 3, 1, 0)).reshape(K * K * Cin_x, Cout)
    w2 = w2.astype(jnp.bfloat16)
    if (Kpad, Npad) != (Kdim, Cout):
        w2 = jnp.pad(w2, ((0, Kpad - Kdim), (0, Npad - Cout)))

    b2 = bias.reshape(1, Cout).astype(jnp.float32)
    if Npad != Cout:
        b2 = jnp.pad(b2, ((0, 0), (0, Npad - Cout)))

    grid = (Mpad // tile_m, Npad // tile_n, Kpad // tile_k)
    nk = grid[2]

    cost_est = pl.CostEstimate(
        flops=2 * Mpad * Kpad * Npad,
        transcendentals=0,
        bytes_accessed=(Mpad * Kpad * 2 + Kpad * Npad * 2 + Npad * 4
                        + Mpad * Npad * out_bytes))
    cparams = pltpu.CompilerParams(
        dimension_semantics=("parallel", "parallel", "arbitrary"),
        vmem_limit_bytes=vmem_limit)
    in_specs = [
        pl.BlockSpec((tile_m, tile_k), lambda i, j, k: (i, k)),
        pl.BlockSpec((tile_k, tile_n), lambda i, j, k: (k, j)),
        pl.BlockSpec((1, tile_n), lambda i, j, k: (0, j)),
    ]
    out_spec = pl.BlockSpec((tile_m, tile_n), lambda i, j, k: (i, j))
    out_shape = jax.ShapeDtypeStruct((Mpad, Npad), out_dtype)

    if nk == 1:
        kern = functools.partial(conv_mm_single_kernel,
                                 apply_act=apply_act, alpha=alpha)
        out = pl.pallas_call(
            kern, out_shape=out_shape, grid=grid,
            in_specs=in_specs, out_specs=out_spec,
            compiler_params=cparams, cost_estimate=cost_est,
        )(patches, w2, b2)
    else:
        kern = functools.partial(conv_mm_kernel,
                                 apply_act=apply_act, alpha=alpha)
        out = pl.pallas_call(
            kern, out_shape=out_shape, grid=grid,
            in_specs=in_specs, out_specs=out_spec,
            scratch_shapes=[pltpu.VMEM((tile_m, tile_n), jnp.float32)],
            compiler_params=cparams, cost_estimate=cost_est,
        )(patches, w2, b2)

    out = out[:M]
    # Carry lane padding forward only when it is cheap (at most 2x channels,
    # e.g. the real conv1 64 -> 128); otherwise slice back to the true Cout.
    if Npad > 2 * Cout:
        out = out[:, :Cout]
        c_ret = Cout
    else:
        c_ret = Npad
    return out.reshape(B, Ho, Wo, c_ret)


# ----------------------------------------------------------------------------
# conv7: k=4, s=4, p=0, Cout=1 -> a (B, 16*C) @ (16*C, 1) matvec, one Pallas
# call, no N padding, no activation.
# ----------------------------------------------------------------------------
def conv7_matvec(x_nhwc, w_oihw, bias):
    x_nhwc = x_nhwc.astype(jnp.bfloat16)
    B, H, W, Cin_x = x_nhwc.shape
    Cout, Cin_w, K, _ = w_oihw.shape
    assert Cout == 1 and Cin_x >= Cin_w

    patches, Ho, Wo = im2col(x_nhwc, K, 4, 0)          # (B, 16*Cin_x)
    M, Kdim = patches.shape
    Mpad = _round_up(M, 8)
    if Mpad != M:
        patches = jnp.pad(patches, ((0, Mpad - M), (0, 0)))

    w_p = w_oihw
    if Cin_x != Cin_w:
        w_p = jnp.pad(w_p, ((0, 0), (0, Cin_x - Cin_w), (0, 0), (0, 0)))
    # (1, Cin_x, kH, kW) -> (1, kH, kW, Cin_x) -> row vector matching (di,dj,c)
    wrow = jnp.transpose(w_p, (0, 2, 3, 1)).reshape(1, Kdim).astype(jnp.bfloat16)
    b2 = bias.reshape(1, 1).astype(jnp.float32)

    cost_est = pl.CostEstimate(
        flops=2 * Mpad * Kdim, transcendentals=0,
        bytes_accessed=Mpad * Kdim * 2 + Kdim * 2 + Mpad * 4 + 4)

    out = pl.pallas_call(
        matvec_kernel,
        out_shape=jax.ShapeDtypeStruct((Mpad, 1), jnp.float32),
        grid=(1,),
        in_specs=[
            pl.BlockSpec((Mpad, Kdim), lambda i: (0, 0)),
            pl.BlockSpec((1, Kdim), lambda i: (0, 0)),
            pl.BlockSpec((1, 1), lambda i: (0, 0)),
        ],
        out_specs=pl.BlockSpec((Mpad, 1), lambda i: (0, 0)),
        compiler_params=pltpu.CompilerParams(
            dimension_semantics=("arbitrary",),
            vmem_limit_bytes=_vmem_limit_bytes()),
        cost_estimate=cost_est,
    )(patches, wrow, b2)

    return out[:M, :1].reshape(B, Ho, Wo, 1)           # (B, 1, 1, 1) f32


# ----------------------------------------------------------------------------
# Parameter construction (mirrors the module's __init__; use_bn=False => bias).
# conv1..conv6: k=4, s=2, p=1 ; conv7: k=4, s=4, p=0.
# ----------------------------------------------------------------------------
def init_params(key, *, num_classes=10, channels=3, conv_dim=64):
    conditional = num_classes is not None
    c_in1 = channels + 12 if conditional else channels
    layer_io = [
        (c_in1, conv_dim),
        (conv_dim, conv_dim * 2),
        (conv_dim * 2, conv_dim * 4),
        (conv_dim * 4, conv_dim * 8),
        (conv_dim * 8, conv_dim * 16),
        (conv_dim * 16, conv_dim * 32),
        (conv_dim * 32, 1),
    ]
    params = []
    for (ci, co) in layer_io:
        key, kw, kb = jax.random.split(key, 3)
        w = 0.02 * jax.random.normal(kw, (co, ci, 4, 4), jnp.float32)  # N(0,0.02)
        fan_in = ci * 4 * 4
        bound = 1.0 / jnp.sqrt(fan_in)
        b = jax.random.uniform(kb, (co,), jnp.float32, -bound, bound)
        params.append((w, b))
    return params, conditional


# ----------------------------------------------------------------------------
# Full forward pass (semantics of CNNDiscriminator256.forward).
# x: (B, C, H, W) NCHW float32 ; label: (B, 12) float32 (when conditional).
# ----------------------------------------------------------------------------
def discriminator_forward(params, x_nchw, label, *, conditional, image_size):
    alpha = 0.2
    x = jnp.transpose(x_nchw, (0, 2, 3, 1)).astype(jnp.bfloat16)  # NCHW -> NHWC
    if conditional:
        B = label.shape[0]
        lab = label.astype(jnp.bfloat16).reshape(B, 1, 1, 12)
        lab = jnp.broadcast_to(lab, (B, image_size, image_size, 12))
        x = jnp.concatenate([x, lab], axis=-1)        # channel concat (NHWC)

    # conv1..conv6: k=4, s=2, p=1, fused LeakyReLU(0.2); activations in bf16.
    for (w, b) in params[:-1]:
        x = conv2d_pallas(x, w, b, stride=2, pad=1, apply_act=True, alpha=alpha,
                          out_dtype=jnp.bfloat16)
    # conv7: k=4, s=4, p=0, no activation; f32 matvec kernel.
    w7, b7 = params[-1]
    y = conv7_matvec(x, w7, b7)                       # (B, 1, 1, 1)
    # torch .squeeze(): drop all singleton dims.
    return jnp.squeeze(y)


if __name__ == "__main__":
    # The architecture's spatial pipeline (six stride-2 convs then a 4x4/s4
    # conv) requires 256x256 input, so image_size stays 256; batch / conv_dim
    # are kept small.
    batch, channels, conv_dim, num_classes = 2, 3, 4, 10
    image_size = 256

    key = jax.random.PRNGKey(0)
    kp, kx, kl = jax.random.split(key, 3)

    params, conditional = init_params(
        kp, num_classes=num_classes, channels=channels, conv_dim=conv_dim)

    x = jax.random.normal(kx, (batch, channels, image_size, image_size), jnp.float32)
    label = jax.random.normal(kl, (batch, 12), jnp.float32)

    fwd = jax.jit(functools.partial(
        discriminator_forward, conditional=conditional, image_size=image_size))
    out = fwd(params, x, label)
    out = jax.block_until_ready(out)

    assert out.shape == (batch,), out.shape
    print("KERNEL_OK")
</pallas_src>

<mosaic_0001>
module attributes {stable_mosaic.version = 11 : i64} {
  func.func @conv_mm_single_kernel(%arg0: i32, %arg1: i32, %arg2: i32, %arg3: memref<512x240xbf16, #tpu.memory_space<vmem>>, %arg4: memref<240x128xbf16, #tpu.memory_space<vmem>>, %arg5: memref<1x128xf32, #tpu.memory_space<vmem>>, %arg6: memref<512x128xbf16, #tpu.memory_space<vmem>>) attributes {dimension_semantics = [#tpu.dimension_semantics<parallel>, #tpu.dimension_semantics<parallel>, #tpu.dimension_semantics<arbitrary>], iteration_bounds = array<i64: 64, 1, 1>, scalar_prefetch = 0 : i64, scratch_operands = 0 : i64, tpu.core_type = #tpu.core_type<tc>, window_params = [{transform_indices = @transform_0, window_bounds = array<i64: 512, 240>}, {transform_indices = @transform_1, window_bounds = array<i64: 240, 128>}, {transform_indices = @transform_2, window_bounds = array<i64: 1, 128>}, {transform_indices = @transform_3, window_bounds = array<i64: 512, 128>}]} {
    %c0 = arith.constant 0 : index
    %c0_0 = arith.constant 0 : index
    %0 = vector.load %arg3[%c0, %c0_0] : memref<512x240xbf16, #tpu.memory_space<vmem>>, vector<512x240xbf16>
    %c0_1 = arith.constant 0 : index
    %c0_2 = arith.constant 0 : index
    %1 = vector.load %arg4[%c0_1, %c0_2] : memref<240x128xbf16, #tpu.memory_space<vmem>>, vector<240x128xbf16>
    %cst = arith.constant dense<0.000000e+00> : vector<512x128xf32>
    %2 = tpu.matmul %0, %1, %cst {dimension_numbers = #tpu.dot_dimension_numbers<[1], [0], [0], [1], [0, 0, 1, 1], [], []>} : vector<512x240xbf16>, vector<240x128xbf16>, vector<512x128xf32> -> vector<512x128xf32>
    %c0_3 = arith.constant 0 : index
    %c0_4 = arith.constant 0 : index
    %3 = vector.load %arg5[%c0_3, %c0_4] : memref<1x128xf32, #tpu.memory_space<vmem>>, vector<1x128xf32>
    %4 = vector.broadcast %3 : vector<1x128xf32> to vector<512x128xf32>
    %5 = arith.addf %2, %4 : vector<512x128xf32>
    %cst_5 = arith.constant 0.000000e+00 : f32
    %6 = vector.broadcast %cst_5 : f32 to vector<512x128xf32>
    %7 = arith.cmpf oge, %5, %6 : vector<512x128xf32>
    %cst_6 = arith.constant 2.000000e-01 : f32
    %8 = vector.broadcast %cst_6 : f32 to vector<512x128xf32>
    %9 = arith.mulf %8, %5 : vector<512x128xf32>
    %10 = arith.select %7, %5, %9 : vector<512x128xi1>, vector<512x128xf32>
    %11 = arith.truncf %10 : vector<512x128xf32> to vector<512x128xbf16>
    %c0_7 = arith.constant 0 : index
    %c0_8 = arith.constant 0 : index
    %12 = vector.load %arg6[%c0_7, %c0_8] : memref<512x128xbf16, #tpu.memory_space<vmem>>, vector<512x128xbf16>
    tpu.vector_store %arg6[%c0_7, %c0_8], %11 {strides = array<i32>} : memref<512x128xbf16, #tpu.memory_space<vmem>>, vector<512x128xbf16>,
    return
  }
  func.func @transform_0(%arg0: i32, %arg1: i32, %arg2: i32) -> (i32, i32) {
    %c0_i32 = arith.constant 0 : i32
    return %arg0, %arg2 : i32, i32
  }
  func.func @transform_1(%arg0: i32, %arg1: i32, %arg2: i32) -> (i32, i32) {
    %c0_i32 = arith.constant 0 : i32
    return %arg2, %arg1 : i32, i32
  }
  func.func @transform_2(%arg0: i32, %arg1: i32, %arg2: i32) -> (i32, i32) {
    %c0_i32 = arith.constant 0 : i32
    %c0_i32_0 = arith.constant 0 : i32
    return %c0_i32, %arg1 : i32, i32
  }
  func.func @transform_3(%arg0: i32, %arg1: i32, %arg2: i32) -> (i32, i32) {
    %c0_i32 = arith.constant 0 : i32
    return %arg0, %arg1 : i32, i32
  }
}

module attributes {stable_mosaic.version = 11 : i64} {
  func.func @conv_mm_single_kernel(%arg0: i32, %arg1: i32, %arg2: i32, %arg3: memref<512x64xbf16, #tpu.memory_space<vmem>>, %arg4: memref<64x128xbf16, #tpu.memory_space<vmem>>, %arg5: memref<1x128xf32, #tpu.memory_space<vmem>>, %arg6: memref<512x128xbf16, #tpu.memory_space<vmem>>) attributes {dimension_semantics = [#tpu.dimension_semantics<parallel>, #tpu.dimension_semantics<parallel>, #tpu.dimension_semantics<arbitrary>], iteration_bounds = array<i64: 16, 1, 1>, scalar_prefetch = 0 : i64, scratch_operands = 0 : i64, tpu.core_type = #tpu.core_type<tc>, window_params = [{transform_indices = @transform_0, window_bounds = array<i64: 512, 64>}, {transform_indices = @transform_1, window_bounds = array<i64: 64, 128>}, {transform_indices = @transform_2, window_bounds = array<i64: 1, 128>}, {transform_indices = @transform_3, window_bounds = array<i64: 512, 128>}]} {
    %c0 = arith.constant 0 : index
    %c0_0 = arith.constant 0 : index
    %0 = vector.load %arg3[%c0, %c0_0] : memref<512x64xbf16, #tpu.memory_space<vmem>>, vector<512x64xbf16>
    %c0_1 = arith.constant 0 : index
    %c0_2 = arith.constant 0 : index
    %1 = vector.load %arg4[%c0_1, %c0_2] : memref<64x128xbf16, #tpu.memory_space<vmem>>, vector<64x128xbf16>
    %cst = arith.constant dense<0.000000e+00> : vector<512x128xf32>
    %2 = tpu.matmul %0, %1, %cst {dimension_numbers = #tpu.dot_dimension_numbers<[1], [0], [0], [1], [0, 0, 1, 1], [], []>} : vector<512x64xbf16>, vector<64x128xbf16>, vector<512x128xf32> -> vector<512x128xf32>
    %c0_3 = arith.constant 0 : index
    %c0_4 = arith.constant 0 : index
    %3 = vector.load %arg5[%c0_3, %c0_4] : memref<1x128xf32, #tpu.memory_space<vmem>>, vector<1x128xf32>
    %4 = vector.broadcast %3 : vector<1x128xf32> to vector<512x128xf32>
    %5 = arith.addf %2, %4 : vector<512x128xf32>
    %cst_5 = arith.constant 0.000000e+00 : f32
    %6 = vector.broadcast %cst_5 : f32 to vector<512x128xf32>
    %7 = arith.cmpf oge, %5, %6 : vector<512x128xf32>
    %cst_6 = arith.constant 2.000000e-01 : f32
    %8 = vector.broadcast %cst_6 : f32 to vector<512x128xf32>
    %9 = arith.mulf %8, %5 : vector<512x128xf32>
    %10 = arith.select %7, %5, %9 : vector<512x128xi1>, vector<512x128xf32>
    %11 = arith.truncf %10 : vector<512x128xf32> to vector<512x128xbf16>
    %c0_7 = arith.constant 0 : index
    %c0_8 = arith.constant 0 : index
    %12 = vector.load %arg6[%c0_7, %c0_8] : memref<512x128xbf16, #tpu.memory_space<vmem>>, vector<512x128xbf16>
    tpu.vector_store %arg6[%c0_7, %c0_8], %11 {strides = array<i32>} : memref<512x128xbf16, #tpu.memory_space<vmem>>, vector<512x128xbf16>,
    return
  }
  func.func @transform_0(%arg0: i32, %arg1: i32, %arg2: i32) -> (i32, i32) {
    %c0_i32 = arith.constant 0 : i32
    return %arg0, %arg2 : i32, i32
  }
  func.func @transform_1(%arg0: i32, %arg1: i32, %arg2: i32) -> (i32, i32) {
    %c0_i32 = arith.constant 0 : i32
    return %arg2, %arg1 : i32, i32
  }
  func.func @transform_2(%arg0: i32, %arg1: i32, %arg2: i32) -> (i32, i32) {
    %c0_i32 = arith.constant 0 : i32
    %c0_i32_0 = arith.constant 0 : i32
    return %c0_i32, %arg1 : i32, i32
  }
  func.func @transform_3(%arg0: i32, %arg1: i32, %arg2: i32) -> (i32, i32) {
    %c0_i32 = arith.constant 0 : i32
    return %arg0, %arg1 : i32, i32
  }
}

module attributes {stable_mosaic.version = 11 : i64} {
  func.func @conv_mm_single_kernel(%arg0: i32, %arg1: i32, %arg2: i32, %arg3: memref<512x128xbf16, #tpu.memory_space<vmem>>, %arg4: memref<128x128xbf16, #tpu.memory_space<vmem>>, %arg5: memref<1x128xf32, #tpu.memory_space<vmem>>, %arg6: memref<512x128xbf16, #tpu.memory_space<vmem>>) attributes {dimension_semantics = [#tpu.dimension_semantics<parallel>, #tpu.dimension_semantics<parallel>, #tpu.dimension_semantics<arbitrary>], iteration_bounds = array<i64: 4, 1, 1>, scalar_prefetch = 0 : i64, scratch_operands = 0 : i64, tpu.core_type = #tpu.core_type<tc>, window_params = [{transform_indices = @transform_0, window_bounds = array<i64: 512, 128>}, {transform_indices = @transform_1, window_bounds = array<i64: 128, 128>}, {transform_indices = @transform_2, window_bounds = array<i64: 1, 128>}, {transform_indices = @transform_3, window_bounds = array<i64: 512, 128>}]} {
    %c0 = arith.constant 0 : index
    %c0_0 = arith.constant 0 : index
    %0 = vector.load %arg3[%c0, %c0_0] : memref<512x128xbf16, #tpu.memory_space<vmem>>, vector<512x128xbf16>
    %c0_1 = arith.constant 0 : index
    %c0_2 = arith.constant 0 : index
    %1 = vector.load %arg4[%c0_1, %c0_2] : memref<128x128xbf16, #tpu.memory_space<vmem>>, vector<128x128xbf16>
    %cst = arith.constant dense<0.000000e+00> : vector<512x128xf32>
    %2 = tpu.matmul %0, %1, %cst {dimension_numbers = #tpu.dot_dimension_numbers<[1], [0], [0], [1], [0, 0, 1, 1], [], []>} : vector<512x128xbf16>, vector<128x128xbf16>, vector<512x128xf32> -> vector<512x128xf32>
    %c0_3 = arith.constant 0 : index
    %c0_4 = arith.constant 0 : index
    %3 = vector.load %arg5[%c0_3, %c0_4] : memref<1x128xf32, #tpu.memory_space<vmem>>, vector<1x128xf32>
    %4 = vector.broadcast %3 : vector<1x128xf32> to vector<512x128xf32>
    %5 = arith.addf %2, %4 : vector<512x128xf32>
    %cst_5 = arith.constant 0.000000e+00 : f32
    %6 = vector.broadcast %cst_5 : f32 to vector<512x128xf32>
    %7 = arith.cmpf oge, %5, %6 : vector<512x128xf32>
    %cst_6 = arith.constant 2.000000e-01 : f32
    %8 = vector.broadcast %cst_6 : f32 to vector<512x128xf32>
    %9 = arith.mulf %8, %5 : vector<512x128xf32>
    %10 = arith.select %7, %5, %9 : vector<512x128xi1>, vector<512x128xf32>
    %11 = arith.truncf %10 : vector<512x128xf32> to vector<512x128xbf16>
    %c0_7 = arith.constant 0 : index
    %c0_8 = arith.constant 0 : index
    %12 = vector.load %arg6[%c0_7, %c0_8] : memref<512x128xbf16, #tpu.memory_space<vmem>>, vector<512x128xbf16>
    tpu.vector_store %arg6[%c0_7, %c0_8], %11 {strides = array<i32>} : memref<512x128xbf16, #tpu.memory_space<vmem>>, vector<512x128xbf16>,
    return
  }
  func.func @transform_0(%arg0: i32, %arg1: i32, %arg2: i32) -> (i32, i32) {
    %c0_i32 = arith.constant 0 : i32
    return %arg0, %arg2 : i32, i32
  }
  func.func @transform_1(%arg0: i32, %arg1: i32, %arg2: i32) -> (i32, i32) {
    %c0_i32 = arith.constant 0 : i32
    return %arg2, %arg1 : i32, i32
  }
  func.func @transform_2(%arg0: i32, %arg1: i32, %arg2: i32) -> (i32, i32) {
    %c0_i32 = arith.constant 0 : i32
    %c0_i32_0 = arith.constant 0 : i32
    return %c0_i32, %arg1 : i32, i32
  }
  func.func @transform_3(%arg0: i32, %arg1: i32, %arg2: i32) -> (i32, i32) {
    %c0_i32 = arith.constant 0 : i32
    return %arg0, %arg1 : i32, i32
  }
}

module attributes {stable_mosaic.version = 11 : i64} {
  func.func @conv_mm_single_kernel(%arg0: i32, %arg1: i32, %arg2: i32, %arg3: memref<512x256xbf16, #tpu.memory_space<vmem>>, %arg4: memref<256x128xbf16, #tpu.memory_space<vmem>>, %arg5: memref<1x128xf32, #tpu.memory_space<vmem>>, %arg6: memref<512x128xbf16, #tpu.memory_space<vmem>>) attributes {dimension_semantics = [#tpu.dimension_semantics<parallel>, #tpu.dimension_semantics<parallel>, #tpu.dimension_semantics<arbitrary>], iteration_bounds = array<i64: 1, 1, 1>, scalar_prefetch = 0 : i64, scratch_operands = 0 : i64, tpu.core_type = #tpu.core_type<tc>, window_params = [{transform_indices = @transform_0, window_bounds = array<i64: 512, 256>}, {transform_indices = @transform_1, window_bounds = array<i64: 256, 128>}, {transform_indices = @transform_2, window_bounds = array<i64: 1, 128>}, {transform_indices = @transform_3, window_bounds = array<i64: 512, 128>}]} {
    %c0 = arith.constant 0 : index
    %c0_0 = arith.constant 0 : index
    %0 = vector.load %arg3[%c0, %c0_0] : memref<512x256xbf16, #tpu.memory_space<vmem>>, vector<512x256xbf16>
    %c0_1 = arith.constant 0 : index
    %c0_2 = arith.constant 0 : index
    %1 = vector.load %arg4[%c0_1, %c0_2] : memref<256x128xbf16, #tpu.memory_space<vmem>>, vector<256x128xbf16>
    %cst = arith.constant dense<0.000000e+00> : vector<512x128xf32>
    %2 = tpu.matmul %0, %1, %cst {dimension_numbers = #tpu.dot_dimension_numbers<[1], [0], [0], [1], [0, 0, 1, 1], [], []>} : vector<512x256xbf16>, vector<256x128xbf16>, vector<512x128xf32> -> vector<512x128xf32>
    %c0_3 = arith.constant 0 : index
    %c0_4 = arith.constant 0 : index
    %3 = vector.load %arg5[%c0_3, %c0_4] : memref<1x128xf32, #tpu.memory_space<vmem>>, vector<1x128xf32>
    %4 = vector.broadcast %3 : vector<1x128xf32> to vector<512x128xf32>
    %5 = arith.addf %2, %4 : vector<512x128xf32>
    %cst_5 = arith.constant 0.000000e+00 : f32
    %6 = vector.broadcast %cst_5 : f32 to vector<512x128xf32>
    %7 = arith.cmpf oge, %5, %6 : vector<512x128xf32>
    %cst_6 = arith.constant 2.000000e-01 : f32
    %8 = vector.broadcast %cst_6 : f32 to vector<512x128xf32>
    %9 = arith.mulf %8, %5 : vector<512x128xf32>
    %10 = arith.select %7, %5, %9 : vector<512x128xi1>, vector<512x128xf32>
    %11 = arith.truncf %10 : vector<512x128xf32> to vector<512x128xbf16>
    %c0_7 = arith.constant 0 : index
    %c0_8 = arith.constant 0 : index
    %12 = vector.load %arg6[%c0_7, %c0_8] : memref<512x128xbf16, #tpu.memory_space<vmem>>, vector<512x128xbf16>
    tpu.vector_store %arg6[%c0_7, %c0_8], %11 {strides = array<i32>} : memref<512x128xbf16, #tpu.memory_space<vmem>>, vector<512x128xbf16>,
    return
  }
  func.func @transform_0(%arg0: i32, %arg1: i32, %arg2: i32) -> (i32, i32) {
    %c0_i32 = arith.constant 0 : i32
    return %arg0, %arg2 : i32, i32
  }
  func.func @transform_1(%arg0: i32, %arg1: i32, %arg2: i32) -> (i32, i32) {
    %c0_i32 = arith.constant 0 : i32
    return %arg2, %arg1 : i32, i32
  }
  func.func @transform_2(%arg0: i32, %arg1: i32, %arg2: i32) -> (i32, i32) {
    %c0_i32 = arith.constant 0 : i32
    %c0_i32_0 = arith.constant 0 : i32
    return %c0_i32, %arg1 : i32, i32
  }
  func.func @transform_3(%arg0: i32, %arg1: i32, %arg2: i32) -> (i32, i32) {
    %c0_i32 = arith.constant 0 : i32
    return %arg0, %arg1 : i32, i32
  }
}

module attributes {stable_mosaic.version = 11 : i64} {
  func.func @conv_mm_single_kernel(%arg0: i32, %arg1: i32, %arg2: i32, %arg3: memref<128x512xbf16, #tpu.memory_space<vmem>>, %arg4: memref<512x128xbf16, #tpu.memory_space<vmem>>, %arg5: memref<1x128xf32, #tpu.memory_space<vmem>>, %arg6: memref<128x128xbf16, #tpu.memory_space<vmem>>) attributes {dimension_semantics = [#tpu.dimension_semantics<parallel>, #tpu.dimension_semantics<parallel>, #tpu.dimension_semantics<arbitrary>], iteration_bounds = array<i64: 1, 1, 1>, scalar_prefetch = 0 : i64, scratch_operands = 0 : i64, tpu.core_type = #tpu.core_type<tc>, window_params = [{transform_indices = @transform_0, window_bounds = array<i64: 128, 512>}, {transform_indices = @transform_1, window_bounds = array<i64: 512, 128>}, {transform_indices = @transform_2, window_bounds = array<i64: 1, 128>}, {transform_indices = @transform_3, window_bounds = array<i64: 128, 128>}]} {
    %c0 = arith.constant 0 : index
    %c0_0 = arith.constant 0 : index
    %0 = vector.load %arg3[%c0, %c0_0] : memref<128x512xbf16, #tpu.memory_space<vmem>>, vector<128x512xbf16>
    %c0_1 = arith.constant 0 : index
    %c0_2 = arith.constant 0 : index
    %1 = vector.load %arg4[%c0_1, %c0_2] : memref<512x128xbf16, #tpu.memory_space<vmem>>, vector<512x128xbf16>
    %cst = arith.constant dense<0.000000e+00> : vector<128x128xf32>
    %2 = tpu.matmul %0, %1, %cst {dimension_numbers = #tpu.dot_dimension_numbers<[1], [0], [0], [1], [0, 0, 1, 1], [], []>} : vector<128x512xbf16>, vector<512x128xbf16>, vector<128x128xf32> -> vector<128x128xf32>
    %c0_3 = arith.constant 0 : index
    %c0_4 = arith.constant 0 : index
    %3 = vector.load %arg5[%c0_3, %c0_4] : memref<1x128xf32, #tpu.memory_space<vmem>>, vector<1x128xf32>
    %4 = vector.broadcast %3 : vector<1x128xf32> to vector<128x128xf32>
    %5 = arith.addf %2, %4 : vector<128x128xf32>
    %cst_5 = arith.constant 0.000000e+00 : f32
    %6 = vector.broadcast %cst_5 : f32 to vector<128x128xf32>
    %7 = arith.cmpf oge, %5, %6 : vector<128x128xf32>
    %cst_6 = arith.constant 2.000000e-01 : f32
    %8 = vector.broadcast %cst_6 : f32 to vector<128x128xf32>
    %9 = arith.mulf %8, %5 : vector<128x128xf32>
    %10 = arith.select %7, %5, %9 : vector<128x128xi1>, vector<128x128xf32>
    %11 = arith.truncf %10 : vector<128x128xf32> to vector<128x128xbf16>
    %c0_7 = arith.constant 0 : index
    %c0_8 = arith.constant 0 : index
    %12 = vector.load %arg6[%c0_7, %c0_8] : memref<128x128xbf16, #tpu.memory_space<vmem>>, vector<128x128xbf16>
    tpu.vector_store %arg6[%c0_7, %c0_8], %11 {strides = array<i32>} : memref<128x128xbf16, #tpu.memory_space<vmem>>, vector<128x128xbf16>,
    return
  }
  func.func @transform_0(%arg0: i32, %arg1: i32, %arg2: i32) -> (i32, i32) {
    %c0_i32 = arith.constant 0 : i32
    return %arg0, %arg2 : i32, i32
  }
  func.func @transform_1(%arg0: i32, %arg1: i32, %arg2: i32) -> (i32, i32) {
    %c0_i32 = arith.constant 0 : i32
    return %arg2, %arg1 : i32, i32
  }
  func.func @transform_2(%arg0: i32, %arg1: i32, %arg2: i32) -> (i32, i32) {
    %c0_i32 = arith.constant 0 : i32
    %c0_i32_0 = arith.constant 0 : i32
    return %c0_i32, %arg1 : i32, i32
  }
  func.func @transform_3(%arg0: i32, %arg1: i32, %arg2: i32) -> (i32, i32) {
    %c0_i32 = arith.constant 0 : i32
    return %arg0, %arg1 : i32, i32
  }
}

module attributes {stable_mosaic.version = 11 : i64} {
  func.func @conv_mm_single_kernel(%arg0: i32, %arg1: i32, %arg2: i32, %arg3: memref<32x2048xbf16, #tpu.memory_space<vmem>>, %arg4: memref<2048x128xbf16, #tpu.memory_space<vmem>>, %arg5: memref<1x128xf32, #tpu.memory_space<vmem>>, %arg6: memref<32x128xbf16, #tpu.memory_space<vmem>>) attributes {dimension_semantics = [#tpu.dimension_semantics<parallel>, #tpu.dimension_semantics<parallel>, #tpu.dimension_semantics<arbitrary>], iteration_bounds = array<i64: 1, 1, 1>, scalar_prefetch = 0 : i64, scratch_operands = 0 : i64, tpu.core_type = #tpu.core_type<tc>, window_params = [{transform_indices = @transform_0, window_bounds = array<i64: 32, 2048>}, {transform_indices = @transform_1, window_bounds = array<i64: 2048, 128>}, {transform_indices = @transform_2, window_bounds = array<i64: 1, 128>}, {transform_indices = @transform_3, window_bounds = array<i64: 32, 128>}]} {
    %c0 = arith.constant 0 : index
    %c0_0 = arith.constant 0 : index
    %0 = vector.load %arg3[%c0, %c0_0] : memref<32x2048xbf16, #tpu.memory_space<vmem>>, vector<32x2048xbf16>
    %c0_1 = arith.constant 0 : index
    %c0_2 = arith.constant 0 : index
    %1 = vector.load %arg4[%c0_1, %c0_2] : memref<2048x128xbf16, #tpu.memory_space<vmem>>, vector<2048x128xbf16>
    %cst = arith.constant dense<0.000000e+00> : vector<32x128xf32>
    %2 = tpu.matmul %0, %1, %cst {dimension_numbers = #tpu.dot_dimension_numbers<[1], [0], [0], [1], [0, 0, 1, 1], [], []>} : vector<32x2048xbf16>, vector<2048x128xbf16>, vector<32x128xf32> -> vector<32x128xf32>
    %c0_3 = arith.constant 0 : index
    %c0_4 = arith.constant 0 : index
    %3 = vector.load %arg5[%c0_3, %c0_4] : memref<1x128xf32, #tpu.memory_space<vmem>>, vector<1x128xf32>
    %4 = vector.broadcast %3 : vector<1x128xf32> to vector<32x128xf32>
    %5 = arith.addf %2, %4 : vector<32x128xf32>
    %cst_5 = arith.constant 0.000000e+00 : f32
    %6 = vector.broadcast %cst_5 : f32 to vector<32x128xf32>
    %7 = arith.cmpf oge, %5, %6 : vector<32x128xf32>
    %cst_6 = arith.constant 2.000000e-01 : f32
    %8 = vector.broadcast %cst_6 : f32 to vector<32x128xf32>
    %9 = arith.mulf %8, %5 : vector<32x128xf32>
    %10 = arith.select %7, %5, %9 : vector<32x128xi1>, vector<32x128xf32>
    %11 = arith.truncf %10 : vector<32x128xf32> to vector<32x128xbf16>
    %c0_7 = arith.constant 0 : index
    %c0_8 = arith.constant 0 : index
    %12 = vector.load %arg6[%c0_7, %c0_8] : memref<32x128xbf16, #tpu.memory_space<vmem>>, vector<32x128xbf16>
    tpu.vector_store %arg6[%c0_7, %c0_8], %11 {strides = array<i32>} : memref<32x128xbf16, #tpu.memory_space<vmem>>, vector<32x128xbf16>,
    return
  }
  func.func @transform_0(%arg0: i32, %arg1: i32, %arg2: i32) -> (i32, i32) {
    %c0_i32 = arith.constant 0 : i32
    return %arg0, %arg2 : i32, i32
  }
  func.func @transform_1(%arg0: i32, %arg1: i32, %arg2: i32) -> (i32, i32) {
    %c0_i32 = arith.constant 0 : i32
    return %arg2, %arg1 : i32, i32
  }
  func.func @transform_2(%arg0: i32, %arg1: i32, %arg2: i32) -> (i32, i32) {
    %c0_i32 = arith.constant 0 : i32
    %c0_i32_0 = arith.constant 0 : i32
    return %c0_i32, %arg1 : i32, i32
  }
  func.func @transform_3(%arg0: i32, %arg1: i32, %arg2: i32) -> (i32, i32) {
    %c0_i32 = arith.constant 0 : i32
    return %arg0, %arg1 : i32, i32
  }
}

module attributes {stable_mosaic.version = 11 : i64} {
  func.func @matvec_kernel(%arg0: i32, %arg1: memref<8x2048xbf16, #tpu.memory_space<vmem>>, %arg2: memref<1x2048xbf16, #tpu.memory_space<vmem>>, %arg3: memref<1x1xf32, #tpu.memory_space<vmem>>, %arg4: memref<8x1xf32, #tpu.memory_space<vmem>>) attributes {dimension_semantics = [#tpu.dimension_semantics<arbitrary>], iteration_bounds = array<i64: 1>, scalar_prefetch = 0 : i64, scratch_operands = 0 : i64, tpu.core_type = #tpu.core_type<tc>, window_params = [{pipeline_mode = #tpu.pipeline_mode<synchronous>, transform_indices = @transform_0, window_bounds = array<i64: 8, 2048>}, {pipeline_mode = #tpu.pipeline_mode<synchronous>, transform_indices = @transform_1, window_bounds = array<i64: 1, 2048>}, {pipeline_mode = #tpu.pipeline_mode<synchronous>, transform_indices = @transform_2, window_bounds = array<i64: 1, 1>}, {pipeline_mode = #tpu.pipeline_mode<synchronous>, transform_indices = @transform_3, window_bounds = array<i64: 8, 1>}]} {
    %c0 = arith.constant 0 : index
    %c0_0 = arith.constant 0 : index
    %0 = vector.load %arg1[%c0, %c0_0] : memref<8x2048xbf16, #tpu.memory_space<vmem>>, vector<8x2048xbf16>
    %1 = arith.extf %0 : vector<8x2048xbf16> to vector<8x2048xf32>
    %c0_1 = arith.constant 0 : index
    %c0_2 = arith.constant 0 : index
    %2 = vector.load %arg2[%c0_1, %c0_2] : memref<1x2048xbf16, #tpu.memory_space<vmem>>, vector<1x2048xbf16>
    %3 = arith.extf %2 : vector<1x2048xbf16> to vector<1x2048xf32>
    %4 = vector.broadcast %3 : vector<1x2048xf32> to vector<8x2048xf32>
    %5 = arith.mulf %1, %4 : vector<8x2048xf32>
    %cst = arith.constant dense<0.000000e+00> : vector<8xf32>
    %6 = vector.multi_reduction <add>, %5, %cst [1] : vector<8x2048xf32> to vector<8xf32>
    %7 = vector.shape_cast %6 : vector<8xf32> to vector<8x1xf32>
    %c0_3 = arith.constant 0 : index
    %c0_4 = arith.constant 0 : index
    %8 = vector.load %arg3[%c0_3, %c0_4] : memref<1x1xf32, #tpu.memory_space<vmem>>, vector<1x1xf32>
    %9 = vector.extract %8[0, 0] : f32 from vector<1x1xf32>
    %10 = vector.broadcast %9 : f32 to vector<8x1xf32>
    %11 = arith.addf %7, %10 : vector<8x1xf32>
    %c0_5 = arith.constant 0 : index
    %c0_6 = arith.constant 0 : index
    %12 = vector.load %arg4[%c0_5, %c0_6] : memref<8x1xf32, #tpu.memory_space<vmem>>, vector<8x1xf32>
    tpu.vector_store %arg4[%c0_5, %c0_6], %11 {strides = array<i32>} : memref<8x1xf32, #tpu.memory_space<vmem>>, vector<8x1xf32>,
    return
  }
  func.func @transform_0(%arg0: i32) -> (i32, i32) {
    %c0_i32 = arith.constant 0 : i32
    %c0_i32_0 = arith.constant 0 : i32
    %c0_i32_1 = arith.constant 0 : i32
    return %c0_i32, %c0_i32_0 : i32, i32
  }
  func.func @transform_1(%arg0: i32) -> (i32, i32) {
    %c0_i32 = arith.constant 0 : i32
    %c0_i32_0 = arith.constant 0 : i32
    %c0_i32_1 = arith.constant 0 : i32
    return %c0_i32, %c0_i32_0 : i32, i32
  }
  func.func @transform_2(%arg0: i32) -> (i32, i32) {
    %c0_i32 = arith.constant 0 : i32
    %c0_i32_0 = arith.constant 0 : i32
    %c0_i32_1 = arith.constant 0 : i32
    return %c0_i32, %c0_i32_0 : i32, i32
  }
  func.func @transform_3(%arg0: i32) -> (i32, i32) {
    %c0_i32 = arith.constant 0 : i32
    %c0_i32_0 = arith.constant 0 : i32
    %c0_i32_1 = arith.constant 0 : i32
    return %c0_i32, %c0_i32_0 : i32, i32
  }
}

</mosaic_0001>

<llo_original>
// kernel: discriminator_forward.7
$region0: #{discriminator_forward.7}
  #allocation0 [shape = 'u32[]', space=smem, size = 0x4, offset = 0x4, fixed_abs, tag = 'smem constant byte address 0x4 - core index']
  #allocation1 [shape = 'u32[144,128]{1,0:T(1,128)}', space=vmem, size = 0x12000, scoped, tag = 'internal scratch']
  %s0 = inlined_call_operand.vmem [shape: bf16[32768,240], index: 0, kind: input, shape index: {}]
  %s1 = inlined_call_operand.vmem [shape: bf16[240,128], index: 1, kind: input, shape index: {}]
  %s2 = inlined_call_operand.vmem [shape: f32[1,128], index: 2, kind: input, shape index: {}]
  %s3 = inlined_call_operand.vmem [shape: bf16[32768,128], index: 3, kind: output, shape index: {}]
  %s4 = sld [smem:[#allocation0]]
  $region45: #{discriminator_forward.7} parent=0
    _
  %s6 = ssub.s32 1, %s4
  %s7 = scalar_select 0, %s6, %s4
  loop: start=0, step=1, limit=66
  $region2: #{discriminator_forward.7} parent=0 // loop_pre_header
    _
  $region3: #{discriminator_forward.7} parent=0 // loop_header
    %s9 = sphi 0, %s13
    %p10 = scmp.ge.s32.totalorder %s9, 66
    %s16 = sphi 0, %s35
    %s17 = sphi 0, %s31
    %s18 = sphi 0, %s27
    %s19 = sphi 0, %s16
    %s20 = sphi 0, %s17
    %s21 = sphi 0, %s18
    %s22 = sphi 0, %s19
    %s23 = sphi 0, %s20
    %s24 = sphi 0, %s21
    %s40 = sphi 0, %s42
    %s43 = sphi 0, %s40
    %s44 = sphi 0, %s43
    %s60 = sphi 0, %s44
    %s68 = sphi 0, %s70
    %s71 = sphi 0, %s68
    %s72 = sphi 0, %s71
    %s88 = sphi 0, %s72
    %s94 = sphi 0, %s96
    %s97 = sphi 0, %s94
    %s98 = sphi 0, %s97
    %s114 = sphi 0, %s98
    %s122 = sphi 0, %s124
    %s125 = sphi 0, %s122
    %s126 = sphi 0, %s125
    %s142 = sphi 0, %s126
  $region4: #{discriminator_forward.7} parent=0 // loop_header_branch
    %12 = sbr.rel (%p10) target = $region8
  $region5: #{discriminator_forward.7} parent=0 // loop_body
    %s14 = ssub.s32 %s9, 1
    %s15 = ssub.s32 %s9, 2
    %s25 = sadd.s32 1, %s18
    %p26 = scmp.ge.s32.totalorder %s25, 1
    %s27 = scalar_select %p26, 0, %s25
    %s28 = sadd.s32 1, %s17
    %s29 = scalar_select %p26, %s28, %s17
    %p30 = scmp.ge.s32.totalorder %s29, 1
    %s31 = scalar_select %p30, 0, %s29
    %s32 = sadd.s32 1, %s16
    %s33 = scalar_select %p30, %s32, %s16
    %p34 = scmp.ge.s32.totalorder %s33, 64
    %s35 = scalar_select %p34, 0, %s33
    %s36 = ssub.s32 %s16, %s35
    %s37 = ssub.s32 %s18, %s27
    %s38 = sor.u32 %s36, %s37
    %p39 = scmp.eq.s32.totalorder %s38, 0
    %s41 = sadd.s32 %s40, 1
    %s42 = scalar_select %p39, %s40, %s41
    %p45 = pneg %p39
    %p46 = scmp.eq.s32.totalorder %s9, 63
    %p47 = por %p45, %p46
    %p48 = scmp.ne.s32.totalorder %s40, %s43
    %p49 = scmp.eq.s32.totalorder %s9, 0
    %p50 = por %p48, %p49
    %p51 = scmp.ne.s32.totalorder %s40, %s43
    %p52 = scmp.eq.s32.totalorder %s14, 63
    %p53 = por %p51, %p52
    %p54 = scmp.ne.s32.totalorder %s43, %s44
    %p55 = scmp.eq.s32.totalorder %s14, 0
    %p56 = por %p54, %p55
    %p57 = scmp.ne.s32.totalorder %s43, %s44
    %p58 = scmp.eq.s32.totalorder %s15, 63
    %p59 = por %p57, %p58
    %p61 = scmp.ne.s32.totalorder %s44, %s60
    %p62 = scmp.eq.s32.totalorder %s15, 0
    %p63 = por %p61, %p62
    %s64 = ssub.s32 %s18, %s27
    %s65 = ssub.s32 %s17, %s31
    %s66 = sor.u32 %s64, %s65
    %p67 = scmp.eq.s32.totalorder %s66, 0
    %s69 = sadd.s32 %s68, 1
    %s70 = scalar_select %p67, %s68, %s69
    %p73 = pneg %p67
    %p74 = scmp.eq.s32.totalorder %s9, 63
    %p75 = por %p73, %p74
    %p76 = scmp.ne.s32.totalorder %s68, %s71
    %p77 = scmp.eq.s32.totalorder %s9, 0
    %p78 = por %p76, %p77
    %p79 = scmp.ne.s32.totalorder %s68, %s71
    %p80 = scmp.eq.s32.totalorder %s14, 63
    %p81 = por %p79, %p80
    %p82 = scmp.ne.s32.totalorder %s71, %s72
    %p83 = scmp.eq.s32.totalorder %s14, 0
    %p84 = por %p82, %p83
    %p85 = scmp.ne.s32.totalorder %s71, %s72
    %p86 = scmp.eq.s32.totalorder %s15, 63
    %p87 = por %p85, %p86
    %p89 = scmp.ne.s32.totalorder %s72, %s88
    %p90 = scmp.eq.s32.totalorder %s15, 0
    %p91 = por %p89, %p90
    %s92 = ssub.s32 %s17, %s31
    %p93 = scmp.eq.s32.totalorder %s92, 0
    %s95 = sadd.s32 %s94, 1
    %s96 = scalar_select %p93, %s94, %s95
    %p99 = pneg %p93
    %p100 = scmp.eq.s32.totalorder %s9, 63
    %p101 = por %p99, %p100
    %p102 = scmp.ne.s32.totalorder %s94, %s97
    %p103 = scmp.eq.s32.totalorder %s9, 0
    %p104 = por %p102, %p103
    %p105 = scmp.ne.s32.totalorder %s94, %s97
    %p106 = scmp.eq.s32.totalorder %s14, 63
    %p107 = por %p105, %p106
    %p108 = scmp.ne.s32.totalorder %s97, %s98
    %p109 = scmp.eq.s32.totalorder %s14, 0
    %p110 = por %p108, %p109
    %p111 = scmp.ne.s32.totalorder %s97, %s98
    %p112 = scmp.eq.s32.totalorder %s15, 63
    %p113 = por %p111, %p112
    %p115 = scmp.ne.s32.totalorder %s98, %s114
    %p116 = scmp.eq.s32.totalorder %s15, 0
    %p117 = por %p115, %p116
    %s118 = ssub.s32 %s16, %s35
    %s119 = ssub.s32 %s17, %s31
    %s120 = sor.u32 %s118, %s119
    %p121 = scmp.eq.s32.totalorder %s120, 0
    %s123 = sadd.s32 %s122, 1
    %s124 = scalar_select %p121, %s122, %s123
    %p127 = pneg %p121
    %p128 = scmp.eq.s32.totalorder %s9, 63
    %p129 = por %p127, %p128
    %p130 = scmp.ne.s32.totalorder %s122, %s125
    %p131 = scmp.eq.s32.totalorder %s9, 0
    %p132 = por %p130, %p131
    %p133 = scmp.ne.s32.totalorder %s122, %s125
    %p134 = scmp.eq.s32.totalorder %s14, 63
    %p135 = por %p133, %p134
    %p136 = scmp.ne.s32.totalorder %s125, %s126
    %p137 = scmp.eq.s32.totalorder %s14, 0
    %p138 = por %p136, %p137
    %p139 = scmp.ne.s32.totalorder %s125, %s126
    %p140 = scmp.eq.s32.totalorder %s15, 63
    %p141 = por %p139, %p140
    %p143 = scmp.ne.s32.totalorder %s126, %s142
    %p144 = scmp.eq.s32.totalorder %s15, 0
    %p145 = por %p143, %p144
    %p146 = scmp.le.s32.totalorder 1, %s9
    %p147 = scmp.lt.s32.totalorder %s9, 65
    %p148 = pnand %p146, %p147
    %p149 = pneg %p148
    // Predicated region
    $region9: #{discriminator_forward.7} parent=5 // pred_check
      _
    $region10: #{discriminator_forward.7} parent=5 // pred_check_branch
      %151 = sbr.rel (%p148) target = $region12
    $region11: #{discriminator_forward.7} parent=5 // pred_region
      %s152 = ssub.s32 %s9, 1
      // Predicated region
      $region13: #{discriminator_forward.7} parent=11 // pred_check
        %p153 = pneg %p84
      $region14: #{discriminator_forward.7} parent=11 // pred_check_branch
        %155 = sbr.rel (%p153) target = $region16
      $region15: #{discriminator_forward.7} parent=11 // pred_region
        %s156 = smul.u32 30, %s21
        %p157 = scmp.lt.s32.totalorder %s156, 29
        %s158 = scalar_select %p157, %s156, 29
        %p159 = scmp.lt.s32.totalorder %s20, 0
        %s160 = scalar_select %p159, %s20, 0
        %s161 = sadd.s32 %s160, %s158
        %s162 = smul.addr %s161, 4
        %s163 = scalar_lea.vmem %s1, %s162
        %s164 = smul.u32 30, %s21
      $region16: #{discriminator_forward.7} parent=11 // pred_fallthru
        _
      // Predicated region
      $region17: #{discriminator_forward.7} parent=11 // pred_check
        %p165 = pneg %p110
      $region18: #{discriminator_forward.7} parent=11 // pred_check_branch
        %167 = sbr.rel (%p165) target = $region20
      $region19: #{discriminator_forward.7} parent=11 // pred_region
        %p168 = scmp.lt.s32.totalorder %s20, 0
        %s169 = scalar_select %p168, %s20, 0
        %s170 = scalar_lea.vmem %s2, %s169
      $region20: #{discriminator_forward.7} parent=11 // pred_fallthru
        _
    $region12: #{discriminator_forward.7} parent=5 // pred_fallthru
      _
    %p171 = scmp.lt.s32.totalorder %s9, 64
    // Predicated region
    $region21: #{discriminator_forward.7} parent=5 // pred_check
      %p172 = pneg %p171
    $region22: #{discriminator_forward.7} parent=5 // pred_check_branch
      %174 = sbr.rel (%p172) target = $region24
    $region23: #{discriminator_forward.7} parent=5 // pred_region
      // Predicated region
      $region25: #{discriminator_forward.7} parent=23 // pred_check
        %p175 = pneg %p50
      $region26: #{discriminator_forward.7} parent=23 // pred_check_branch
        %177 = sbr.rel (%p175) target = $region28
      $region27: #{discriminator_forward.7} parent=23 // pred_region
        %s178 = smul.u32 64, %s16
        %s179 = smul.u32 2, %s18
        %p180 = scmp.lt.s32.totalorder %s178, 4095
        %s181 = scalar_select %p180, %s178, 4095
        %p182 = scmp.lt.s32.totalorder %s179, 1
        %s183 = scalar_select %p182, %s179, 1
        %s184 = smul.addr %s181, 2
        %s185 = sadd.s32 %s183, %s184
        %s186 = smul.addr %s185, 4
        %s187 = scalar_lea.vmem %s0, %s186
        %s188 = smul.u32 64, %s16
        %s189 = smul.u32 2, %s18
      $region28: #{discriminator_forward.7} parent=23 // pred_fallthru
        _
    $region24: #{discriminator_forward.7} parent=5 // pred_fallthru
      _
    %p190 = scmp.le.s32.totalorder 1, %s9
    %p191 = scmp.lt.s32.totalorder %s9, 65
    %p192 = pnand %p190, %p191
    %p193 = pneg %p192
    // Predicated region
    $region29: #{discriminator_forward.7} parent=5 // pred_check
      _
    $region30: #{discriminator_forward.7} parent=5 // pred_check_branch
      %195 = sbr.rel (%p192) target = $region32
    $region31: #{discriminator_forward.7} parent=5 // pred_region
      %s196 = ssub.s32 %s9, 1
      %s197 = smul.u32 64, %s19
      %s198 = smul.u32 2, %s21
      %p199 = scmp.lt.s32.totalorder %s197, 4095
      %s200 = scalar_select %p199, %s197, 4095
      %p201 = scmp.lt.s32.totalorder %s198, 1
      %s202 = scalar_select %p201, %s198, 1
      %s203 = smul.addr %s200, 2
      %s204 = sadd.s32 %s202, %s203
      %s205 = smul.addr %s204, 4
      %s206 = scalar_lea.vmem %s0, %s205
      %p207 = pneg %p56
      %p208 = pneg %p53
      %s209 = smul.u32 30, %s21
      %p210 = scmp.lt.s32.totalorder %s209, 29
      %s211 = scalar_select %p210, %s209, 29
      %p212 = scmp.lt.s32.totalorder %s20, 0
      %s213 = scalar_select %p212, %s20, 0
      %s214 = sadd.s32 %s213, %s211
      %s215 = smul.addr %s214, 4
      %s216 = scalar_lea.vmem %s1, %s215
      %p217 = pneg %p84
      %p218 = pneg %p81
      %p219 = scmp.lt.s32.totalorder %s20, 0
      %s220 = scalar_select %p219, %s20, 0
      %s221 = scalar_lea.vmem %s2, %s220
      %p222 = pneg %p110
      %p223 = pneg %p107
      %p224 = pneg %p138
      %p225 = pneg %p135
      %s226 = smul.u32 64, %s19
      %p227 = scmp.lt.s32.totalorder %s226, 4095
      %s228 = scalar_select %p227, %s226, 4095
      %p229 = scmp.lt.s32.totalorder %s20, 0
      %s230 = scalar_select %p229, %s20, 0
      %s231 = sadd.s32 %s230, %s228
      %s232 = smul.addr %s231, 4
      %s233 = scalar_lea.vmem %s3, %s232
      %s234 = smul.u32 64, %s19
      %s235 = smul.u32 2, %s21
      %p236 = scmp.lt.s32.totalorder %s234, 4095
      %s237 = scalar_select %p236, %s234, 4095
      %p238 = scmp.lt.s32.totalorder %s235, 1
      %s239 = scalar_select %p238, %s235, 1
      %s240 = smul.addr %s237, 2
      %s241 = sadd.s32 %s239, %s240
      %s242 = smul.addr %s241, 4
      %s243 = scalar_lea.vmem %s0, %s242
      %s244 = smul.u32 64, %s19
      %s245 = smul.u32 2, %s21
      %s246 = smul.u32 30, %s21
      %p247 = scmp.lt.s32.totalorder %s246, 29
      %s248 = scalar_select %p247, %s246, 29
      %p249 = scmp.lt.s32.totalorder %s20, 0
      %s250 = scalar_select %p249, %s20, 0
      %s251 = sadd.s32 %s250, %s248
      %s252 = smul.addr %s251, 4
      %s253 = scalar_lea.vmem %s1, %s252
      %s254 = smul.u32 30, %s21
      %p255 = scmp.lt.s32.totalorder %s20, 0
      %s256 = scalar_select %p255, %s20, 0
      %s257 = scalar_lea.vmem %s2, %s256
      %s258 = smul.u32 64, %s19
      %p259 = scmp.lt.s32.totalorder %s258, 4095
      %s260 = scalar_select %p259, %s258, 4095
      %p261 = scmp.lt.s32.totalorder %s20, 0
      %s262 = scalar_select %p261, %s20, 0
      %s263 = sadd.s32 %s262, %s260
      %s264 = smul.addr %s263, 4
      %s265 = scalar_lea.vmem %s3, %s264
      %s266 = smul.u32 64, %s19
      %v268 = vld [vmem:[%s243] sm:$0xff]
      %v269 = vld [vmem:[%s243 + $0x8] sm:$0xff]
      %v270 = vld [vmem:[%s243 + $0x10] sm:$0xff]
      %v271 = vld [vmem:[%s243 + $0x18] sm:$0xff]
      %v272 = vld [vmem:[%s243 + $0x20] sm:$0xff]
      %v273 = vld [vmem:[%s243 + $0x28] sm:$0xff]
      %v274 = vld [vmem:[%s243 + $0x30] sm:$0xff]
      %v275 = vld [vmem:[%s243 + $0x38] sm:$0xff]
      %v276 = vld [vmem:[%s243 + $0x40] sm:$0xff]
      %v277 = vld [vmem:[%s243 + $0x48] sm:$0xff]
      %v278 = vld [vmem:[%s243 + $0x50] sm:$0xff]
      %v279 = vld [vmem:[%s243 + $0x58] sm:$0xff]
      %v280 = vld [vmem:[%s243 + $0x60] sm:$0xff]
      %v281 = vld [vmem:[%s243 + $0x68] sm:$0xff]
      %v282 = vld [vmem:[%s243 + $0x70] sm:$0xff]
      %v283 = vld [vmem:[%s243 + $0x78] sm:$0xff]
      %v284 = vld [vmem:[%s243 + $0x80] sm:$0xff]
      %v285 = vld [vmem:[%s243 + $0x88] sm:$0xff]
      %v286 = vld [vmem:[%s243 + $0x90] sm:$0xff]
      %v287 = vld [vmem:[%s243 + $0x98] sm:$0xff]
      %v288 = vld [vmem:[%s243 + $0xa0] sm:$0xff]
      %v289 = vld [vmem:[%s243 + $0xa8] sm:$0xff]
      %v290 = vld [vmem:[%s243 + $0xb0] sm:$0xff]
      %v291 = vld [vmem:[%s243 + $0xb8] sm:$0xff]
      %v292 = vld [vmem:[%s243 + $0xc0] sm:$0xff]
      %v293 = vld [vmem:[%s243 + $0xc8] sm:$0xff]
      %v294 = vld [vmem:[%s243 + $0xd0] sm:$0xff]
      %v295 = vld [vmem:[%s243 + $0xd8] sm:$0xff]
      %v296 = vld [vmem:[%s243 + $0xe0] sm:$0xff]
      %v297 = vld [vmem:[%s243 + $0xe8] sm:$0xff]
      %v298 = vld [vmem:[%s243 + $0xf0] sm:$0xff]
      %v299 = vld [vmem:[%s243 + $0xf8] sm:$0xff]
      %v300 = vld [vmem:[%s243 + $0x100] sm:$0xff]
      %v301 = vld [vmem:[%s243 + $0x108] sm:$0xff]
      %v302 = vld [vmem:[%s243 + $0x110] sm:$0xff]
      %v303 = vld [vmem:[%s243 + $0x118] sm:$0xff]
      %v304 = vld [vmem:[%s243 + $0x120] sm:$0xff]
      %v305 = vld [vmem:[%s243 + $0x128] sm:$0xff]
      %v306 = vld [vmem:[%s243 + $0x130] sm:$0xff]
      %v307 = vld [vmem:[%s243 + $0x138] sm:$0xff]
      %v308 = vld [vmem:[%s243 + $0x140] sm:$0xff]
      %v309 = vld [vmem:[%s243 + $0x148] sm:$0xff]
      %v310 = vld [vmem:[%s243 + $0x150] sm:$0xff]
      %v311 = vld [vmem:[%s243 + $0x158] sm:$0xff]
      %v312 = vld [vmem:[%s243 + $0x160] sm:$0xff]
      %v313 = vld [vmem:[%s243 + $0x168] sm:$0xff]
      %v314 = vld [vmem:[%s243 + $0x170] sm:$0xff]
      %v315 = vld [vmem:[%s243 + $0x178] sm:$0xff]
      %v316 = vld [vmem:[%s243 + $0x180] sm:$0xff]
      %v317 = vld [vmem:[%s243 + $0x188] sm:$0xff]
      %v318 = vld [vmem:[%s243 + $0x190] sm:$0xff]
      %v319 = vld [vmem:[%s243 + $0x198] sm:$0xff]
      %v320 = vld [vmem:[%s243 + $0x1a0] sm:$0xff]
      %v321 = vld [vmem:[%s243 + $0x1a8] sm:$0xff]
      %v322 = vld [vmem:[%s243 + $0x1b0] sm:$0xff]
      %v323 = vld [vmem:[%s243 + $0x1b8] sm:$0xff]
      %v324 = vld [vmem:[%s243 + $0x1c0] sm:$0xff]
      %v325 = vld [vmem:[%s243 + $0x1c8] sm:$0xff]
      %v326 = vld [vmem:[%s243 + $0x1d0] sm:$0xff]
      %v327 = vld [vmem:[%s243 + $0x1d8] sm:$0xff]
      %v328 = vld [vmem:[%s243 + $0x1e0] sm:$0xff]
      %v329 = vld [vmem:[%s243 + $0x1e8] sm:$0xff]
      %v330 = vld [vmem:[%s243 + $0x1f0] sm:$0xff]
      %v331 = vld [vmem:[%s243 + $0x1f8] sm:$0xff]
      %v332 = vld [vmem:[%s253] sm:$0xf]
      %v333 = vld [vmem:[%s253 + $0x4] sm:$0xf]
      %v334 = vld [vmem:[%s253 + $0x8] sm:$0xf]
      %v335 = vld [vmem:[%s253 + $0xc] sm:$0xf]
      %v336 = vld [vmem:[%s253 + $0x10] sm:$0xf]
      %v337 = vld [vmem:[%s253 + $0x14] sm:$0xf]
      %v338 = vld [vmem:[%s253 + $0x18] sm:$0xf]
      %v339 = vld [vmem:[%s253 + $0x1c] sm:$0xf]
      %v340 = vld [vmem:[%s253 + $0x20] sm:$0xf]
      %v341 = vld [vmem:[%s253 + $0x24] sm:$0xf]
      %v342 = vld [vmem:[%s253 + $0x28] sm:$0xf]
      %v343 = vld [vmem:[%s253 + $0x2c] sm:$0xf]
      %v344 = vld [vmem:[%s253 + $0x30] sm:$0xf]
      %v345 = vld [vmem:[%s253 + $0x34] sm:$0xf]
      %v346 = vld [vmem:[%s253 + $0x38] sm:$0xf]
      %v347 = vld [vmem:[%s253 + $0x3c] sm:$0xf]
      %v348 = vld [vmem:[%s253 + $0x40] sm:$0xf]
      %v349 = vld [vmem:[%s253 + $0x44] sm:$0xf]
      %v350 = vld [vmem:[%s253 + $0x48] sm:$0xf]
      %v351 = vld [vmem:[%s253 + $0x4c] sm:$0xf]
      %v352 = vld [vmem:[%s253 + $0x50] sm:$0xf]
      %v353 = vld [vmem:[%s253 + $0x54] sm:$0xf]
      %v354 = vld [vmem:[%s253 + $0x58] sm:$0xf]
      %v355 = vld [vmem:[%s253 + $0x5c] sm:$0xf]
      %v356 = vld [vmem:[%s253 + $0x60] sm:$0xf]
      %v357 = vld [vmem:[%s253 + $0x64] sm:$0xf]
      %v358 = vld [vmem:[%s253 + $0x68] sm:$0xf]
      %v359 = vld [vmem:[%s253 + $0x6c] sm:$0xf]
      %v360 = vld [vmem:[%s253 + $0x70] sm:$0xf]
      %v361 = vld [vmem:[%s253 + $0x74] sm:$0xf]
      %v362 = vld [vmem:[%s257] sm:$0x1]
      %v364 = vlaneseq
      %v365 = vshrl.u32 %v364, 7
      %v366 = vsub.s32 0, %v365
      %v367 = vrot.slane %v362, %v366
      %v433 = vunpack.c.l.b16 %v268
      %v434 = vunpack.c.h.b16 %v268
      %v435 = vunpack.c.l.b16 %v269
      %v436 = vunpack.c.h.b16 %v269
      %v437 = vunpack.c.l.b16 %v270
      %v438 = vunpack.c.h.b16 %v270
      %v439 = vunpack.c.l.b16 %v271
      %v440 = vunpack.c.h.b16 %v271
      %v441 = vunpack.c.l.b16 %v272
      %v442 = vunpack.c.h.b16 %v272
      %v443 = vunpack.c.l.b16 %v273
      %v444 = vunpack.c.h.b16 %v273
      %v445 = vunpack.c.l.b16 %v274
      %v446 = vunpack.c.h.b16 %v274
      %v447 = vunpack.c.l.b16 %v275
      %v448 = vunpack.c.h.b16 %v275
      %v449 = vunpack.c.l.b16 %v276
      %v450 = vunpack.c.h.b16 %v276
      %v451 = vunpack.c.l.b16 %v277
      %v452 = vunpack.c.h.b16 %v277
      %v453 = vunpack.c.l.b16 %v278
      %v454 = vunpack.c.h.b16 %v278
      %v455 = vunpack.c.l.b16 %v279
      %v456 = vunpack.c.h.b16 %v279
      %v457 = vunpack.c.l.b16 %v280
      %v458 = vunpack.c.h.b16 %v280
      %v459 = vunpack.c.l.b16 %v281
      %v460 = vunpack.c.h.b16 %v281
      %v461 = vunpack.c.l.b16 %v282
      %v462 = vunpack.c.h.b16 %v282
      %v463 = vunpack.c.l.b16 %v283
      %v464 = vunpack.c.h.b16 %v283
      %v465 = vunpack.c.l.b16 %v284
      %v466 = vunpack.c.h.b16 %v284
      %v467 = vunpack.c.l.b16 %v285
      %v468 = vunpack.c.h.b16 %v285
      %v469 = vunpack.c.l.b16 %v286
      %v470 = vunpack.c.h.b16 %v286
      %v471 = vunpack.c.l.b16 %v287
      %v472 = vunpack.c.h.b16 %v287
      %v473 = vunpack.c.l.b16 %v288
      %v474 = vunpack.c.h.b16 %v288
      %v475 = vunpack.c.l.b16 %v289
      %v476 = vunpack.c.h.b16 %v289
      %v477 = vunpack.c.l.b16 %v290
      %v478 = vunpack.c.h.b16 %v290
      %v479 = vunpack.c.l.b16 %v291
      %v480 = vunpack.c.h.b16 %v291
      %v481 = vunpack.c.l.b16 %v292
      %v482 = vunpack.c.h.b16 %v292
      %v483 = vunpack.c.l.b16 %v293
      %v484 = vunpack.c.h.b16 %v293
      %v485 = vunpack.c.l.b16 %v294
      %v486 = vunpack.c.h.b16 %v294
      %v487 = vunpack.c.l.b16 %v295
      %v488 = vunpack.c.h.b16 %v295
      %v489 = vunpack.c.l.b16 %v296
      %v490 = vunpack.c.h.b16 %v296
      %v491 = vunpack.c.l.b16 %v297
      %v492 = vunpack.c.h.b16 %v297
      %v493 = vunpack.c.l.b16 %v298
      %v494 = vunpack.c.h.b16 %v298
      %v495 = vunpack.c.l.b16 %v299
      %v496 = vunpack.c.h.b16 %v299
      %v497 = vunpack.c.l.b16 %v300
      %v498 = vunpack.c.h.b16 %v300
      %v499 = vunpack.c.l.b16 %v301
      %v500 = vunpack.c.h.b16 %v301
      %v501 = vunpack.c.l.b16 %v302
      %v502 = vunpack.c.h.b16 %v302
      %v503 = vunpack.c.l.b16 %v303
      %v504 = vunpack.c.h.b16 %v303
      %v505 = vunpack.c.l.b16 %v304
      %v506 = vunpack.c.h.b16 %v304
      %v507 = vunpack.c.l.b16 %v305
      %v508 = vunpack.c.h.b16 %v305
      %v509 = vunpack.c.l.b16 %v306
      %v510 = vunpack.c.h.b16 %v306
      %v511 = vunpack.c.l.b16 %v307
      %v512 = vunpack.c.h.b16 %v307
      %v513 = vunpack.c.l.b16 %v308
      %v514 = vunpack.c.h.b16 %v308
      %v515 = vunpack.c.l.b16 %v309
      %v516 = vunpack.c.h.b16 %v309
      %v517 = vunpack.c.l.b16 %v310
      %v518 = vunpack.c.h.b16 %v310
      %v519 = vunpack.c.l.b16 %v311
      %v520 = vunpack.c.h.b16 %v311
      %v521 = vunpack.c.l.b16 %v312
      %v522 = vunpack.c.h.b16 %v312
      %v523 = vunpack.c.l.b16 %v313
      %v524 = vunpack.c.h.b16 %v313
      %v525 = vunpack.c.l.b16 %v314
      %v526 = vunpack.c.h.b16 %v314
      %v527 = vunpack.c.l.b16 %v315
      %v528 = vunpack.c.h.b16 %v315
      %v529 = vunpack.c.l.b16 %v316
      %v530 = vunpack.c.h.b16 %v316
      %v531 = vunpack.c.l.b16 %v317
      %v532 = vunpack.c.h.b16 %v317
      %v533 = vunpack.c.l.b16 %v318
      %v534 = vunpack.c.h.b16 %v318
      %v535 = vunpack.c.l.b16 %v319
      %v536 = vunpack.c.h.b16 %v319
      %v537 = vunpack.c.l.b16 %v320
      %v538 = vunpack.c.h.b16 %v320
      %v539 = vunpack.c.l.b16 %v321
      %v540 = vunpack.c.h.b16 %v321
      %v541 = vunpack.c.l.b16 %v322
      %v542 = vunpack.c.h.b16 %v322
      %v543 = vunpack.c.l.b16 %v323
      %v544 = vunpack.c.h.b16 %v323
      %v545 = vunpack.c.l.b16 %v324
      %v546 = vunpack.c.h.b16 %v324
      %v547 = vunpack.c.l.b16 %v325
      %v548 = vunpack.c.h.b16 %v325
      %v549 = vunpack.c.l.b16 %v326
      %v550 = vunpack.c.h.b16 %v326
      %v551 = vunpack.c.l.b16 %v327
      %v552 = vunpack.c.h.b16 %v327
      %v553 = vunpack.c.l.b16 %v328
      %v554 = vunpack.c.h.b16 %v328
      %v555 = vunpack.c.l.b16 %v329
      %v556 = vunpack.c.h.b16 %v329
      %v557 = vunpack.c.l.b16 %v330
      %v558 = vunpack.c.h.b16 %v330
      %v559 = vunpack.c.l.b16 %v331
      %v560 = vunpack.c.h.b16 %v331
      %v561 = vpack.c.b16 %v435, %v433
      %v562 = vpack.c.b16 %v436, %v434
      %v563 = vpack.c.b16 %v439, %v437
      %v564 = vpack.c.b16 %v440, %v438
      %v565 = vpack.c.b16 %v443, %v441
      %v566 = vpack.c.b16 %v444, %v442
      %v567 = vpack.c.b16 %v447, %v445
      %v568 = vpack.c.b16 %v448, %v446
      %v569 = vpack.c.b16 %v451, %v449
      %v570 = vpack.c.b16 %v452, %v450
      %v571 = vpack.c.b16 %v455, %v453
      %v572 = vpack.c.b16 %v456, %v454
      %v573 = vpack.c.b16 %v459, %v457
      %v574 = vpack.c.b16 %v460, %v458
      %v575 = vpack.c.b16 %v463, %v461
      %v576 = vpack.c.b16 %v464, %v462
      %v577 = vpack.c.b16 %v467, %v465
      %v578 = vpack.c.b16 %v468, %v466
      %v579 = vpack.c.b16 %v471, %v469
      %v580 = vpack.c.b16 %v472, %v470
      %v581 = vpack.c.b16 %v475, %v473
      %v582 = vpack.c.b16 %v476, %v474
      %v583 = vpack.c.b16 %v479, %v477
      %v584 = vpack.c.b16 %v480, %v478
      %v585 = vpack.c.b16 %v483, %v481
      %v586 = vpack.c.b16 %v484, %v482
      %v587 = vpack.c.b16 %v487, %v485
      %v588 = vpack.c.b16 %v488, %v486
      %v589 = vpack.c.b16 %v491, %v489
      %v590 = vpack.c.b16 %v492, %v490
      %v591 = vpack.c.b16 %v495, %v493
      %v592 = vpack.c.b16 %v496, %v494
      %v593 = vpack.c.b16 %v499, %v497
      %v594 = vpack.c.b16 %v500, %v498
      %v595 = vpack.c.b16 %v503, %v501
      %v596 = vpack.c.b16 %v504, %v502
      %v597 = vpack.c.b16 %v507, %v505
      %v598 = vpack.c.b16 %v508, %v506
      %v599 = vpack.c.b16 %v511, %v509
      %v600 = vpack.c.b16 %v512, %v510
      %v601 = vpack.c.b16 %v515, %v513
      %v602 = vpack.c.b16 %v516, %v514
      %v603 = vpack.c.b16 %v519, %v517
      %v604 = vpack.c.b16 %v520, %v518
      %v605 = vpack.c.b16 %v523, %v521
      %v606 = vpack.c.b16 %v524, %v522
      %v607 = vpack.c.b16 %v527, %v525
      %v608 = vpack.c.b16 %v528, %v526
      %v609 = vpack.c.b16 %v531, %v529
      %v610 = vpack.c.b16 %v532, %v530
      %v611 = vpack.c.b16 %v535, %v533
      %v612 = vpack.c.b16 %v536, %v534
      %v613 = vpack.c.b16 %v539, %v537
      %v614 = vpack.c.b16 %v540, %v538
      %v615 = vpack.c.b16 %v543, %v541
      %v616 = vpack.c.b16 %v544, %v542
      %v617 = vpack.c.b16 %v547, %v545
      %v618 = vpack.c.b16 %v548, %v546
      %v619 = vpack.c.b16 %v551, %v549
      %v620 = vpack.c.b16 %v552, %v550
      %v621 = vpack.c.b16 %v555, %v553
      %v622 = vpack.c.b16 %v556, %v554
      %v623 = vpack.c.b16 %v559, %v557
      %v624 = vpack.c.b16 %v560, %v558
      %v687 = vunpack.c.l.b16 %v332
      %v688 = vunpack.c.l.b16 %v333
      %v689 = vunpack.c.l.b16 %v334
      %v690 = vunpack.c.l.b16 %v335
      %v691 = vunpack.c.l.b16 %v336
      %v692 = vunpack.c.l.b16 %v337
      %v693 = vunpack.c.l.b16 %v338
      %v694 = vunpack.c.l.b16 %v339
      %v695 = vunpack.c.l.b16 %v340
      %v696 = vunpack.c.l.b16 %v341
      %v697 = vunpack.c.l.b16 %v342
      %v698 = vunpack.c.l.b16 %v343
      %v699 = vunpack.c.l.b16 %v344
      %v700 = vunpack.c.l.b16 %v345
      %v701 = vunpack.c.l.b16 %v346
      %v702 = vunpack.c.l.b16 %v347
      %v703 = vunpack.c.l.b16 %v348
      %v704 = vunpack.c.l.b16 %v349
      %v705 = vunpack.c.l.b16 %v350
      %v706 = vunpack.c.l.b16 %v351
      %v707 = vunpack.c.l.b16 %v352
      %v708 = vunpack.c.l.b16 %v353
      %v709 = vunpack.c.l.b16 %v354
      %v710 = vunpack.c.l.b16 %v355
      %v711 = vunpack.c.l.b16 %v356
      %v712 = vunpack.c.l.b16 %v357
      %v713 = vunpack.c.l.b16 %v358
      %v714 = vunpack.c.l.b16 %v359
      %v715 = vunpack.c.l.b16 %v360
      %v716 = vunpack.c.l.b16 %v361
      %v717 = vpack.c.b16 %v688, %v687
      %v718 = vpack.c.b16 %v690, %v689
      %v719 = vpack.c.b16 %v692, %v691
      %v720 = vpack.c.b16 %v694, %v693
      %v721 = vpack.c.b16 %v696, %v695
      %v722 = vpack.c.b16 %v698, %v697
      %v723 = vpack.c.b16 %v700, %v699
      %v724 = vpack.c.b16 %v702, %v701
      %v725 = vpack.c.b16 %v704, %v703
      %v726 = vpack.c.b16 %v706, %v705
      %v727 = vpack.c.b16 %v708, %v707
      %v728 = vpack.c.b16 %v710, %v709
      %v729 = vpack.c.b16 %v712, %v711
      %v730 = vpack.c.b16 %v714, %v713
      %v731 = vpack.c.b16 %v716, %v715
      %vm747 = vcmask 916480
      %v749 = vsel %vm747, %v562, 0
      %v752 = vsel %vm747, %v564, 0
      %v755 = vsel %vm747, %v566, 0
      %v758 = vsel %vm747, %v568, 0
      %v761 = vsel %vm747, %v570, 0
      %v764 = vsel %vm747, %v572, 0
      %v767 = vsel %vm747, %v574, 0
      %v770 = vsel %vm747, %v576, 0
      %v773 = vsel %vm747, %v578, 0
      %v776 = vsel %vm747, %v580, 0
      %v779 = vsel %vm747, %v582, 0
      %v782 = vsel %vm747, %v584, 0
      %v785 = vsel %vm747, %v586, 0
      %v788 = vsel %vm747, %v588, 0
      %v791 = vsel %vm747, %v590, 0
      %v794 = vsel %vm747, %v592, 0
      %v797 = vsel %vm747, %v594, 0
      %v800 = vsel %vm747, %v596, 0
      %v803 = vsel %vm747, %v598, 0
      %v806 = vsel %vm747, %v600, 0
      %v809 = vsel %vm747, %v602, 0
      %v812 = vsel %vm747, %v604, 0
      %v815 = vsel %vm747, %v606, 0
      %v818 = vsel %vm747, %v608, 0
      %v821 = vsel %vm747, %v610, 0
      %v824 = vsel %vm747, %v612, 0
      %v827 = vsel %vm747, %v614, 0
      %v830 = vsel %vm747, %v616, 0
      %v833 = vsel %vm747, %v618, 0
      %v836 = vsel %vm747, %v620, 0
      %v839 = vsel %vm747, %v622, 0
      %v842 = vsel %vm747, %v624, 0
      %844 = vmatprep.subr.bf16.mxu0 0
      %845 = vmatpush1.bf16.msra.mxu0 %v724
      %846 = vmatprep.subr.bf16.mxu0 0
      %847 = vmatpush1.bf16.msra.mxu0 %v723
      %848 = vmatprep.subr.bf16.mxu0 0
      %849 = vmatpush1.bf16.msra.mxu0 %v722
      %850 = vmatprep.subr.bf16.mxu0 0
      %851 = vmatpush1.bf16.msra.mxu0 %v721
      %852 = vmatprep.subr.bf16.mxu0 0
      %853 = vmatpush1.bf16.msra.mxu0 %v720
      %854 = vmatprep.subr.bf16.mxu0 0
      %855 = vmatpush1.bf16.msra.mxu0 %v719
      %856 = vmatprep.subr.bf16.mxu0 0
      %857 = vmatpush1.bf16.msra.mxu0 %v718
      %858 = vmatprep.subr.bf16.mxu0 0
      %859 = vmatpush1.bf16.msra.mxu0 %v717
      %860 = vmatprep.subr.bf16.mxu0 0
      %861 = vmatpush2.bf16.msra.mxu0 0
      %862 = vmatprep.subr.bf16.mxu0 0
      %863 = vmatpush2.bf16.msra.mxu0 %v731
      %864 = vmatprep.subr.bf16.mxu0 0
      %865 = vmatpush2.bf16.msra.mxu0 %v730
      %866 = vmatprep.subr.bf16.mxu0 0
      %867 = vmatpush2.bf16.msra.mxu0 %v729
      %868 = vmatprep.subr.bf16.mxu0 0
      %869 = vmatpush2.bf16.msra.mxu0 %v728
      %870 = vmatprep.subr.bf16.mxu0 0
      %871 = vmatpush2.bf16.msra.mxu0 %v727
      %872 = vmatprep.subr.bf16.mxu0 0
      %873 = vmatpush2.bf16.msra.mxu0 %v726
      %874 = vmatprep.subr.bf16.mxu0 0
      %875 = vmatpush2.bf16.msra.mxu0 %v725
      %876 = vmatprep.mubr.bf16.mxu0 %v749
      %877 = vmatmul.mubr.bf16.gmra.mxu0 %v561
      %v878 = vpop.f32.mrf.mxu0
      %v879 = vadd.f32 %v367, %v878
      %v880 = vpop.f32.mrf.mxu0
      %v881 = vpop.f32.mrf.mxu0
      %v882 = vadd.f32 %v367, %v881
      %v883 = vpop.f32.mrf.mxu0
      %884 = vmatprep.mubr.bf16.mxu0 %v752
      %885 = vmatmul.mubr.bf16.gmra.mxu0 %v563
      %v886 = vpop.f32.mrf.mxu0
      %v887 = vadd.f32 %v367, %v886
      %v888 = vpop.f32.mrf.mxu0
      %v889 = vpop.f32.mrf.mxu0
      %v890 = vadd.f32 %v367, %v889
      %v891 = vpop.f32.mrf.mxu0
      %892 = vmatprep.mubr.bf16.mxu0 %v755
      %893 = vmatmul.mubr.bf16.gmra.mxu0 %v565
      %v894 = vpop.f32.mrf.mxu0
      %v895 = vadd.f32 %v367, %v894
      %v896 = vpop.f32.mrf.mxu0
      %v897 = vpop.f32.mrf.mxu0
      %v898 = vadd.f32 %v367, %v897
      %v899 = vpop.f32.mrf.mxu0
      %900 = vmatprep.mubr.bf16.mxu0 %v758
      %901 = vmatmul.mubr.bf16.gmra.mxu0 %v567
      %v902 = vpop.f32.mrf.mxu0
      %v903 = vadd.f32 %v367, %v902
      %v904 = vpop.f32.mrf.mxu0
      %v905 = vpop.f32.mrf.mxu0
      %v906 = vadd.f32 %v367, %v905
      %v907 = vpop.f32.mrf.mxu0
      %908 = vmatprep.mubr.bf16.mxu0 %v761
      %909 = vmatmul.mubr.bf16.gmra.mxu0 %v569
      %v910 = vpop.f32.mrf.mxu0
      %v911 = vadd.f32 %v367, %v910
      %v912 = vpop.f32.mrf.mxu0
      %v913 = vpop.f32.mrf.mxu0
      %v914 = vadd.f32 %v367, %v913
      %v915 = vpop.f32.mrf.mxu0
      %916 = vmatprep.mubr.bf16.mxu0 %v764
      %917 = vmatmul.mubr.bf16.gmra.mxu0 %v571
      %v918 = vpop.f32.mrf.mxu0
      %v919 = vadd.f32 %v367, %v918
      %v920 = vpop.f32.mrf.mxu0
      %v921 = vpop.f32.mrf.mxu0
      %v922 = vadd.f32 %v367, %v921
      %v923 = vpop.f32.mrf.mxu0
      %924 = vmatprep.mubr.bf16.mxu0 %v767
      %925 = vmatmul.mubr.bf16.gmra.mxu0 %v573
      %v926 = vpop.f32.mrf.mxu0
      %v927 = vadd.f32 %v367, %v926
      %v928 = vpop.f32.mrf.mxu0
      %v929 = vpop.f32.mrf.mxu0
      %v930 = vadd.f32 %v367, %v929
      %v931 = vpop.f32.mrf.mxu0
      %932 = vmatprep.mubr.bf16.mxu0 %v770
      %933 = vmatmul.mubr.bf16.gmra.mxu0 %v575
      %v934 = vpop.f32.mrf.mxu0
      %v935 = vadd.f32 %v367, %v934
      %v936 = vpop.f32.mrf.mxu0
      %v937 = vpop.f32.mrf.mxu0
      %v938 = vadd.f32 %v367, %v937
      %v939 = vpop.f32.mrf.mxu0
      %940 = vmatprep.mubr.bf16.mxu0 %v773
      %941 = vmatmul.mubr.bf16.gmra.mxu0 %v577
      %v942 = vpop.f32.mrf.mxu0
      %v943 = vadd.f32 %v367, %v942
      %v944 = vpop.f32.mrf.mxu0
      %v945 = vpop.f32.mrf.mxu0
      %v946 = vadd.f32 %v367, %v945
      %v947 = vpop.f32.mrf.mxu0
      %948 = vmatprep.mubr.bf16.mxu0 %v776
      %949 = vmatmul.mubr.bf16.gmra.mxu0 %v579
      %v950 = vpop.f32.mrf.mxu0
      %v951 = vadd.f32 %v367, %v950
      %v952 = vpop.f32.mrf.mxu0
      %v953 = vpop.f32.mrf.mxu0
      %v954 = vadd.f32 %v367, %v953
      %v955 = vpop.f32.mrf.mxu0
      %956 = vmatprep.mubr.bf16.mxu0 %v779
      %957 = vmatmul.mubr.bf16.gmra.mxu0 %v581
      %v958 = vpop.f32.mrf.mxu0
      %v959 = vadd.f32 %v367, %v958
      %v960 = vpop.f32.mrf.mxu0
      %v961 = vpop.f32.mrf.mxu0
      %v962 = vadd.f32 %v367, %v961
      %v963 = vpop.f32.mrf.mxu0
      %964 = vmatprep.mubr.bf16.mxu0 %v782
      %965 = vmatmul.mubr.bf16.gmra.mxu0 %v583
      %v966 = vpop.f32.mrf.mxu0
      %v967 = vadd.f32 %v367, %v966
      %v968 = vpop.f32.mrf.mxu0
      %v969 = vpop.f32.mrf.mxu0
      %v970 = vadd.f32 %v367, %v969
      %v971 = vpop.f32.mrf.mxu0
      %972 = vmatprep.mubr.bf16.mxu0 %v785
      %973 = vmatmul.mubr.bf16.gmra.mxu0 %v585
      %v974 = vpop.f32.mrf.mxu0
      %v975 = vadd.f32 %v367, %v974
      %v976 = vpop.f32.mrf.mxu0
      %v977 = vpop.f32.mrf.mxu0
      %v978 = vadd.f32 %v367, %v977
      %v979 = vpop.f32.mrf.mxu0
      %980 = vmatprep.mubr.bf16.mxu0 %v788
      %981 = vmatmul.mubr.bf16.gmra.mxu0 %v587
      %v982 = vpop.f32.mrf.mxu0
      %v983 = vadd.f32 %v367, %v982
      %v984 = vpop.f32.mrf.mxu0
      %v985 = vpop.f32.mrf.mxu0
      %v986 = vadd.f32 %v367, %v985
      %v987 = vpop.f32.mrf.mxu0
      %988 = vmatprep.mubr.bf16.mxu0 %v791
      %989 = vmatmul.mubr.bf16.gmra.mxu0 %v589
      %v990 = vpop.f32.mrf.mxu0
      %v991 = vadd.f32 %v367, %v990
      %v992 = vpop.f32.mrf.mxu0
      %v993 = vpop.f32.mrf.mxu0
      %v994 = vadd.f32 %v367, %v993
      %v995 = vpop.f32.mrf.mxu0
      %996 = vmatprep.mubr.bf16.mxu0 %v794
      %997 = vmatmul.mubr.bf16.gmra.mxu0 %v591
      %v998 = vpop.f32.mrf.mxu0
      %v999 = vadd.f32 %v367, %v998
      %v1000 = vpop.f32.mrf.mxu0
      %v1001 = vpop.f32.mrf.mxu0
      %v1002 = vadd.f32 %v367, %v1001
      %v1003 = vpop.f32.mrf.mxu0
      %1004 = vmatprep.mubr.bf16.mxu0 %v797
      %1005 = vmatmul.mubr.bf16.gmra.mxu0 %v593
      %v1006 = vpop.f32.mrf.mxu0
      %v1007 = vadd.f32 %v367, %v1006
      %v1008 = vpop.f32.mrf.mxu0
      %v1009 = vpop.f32.mrf.mxu0
      %v1010 = vadd.f32 %v367, %v1009
      %v1011 = vpop.f32.mrf.mxu0
      %1012 = vmatprep.mubr.bf16.mxu0 %v800
      %1013 = vmatmul.mubr.bf16.gmra.mxu0 %v595
      %v1014 = vpop.f32.mrf.mxu0
      %v1015 = vadd.f32 %v367, %v1014
      %v1016 = vpop.f32.mrf.mxu0
      %v1017 = vpop.f32.mrf.mxu0
      %v1018 = vadd.f32 %v367, %v1017
      %v1019 = vpop.f32.mrf.mxu0
      %1020 = vmatprep.mubr.bf16.mxu0 %v803
      %1021 = vmatmul.mubr.bf16.gmra.mxu0 %v597
      %v1022 = vpop.f32.mrf.mxu0
      %v1023 = vadd.f32 %v367, %v1022
      %v1024 = vpop.f32.mrf.mxu0
      %v1025 = vpop.f32.mrf.mxu0
      %v1026 = vadd.f32 %v367, %v1025
      %v1027 = vpop.f32.mrf.mxu0
      %1028 = vmatprep.mubr.bf16.mxu0 %v806
      %1029 = vmatmul.mubr.bf16.gmra.mxu0 %v599
      %v1030 = vpop.f32.mrf.mxu0
      %v1031 = vadd.f32 %v367, %v1030
      %v1032 = vpop.f32.mrf.mxu0
      %v1033 = vpop.f32.mrf.mxu0
      %v1034 = vadd.f32 %v367, %v1033
      %v1035 = vpop.f32.mrf.mxu0
      %1036 = vmatprep.mubr.bf16.mxu0 %v809
      %1037 = vmatmul.mubr.bf16.gmra.mxu0 %v601
      %v1038 = vpop.f32.mrf.mxu0
      %v1039 = vadd.f32 %v367, %v1038
      %v1040 = vpop.f32.mrf.mxu0
      %v1041 = vpop.f32.mrf.mxu0
      %v1042 = vadd.f32 %v367, %v1041
      %v1043 = vpop.f32.mrf.mxu0
      %1044 = vmatprep.mubr.bf16.mxu0 %v812
      %1045 = vmatmul.mubr.bf16.gmra.mxu0 %v603
      %v1046 = vpop.f32.mrf.mxu0
      %v1047 = vadd.f32 %v367, %v1046
      %v1048 = vpop.f32.mrf.mxu0
      %v1049 = vpop.f32.mrf.mxu0
      %v1050 = vadd.f32 %v367, %v1049
      %v1051 = vpop.f32.mrf.mxu0
      %1052 = vmatprep.mubr.bf16.mxu0 %v815
      %1053 = vmatmul.mubr.bf16.gmra.mxu0 %v605
      %v1054 = vpop.f32.mrf.mxu0
      %v1055 = vadd.f32 %v367, %v1054
      %v1056 = vpop.f32.mrf.mxu0
      %v1057 = vpop.f32.mrf.mxu0
      %v1058 = vadd.f32 %v367, %v1057
      %v1059 = vpop.f32.mrf.mxu0
      %1060 = vmatprep.mubr.bf16.mxu0 %v818
      %1061 = vmatmul.mubr.bf16.gmra.mxu0 %v607
      %v1062 = vpop.f32.mrf.mxu0
      %v1063 = vadd.f32 %v367, %v1062
      %v1064 = vpop.f32.mrf.mxu0
      %v1065 = vpop.f32.mrf.mxu0
      %v1066 = vadd.f32 %v367, %v1065
      %v1067 = vpop.f32.mrf.mxu0
      %1068 = vmatprep.mubr.bf16.mxu0 %v821
      %1069 = vmatmul.mubr.bf16.gmra.mxu0 %v609
      %v1070 = vpop.f32.mrf.mxu0
      %v1071 = vadd.f32 %v367, %v1070
      %v1072 = vpop.f32.mrf.mxu0
      %v1073 = vpop.f32.mrf.mxu0
      %v1074 = vadd.f32 %v367, %v1073
      %v1075 = vpop.f32.mrf.mxu0
      %1076 = vmatprep.mubr.bf16.mxu0 %v824
      %1077 = vmatmul.mubr.bf16.gmra.mxu0 %v611
      %v1078 = vpop.f32.mrf.mxu0
      %v1079 = vadd.f32 %v367, %v1078
      %v1080 = vpop.f32.mrf.mxu0
      %v1081 = vpop.f32.mrf.mxu0
      %v1082 = vadd.f32 %v367, %v1081
      %v1083 = vpop.f32.mrf.mxu0
      %1084 = vmatprep.mubr.bf16.mxu0 %v827
      %1085 = vmatmul.mubr.bf16.gmra.mxu0 %v613
      %v1086 = vpop.f32.mrf.mxu0
      %v1087 = vadd.f32 %v367, %v1086
      %v1088 = vpop.f32.mrf.mxu0
      %v1089 = vpop.f32.mrf.mxu0
      %v1090 = vadd.f32 %v367, %v1089
      %v1091 = vpop.f32.mrf.mxu0
      %1092 = vmatprep.mubr.bf16.mxu0 %v830
      %1093 = vmatmul.mubr.bf16.gmra.mxu0 %v615
      %v1094 = vpop.f32.mrf.mxu0
      %v1095 = vadd.f32 %v367, %v1094
      %v1096 = vpop.f32.mrf.mxu0
      %v1097 = vpop.f32.mrf.mxu0
      %v1098 = vadd.f32 %v367, %v1097
      %v1099 = vpop.f32.mrf.mxu0
      %1100 = vmatprep.mubr.bf16.mxu0 %v833
      %1101 = vmatmul.mubr.bf16.gmra.mxu0 %v617
      %v1102 = vpop.f32.mrf.mxu0
      %v1103 = vadd.f32 %v367, %v1102
      %v1104 = vpop.f32.mrf.mxu0
      %v1105 = vpop.f32.mrf.mxu0
      %v1106 = vadd.f32 %v367, %v1105
      %v1107 = vpop.f32.mrf.mxu0
      %1108 = vmatprep.mubr.bf16.mxu0 %v836
      %1109 = vmatmul.mubr.bf16.gmra.mxu0 %v619
      %v1110 = vpop.f32.mrf.mxu0
      %v1111 = vadd.f32 %v367, %v1110
      %v1112 = vpop.f32.mrf.mxu0
      %v1113 = vpop.f32.mrf.mxu0
      %v1114 = vadd.f32 %v367, %v1113
      %v1115 = vpop.f32.mrf.mxu0
      %1116 = vmatprep.mubr.bf16.mxu0 %v839
      %1117 = vmatmul.mubr.bf16.gmra.mxu0 %v621
      %v1118 = vpop.f32.mrf.mxu0
      %v1119 = vadd.f32 %v367, %v1118
      %v1120 = vpop.f32.mrf.mxu0
      %v1121 = vpop.f32.mrf.mxu0
      %v1122 = vadd.f32 %v367, %v1121
      %v1123 = vpop.f32.mrf.mxu0
      %1124 = vmatprep.mubr.bf16.mxu0 %v842
      %1125 = vmatmul.mubr.bf16.gmra.mxu0 %v623
      %v1126 = vpop.f32.mrf.mxu0
      %v1127 = vadd.f32 %v367, %v1126
      %v1128 = vpop.f32.mrf.mxu0
      %v1129 = vpop.f32.mrf.mxu0
      %v1130 = vadd.f32 %v367, %v1129
      %v1131 = vpop.f32.mrf.mxu0
      %1132 = vdwg.mxu0
      %vm1133 = vcmp.ge.f32.partialorder %v879, 0.0
      %vm1134 = vcmp.ge.f32.partialorder %v882, 0.0
      %vm1135 = vcmp.ge.f32.partialorder %v887, 0.0
      %vm1136 = vcmp.ge.f32.partialorder %v890, 0.0
      %vm1137 = vcmp.ge.f32.partialorder %v895, 0.0
      %vm1138 = vcmp.ge.f32.partialorder %v898, 0.0
      %vm1139 = vcmp.ge.f32.partialorder %v903, 0.0
      %vm1140 = vcmp.ge.f32.partialorder %v906, 0.0
      %vm1141 = vcmp.ge.f32.partialorder %v911, 0.0
      %vm1142 = vcmp.ge.f32.partialorder %v914, 0.0
      %vm1143 = vcmp.ge.f32.partialorder %v919, 0.0
      %vm1144 = vcmp.ge.f32.partialorder %v922, 0.0
      %vm1145 = vcmp.ge.f32.partialorder %v927, 0.0
      %vm1146 = vcmp.ge.f32.partialorder %v930, 0.0
      %vm1147 = vcmp.ge.f32.partialorder %v935, 0.0
      %vm1148 = vcmp.ge.f32.partialorder %v938, 0.0
      %vm1149 = vcmp.ge.f32.partialorder %v943, 0.0
      %vm1150 = vcmp.ge.f32.partialorder %v946, 0.0
      %vm1151 = vcmp.ge.f32.partialorder %v951, 0.0
      %vm1152 = vcmp.ge.f32.partialorder %v954, 0.0
      %vm1153 = vcmp.ge.f32.partialorder %v959, 0.0
      %vm1154 = vcmp.ge.f32.partialorder %v962, 0.0
      %vm1155 = vcmp.ge.f32.partialorder %v967, 0.0
      %vm1156 = vcmp.ge.f32.partialorder %v970, 0.0
      %vm1157 = vcmp.ge.f32.partialorder %v975, 0.0
      %vm1158 = vcmp.ge.f32.partialorder %v978, 0.0
      %vm1159 = vcmp.ge.f32.partialorder %v983, 0.0
      %vm1160 = vcmp.ge.f32.partialorder %v986, 0.0
      %vm1161 = vcmp.ge.f32.partialorder %v991, 0.0
      %vm1162 = vcmp.ge.f32.partialorder %v994, 0.0
      %vm1163 = vcmp.ge.f32.partialorder %v999, 0.0
      %vm1164 = vcmp.ge.f32.partialorder %v1002, 0.0
      %vm1165 = vcmp.ge.f32.partialorder %v1007, 0.0
      %vm1166 = vcmp.ge.f32.partialorder %v1010, 0.0
      %vm1167 = vcmp.ge.f32.partialorder %v1015, 0.0
      %vm1168 = vcmp.ge.f32.partialorder %v1018, 0.0
      %vm1169 = vcmp.ge.f32.partialorder %v1023, 0.0
      %vm1170 = vcmp.ge.f32.partialorder %v1026, 0.0
      %vm1171 = vcmp.ge.f32.partialorder %v1031, 0.0
      %vm1172 = vcmp.ge.f32.partialorder %v1034, 0.0
      %vm1173 = vcmp.ge.f32.partialorder %v1039, 0.0
      %vm1174 = vcmp.ge.f32.partialorder %v1042, 0.0
      %vm1175 = vcmp.ge.f32.partialorder %v1047, 0.0
      %vm1176 = vcmp.ge.f32.partialorder %v1050, 0.0
      %vm1177 = vcmp.ge.f32.partialorder %v1055, 0.0
      %vm1178 = vcmp.ge.f32.partialorder %v1058, 0.0
      %vm1179 = vcmp.ge.f32.partialorder %v1063, 0.0
      %vm1180 = vcmp.ge.f32.partialorder %v1066, 0.0
      %vm1181 = vcmp.ge.f32.partialorder %v1071, 0.0
      %vm1182 = vcmp.ge.f32.partialorder %v1074, 0.0
      %vm1183 = vcmp.ge.f32.partialorder %v1079, 0.0
      %vm1184 = vcmp.ge.f32.partialorder %v1082, 0.0
      %vm1185 = vcmp.ge.f32.partialorder %v1087, 0.0
      %vm1186 = vcmp.ge.f32.partialorder %v1090, 0.0
      %vm1187 = vcmp.ge.f32.partialorder %v1095, 0.0
      %vm1188 = vcmp.ge.f32.partialorder %v1098, 0.0
      %vm1189 = vcmp.ge.f32.partialorder %v1103, 0.0
      %vm1190 = vcmp.ge.f32.partialorder %v1106, 0.0
      %vm1191 = vcmp.ge.f32.partialorder %v1111, 0.0
      %vm1192 = vcmp.ge.f32.partialorder %v1114, 0.0
      %vm1193 = vcmp.ge.f32.partialorder %v1119, 0.0
      %vm1194 = vcmp.ge.f32.partialorder %v1122, 0.0
      %vm1195 = vcmp.ge.f32.partialorder %v1127, 0.0
      %vm1196 = vcmp.ge.f32.partialorder %v1130, 0.0
      %v1197 = vmul.f32 %v879, 0.2
      %v1198 = vmul.f32 %v882, 0.2
      %v1199 = vmul.f32 %v887, 0.2
      %v1200 = vmul.f32 %v890, 0.2
      %v1201 = vmul.f32 %v895, 0.2
      %v1202 = vmul.f32 %v898, 0.2
      %v1203 = vmul.f32 %v903, 0.2
      %v1204 = vmul.f32 %v906, 0.2
      %v1205 = vmul.f32 %v911, 0.2
      %v1206 = vmul.f32 %v914, 0.2
      %v1207 = vmul.f32 %v919, 0.2
      %v1208 = vmul.f32 %v922, 0.2
      %v1209 = vmul.f32 %v927, 0.2
      %v1210 = vmul.f32 %v930, 0.2
      %v1211 = vmul.f32 %v935, 0.2
      %v1212 = vmul.f32 %v938, 0.2
      %v1213 = vmul.f32 %v943, 0.2
      %v1214 = vmul.f32 %v946, 0.2
      %v1215 = vmul.f32 %v951, 0.2
      %v1216 = vmul.f32 %v954, 0.2
      %v1217 = vmul.f32 %v959, 0.2
      %v1218 = vmul.f32 %v962, 0.2
      %v1219 = vmul.f32 %v967, 0.2
      %v1220 = vmul.f32 %v970, 0.2
      %v1221 = vmul.f32 %v975, 0.2
      %v1222 = vmul.f32 %v978, 0.2
      %v1223 = vmul.f32 %v983, 0.2
      %v1224 = vmul.f32 %v986, 0.2
      %v1225 = vmul.f32 %v991, 0.2
      %v1226 = vmul.f32 %v994, 0.2
      %v1227 = vmul.f32 %v999, 0.2
      %v1228 = vmul.f32 %v1002, 0.2
      %v1229 = vmul.f32 %v1007, 0.2
      %v1230 = vmul.f32 %v1010, 0.2
      %v1231 = vmul.f32 %v1015, 0.2
      %v1232 = vmul.f32 %v1018, 0.2
      %v1233 = vmul.f32 %v1023, 0.2
      %v1234 = vmul.f32 %v1026, 0.2
      %v1235 = vmul.f32 %v1031, 0.2
      %v1236 = vmul.f32 %v1034, 0.2
      %v1237 = vmul.f32 %v1039, 0.2
      %v1238 = vmul.f32 %v1042, 0.2
      %v1239 = vmul.f32 %v1047, 0.2
      %v1240 = vmul.f32 %v1050, 0.2
      %v1241 = vmul.f32 %v1055, 0.2
      %v1242 = vmul.f32 %v1058, 0.2
      %v1243 = vmul.f32 %v1063, 0.2
      %v1244 = vmul.f32 %v1066, 0.2
      %v1245 = vmul.f32 %v1071, 0.2
      %v1246 = vmul.f32 %v1074, 0.2
      %v1247 = vmul.f32 %v1079, 0.2
      %v1248 = vmul.f32 %v1082, 0.2
      %v1249 = vmul.f32 %v1087, 0.2
      %v1250 = vmul.f32 %v1090, 0.2
      %v1251 = vmul.f32 %v1095, 0.2
      %v1252 = vmul.f32 %v1098, 0.2
      %v1253 = vmul.f32 %v1103, 0.2
      %v1254 = vmul.f32 %v1106, 0.2
      %v1255 = vmul.f32 %v1111, 0.2
      %v1256 = vmul.f32 %v1114, 0.2
      %v1257 = vmul.f32 %v1119, 0.2
      %v1258 = vmul.f32 %v1122, 0.2
      %v1259 = vmul.f32 %v1127, 0.2
      %v1260 = vmul.f32 %v1130, 0.2
      %v1261 = vsel %vm1133, %v879, %v1197
      %v1262 = vsel %vm1134, %v882, %v1198
      %v1263 = vsel %vm1135, %v887, %v1199
      %v1264 = vsel %vm1136, %v890, %v1200
      %v1265 = vsel %vm1137, %v895, %v1201
      %v1266 = vsel %vm1138, %v898, %v1202
      %v1267 = vsel %vm1139, %v903, %v1203
      %v1268 = vsel %vm1140, %v906, %v1204
      %v1269 = vsel %vm1141, %v911, %v1205
      %v1270 = vsel %vm1142, %v914, %v1206
      %v1271 = vsel %vm1143, %v919, %v1207
      %v1272 = vsel %vm1144, %v922, %v1208
      %v1273 = vsel %vm1145, %v927, %v1209
      %v1274 = vsel %vm1146, %v930, %v1210
      %v1275 = vsel %vm1147, %v935, %v1211
      %v1276 = vsel %vm1148, %v938, %v1212
      %v1277 = vsel %vm1149, %v943, %v1213
      %v1278 = vsel %vm1150, %v946, %v1214
      %v1279 = vsel %vm1151, %v951, %v1215
      %v1280 = vsel %vm1152, %v954, %v1216
      %v1281 = vsel %vm1153, %v959, %v1217
      %v1282 = vsel %vm1154, %v962, %v1218
      %v1283 = vsel %vm1155, %v967, %v1219
      %v1284 = vsel %vm1156, %v970, %v1220
      %v1285 = vsel %vm1157, %v975, %v1221
      %v1286 = vsel %vm1158, %v978, %v1222
      %v1287 = vsel %vm1159, %v983, %v1223
      %v1288 = vsel %vm1160, %v986, %v1224
      %v1289 = vsel %vm1161, %v991, %v1225
      %v1290 = vsel %vm1162, %v994, %v1226
      %v1291 = vsel %vm1163, %v999, %v1227
      %v1292 = vsel %vm1164, %v1002, %v1228
      %v1293 = vsel %vm1165, %v1007, %v1229
      %v1294 = vsel %vm1166, %v1010, %v1230
      %v1295 = vsel %vm1167, %v1015, %v1231
      %v1296 = vsel %vm1168, %v1018, %v1232
      %v1297 = vsel %vm1169, %v1023, %v1233
      %v1298 = vsel %vm1170, %v1026, %v1234
      %v1299 = vsel %vm1171, %v1031, %v1235
      %v1300 = vsel %vm1172, %v1034, %v1236
      %v1301 = vsel %vm1173, %v1039, %v1237
      %v1302 = vsel %vm1174, %v1042, %v1238
      %v1303 = vsel %vm1175, %v1047, %v1239
      %v1304 = vsel %vm1176, %v1050, %v1240
      %v1305 = vsel %vm1177, %v1055, %v1241
      %v1306 = vsel %vm1178, %v1058, %v1242
      %v1307 = vsel %vm1179, %v1063, %v1243
      %v1308 = vsel %vm1180, %v1066, %v1244
      %v1309 = vsel %vm1181, %v1071, %v1245
      %v1310 = vsel %vm1182, %v1074, %v1246
      %v1311 = vsel %vm1183, %v1079, %v1247
      %v1312 = vsel %vm1184, %v1082, %v1248
      %v1313 = vsel %vm1185, %v1087, %v1249
      %v1314 = vsel %vm1186, %v1090, %v1250
      %v1315 = vsel %vm1187, %v1095, %v1251
      %v1316 = vsel %vm1188, %v1098, %v1252
      %v1317 = vsel %vm1189, %v1103, %v1253
      %v1318 = vsel %vm1190, %v1106, %v1254
      %v1319 = vsel %vm1191, %v1111, %v1255
      %v1320 = vsel %vm1192, %v1114, %v1256
      %v1321 = vsel %vm1193, %v1119, %v1257
      %v1322 = vsel %vm1194, %v1122, %v1258
      %v1323 = vsel %vm1195, %v1127, %v1259
      %v1324 = vsel %vm1196, %v1130, %v1260
      %v1325 = vpack.c.bf16 %v1262, %v1261
      %v1326 = vpack.c.bf16 %v1264, %v1263
      %v1327 = vpack.c.bf16 %v1266, %v1265
      %v1328 = vpack.c.bf16 %v1268, %v1267
      %v1329 = vpack.c.bf16 %v1270, %v1269
      %v1330 = vpack.c.bf16 %v1272, %v1271
      %v1331 = vpack.c.bf16 %v1274, %v1273
      %v1332 = vpack.c.bf16 %v1276, %v1275
      %v1333 = vpack.c.bf16 %v1278, %v1277
      %v1334 = vpack.c.bf16 %v1280, %v1279
      %v1335 = vpack.c.bf16 %v1282, %v1281
      %v1336 = vpack.c.bf16 %v1284, %v1283
      %v1337 = vpack.c.bf16 %v1286, %v1285
      %v1338 = vpack.c.bf16 %v1288, %v1287
      %v1339 = vpack.c.bf16 %v1290, %v1289
      %v1340 = vpack.c.bf16 %v1292, %v1291
      %v1341 = vpack.c.bf16 %v1294, %v1293
      %v1342 = vpack.c.bf16 %v1296, %v1295
      %v1343 = vpack.c.bf16 %v1298, %v1297
      %v1344 = vpack.c.bf16 %v1300, %v1299
      %v1345 = vpack.c.bf16 %v1302, %v1301
      %v1346 = vpack.c.bf16 %v1304, %v1303
      %v1347 = vpack.c.bf16 %v1306, %v1305
      %v1348 = vpack.c.bf16 %v1308, %v1307
      %v1349 = vpack.c.bf16 %v1310, %v1309
      %v1350 = vpack.c.bf16 %v1312, %v1311
      %v1351 = vpack.c.bf16 %v1314, %v1313
      %v1352 = vpack.c.bf16 %v1316, %v1315
      %v1353 = vpack.c.bf16 %v1318, %v1317
      %v1354 = vpack.c.bf16 %v1320, %v1319
      %v1355 = vpack.c.bf16 %v1322, %v1321
      %v1356 = vpack.c.bf16 %v1324, %v1323
      %v1389 = vunpack.c.l.b16 %v1325
      %v1390 = vunpack.c.h.b16 %v1325
      %v1391 = vunpack.c.l.b16 %v1326
      %v1392 = vunpack.c.h.b16 %v1326
      %v1393 = vunpack.c.l.b16 %v1327
      %v1394 = vunpack.c.h.b16 %v1327
      %v1395 = vunpack.c.l.b16 %v1328
      %v1396 = vunpack.c.h.b16 %v1328
      %v1397 = vunpack.c.l.b16 %v1329
      %v1398 = vunpack.c.h.b16 %v1329
      %v1399 = vunpack.c.l.b16 %v1330
      %v1400 = vunpack.c.h.b16 %v1330
      %v1401 = vunpack.c.l.b16 %v1331
      %v1402 = vunpack.c.h.b16 %v1331
      %v1403 = vunpack.c.l.b16 %v1332
      %v1404 = vunpack.c.h.b16 %v1332
      %v1405 = vunpack.c.l.b16 %v1333
      %v1406 = vunpack.c.h.b16 %v1333
      %v1407 = vunpack.c.l.b16 %v1334
      %v1408 = vunpack.c.h.b16 %v1334
      %v1409 = vunpack.c.l.b16 %v1335
      %v1410 = vunpack.c.h.b16 %v1335
      %v1411 = vunpack.c.l.b16 %v1336
      %v1412 = vunpack.c.h.b16 %v1336
      %v1413 = vunpack.c.l.b16 %v1337
      %v1414 = vunpack.c.h.b16 %v1337
      %v1415 = vunpack.c.l.b16 %v1338
      %v1416 = vunpack.c.h.b16 %v1338
      %v1417 = vunpack.c.l.b16 %v1339
      %v1418 = vunpack.c.h.b16 %v1339
      %v1419 = vunpack.c.l.b16 %v1340
      %v1420 = vunpack.c.h.b16 %v1340
      %v1421 = vunpack.c.l.b16 %v1341
      %v1422 = vunpack.c.h.b16 %v1341
      %v1423 = vunpack.c.l.b16 %v1342
      %v1424 = vunpack.c.h.b16 %v1342
      %v1425 = vunpack.c.l.b16 %v1343
      %v1426 = vunpack.c.h.b16 %v1343
      %v1427 = vunpack.c.l.b16 %v1344
      %v1428 = vunpack.c.h.b16 %v1344
      %v1429 = vunpack.c.l.b16 %v1345
      %v1430 = vunpack.c.h.b16 %v1345
      %v1431 = vunpack.c.l.b16 %v1346
      %v1432 = vunpack.c.h.b16 %v1346
      %v1433 = vunpack.c.l.b16 %v1347
      %v1434 = vunpack.c.h.b16 %v1347
      %v1435 = vunpack.c.l.b16 %v1348
      %v1436 = vunpack.c.h.b16 %v1348
      %v1437 = vunpack.c.l.b16 %v1349
      %v1438 = vunpack.c.h.b16 %v1349
      %v1439 = vunpack.c.l.b16 %v1350
      %v1440 = vunpack.c.h.b16 %v1350
      %v1441 = vunpack.c.l.b16 %v1351
      %v1442 = vunpack.c.h.b16 %v1351
      %v1443 = vunpack.c.l.b16 %v1352
      %v1444 = vunpack.c.h.b16 %v1352
      %v1445 = vunpack.c.l.b16 %v1353
      %v1446 = vunpack.c.h.b16 %v1353
      %v1447 = vunpack.c.l.b16 %v1354
      %v1448 = vunpack.c.h.b16 %v1354
      %v1449 = vunpack.c.l.b16 %v1355
      %v1450 = vunpack.c.h.b16 %v1355
      %v1451 = vunpack.c.l.b16 %v1356
      %v1452 = vunpack.c.h.b16 %v1356
      %v1453 = vpack.c.b16 %v1389, %v1389
      %v1454 = vpack.c.b16 %v1390, %v1390
      %v1455 = vpack.c.b16 %v1391, %v1391
      %v1456 = vpack.c.b16 %v1392, %v1392
      %v1457 = vpack.c.b16 %v1393, %v1393
      %v1458 = vpack.c.b16 %v1394, %v1394
      %v1459 = vpack.c.b16 %v1395, %v1395
      %v1460 = vpack.c.b16 %v1396, %v1396
      %v1461 = vpack.c.b16 %v1397, %v1397
      %v1462 = vpack.c.b16 %v1398, %v1398
      %v1463 = vpack.c.b16 %v1399, %v1399
      %v1464 = vpack.c.b16 %v1400, %v1400
      %v1465 = vpack.c.b16 %v1401, %v1401
      %v1466 = vpack.c.b16 %v1402, %v1402
      %v1467 = vpack.c.b16 %v1403, %v1403
      %v1468 = vpack.c.b16 %v1404, %v1404
      %v1469 = vpack.c.b16 %v1405, %v1405
      %v1470 = vpack.c.b16 %v1406, %v1406
      %v1471 = vpack.c.b16 %v1407, %v1407
      %v1472 = vpack.c.b16 %v1408, %v1408
      %v1473 = vpack.c.b16 %v1409, %v1409
      %v1474 = vpack.c.b16 %v1410, %v1410
      %v1475 = vpack.c.b16 %v1411, %v1411
      %v1476 = vpack.c.b16 %v1412, %v1412
      %v1477 = vpack.c.b16 %v1413, %v1413
      %v1478 = vpack.c.b16 %v1414, %v1414
      %v1479 = vpack.c.b16 %v1415, %v1415
      %v1480 = vpack.c.b16 %v1416, %v1416
      %v1481 = vpack.c.b16 %v1417, %v1417
      %v1482 = vpack.c.b16 %v1418, %v1418
      %v1483 = vpack.c.b16 %v1419, %v1419
      %v1484 = vpack.c.b16 %v1420, %v1420
      %v1485 = vpack.c.b16 %v1421, %v1421
      %v1486 = vpack.c.b16 %v1422, %v1422
      %v1487 = vpack.c.b16 %v1423, %v1423
      %v1488 = vpack.c.b16 %v1424, %v1424
      %v1489 = vpack.c.b16 %v1425, %v1425
      %v1490 = vpack.c.b16 %v1426, %v1426
      %v1491 = vpack.c.b16 %v1427, %v1427
      %v1492 = vpack.c.b16 %v1428, %v1428
      %v1493 = vpack.c.b16 %v1429, %v1429
      %v1494 = vpack.c.b16 %v1430, %v1430
      %v1495 = vpack.c.b16 %v1431, %v1431
      %v1496 = vpack.c.b16 %v1432, %v1432
      %v1497 = vpack.c.b16 %v1433, %v1433
      %v1498 = vpack.c.b16 %v1434, %v1434
      %v1499 = vpack.c.b16 %v1435, %v1435
      %v1500 = vpack.c.b16 %v1436, %v1436
      %v1501 = vpack.c.b16 %v1437, %v1437
      %v1502 = vpack.c.b16 %v1438, %v1438
      %v1503 = vpack.c.b16 %v1439, %v1439
      %v1504 = vpack.c.b16 %v1440, %v1440
      %v1505 = vpack.c.b16 %v1441, %v1441
      %v1506 = vpack.c.b16 %v1442, %v1442
      %v1507 = vpack.c.b16 %v1443, %v1443
      %v1508 = vpack.c.b16 %v1444, %v1444
      %v1509 = vpack.c.b16 %v1445, %v1445
      %v1510 = vpack.c.b16 %v1446, %v1446
      %v1511 = vpack.c.b16 %v1447, %v1447
      %v1512 = vpack.c.b16 %v1448, %v1448
      %v1513 = vpack.c.b16 %v1449, %v1449
      %v1514 = vpack.c.b16 %v1450, %v1450
      %v1515 = vpack.c.b16 %v1451, %v1451
      %v1516 = vpack.c.b16 %v1452, %v1452
      %1581 = vst [vmem:[%s265] sm:$0xf] %v1453
      %1582 = vst [vmem:[%s265 + $0x4] sm:$0xf] %v1454
      %1583 = vst [vmem:[%s265 + $0x8] sm:$0xf] %v1455
      %1584 = vst [vmem:[%s265 + $0xc] sm:$0xf] %v1456
      %1585 = vst [vmem:[%s265 + $0x10] sm:$0xf] %v1457
      %1586 = vst [vmem:[%s265 + $0x14] sm:$0xf] %v1458
      %1587 = vst [vmem:[%s265 + $0x18] sm:$0xf] %v1459
      %1588 = vst [vmem:[%s265 + $0x1c] sm:$0xf] %v1460
      %1589 = vst [vmem:[%s265 + $0x20] sm:$0xf] %v1461
      %1590 = vst [vmem:[%s265 + $0x24] sm:$0xf] %v1462
      %1591 = vst [vmem:[%s265 + $0x28] sm:$0xf] %v1463
      %1592 = vst [vmem:[%s265 + $0x2c] sm:$0xf] %v1464
      %1593 = vst [vmem:[%s265 + $0x30] sm:$0xf] %v1465
      %1594 = vst [vmem:[%s265 + $0x34] sm:$0xf] %v1466
      %1595 = vst [vmem:[%s265 + $0x38] sm:$0xf] %v1467
      %1596 = vst [vmem:[%s265 + $0x3c] sm:$0xf] %v1468
      %1597 = vst [vmem:[%s265 + $0x40] sm:$0xf] %v1469
      %1598 = vst [vmem:[%s265 + $0x44] sm:$0xf] %v1470
      %1599 = vst [vmem:[%s265 + $0x48] sm:$0xf] %v1471
      %1600 = vst [vmem:[%s265 + $0x4c] sm:$0xf] %v1472
      %1601 = vst [vmem:[%s265 + $0x50] sm:$0xf] %v1473
      %1602 = vst [vmem:[%s265 + $0x54] sm:$0xf] %v1474
      %1603 = vst [vmem:[%s265 + $0x58] sm:$0xf] %v1475
      %1604 = vst [vmem:[%s265 + $0x5c] sm:$0xf] %v1476
      %1605 = vst [vmem:[%s265 + $0x60] sm:$0xf] %v1477
      %1606 = vst [vmem:[%s265 + $0x64] sm:$0xf] %v1478
      %1607 = vst [vmem:[%s265 + $0x68] sm:$0xf] %v1479
      %1608 = vst [vmem:[%s265 + $0x6c] sm:$0xf] %v1480
      %1609 = vst [vmem:[%s265 + $0x70] sm:$0xf] %v1481
      %1610 = vst [vmem:[%s265 + $0x74] sm:$0xf] %v1482
      %1611 = vst [vmem:[%s265 + $0x78] sm:$0xf] %v1483
      %1612 = vst [vmem:[%s265 + $0x7c] sm:$0xf] %v1484
      %1613 = vst [vmem:[%s265 + $0x80] sm:$0xf] %v1485
      %1614 = vst [vmem:[%s265 + $0x84] sm:$0xf] %v1486
      %1615 = vst [vmem:[%s265 + $0x88] sm:$0xf] %v1487
      %1616 = vst [vmem:[%s265 + $0x8c] sm:$0xf] %v1488
      %1617 = vst [vmem:[%s265 + $0x90] sm:$0xf] %v1489
      %1618 = vst [vmem:[%s265 + $0x94] sm:$0xf] %v1490
      %1619 = vst [vmem:[%s265 + $0x98] sm:$0xf] %v1491
      %1620 = vst [vmem:[%s265 + $0x9c] sm:$0xf] %v1492
      %1621 = vst [vmem:[%s265 + $0xa0] sm:$0xf] %v1493
      %1622 = vst [vmem:[%s265 + $0xa4] sm:$0xf] %v1494
      %1623 = vst [vmem:[%s265 + $0xa8] sm:$0xf] %v1495
      %1624 = vst [vmem:[%s265 + $0xac] sm:$0xf] %v1496
      %1625 = vst [vmem:[%s265 + $0xb0] sm:$0xf] %v1497
      %1626 = vst [vmem:[%s265 + $0xb4] sm:$0xf] %v1498
      %1627 = vst [vmem:[%s265 + $0xb8] sm:$0xf] %v1499
      %1628 = vst [vmem:[%s265 + $0xbc] sm:$0xf] %v1500
      %1629 = vst [vmem:[%s265 + $0xc0] sm:$0xf] %v1501
      %1630 = vst [vmem:[%s265 + $0xc4] sm:$0xf] %v1502
      %1631 = vst [vmem:[%s265 + $0xc8] sm:$0xf] %v1503
      %1632 = vst [vmem:[%s265 + $0xcc] sm:$0xf] %v1504
      %1633 = vst [vmem:[%s265 + $0xd0] sm:$0xf] %v1505
      %1634 = vst [vmem:[%s265 + $0xd4] sm:$0xf] %v1506
      %1635 = vst [vmem:[%s265 + $0xd8] sm:$0xf] %v1507
      %1636 = vst [vmem:[%s265 + $0xdc] sm:$0xf] %v1508
      %1637 = vst [vmem:[%s265 + $0xe0] sm:$0xf] %v1509
      %1638 = vst [vmem:[%s265 + $0xe4] sm:$0xf] %v1510
      %1639 = vst [vmem:[%s265 + $0xe8] sm:$0xf] %v1511
      %1640 = vst [vmem:[%s265 + $0xec] sm:$0xf] %v1512
      %1641 = vst [vmem:[%s265 + $0xf0] sm:$0xf] %v1513
      %1642 = vst [vmem:[%s265 + $0xf4] sm:$0xf] %v1514
      %1643 = vst [vmem:[%s265 + $0xf8] sm:$0xf] %v1515
      %1644 = vst [vmem:[%s265 + $0xfc] sm:$0xf] %v1516
      %s1645 = smul.u32 64, %s19
      %p1646 = scmp.lt.s32.totalorder %s1645, 4095
      %s1647 = scalar_select %p1646, %s1645, 4095
      %p1648 = scmp.lt.s32.totalorder %s20, 0
      %s1649 = scalar_select %p1648, %s20, 0
      %s1650 = sadd.s32 %s1649, %s1647
      %s1651 = smul.addr %s1650, 4
      %s1652 = scalar_lea.vmem %s3, %s1651
      // Predicated region
      $region33: #{discriminator_forward.7} parent=31 // pred_check
        %p1653 = pneg %p135
      $region34: #{discriminator_forward.7} parent=31 // pred_check_branch
        %1655 = sbr.rel (%p1653) target = $region36
      $region35: #{discriminator_forward.7} parent=31 // pred_region
        %s1656 = smul.u32 64, %s19
      $region36: #{discriminator_forward.7} parent=31 // pred_fallthru
        _
    $region32: #{discriminator_forward.7} parent=5 // pred_fallthru
      _
    %p1657 = scmp.le.s32.totalorder 2, %s9
    // Predicated region
    $region37: #{discriminator_forward.7} parent=5 // pred_check
      %p1658 = pneg %p1657
    $region38: #{discriminator_forward.7} parent=5 // pred_check_branch
      %1660 = sbr.rel (%p1658) target = $region40
    $region39: #{discriminator_forward.7} parent=5 // pred_region
      %s1661 = ssub.s32 %s9, 2
      // Predicated region
      $region41: #{discriminator_forward.7} parent=39 // pred_check
        %p1662 = pneg %p141
      $region42: #{discriminator_forward.7} parent=39 // pred_check_branch
        %1664 = sbr.rel (%p1662) target = $region44
      $region43: #{discriminator_forward.7} parent=39 // pred_region
        %s1665 = smul.u32 64, %s22
        %p1666 = scmp.lt.s32.totalorder %s1665, 4095
        %s1667 = scalar_select %p1666, %s1665, 4095
        %p1668 = scmp.lt.s32.totalorder %s23, 0
        %s1669 = scalar_select %p1668, %s23, 0
        %s1670 = sadd.s32 %s1669, %s1667
        %s1671 = smul.addr %s1670, 4
        %s1672 = scalar_lea.vmem %s3, %s1671
      $region44: #{discriminator_forward.7} parent=39 // pred_fallthru
        _
    $region40: #{discriminator_forward.7} parent=5 // pred_fallthru
      _
  $region6: #{discriminator_forward.7} parent=0 // loop_footer
    %s13 = sadd.s32 1, %s9
  $region7: #{discriminator_forward.7} parent=0 // loop_footer_branch
    %8 = sbr.rel target = $region3
  $region8: #{discriminator_forward.7} parent=0 // loop_exit
    _

// kernel: discriminator_forward.8
$region0: #{discriminator_forward.8}
  #allocation0 [shape = 'u32[]', space=smem, size = 0x4, offset = 0x4, fixed_abs, tag = 'smem constant byte address 0x4 - core index']
  #allocation1 [shape = 'u32[144,128]{1,0:T(1,128)}', space=vmem, size = 0x12000, scoped, tag = 'internal scratch']
  %s0 = inlined_call_operand.vmem [shape: bf16[8192,64], index: 0, kind: input, shape index: {}]
  %s1 = inlined_call_operand.vmem [shape: bf16[64,128], index: 1, kind: input, shape index: {}]
  %s2 = inlined_call_operand.vmem [shape: f32[1,128], index: 2, kind: input, shape index: {}]
  %s3 = inlined_call_operand.vmem [shape: bf16[8192,128], index: 3, kind: output, shape index: {}]
  %s4 = sld [smem:[#allocation0]]
  $region45: #{discriminator_forward.8} parent=0
    _
  %s6 = ssub.s32 1, %s4
  %s7 = scalar_select 0, %s6, %s4
  loop: start=0, step=1, limit=18
  $region2: #{discriminator_forward.8} parent=0 // loop_pre_header
    _
  $region3: #{discriminator_forward.8} parent=0 // loop_header
    %s9 = sphi 0, %s13
    %p10 = scmp.ge.s32.totalorder %s9, 18
    %s16 = sphi 0, %s35
    %s17 = sphi 0, %s31
    %s18 = sphi 0, %s27
    %s19 = sphi 0, %s16
    %s20 = sphi 0, %s17
    %s21 = sphi 0, %s18
    %s22 = sphi 0, %s19
    %s23 = sphi 0, %s20
    %s24 = sphi 0, %s21
    %s40 = sphi 0, %s42
    %s43 = sphi 0, %s40
    %s44 = sphi 0, %s43
    %s60 = sphi 0, %s44
    %s68 = sphi 0, %s70
    %s71 = sphi 0, %s68
    %s72 = sphi 0, %s71
    %s88 = sphi 0, %s72
    %s94 = sphi 0, %s96
    %s97 = sphi 0, %s94
    %s98 = sphi 0, %s97
    %s114 = sphi 0, %s98
    %s122 = sphi 0, %s124
    %s125 = sphi 0, %s122
    %s126 = sphi 0, %s125
    %s142 = sphi 0, %s126
  $region4: #{discriminator_forward.8} parent=0 // loop_header_branch
    %12 = sbr.rel (%p10) target = $region8
  $region5: #{discriminator_forward.8} parent=0 // loop_body
    %s14 = ssub.s32 %s9, 1
    %s15 = ssub.s32 %s9, 2
    %s25 = sadd.s32 1, %s18
    %p26 = scmp.ge.s32.totalorder %s25, 1
    %s27 = scalar_select %p26, 0, %s25
    %s28 = sadd.s32 1, %s17
    %s29 = scalar_select %p26, %s28, %s17
    %p30 = scmp.ge.s32.totalorder %s29, 1
    %s31 = scalar_select %p30, 0, %s29
    %s32 = sadd.s32 1, %s16
    %s33 = scalar_select %p30, %s32, %s16
    %p34 = scmp.ge.s32.totalorder %s33, 16
    %s35 = scalar_select %p34, 0, %s33
    %s36 = ssub.s32 %s16, %s35
    %s37 = ssub.s32 %s18, %s27
    %s38 = sor.u32 %s36, %s37
    %p39 = scmp.eq.s32.totalorder %s38, 0
    %s41 = sadd.s32 %s40, 1
    %s42 = scalar_select %p39, %s40, %s41
    %p45 = pneg %p39
    %p46 = scmp.eq.s32.totalorder %s9, 15
    %p47 = por %p45, %p46
    %p48 = scmp.ne.s32.totalorder %s40, %s43
    %p49 = scmp.eq.s32.totalorder %s9, 0
    %p50 = por %p48, %p49
    %p51 = scmp.ne.s32.totalorder %s40, %s43
    %p52 = scmp.eq.s32.totalorder %s14, 15
    %p53 = por %p51, %p52
    %p54 = scmp.ne.s32.totalorder %s43, %s44
    %p55 = scmp.eq.s32.totalorder %s14, 0
    %p56 = por %p54, %p55
    %p57 = scmp.ne.s32.totalorder %s43, %s44
    %p58 = scmp.eq.s32.totalorder %s15, 15
    %p59 = por %p57, %p58
    %p61 = scmp.ne.s32.totalorder %s44, %s60
    %p62 = scmp.eq.s32.totalorder %s15, 0
    %p63 = por %p61, %p62
    %s64 = ssub.s32 %s18, %s27
    %s65 = ssub.s32 %s17, %s31
    %s66 = sor.u32 %s64, %s65
    %p67 = scmp.eq.s32.totalorder %s66, 0
    %s69 = sadd.s32 %s68, 1
    %s70 = scalar_select %p67, %s68, %s69
    %p73 = pneg %p67
    %p74 = scmp.eq.s32.totalorder %s9, 15
    %p75 = por %p73, %p74
    %p76 = scmp.ne.s32.totalorder %s68, %s71
    %p77 = scmp.eq.s32.totalorder %s9, 0
    %p78 = por %p76, %p77
    %p79 = scmp.ne.s32.totalorder %s68, %s71
    %p80 = scmp.eq.s32.totalorder %s14, 15
    %p81 = por %p79, %p80
    %p82 = scmp.ne.s32.totalorder %s71, %s72
    %p83 = scmp.eq.s32.totalorder %s14, 0
    %p84 = por %p82, %p83
    %p85 = scmp.ne.s32.totalorder %s71, %s72
    %p86 = scmp.eq.s32.totalorder %s15, 15
    %p87 = por %p85, %p86
    %p89 = scmp.ne.s32.totalorder %s72, %s88
    %p90 = scmp.eq.s32.totalorder %s15, 0
    %p91 = por %p89, %p90
    %s92 = ssub.s32 %s17, %s31
    %p93 = scmp.eq.s32.totalorder %s92, 0
    %s95 = sadd.s32 %s94, 1
    %s96 = scalar_select %p93, %s94, %s95
    %p99 = pneg %p93
    %p100 = scmp.eq.s32.totalorder %s9, 15
    %p101 = por %p99, %p100
    %p102 = scmp.ne.s32.totalorder %s94, %s97
    %p103 = scmp.eq.s32.totalorder %s9, 0
    %p104 = por %p102, %p103
    %p105 = scmp.ne.s32.totalorder %s94, %s97
    %p106 = scmp.eq.s32.totalorder %s14, 15
    %p107 = por %p105, %p106
    %p108 = scmp.ne.s32.totalorder %s97, %s98
    %p109 = scmp.eq.s32.totalorder %s14, 0
    %p110 = por %p108, %p109
    %p111 = scmp.ne.s32.totalorder %s97, %s98
    %p112 = scmp.eq.s32.totalorder %s15, 15
    %p113 = por %p111, %p112
    %p115 = scmp.ne.s32.totalorder %s98, %s114
    %p116 = scmp.eq.s32.totalorder %s15, 0
    %p117 = por %p115, %p116
    %s118 = ssub.s32 %s16, %s35
    %s119 = ssub.s32 %s17, %s31
    %s120 = sor.u32 %s118, %s119
    %p121 = scmp.eq.s32.totalorder %s120, 0
    %s123 = sadd.s32 %s122, 1
    %s124 = scalar_select %p121, %s122, %s123
    %p127 = pneg %p121
    %p128 = scmp.eq.s32.totalorder %s9, 15
    %p129 = por %p127, %p128
    %p130 = scmp.ne.s32.totalorder %s122, %s125
    %p131 = scmp.eq.s32.totalorder %s9, 0
    %p132 = por %p130, %p131
    %p133 = scmp.ne.s32.totalorder %s122, %s125
    %p134 = scmp.eq.s32.totalorder %s14, 15
    %p135 = por %p133, %p134
    %p136 = scmp.ne.s32.totalorder %s125, %s126
    %p137 = scmp.eq.s32.totalorder %s14, 0
    %p138 = por %p136, %p137
    %p139 = scmp.ne.s32.totalorder %s125, %s126
    %p140 = scmp.eq.s32.totalorder %s15, 15
    %p141 = por %p139, %p140
    %p143 = scmp.ne.s32.totalorder %s126, %s142
    %p144 = scmp.eq.s32.totalorder %s15, 0
    %p145 = por %p143, %p144
    %p146 = scmp.le.s32.totalorder 1, %s9
    %p147 = scmp.lt.s32.totalorder %s9, 17
    %p148 = pnand %p146, %p147
    %p149 = pneg %p148
    // Predicated region
    $region9: #{discriminator_forward.8} parent=5 // pred_check
      _
    $region10: #{discriminator_forward.8} parent=5 // pred_check_branch
      %151 = sbr.rel (%p148) target = $region12
    $region11: #{discriminator_forward.8} parent=5 // pred_region
      %s152 = ssub.s32 %s9, 1
      // Predicated region
      $region13: #{discriminator_forward.8} parent=11 // pred_check
        %p153 = pneg %p84
      $region14: #{discriminator_forward.8} parent=11 // pred_check_branch
        %155 = sbr.rel (%p153) target = $region16
      $region15: #{discriminator_forward.8} parent=11 // pred_region
        %s156 = smul.u32 8, %s21
        %p157 = scmp.lt.s32.totalorder %s156, 7
        %s158 = scalar_select %p157, %s156, 7
        %p159 = scmp.lt.s32.totalorder %s20, 0
        %s160 = scalar_select %p159, %s20, 0
        %s161 = sadd.s32 %s160, %s158
        %s162 = smul.addr %s161, 4
        %s163 = scalar_lea.vmem %s1, %s162
        %s164 = smul.u32 8, %s21
      $region16: #{discriminator_forward.8} parent=11 // pred_fallthru
        _
      // Predicated region
      $region17: #{discriminator_forward.8} parent=11 // pred_check
        %p165 = pneg %p110
      $region18: #{discriminator_forward.8} parent=11 // pred_check_branch
        %167 = sbr.rel (%p165) target = $region20
      $region19: #{discriminator_forward.8} parent=11 // pred_region
        %p168 = scmp.lt.s32.totalorder %s20, 0
        %s169 = scalar_select %p168, %s20, 0
        %s170 = scalar_lea.vmem %s2, %s169
      $region20: #{discriminator_forward.8} parent=11 // pred_fallthru
        _
    $region12: #{discriminator_forward.8} parent=5 // pred_fallthru
      _
    %p171 = scmp.lt.s32.totalorder %s9, 16
    // Predicated region
    $region21: #{discriminator_forward.8} parent=5 // pred_check
      %p172 = pneg %p171
    $region22: #{discriminator_forward.8} parent=5 // pred_check_branch
      %174 = sbr.rel (%p172) target = $region24
    $region23: #{discriminator_forward.8} parent=5 // pred_region
      // Predicated region
      $region25: #{discriminator_forward.8} parent=23 // pred_check
        %p175 = pneg %p50
      $region26: #{discriminator_forward.8} parent=23 // pred_check_branch
        %177 = sbr.rel (%p175) target = $region28
      $region27: #{discriminator_forward.8} parent=23 // pred_region
        %s178 = smul.u32 64, %s16
        %p179 = scmp.lt.s32.totalorder %s178, 1023
        %s180 = scalar_select %p179, %s178, 1023
        %p181 = scmp.lt.s32.totalorder %s18, 0
        %s182 = scalar_select %p181, %s18, 0
        %s183 = sadd.s32 %s182, %s180
        %s184 = smul.addr %s183, 4
        %s185 = scalar_lea.vmem %s0, %s184
        %s186 = smul.u32 64, %s16
      $region28: #{discriminator_forward.8} parent=23 // pred_fallthru
        _
    $region24: #{discriminator_forward.8} parent=5 // pred_fallthru
      _
    %p187 = scmp.le.s32.totalorder 1, %s9
    %p188 = scmp.lt.s32.totalorder %s9, 17
    %p189 = pnand %p187, %p188
    %p190 = pneg %p189
    // Predicated region
    $region29: #{discriminator_forward.8} parent=5 // pred_check
      _
    $region30: #{discriminator_forward.8} parent=5 // pred_check_branch
      %192 = sbr.rel (%p189) target = $region32
    $region31: #{discriminator_forward.8} parent=5 // pred_region
      %s193 = ssub.s32 %s9, 1
      %s194 = smul.u32 64, %s19
      %p195 = scmp.lt.s32.totalorder %s194, 1023
      %s196 = scalar_select %p195, %s194, 1023
      %p197 = scmp.lt.s32.totalorder %s21, 0
      %s198 = scalar_select %p197, %s21, 0
      %s199 = sadd.s32 %s198, %s196
      %s200 = smul.addr %s199, 4
      %s201 = scalar_lea.vmem %s0, %s200
      %p202 = pneg %p56
      %p203 = pneg %p53
      %s204 = smul.u32 8, %s21
      %p205 = scmp.lt.s32.totalorder %s204, 7
      %s206 = scalar_select %p205, %s204, 7
      %p207 = scmp.lt.s32.totalorder %s20, 0
      %s208 = scalar_select %p207, %s20, 0
      %s209 = sadd.s32 %s208, %s206
      %s210 = smul.addr %s209, 4
      %s211 = scalar_lea.vmem %s1, %s210
      %p212 = pneg %p84
      %p213 = pneg %p81
      %p214 = scmp.lt.s32.totalorder %s20, 0
      %s215 = scalar_select %p214, %s20, 0
      %s216 = scalar_lea.vmem %s2, %s215
      %p217 = pneg %p110
      %p218 = pneg %p107
      %p219 = pneg %p138
      %p220 = pneg %p135
      %s221 = smul.u32 64, %s19
      %p222 = scmp.lt.s32.totalorder %s221, 1023
      %s223 = scalar_select %p222, %s221, 1023
      %p224 = scmp.lt.s32.totalorder %s20, 0
      %s225 = scalar_select %p224, %s20, 0
      %s226 = sadd.s32 %s225, %s223
      %s227 = smul.addr %s226, 4
      %s228 = scalar_lea.vmem %s3, %s227
      %s229 = smul.u32 64, %s19
      %p230 = scmp.lt.s32.totalorder %s229, 1023
      %s231 = scalar_select %p230, %s229, 1023
      %p232 = scmp.lt.s32.totalorder %s21, 0
      %s233 = scalar_select %p232, %s21, 0
      %s234 = sadd.s32 %s233, %s231
      %s235 = smul.addr %s234, 4
      %s236 = scalar_lea.vmem %s0, %s235
      %s237 = smul.u32 64, %s19
      %s238 = smul.u32 8, %s21
      %p239 = scmp.lt.s32.totalorder %s238, 7
      %s240 = scalar_select %p239, %s238, 7
      %p241 = scmp.lt.s32.totalorder %s20, 0
      %s242 = scalar_select %p241, %s20, 0
      %s243 = sadd.s32 %s242, %s240
      %s244 = smul.addr %s243, 4
      %s245 = scalar_lea.vmem %s1, %s244
      %s246 = smul.u32 8, %s21
      %p247 = scmp.lt.s32.totalorder %s20, 0
      %s248 = scalar_select %p247, %s20, 0
      %s249 = scalar_lea.vmem %s2, %s248
      %s250 = smul.u32 64, %s19
      %p251 = scmp.lt.s32.totalorder %s250, 1023
      %s252 = scalar_select %p251, %s250, 1023
      %p253 = scmp.lt.s32.totalorder %s20, 0
      %s254 = scalar_select %p253, %s20, 0
      %s255 = sadd.s32 %s254, %s252
      %s256 = smul.addr %s255, 4
      %s257 = scalar_lea.vmem %s3, %s256
      %s258 = smul.u32 64, %s19
      %v260 = vld [vmem:[%s236] sm:$0xf]
      %v261 = vld [vmem:[%s236 + $0x4] sm:$0xf]
      %v262 = vld [vmem:[%s236 + $0x8] sm:$0xf]
      %v263 = vld [vmem:[%s236 + $0xc] sm:$0xf]
      %v264 = vld [vmem:[%s236 + $0x10] sm:$0xf]
      %v265 = vld [vmem:[%s236 + $0x14] sm:$0xf]
      %v266 = vld [vmem:[%s236 + $0x18] sm:$0xf]
      %v267 = vld [vmem:[%s236 + $0x1c] sm:$0xf]
      %v268 = vld [vmem:[%s236 + $0x20] sm:$0xf]
      %v269 = vld [vmem:[%s236 + $0x24] sm:$0xf]
      %v270 = vld [vmem:[%s236 + $0x28] sm:$0xf]
      %v271 = vld [vmem:[%s236 + $0x2c] sm:$0xf]
      %v272 = vld [vmem:[%s236 + $0x30] sm:$0xf]
      %v273 = vld [vmem:[%s236 + $0x34] sm:$0xf]
      %v274 = vld [vmem:[%s236 + $0x38] sm:$0xf]
      %v275 = vld [vmem:[%s236 + $0x3c] sm:$0xf]
      %v276 = vld [vmem:[%s236 + $0x40] sm:$0xf]
      %v277 = vld [vmem:[%s236 + $0x44] sm:$0xf]
      %v278 = vld [vmem:[%s236 + $0x48] sm:$0xf]
      %v279 = vld [vmem:[%s236 + $0x4c] sm:$0xf]
      %v280 = vld [vmem:[%s236 + $0x50] sm:$0xf]
      %v281 = vld [vmem:[%s236 + $0x54] sm:$0xf]
      %v282 = vld [vmem:[%s236 + $0x58] sm:$0xf]
      %v283 = vld [vmem:[%s236 + $0x5c] sm:$0xf]
      %v284 = vld [vmem:[%s236 + $0x60] sm:$0xf]
      %v285 = vld [vmem:[%s236 + $0x64] sm:$0xf]
      %v286 = vld [vmem:[%s236 + $0x68] sm:$0xf]
      %v287 = vld [vmem:[%s236 + $0x6c] sm:$0xf]
      %v288 = vld [vmem:[%s236 + $0x70] sm:$0xf]
      %v289 = vld [vmem:[%s236 + $0x74] sm:$0xf]
      %v290 = vld [vmem:[%s236 + $0x78] sm:$0xf]
      %v291 = vld [vmem:[%s236 + $0x7c] sm:$0xf]
      %v292 = vld [vmem:[%s236 + $0x80] sm:$0xf]
      %v293 = vld [vmem:[%s236 + $0x84] sm:$0xf]
      %v294 = vld [vmem:[%s236 + $0x88] sm:$0xf]
      %v295 = vld [vmem:[%s236 + $0x8c] sm:$0xf]
      %v296 = vld [vmem:[%s236 + $0x90] sm:$0xf]
      %v297 = vld [vmem:[%s236 + $0x94] sm:$0xf]
      %v298 = vld [vmem:[%s236 + $0x98] sm:$0xf]
      %v299 = vld [vmem:[%s236 + $0x9c] sm:$0xf]
      %v300 = vld [vmem:[%s236 + $0xa0] sm:$0xf]
      %v301 = vld [vmem:[%s236 + $0xa4] sm:$0xf]
      %v302 = vld [vmem:[%s236 + $0xa8] sm:$0xf]
      %v303 = vld [vmem:[%s236 + $0xac] sm:$0xf]
      %v304 = vld [vmem:[%s236 + $0xb0] sm:$0xf]
      %v305 = vld [vmem:[%s236 + $0xb4] sm:$0xf]
      %v306 = vld [vmem:[%s236 + $0xb8] sm:$0xf]
      %v307 = vld [vmem:[%s236 + $0xbc] sm:$0xf]
      %v308 = vld [vmem:[%s236 + $0xc0] sm:$0xf]
      %v309 = vld [vmem:[%s236 + $0xc4] sm:$0xf]
      %v310 = vld [vmem:[%s236 + $0xc8] sm:$0xf]
      %v311 = vld [vmem:[%s236 + $0xcc] sm:$0xf]
      %v312 = vld [vmem:[%s236 + $0xd0] sm:$0xf]
      %v313 = vld [vmem:[%s236 + $0xd4] sm:$0xf]
      %v314 = vld [vmem:[%s236 + $0xd8] sm:$0xf]
      %v315 = vld [vmem:[%s236 + $0xdc] sm:$0xf]
      %v316 = vld [vmem:[%s236 + $0xe0] sm:$0xf]
      %v317 = vld [vmem:[%s236 + $0xe4] sm:$0xf]
      %v318 = vld [vmem:[%s236 + $0xe8] sm:$0xf]
      %v319 = vld [vmem:[%s236 + $0xec] sm:$0xf]
      %v320 = vld [vmem:[%s236 + $0xf0] sm:$0xf]
      %v321 = vld [vmem:[%s236 + $0xf4] sm:$0xf]
      %v322 = vld [vmem:[%s236 + $0xf8] sm:$0xf]
      %v323 = vld [vmem:[%s236 + $0xfc] sm:$0xf]
      %v324 = vld [vmem:[%s245] sm:$0xf]
      %v325 = vld [vmem:[%s245 + $0x4] sm:$0xf]
      %v326 = vld [vmem:[%s245 + $0x8] sm:$0xf]
      %v327 = vld [vmem:[%s245 + $0xc] sm:$0xf]
      %v328 = vld [vmem:[%s245 + $0x10] sm:$0xf]
      %v329 = vld [vmem:[%s245 + $0x14] sm:$0xf]
      %v330 = vld [vmem:[%s245 + $0x18] sm:$0xf]
      %v331 = vld [vmem:[%s245 + $0x1c] sm:$0xf]
      %v332 = vld [vmem:[%s249] sm:$0x1]
      %v334 = vlaneseq
      %v335 = vshrl.u32 %v334, 7
      %v336 = vsub.s32 0, %v335
      %v337 = vrot.slane %v332, %v336
      %v403 = vunpack.c.l.b16 %v260
      %v404 = vunpack.c.l.b16 %v261
      %v405 = vunpack.c.l.b16 %v262
      %v406 = vunpack.c.l.b16 %v263
      %v407 = vunpack.c.l.b16 %v264
      %v408 = vunpack.c.l.b16 %v265
      %v409 = vunpack.c.l.b16 %v266
      %v410 = vunpack.c.l.b16 %v267
      %v411 = vunpack.c.l.b16 %v268
      %v412 = vunpack.c.l.b16 %v269
      %v413 = vunpack.c.l.b16 %v270
      %v414 = vunpack.c.l.b16 %v271
      %v415 = vunpack.c.l.b16 %v272
      %v416 = vunpack.c.l.b16 %v273
      %v417 = vunpack.c.l.b16 %v274
      %v418 = vunpack.c.l.b16 %v275
      %v419 = vunpack.c.l.b16 %v276
      %v420 = vunpack.c.l.b16 %v277
      %v421 = vunpack.c.l.b16 %v278
      %v422 = vunpack.c.l.b16 %v279
      %v423 = vunpack.c.l.b16 %v280
      %v424 = vunpack.c.l.b16 %v281
      %v425 = vunpack.c.l.b16 %v282
      %v426 = vunpack.c.l.b16 %v283
      %v427 = vunpack.c.l.b16 %v284
      %v428 = vunpack.c.l.b16 %v285
      %v429 = vunpack.c.l.b16 %v286
      %v430 = vunpack.c.l.b16 %v287
      %v431 = vunpack.c.l.b16 %v288
      %v432 = vunpack.c.l.b16 %v289
      %v433 = vunpack.c.l.b16 %v290
      %v434 = vunpack.c.l.b16 %v291
      %v435 = vunpack.c.l.b16 %v292
      %v436 = vunpack.c.l.b16 %v293
      %v437 = vunpack.c.l.b16 %v294
      %v438 = vunpack.c.l.b16 %v295
      %v439 = vunpack.c.l.b16 %v296
      %v440 = vunpack.c.l.b16 %v297
      %v441 = vunpack.c.l.b16 %v298
      %v442 = vunpack.c.l.b16 %v299
      %v443 = vunpack.c.l.b16 %v300
      %v444 = vunpack.c.l.b16 %v301
      %v445 = vunpack.c.l.b16 %v302
      %v446 = vunpack.c.l.b16 %v303
      %v447 = vunpack.c.l.b16 %v304
      %v448 = vunpack.c.l.b16 %v305
      %v449 = vunpack.c.l.b16 %v306
      %v450 = vunpack.c.l.b16 %v307
      %v451 = vunpack.c.l.b16 %v308
      %v452 = vunpack.c.l.b16 %v309
      %v453 = vunpack.c.l.b16 %v310
      %v454 = vunpack.c.l.b16 %v311
      %v455 = vunpack.c.l.b16 %v312
      %v456 = vunpack.c.l.b16 %v313
      %v457 = vunpack.c.l.b16 %v314
      %v458 = vunpack.c.l.b16 %v315
      %v459 = vunpack.c.l.b16 %v316
      %v460 = vunpack.c.l.b16 %v317
      %v461 = vunpack.c.l.b16 %v318
      %v462 = vunpack.c.l.b16 %v319
      %v463 = vunpack.c.l.b16 %v320
      %v464 = vunpack.c.l.b16 %v321
      %v465 = vunpack.c.l.b16 %v322
      %v466 = vunpack.c.l.b16 %v323
      %v467 = vpack.c.b16 %v404, %v403
      %v468 = vpack.c.b16 %v406, %v405
      %v469 = vpack.c.b16 %v408, %v407
      %v470 = vpack.c.b16 %v410, %v409
      %v471 = vpack.c.b16 %v412, %v411
      %v472 = vpack.c.b16 %v414, %v413
      %v473 = vpack.c.b16 %v416, %v415
      %v474 = vpack.c.b16 %v418, %v417
      %v475 = vpack.c.b16 %v420, %v419
      %v476 = vpack.c.b16 %v422, %v421
      %v477 = vpack.c.b16 %v424, %v423
      %v478 = vpack.c.b16 %v426, %v425
      %v479 = vpack.c.b16 %v428, %v427
      %v480 = vpack.c.b16 %v430, %v429
      %v481 = vpack.c.b16 %v432, %v431
      %v482 = vpack.c.b16 %v434, %v433
      %v483 = vpack.c.b16 %v436, %v435
      %v484 = vpack.c.b16 %v438, %v437
      %v485 = vpack.c.b16 %v440, %v439
      %v486 = vpack.c.b16 %v442, %v441
      %v487 = vpack.c.b16 %v444, %v443
      %v488 = vpack.c.b16 %v446, %v445
      %v489 = vpack.c.b16 %v448, %v447
      %v490 = vpack.c.b16 %v450, %v449
      %v491 = vpack.c.b16 %v452, %v451
      %v492 = vpack.c.b16 %v454, %v453
      %v493 = vpack.c.b16 %v456, %v455
      %v494 = vpack.c.b16 %v458, %v457
      %v495 = vpack.c.b16 %v460, %v459
      %v496 = vpack.c.b16 %v462, %v461
      %v497 = vpack.c.b16 %v464, %v463
      %v498 = vpack.c.b16 %v466, %v465
      %v507 = vunpack.c.l.b16 %v324
      %v508 = vunpack.c.l.b16 %v325
      %v509 = vunpack.c.l.b16 %v326
      %v510 = vunpack.c.l.b16 %v327
      %v511 = vunpack.c.l.b16 %v328
      %v512 = vunpack.c.l.b16 %v329
      %v513 = vunpack.c.l.b16 %v330
      %v514 = vunpack.c.l.b16 %v331
      %v515 = vpack.c.b16 %v508, %v507
      %v516 = vpack.c.b16 %v510, %v509
      %v517 = vpack.c.b16 %v512, %v511
      %v518 = vpack.c.b16 %v514, %v513
      %vm523 = vcmask 523264
      %v525 = vsel %vm523, %v467, 0
      %v528 = vsel %vm523, %v468, 0
      %v531 = vsel %vm523, %v469, 0
      %v534 = vsel %vm523, %v470, 0
      %v537 = vsel %vm523, %v471, 0
      %v540 = vsel %vm523, %v472, 0
      %v543 = vsel %vm523, %v473, 0
      %v546 = vsel %vm523, %v474, 0
      %v549 = vsel %vm523, %v475, 0
      %v552 = vsel %vm523, %v476, 0
      %v555 = vsel %vm523, %v477, 0
      %v558 = vsel %vm523, %v478, 0
      %v561 = vsel %vm523, %v479, 0
      %v564 = vsel %vm523, %v480, 0
      %v567 = vsel %vm523, %v481, 0
      %v570 = vsel %vm523, %v482, 0
      %v573 = vsel %vm523, %v483, 0
      %v576 = vsel %vm523, %v484, 0
      %v579 = vsel %vm523, %v485, 0
      %v582 = vsel %vm523, %v486, 0
      %v585 = vsel %vm523, %v487, 0
      %v588 = vsel %vm523, %v488, 0
      %v591 = vsel %vm523, %v489, 0
      %v594 = vsel %vm523, %v490, 0
      %v597 = vsel %vm523, %v491, 0
      %v600 = vsel %vm523, %v492, 0
      %v603 = vsel %vm523, %v493, 0
      %v606 = vsel %vm523, %v494, 0
      %v609 = vsel %vm523, %v495, 0
      %v612 = vsel %vm523, %v496, 0
      %v615 = vsel %vm523, %v497, 0
      %v618 = vsel %vm523, %v498, 0
      %620 = vmatprep.subr.bf16.mxu0 0
      %621 = vmatpush1.bf16.msra.mxu0 0
      %622 = vmatprep.subr.bf16.mxu0 0
      %623 = vmatpush1.bf16.msra.mxu0 0
      %624 = vmatprep.subr.bf16.mxu0 0
      %625 = vmatpush1.bf16.msra.mxu0 0
      %626 = vmatprep.subr.bf16.mxu0 0
      %627 = vmatpush1.bf16.msra.mxu0 0
      %628 = vmatprep.subr.bf16.mxu0 0
      %629 = vmatpush1.bf16.msra.mxu0 %v518
      %630 = vmatprep.subr.bf16.mxu0 0
      %631 = vmatpush1.bf16.msra.mxu0 %v517
      %632 = vmatprep.subr.bf16.mxu0 0
      %633 = vmatpush1.bf16.msra.mxu0 %v516
      %634 = vmatprep.subr.bf16.mxu0 0
      %635 = vmatpush1.bf16.msra.mxu0 %v515
      %636 = vmatprep.subr.bf16.mxu0 0
      %637 = vmatpush2.bf16.msra.mxu0 0
      %638 = vmatprep.subr.bf16.mxu0 0
      %639 = vmatpush2.bf16.msra.mxu0 0
      %640 = vmatprep.subr.bf16.mxu0 0
      %641 = vmatpush2.bf16.msra.mxu0 0
      %642 = vmatprep.subr.bf16.mxu0 0
      %643 = vmatpush2.bf16.msra.mxu0 0
      %644 = vmatprep.subr.bf16.mxu0 0
      %645 = vmatpush2.bf16.msra.mxu0 0
      %646 = vmatprep.subr.bf16.mxu0 0
      %647 = vmatpush2.bf16.msra.mxu0 0
      %648 = vmatprep.subr.bf16.mxu0 0
      %649 = vmatpush2.bf16.msra.mxu0 0
      %650 = vmatprep.subr.bf16.mxu0 0
      %651 = vmatpush2.bf16.msra.mxu0 0
      %652 = vmatprep.mubr.bf16.mxu0 0
      %653 = vmatmul.mubr.bf16.gmra.mxu0 %v525
      %v654 = vpop.f32.mrf.mxu0
      %v655 = vadd.f32 %v337, %v654
      %v656 = vpop.f32.mrf.mxu0
      %v657 = vpop.f32.mrf.mxu0
      %v658 = vadd.f32 %v337, %v657
      %v659 = vpop.f32.mrf.mxu0
      %660 = vmatprep.mubr.bf16.mxu0 0
      %661 = vmatmul.mubr.bf16.gmra.mxu0 %v528
      %v662 = vpop.f32.mrf.mxu0
      %v663 = vadd.f32 %v337, %v662
      %v664 = vpop.f32.mrf.mxu0
      %v665 = vpop.f32.mrf.mxu0
      %v666 = vadd.f32 %v337, %v665
      %v667 = vpop.f32.mrf.mxu0
      %668 = vmatprep.mubr.bf16.mxu0 0
      %669 = vmatmul.mubr.bf16.gmra.mxu0 %v531
      %v670 = vpop.f32.mrf.mxu0
      %v671 = vadd.f32 %v337, %v670
      %v672 = vpop.f32.mrf.mxu0
      %v673 = vpop.f32.mrf.mxu0
      %v674 = vadd.f32 %v337, %v673
      %v675 = vpop.f32.mrf.mxu0
      %676 = vmatprep.mubr.bf16.mxu0 0
      %677 = vmatmul.mubr.bf16.gmra.mxu0 %v534
      %v678 = vpop.f32.mrf.mxu0
      %v679 = vadd.f32 %v337, %v678
      %v680 = vpop.f32.mrf.mxu0
      %v681 = vpop.f32.mrf.mxu0
      %v682 = vadd.f32 %v337, %v681
      %v683 = vpop.f32.mrf.mxu0
      %684 = vmatprep.mubr.bf16.mxu0 0
      %685 = vmatmul.mubr.bf16.gmra.mxu0 %v537
      %v686 = vpop.f32.mrf.mxu0
      %v687 = vadd.f32 %v337, %v686
      %v688 = vpop.f32.mrf.mxu0
      %v689 = vpop.f32.mrf.mxu0
      %v690 = vadd.f32 %v337, %v689
      %v691 = vpop.f32.mrf.mxu0
      %692 = vmatprep.mubr.bf16.mxu0 0
      %693 = vmatmul.mubr.bf16.gmra.mxu0 %v540
      %v694 = vpop.f32.mrf.mxu0
      %v695 = vadd.f32 %v337, %v694
      %v696 = vpop.f32.mrf.mxu0
      %v697 = vpop.f32.mrf.mxu0
      %v698 = vadd.f32 %v337, %v697
      %v699 = vpop.f32.mrf.mxu0
      %700 = vmatprep.mubr.bf16.mxu0 0
      %701 = vmatmul.mubr.bf16.gmra.mxu0 %v543
      %v702 = vpop.f32.mrf.mxu0
      %v703 = vadd.f32 %v337, %v702
      %v704 = vpop.f32.mrf.mxu0
      %v705 = vpop.f32.mrf.mxu0
      %v706 = vadd.f32 %v337, %v705
      %v707 = vpop.f32.mrf.mxu0
      %708 = vmatprep.mubr.bf16.mxu0 0
      %709 = vmatmul.mubr.bf16.gmra.mxu0 %v546
      %v710 = vpop.f32.mrf.mxu0
      %v711 = vadd.f32 %v337, %v710
      %v712 = vpop.f32.mrf.mxu0
      %v713 = vpop.f32.mrf.mxu0
      %v714 = vadd.f32 %v337, %v713
      %v715 = vpop.f32.mrf.mxu0
      %716 = vmatprep.mubr.bf16.mxu0 0
      %717 = vmatmul.mubr.bf16.gmra.mxu0 %v549
      %v718 = vpop.f32.mrf.mxu0
      %v719 = vadd.f32 %v337, %v718
      %v720 = vpop.f32.mrf.mxu0
      %v721 = vpop.f32.mrf.mxu0
      %v722 = vadd.f32 %v337, %v721
      %v723 = vpop.f32.mrf.mxu0
      %724 = vmatprep.mubr.bf16.mxu0 0
      %725 = vmatmul.mubr.bf16.gmra.mxu0 %v552
      %v726 = vpop.f32.mrf.mxu0
      %v727 = vadd.f32 %v337, %v726
      %v728 = vpop.f32.mrf.mxu0
      %v729 = vpop.f32.mrf.mxu0
      %v730 = vadd.f32 %v337, %v729
      %v731 = vpop.f32.mrf.mxu0
      %732 = vmatprep.mubr.bf16.mxu0 0
      %733 = vmatmul.mubr.bf16.gmra.mxu0 %v555
      %v734 = vpop.f32.mrf.mxu0
      %v735 = vadd.f32 %v337, %v734
      %v736 = vpop.f32.mrf.mxu0
      %v737 = vpop.f32.mrf.mxu0
      %v738 = vadd.f32 %v337, %v737
      %v739 = vpop.f32.mrf.mxu0
      %740 = vmatprep.mubr.bf16.mxu0 0
      %741 = vmatmul.mubr.bf16.gmra.mxu0 %v558
      %v742 = vpop.f32.mrf.mxu0
      %v743 = vadd.f32 %v337, %v742
      %v744 = vpop.f32.mrf.mxu0
      %v745 = vpop.f32.mrf.mxu0
      %v746 = vadd.f32 %v337, %v745
      %v747 = vpop.f32.mrf.mxu0
      %748 = vmatprep.mubr.bf16.mxu0 0
      %749 = vmatmul.mubr.bf16.gmra.mxu0 %v561
      %v750 = vpop.f32.mrf.mxu0
      %v751 = vadd.f32 %v337, %v750
      %v752 = vpop.f32.mrf.mxu0
      %v753 = vpop.f32.mrf.mxu0
      %v754 = vadd.f32 %v337, %v753
      %v755 = vpop.f32.mrf.mxu0
      %756 = vmatprep.mubr.bf16.mxu0 0
      %757 = vmatmul.mubr.bf16.gmra.mxu0 %v564
      %v758 = vpop.f32.mrf.mxu0
      %v759 = vadd.f32 %v337, %v758
      %v760 = vpop.f32.mrf.mxu0
      %v761 = vpop.f32.mrf.mxu0
      %v762 = vadd.f32 %v337, %v761
      %v763 = vpop.f32.mrf.mxu0
      %764 = vmatprep.mubr.bf16.mxu0 0
      %765 = vmatmul.mubr.bf16.gmra.mxu0 %v567
      %v766 = vpop.f32.mrf.mxu0
      %v767 = vadd.f32 %v337, %v766
      %v768 = vpop.f32.mrf.mxu0
      %v769 = vpop.f32.mrf.mxu0
      %v770 = vadd.f32 %v337, %v769
      %v771 = vpop.f32.mrf.mxu0
      %772 = vmatprep.mubr.bf16.mxu0 0
      %773 = vmatmul.mubr.bf16.gmra.mxu0 %v570
      %v774 = vpop.f32.mrf.mxu0
      %v775 = vadd.f32 %v337, %v774
      %v776 = vpop.f32.mrf.mxu0
      %v777 = vpop.f32.mrf.mxu0
      %v778 = vadd.f32 %v337, %v777
      %v779 = vpop.f32.mrf.mxu0
      %780 = vmatprep.mubr.bf16.mxu0 0
      %781 = vmatmul.mubr.bf16.gmra.mxu0 %v573
      %v782 = vpop.f32.mrf.mxu0
      %v783 = vadd.f32 %v337, %v782
      %v784 = vpop.f32.mrf.mxu0
      %v785 = vpop.f32.mrf.mxu0
      %v786 = vadd.f32 %v337, %v785
      %v787 = vpop.f32.mrf.mxu0
      %788 = vmatprep.mubr.bf16.mxu0 0
      %789 = vmatmul.mubr.bf16.gmra.mxu0 %v576
      %v790 = vpop.f32.mrf.mxu0
      %v791 = vadd.f32 %v337, %v790
      %v792 = vpop.f32.mrf.mxu0
      %v793 = vpop.f32.mrf.mxu0
      %v794 = vadd.f32 %v337, %v793
      %v795 = vpop.f32.mrf.mxu0
      %796 = vmatprep.mubr.bf16.mxu0 0
      %797 = vmatmul.mubr.bf16.gmra.mxu0 %v579
      %v798 = vpop.f32.mrf.mxu0
      %v799 = vadd.f32 %v337, %v798
      %v800 = vpop.f32.mrf.mxu0
      %v801 = vpop.f32.mrf.mxu0
      %v802 = vadd.f32 %v337, %v801
      %v803 = vpop.f32.mrf.mxu0
      %804 = vmatprep.mubr.bf16.mxu0 0
      %805 = vmatmul.mubr.bf16.gmra.mxu0 %v582
      %v806 = vpop.f32.mrf.mxu0
      %v807 = vadd.f32 %v337, %v806
      %v808 = vpop.f32.mrf.mxu0
      %v809 = vpop.f32.mrf.mxu0
      %v810 = vadd.f32 %v337, %v809
      %v811 = vpop.f32.mrf.mxu0
      %812 = vmatprep.mubr.bf16.mxu0 0
      %813 = vmatmul.mubr.bf16.gmra.mxu0 %v585
      %v814 = vpop.f32.mrf.mxu0
      %v815 = vadd.f32 %v337, %v814
      %v816 = vpop.f32.mrf.mxu0
      %v817 = vpop.f32.mrf.mxu0
      %v818 = vadd.f32 %v337, %v817
      %v819 = vpop.f32.mrf.mxu0
      %820 = vmatprep.mubr.bf16.mxu0 0
      %821 = vmatmul.mubr.bf16.gmra.mxu0 %v588
      %v822 = vpop.f32.mrf.mxu0
      %v823 = vadd.f32 %v337, %v822
      %v824 = vpop.f32.mrf.mxu0
      %v825 = vpop.f32.mrf.mxu0
      %v826 = vadd.f32 %v337, %v825
      %v827 = vpop.f32.mrf.mxu0
      %828 = vmatprep.mubr.bf16.mxu0 0
      %829 = vmatmul.mubr.bf16.gmra.mxu0 %v591
      %v830 = vpop.f32.mrf.mxu0
      %v831 = vadd.f32 %v337, %v830
      %v832 = vpop.f32.mrf.mxu0
      %v833 = vpop.f32.mrf.mxu0
      %v834 = vadd.f32 %v337, %v833
      %v835 = vpop.f32.mrf.mxu0
      %836 = vmatprep.mubr.bf16.mxu0 0
      %837 = vmatmul.mubr.bf16.gmra.mxu0 %v594
      %v838 = vpop.f32.mrf.mxu0
      %v839 = vadd.f32 %v337, %v838
      %v840 = vpop.f32.mrf.mxu0
      %v841 = vpop.f32.mrf.mxu0
      %v842 = vadd.f32 %v337, %v841
      %v843 = vpop.f32.mrf.mxu0
      %844 = vmatprep.mubr.bf16.mxu0 0
      %845 = vmatmul.mubr.bf16.gmra.mxu0 %v597
      %v846 = vpop.f32.mrf.mxu0
      %v847 = vadd.f32 %v337, %v846
      %v848 = vpop.f32.mrf.mxu0
      %v849 = vpop.f32.mrf.mxu0
      %v850 = vadd.f32 %v337, %v849
      %v851 = vpop.f32.mrf.mxu0
      %852 = vmatprep.mubr.bf16.mxu0 0
      %853 = vmatmul.mubr.bf16.gmra.mxu0 %v600
      %v854 = vpop.f32.mrf.mxu0
      %v855 = vadd.f32 %v337, %v854
      %v856 = vpop.f32.mrf.mxu0
      %v857 = vpop.f32.mrf.mxu0
      %v858 = vadd.f32 %v337, %v857
      %v859 = vpop.f32.mrf.mxu0
      %860 = vmatprep.mubr.bf16.mxu0 0
      %861 = vmatmul.mubr.bf16.gmra.mxu0 %v603
      %v862 = vpop.f32.mrf.mxu0
      %v863 = vadd.f32 %v337, %v862
      %v864 = vpop.f32.mrf.mxu0
      %v865 = vpop.f32.mrf.mxu0
      %v866 = vadd.f32 %v337, %v865
      %v867 = vpop.f32.mrf.mxu0
      %868 = vmatprep.mubr.bf16.mxu0 0
      %869 = vmatmul.mubr.bf16.gmra.mxu0 %v606
      %v870 = vpop.f32.mrf.mxu0
      %v871 = vadd.f32 %v337, %v870
      %v872 = vpop.f32.mrf.mxu0
      %v873 = vpop.f32.mrf.mxu0
      %v874 = vadd.f32 %v337, %v873
      %v875 = vpop.f32.mrf.mxu0
      %876 = vmatprep.mubr.bf16.mxu0 0
      %877 = vmatmul.mubr.bf16.gmra.mxu0 %v609
      %v878 = vpop.f32.mrf.mxu0
      %v879 = vadd.f32 %v337, %v878
      %v880 = vpop.f32.mrf.mxu0
      %v881 = vpop.f32.mrf.mxu0
      %v882 = vadd.f32 %v337, %v881
      %v883 = vpop.f32.mrf.mxu0
      %884 = vmatprep.mubr.bf16.mxu0 0
      %885 = vmatmul.mubr.bf16.gmra.mxu0 %v612
      %v886 = vpop.f32.mrf.mxu0
      %v887 = vadd.f32 %v337, %v886
      %v888 = vpop.f32.mrf.mxu0
      %v889 = vpop.f32.mrf.mxu0
      %v890 = vadd.f32 %v337, %v889
      %v891 = vpop.f32.mrf.mxu0
      %892 = vmatprep.mubr.bf16.mxu0 0
      %893 = vmatmul.mubr.bf16.gmra.mxu0 %v615
      %v894 = vpop.f32.mrf.mxu0
      %v895 = vadd.f32 %v337, %v894
      %v896 = vpop.f32.mrf.mxu0
      %v897 = vpop.f32.mrf.mxu0
      %v898 = vadd.f32 %v337, %v897
      %v899 = vpop.f32.mrf.mxu0
      %900 = vmatprep.mubr.bf16.mxu0 0
      %901 = vmatmul.mubr.bf16.gmra.mxu0 %v618
      %v902 = vpop.f32.mrf.mxu0
      %v903 = vadd.f32 %v337, %v902
      %v904 = vpop.f32.mrf.mxu0
      %v905 = vpop.f32.mrf.mxu0
      %v906 = vadd.f32 %v337, %v905
      %v907 = vpop.f32.mrf.mxu0
      %908 = vdwg.mxu0
      %vm909 = vcmp.ge.f32.partialorder %v655, 0.0
      %vm910 = vcmp.ge.f32.partialorder %v658, 0.0
      %vm911 = vcmp.ge.f32.partialorder %v663, 0.0
      %vm912 = vcmp.ge.f32.partialorder %v666, 0.0
      %vm913 = vcmp.ge.f32.partialorder %v671, 0.0
      %vm914 = vcmp.ge.f32.partialorder %v674, 0.0
      %vm915 = vcmp.ge.f32.partialorder %v679, 0.0
      %vm916 = vcmp.ge.f32.partialorder %v682, 0.0
      %vm917 = vcmp.ge.f32.partialorder %v687, 0.0
      %vm918 = vcmp.ge.f32.partialorder %v690, 0.0
      %vm919 = vcmp.ge.f32.partialorder %v695, 0.0
      %vm920 = vcmp.ge.f32.partialorder %v698, 0.0
      %vm921 = vcmp.ge.f32.partialorder %v703, 0.0
      %vm922 = vcmp.ge.f32.partialorder %v706, 0.0
      %vm923 = vcmp.ge.f32.partialorder %v711, 0.0
      %vm924 = vcmp.ge.f32.partialorder %v714, 0.0
      %vm925 = vcmp.ge.f32.partialorder %v719, 0.0
      %vm926 = vcmp.ge.f32.partialorder %v722, 0.0
      %vm927 = vcmp.ge.f32.partialorder %v727, 0.0
      %vm928 = vcmp.ge.f32.partialorder %v730, 0.0
      %vm929 = vcmp.ge.f32.partialorder %v735, 0.0
      %vm930 = vcmp.ge.f32.partialorder %v738, 0.0
      %vm931 = vcmp.ge.f32.partialorder %v743, 0.0
      %vm932 = vcmp.ge.f32.partialorder %v746, 0.0
      %vm933 = vcmp.ge.f32.partialorder %v751, 0.0
      %vm934 = vcmp.ge.f32.partialorder %v754, 0.0
      %vm935 = vcmp.ge.f32.partialorder %v759, 0.0
      %vm936 = vcmp.ge.f32.partialorder %v762, 0.0
      %vm937 = vcmp.ge.f32.partialorder %v767, 0.0
      %vm938 = vcmp.ge.f32.partialorder %v770, 0.0
      %vm939 = vcmp.ge.f32.partialorder %v775, 0.0
      %vm940 = vcmp.ge.f32.partialorder %v778, 0.0
      %vm941 = vcmp.ge.f32.partialorder %v783, 0.0
      %vm942 = vcmp.ge.f32.partialorder %v786, 0.0
      %vm943 = vcmp.ge.f32.partialorder %v791, 0.0
      %vm944 = vcmp.ge.f32.partialorder %v794, 0.0
      %vm945 = vcmp.ge.f32.partialorder %v799, 0.0
      %vm946 = vcmp.ge.f32.partialorder %v802, 0.0
      %vm947 = vcmp.ge.f32.partialorder %v807, 0.0
      %vm948 = vcmp.ge.f32.partialorder %v810, 0.0
      %vm949 = vcmp.ge.f32.partialorder %v815, 0.0
      %vm950 = vcmp.ge.f32.partialorder %v818, 0.0
      %vm951 = vcmp.ge.f32.partialorder %v823, 0.0
      %vm952 = vcmp.ge.f32.partialorder %v826, 0.0
      %vm953 = vcmp.ge.f32.partialorder %v831, 0.0
      %vm954 = vcmp.ge.f32.partialorder %v834, 0.0
      %vm955 = vcmp.ge.f32.partialorder %v839, 0.0
      %vm956 = vcmp.ge.f32.partialorder %v842, 0.0
      %vm957 = vcmp.ge.f32.partialorder %v847, 0.0
      %vm958 = vcmp.ge.f32.partialorder %v850, 0.0
      %vm959 = vcmp.ge.f32.partialorder %v855, 0.0
      %vm960 = vcmp.ge.f32.partialorder %v858, 0.0
      %vm961 = vcmp.ge.f32.partialorder %v863, 0.0
      %vm962 = vcmp.ge.f32.partialorder %v866, 0.0
      %vm963 = vcmp.ge.f32.partialorder %v871, 0.0
      %vm964 = vcmp.ge.f32.partialorder %v874, 0.0
      %vm965 = vcmp.ge.f32.partialorder %v879, 0.0
      %vm966 = vcmp.ge.f32.partialorder %v882, 0.0
      %vm967 = vcmp.ge.f32.partialorder %v887, 0.0
      %vm968 = vcmp.ge.f32.partialorder %v890, 0.0
      %vm969 = vcmp.ge.f32.partialorder %v895, 0.0
      %vm970 = vcmp.ge.f32.partialorder %v898, 0.0
      %vm971 = vcmp.ge.f32.partialorder %v903, 0.0
      %vm972 = vcmp.ge.f32.partialorder %v906, 0.0
      %v973 = vmul.f32 %v655, 0.2
      %v974 = vmul.f32 %v658, 0.2
      %v975 = vmul.f32 %v663, 0.2
      %v976 = vmul.f32 %v666, 0.2
      %v977 = vmul.f32 %v671, 0.2
      %v978 = vmul.f32 %v674, 0.2
      %v979 = vmul.f32 %v679, 0.2
      %v980 = vmul.f32 %v682, 0.2
      %v981 = vmul.f32 %v687, 0.2
      %v982 = vmul.f32 %v690, 0.2
      %v983 = vmul.f32 %v695, 0.2
      %v984 = vmul.f32 %v698, 0.2
      %v985 = vmul.f32 %v703, 0.2
      %v986 = vmul.f32 %v706, 0.2
      %v987 = vmul.f32 %v711, 0.2
      %v988 = vmul.f32 %v714, 0.2
      %v989 = vmul.f32 %v719, 0.2
      %v990 = vmul.f32 %v722, 0.2
      %v991 = vmul.f32 %v727, 0.2
      %v992 = vmul.f32 %v730, 0.2
      %v993 = vmul.f32 %v735, 0.2
      %v994 = vmul.f32 %v738, 0.2
      %v995 = vmul.f32 %v743, 0.2
      %v996 = vmul.f32 %v746, 0.2
      %v997 = vmul.f32 %v751, 0.2
      %v998 = vmul.f32 %v754, 0.2
      %v999 = vmul.f32 %v759, 0.2
      %v1000 = vmul.f32 %v762, 0.2
      %v1001 = vmul.f32 %v767, 0.2
      %v1002 = vmul.f32 %v770, 0.2
      %v1003 = vmul.f32 %v775, 0.2
      %v1004 = vmul.f32 %v778, 0.2
      %v1005 = vmul.f32 %v783, 0.2
      %v1006 = vmul.f32 %v786, 0.2
      %v1007 = vmul.f32 %v791, 0.2
      %v1008 = vmul.f32 %v794, 0.2
      %v1009 = vmul.f32 %v799, 0.2
      %v1010 = vmul.f32 %v802, 0.2
      %v1011 = vmul.f32 %v807, 0.2
      %v1012 = vmul.f32 %v810, 0.2
      %v1013 = vmul.f32 %v815, 0.2
      %v1014 = vmul.f32 %v818, 0.2
      %v1015 = vmul.f32 %v823, 0.2
      %v1016 = vmul.f32 %v826, 0.2
      %v1017 = vmul.f32 %v831, 0.2
      %v1018 = vmul.f32 %v834, 0.2
      %v1019 = vmul.f32 %v839, 0.2
      %v1020 = vmul.f32 %v842, 0.2
      %v1021 = vmul.f32 %v847, 0.2
      %v1022 = vmul.f32 %v850, 0.2
      %v1023 = vmul.f32 %v855, 0.2
      %v1024 = vmul.f32 %v858, 0.2
      %v1025 = vmul.f32 %v863, 0.2
      %v1026 = vmul.f32 %v866, 0.2
      %v1027 = vmul.f32 %v871, 0.2
      %v1028 = vmul.f32 %v874, 0.2
      %v1029 = vmul.f32 %v879, 0.2
      %v1030 = vmul.f32 %v882, 0.2
      %v1031 = vmul.f32 %v887, 0.2
      %v1032 = vmul.f32 %v890, 0.2
      %v1033 = vmul.f32 %v895, 0.2
      %v1034 = vmul.f32 %v898, 0.2
      %v1035 = vmul.f32 %v903, 0.2
      %v1036 = vmul.f32 %v906, 0.2
      %v1037 = vsel %vm909, %v655, %v973
      %v1038 = vsel %vm910, %v658, %v974
      %v1039 = vsel %vm911, %v663, %v975
      %v1040 = vsel %vm912, %v666, %v976
      %v1041 = vsel %vm913, %v671, %v977
      %v1042 = vsel %vm914, %v674, %v978
      %v1043 = vsel %vm915, %v679, %v979
      %v1044 = vsel %vm916, %v682, %v980
      %v1045 = vsel %vm917, %v687, %v981
      %v1046 = vsel %vm918, %v690, %v982
      %v1047 = vsel %vm919, %v695, %v983
      %v1048 = vsel %vm920, %v698, %v984
      %v1049 = vsel %vm921, %v703, %v985
      %v1050 = vsel %vm922, %v706, %v986
      %v1051 = vsel %vm923, %v711, %v987
      %v1052 = vsel %vm924, %v714, %v988
      %v1053 = vsel %vm925, %v719, %v989
      %v1054 = vsel %vm926, %v722, %v990
      %v1055 = vsel %vm927, %v727, %v991
      %v1056 = vsel %vm928, %v730, %v992
      %v1057 = vsel %vm929, %v735, %v993
      %v1058 = vsel %vm930, %v738, %v994
      %v1059 = vsel %vm931, %v743, %v995
      %v1060 = vsel %vm932, %v746, %v996
      %v1061 = vsel %vm933, %v751, %v997
      %v1062 = vsel %vm934, %v754, %v998
      %v1063 = vsel %vm935, %v759, %v999
      %v1064 = vsel %vm936, %v762, %v1000
      %v1065 = vsel %vm937, %v767, %v1001
      %v1066 = vsel %vm938, %v770, %v1002
      %v1067 = vsel %vm939, %v775, %v1003
      %v1068 = vsel %vm940, %v778, %v1004
      %v1069 = vsel %vm941, %v783, %v1005
      %v1070 = vsel %vm942, %v786, %v1006
      %v1071 = vsel %vm943, %v791, %v1007
      %v1072 = vsel %vm944, %v794, %v1008
      %v1073 = vsel %vm945, %v799, %v1009
      %v1074 = vsel %vm946, %v802, %v1010
      %v1075 = vsel %vm947, %v807, %v1011
      %v1076 = vsel %vm948, %v810, %v1012
      %v1077 = vsel %vm949, %v815, %v1013
      %v1078 = vsel %vm950, %v818, %v1014
      %v1079 = vsel %vm951, %v823, %v1015
      %v1080 = vsel %vm952, %v826, %v1016
      %v1081 = vsel %vm953, %v831, %v1017
      %v1082 = vsel %vm954, %v834, %v1018
      %v1083 = vsel %vm955, %v839, %v1019
      %v1084 = vsel %vm956, %v842, %v1020
      %v1085 = vsel %vm957, %v847, %v1021
      %v1086 = vsel %vm958, %v850, %v1022
      %v1087 = vsel %vm959, %v855, %v1023
      %v1088 = vsel %vm960, %v858, %v1024
      %v1089 = vsel %vm961, %v863, %v1025
      %v1090 = vsel %vm962, %v866, %v1026
      %v1091 = vsel %vm963, %v871, %v1027
      %v1092 = vsel %vm964, %v874, %v1028
      %v1093 = vsel %vm965, %v879, %v1029
      %v1094 = vsel %vm966, %v882, %v1030
      %v1095 = vsel %vm967, %v887, %v1031
      %v1096 = vsel %vm968, %v890, %v1032
      %v1097 = vsel %vm969, %v895, %v1033
      %v1098 = vsel %vm970, %v898, %v1034
      %v1099 = vsel %vm971, %v903, %v1035
      %v1100 = vsel %vm972, %v906, %v1036
      %v1101 = vpack.c.bf16 %v1038, %v1037
      %v1102 = vpack.c.bf16 %v1040, %v1039
      %v1103 = vpack.c.bf16 %v1042, %v1041
      %v1104 = vpack.c.bf16 %v1044, %v1043
      %v1105 = vpack.c.bf16 %v1046, %v1045
      %v1106 = vpack.c.bf16 %v1048, %v1047
      %v1107 = vpack.c.bf16 %v1050, %v1049
      %v1108 = vpack.c.bf16 %v1052, %v1051
      %v1109 = vpack.c.bf16 %v1054, %v1053
      %v1110 = vpack.c.bf16 %v1056, %v1055
      %v1111 = vpack.c.bf16 %v1058, %v1057
      %v1112 = vpack.c.bf16 %v1060, %v1059
      %v1113 = vpack.c.bf16 %v1062, %v1061
      %v1114 = vpack.c.bf16 %v1064, %v1063
      %v1115 = vpack.c.bf16 %v1066, %v1065
      %v1116 = vpack.c.bf16 %v1068, %v1067
      %v1117 = vpack.c.bf16 %v1070, %v1069
      %v1118 = vpack.c.bf16 %v1072, %v1071
      %v1119 = vpack.c.bf16 %v1074, %v1073
      %v1120 = vpack.c.bf16 %v1076, %v1075
      %v1121 = vpack.c.bf16 %v1078, %v1077
      %v1122 = vpack.c.bf16 %v1080, %v1079
      %v1123 = vpack.c.bf16 %v1082, %v1081
      %v1124 = vpack.c.bf16 %v1084, %v1083
      %v1125 = vpack.c.bf16 %v1086, %v1085
      %v1126 = vpack.c.bf16 %v1088, %v1087
      %v1127 = vpack.c.bf16 %v1090, %v1089
      %v1128 = vpack.c.bf16 %v1092, %v1091
      %v1129 = vpack.c.bf16 %v1094, %v1093
      %v1130 = vpack.c.bf16 %v1096, %v1095
      %v1131 = vpack.c.bf16 %v1098, %v1097
      %v1132 = vpack.c.bf16 %v1100, %v1099
      %v1165 = vunpack.c.l.b16 %v1101
      %v1166 = vunpack.c.h.b16 %v1101
      %v1167 = vunpack.c.l.b16 %v1102
      %v1168 = vunpack.c.h.b16 %v1102
      %v1169 = vunpack.c.l.b16 %v1103
      %v1170 = vunpack.c.h.b16 %v1103
      %v1171 = vunpack.c.l.b16 %v1104
      %v1172 = vunpack.c.h.b16 %v1104
      %v1173 = vunpack.c.l.b16 %v1105
      %v1174 = vunpack.c.h.b16 %v1105
      %v1175 = vunpack.c.l.b16 %v1106
      %v1176 = vunpack.c.h.b16 %v1106
      %v1177 = vunpack.c.l.b16 %v1107
      %v1178 = vunpack.c.h.b16 %v1107
      %v1179 = vunpack.c.l.b16 %v1108
      %v1180 = vunpack.c.h.b16 %v1108
      %v1181 = vunpack.c.l.b16 %v1109
      %v1182 = vunpack.c.h.b16 %v1109
      %v1183 = vunpack.c.l.b16 %v1110
      %v1184 = vunpack.c.h.b16 %v1110
      %v1185 = vunpack.c.l.b16 %v1111
      %v1186 = vunpack.c.h.b16 %v1111
      %v1187 = vunpack.c.l.b16 %v1112
      %v1188 = vunpack.c.h.b16 %v1112
      %v1189 = vunpack.c.l.b16 %v1113
      %v1190 = vunpack.c.h.b16 %v1113
      %v1191 = vunpack.c.l.b16 %v1114
      %v1192 = vunpack.c.h.b16 %v1114
      %v1193 = vunpack.c.l.b16 %v1115
      %v1194 = vunpack.c.h.b16 %v1115
      %v1195 = vunpack.c.l.b16 %v1116
      %v1196 = vunpack.c.h.b16 %v1116
      %v1197 = vunpack.c.l.b16 %v1117
      %v1198 = vunpack.c.h.b16 %v1117
      %v1199 = vunpack.c.l.b16 %v1118
      %v1200 = vunpack.c.h.b16 %v1118
      %v1201 = vunpack.c.l.b16 %v1119
      %v1202 = vunpack.c.h.b16 %v1119
      %v1203 = vunpack.c.l.b16 %v1120
      %v1204 = vunpack.c.h.b16 %v1120
      %v1205 = vunpack.c.l.b16 %v1121
      %v1206 = vunpack.c.h.b16 %v1121
      %v1207 = vunpack.c.l.b16 %v1122
      %v1208 = vunpack.c.h.b16 %v1122
      %v1209 = vunpack.c.l.b16 %v1123
      %v1210 = vunpack.c.h.b16 %v1123
      %v1211 = vunpack.c.l.b16 %v1124
      %v1212 = vunpack.c.h.b16 %v1124
      %v1213 = vunpack.c.l.b16 %v1125
      %v1214 = vunpack.c.h.b16 %v1125
      %v1215 = vunpack.c.l.b16 %v1126
      %v1216 = vunpack.c.h.b16 %v1126
      %v1217 = vunpack.c.l.b16 %v1127
      %v1218 = vunpack.c.h.b16 %v1127
      %v1219 = vunpack.c.l.b16 %v1128
      %v1220 = vunpack.c.h.b16 %v1128
      %v1221 = vunpack.c.l.b16 %v1129
      %v1222 = vunpack.c.h.b16 %v1129
      %v1223 = vunpack.c.l.b16 %v1130
      %v1224 = vunpack.c.h.b16 %v1130
      %v1225 = vunpack.c.l.b16 %v1131
      %v1226 = vunpack.c.h.b16 %v1131
      %v1227 = vunpack.c.l.b16 %v1132
      %v1228 = vunpack.c.h.b16 %v1132
      %v1229 = vpack.c.b16 %v1165, %v1165
      %v1230 = vpack.c.b16 %v1166, %v1166
      %v1231 = vpack.c.b16 %v1167, %v1167
      %v1232 = vpack.c.b16 %v1168, %v1168
      %v1233 = vpack.c.b16 %v1169, %v1169
      %v1234 = vpack.c.b16 %v1170, %v1170
      %v1235 = vpack.c.b16 %v1171, %v1171
      %v1236 = vpack.c.b16 %v1172, %v1172
      %v1237 = vpack.c.b16 %v1173, %v1173
      %v1238 = vpack.c.b16 %v1174, %v1174
      %v1239 = vpack.c.b16 %v1175, %v1175
      %v1240 = vpack.c.b16 %v1176, %v1176
      %v1241 = vpack.c.b16 %v1177, %v1177
      %v1242 = vpack.c.b16 %v1178, %v1178
      %v1243 = vpack.c.b16 %v1179, %v1179
      %v1244 = vpack.c.b16 %v1180, %v1180
      %v1245 = vpack.c.b16 %v1181, %v1181
      %v1246 = vpack.c.b16 %v1182, %v1182
      %v1247 = vpack.c.b16 %v1183, %v1183
      %v1248 = vpack.c.b16 %v1184, %v1184
      %v1249 = vpack.c.b16 %v1185, %v1185
      %v1250 = vpack.c.b16 %v1186, %v1186
      %v1251 = vpack.c.b16 %v1187, %v1187
      %v1252 = vpack.c.b16 %v1188, %v1188
      %v1253 = vpack.c.b16 %v1189, %v1189
      %v1254 = vpack.c.b16 %v1190, %v1190
      %v1255 = vpack.c.b16 %v1191, %v1191
      %v1256 = vpack.c.b16 %v1192, %v1192
      %v1257 = vpack.c.b16 %v1193, %v1193
      %v1258 = vpack.c.b16 %v1194, %v1194
      %v1259 = vpack.c.b16 %v1195, %v1195
      %v1260 = vpack.c.b16 %v1196, %v1196
      %v1261 = vpack.c.b16 %v1197, %v1197
      %v1262 = vpack.c.b16 %v1198, %v1198
      %v1263 = vpack.c.b16 %v1199, %v1199
      %v1264 = vpack.c.b16 %v1200, %v1200
      %v1265 = vpack.c.b16 %v1201, %v1201
      %v1266 = vpack.c.b16 %v1202, %v1202
      %v1267 = vpack.c.b16 %v1203, %v1203
      %v1268 = vpack.c.b16 %v1204, %v1204
      %v1269 = vpack.c.b16 %v1205, %v1205
      %v1270 = vpack.c.b16 %v1206, %v1206
      %v1271 = vpack.c.b16 %v1207, %v1207
      %v1272 = vpack.c.b16 %v1208, %v1208
      %v1273 = vpack.c.b16 %v1209, %v1209
      %v1274 = vpack.c.b16 %v1210, %v1210
      %v1275 = vpack.c.b16 %v1211, %v1211
      %v1276 = vpack.c.b16 %v1212, %v1212
      %v1277 = vpack.c.b16 %v1213, %v1213
      %v1278 = vpack.c.b16 %v1214, %v1214
      %v1279 = vpack.c.b16 %v1215, %v1215
      %v1280 = vpack.c.b16 %v1216, %v1216
      %v1281 = vpack.c.b16 %v1217, %v1217
      %v1282 = vpack.c.b16 %v1218, %v1218
      %v1283 = vpack.c.b16 %v1219, %v1219
      %v1284 = vpack.c.b16 %v1220, %v1220
      %v1285 = vpack.c.b16 %v1221, %v1221
      %v1286 = vpack.c.b16 %v1222, %v1222
      %v1287 = vpack.c.b16 %v1223, %v1223
      %v1288 = vpack.c.b16 %v1224, %v1224
      %v1289 = vpack.c.b16 %v1225, %v1225
      %v1290 = vpack.c.b16 %v1226, %v1226
      %v1291 = vpack.c.b16 %v1227, %v1227
      %v1292 = vpack.c.b16 %v1228, %v1228
      %1357 = vst [vmem:[%s257] sm:$0xf] %v1229
      %1358 = vst [vmem:[%s257 + $0x4] sm:$0xf] %v1230
      %1359 = vst [vmem:[%s257 + $0x8] sm:$0xf] %v1231
      %1360 = vst [vmem:[%s257 + $0xc] sm:$0xf] %v1232
      %1361 = vst [vmem:[%s257 + $0x10] sm:$0xf] %v1233
      %1362 = vst [vmem:[%s257 + $0x14] sm:$0xf] %v1234
      %1363 = vst [vmem:[%s257 + $0x18] sm:$0xf] %v1235
      %1364 = vst [vmem:[%s257 + $0x1c] sm:$0xf] %v1236
      %1365 = vst [vmem:[%s257 + $0x20] sm:$0xf] %v1237
      %1366 = vst [vmem:[%s257 + $0x24] sm:$0xf] %v1238
      %1367 = vst [vmem:[%s257 + $0x28] sm:$0xf] %v1239
      %1368 = vst [vmem:[%s257 + $0x2c] sm:$0xf] %v1240
      %1369 = vst [vmem:[%s257 + $0x30] sm:$0xf] %v1241
      %1370 = vst [vmem:[%s257 + $0x34] sm:$0xf] %v1242
      %1371 = vst [vmem:[%s257 + $0x38] sm:$0xf] %v1243
      %1372 = vst [vmem:[%s257 + $0x3c] sm:$0xf] %v1244
      %1373 = vst [vmem:[%s257 + $0x40] sm:$0xf] %v1245
      %1374 = vst [vmem:[%s257 + $0x44] sm:$0xf] %v1246
      %1375 = vst [vmem:[%s257 + $0x48] sm:$0xf] %v1247
      %1376 = vst [vmem:[%s257 + $0x4c] sm:$0xf] %v1248
      %1377 = vst [vmem:[%s257 + $0x50] sm:$0xf] %v1249
      %1378 = vst [vmem:[%s257 + $0x54] sm:$0xf] %v1250
      %1379 = vst [vmem:[%s257 + $0x58] sm:$0xf] %v1251
      %1380 = vst [vmem:[%s257 + $0x5c] sm:$0xf] %v1252
      %1381 = vst [vmem:[%s257 + $0x60] sm:$0xf] %v1253
      %1382 = vst [vmem:[%s257 + $0x64] sm:$0xf] %v1254
      %1383 = vst [vmem:[%s257 + $0x68] sm:$0xf] %v1255
      %1384 = vst [vmem:[%s257 + $0x6c] sm:$0xf] %v1256
      %1385 = vst [vmem:[%s257 + $0x70] sm:$0xf] %v1257
      %1386 = vst [vmem:[%s257 + $0x74] sm:$0xf] %v1258
      %1387 = vst [vmem:[%s257 + $0x78] sm:$0xf] %v1259
      %1388 = vst [vmem:[%s257 + $0x7c] sm:$0xf] %v1260
      %1389 = vst [vmem:[%s257 + $0x80] sm:$0xf] %v1261
      %1390 = vst [vmem:[%s257 + $0x84] sm:$0xf] %v1262
      %1391 = vst [vmem:[%s257 + $0x88] sm:$0xf] %v1263
      %1392 = vst [vmem:[%s257 + $0x8c] sm:$0xf] %v1264
      %1393 = vst [vmem:[%s257 + $0x90] sm:$0xf] %v1265
      %1394 = vst [vmem:[%s257 + $0x94] sm:$0xf] %v1266
      %1395 = vst [vmem:[%s257 + $0x98] sm:$0xf] %v1267
      %1396 = vst [vmem:[%s257 + $0x9c] sm:$0xf] %v1268
      %1397 = vst [vmem:[%s257 + $0xa0] sm:$0xf] %v1269
      %1398 = vst [vmem:[%s257 + $0xa4] sm:$0xf] %v1270
      %1399 = vst [vmem:[%s257 + $0xa8] sm:$0xf] %v1271
      %1400 = vst [vmem:[%s257 + $0xac] sm:$0xf] %v1272
      %1401 = vst [vmem:[%s257 + $0xb0] sm:$0xf] %v1273
      %1402 = vst [vmem:[%s257 + $0xb4] sm:$0xf] %v1274
      %1403 = vst [vmem:[%s257 + $0xb8] sm:$0xf] %v1275
      %1404 = vst [vmem:[%s257 + $0xbc] sm:$0xf] %v1276
      %1405 = vst [vmem:[%s257 + $0xc0] sm:$0xf] %v1277
      %1406 = vst [vmem:[%s257 + $0xc4] sm:$0xf] %v1278
      %1407 = vst [vmem:[%s257 + $0xc8] sm:$0xf] %v1279
      %1408 = vst [vmem:[%s257 + $0xcc] sm:$0xf] %v1280
      %1409 = vst [vmem:[%s257 + $0xd0] sm:$0xf] %v1281
      %1410 = vst [vmem:[%s257 + $0xd4] sm:$0xf] %v1282
      %1411 = vst [vmem:[%s257 + $0xd8] sm:$0xf] %v1283
      %1412 = vst [vmem:[%s257 + $0xdc] sm:$0xf] %v1284
      %1413 = vst [vmem:[%s257 + $0xe0] sm:$0xf] %v1285
      %1414 = vst [vmem:[%s257 + $0xe4] sm:$0xf] %v1286
      %1415 = vst [vmem:[%s257 + $0xe8] sm:$0xf] %v1287
      %1416 = vst [vmem:[%s257 + $0xec] sm:$0xf] %v1288
      %1417 = vst [vmem:[%s257 + $0xf0] sm:$0xf] %v1289
      %1418 = vst [vmem:[%s257 + $0xf4] sm:$0xf] %v1290
      %1419 = vst [vmem:[%s257 + $0xf8] sm:$0xf] %v1291
      %1420 = vst [vmem:[%s257 + $0xfc] sm:$0xf] %v1292
      %s1421 = smul.u32 64, %s19
      %p1422 = scmp.lt.s32.totalorder %s1421, 1023
      %s1423 = scalar_select %p1422, %s1421, 1023
      %p1424 = scmp.lt.s32.totalorder %s20, 0
      %s1425 = scalar_select %p1424, %s20, 0
      %s1426 = sadd.s32 %s1425, %s1423
      %s1427 = smul.addr %s1426, 4
      %s1428 = scalar_lea.vmem %s3, %s1427
      // Predicated region
      $region33: #{discriminator_forward.8} parent=31 // pred_check
        %p1429 = pneg %p135
      $region34: #{discriminator_forward.8} parent=31 // pred_check_branch
        %1431 = sbr.rel (%p1429) target = $region36
      $region35: #{discriminator_forward.8} parent=31 // pred_region
        %s1432 = smul.u32 64, %s19
      $region36: #{discriminator_forward.8} parent=31 // pred_fallthru
        _
    $region32: #{discriminator_forward.8} parent=5 // pred_fallthru
      _
    %p1433 = scmp.le.s32.totalorder 2, %s9
    // Predicated region
    $region37: #{discriminator_forward.8} parent=5 // pred_check
      %p1434 = pneg %p1433
    $region38: #{discriminator_forward.8} parent=5 // pred_check_branch
      %1436 = sbr.rel (%p1434) target = $region40
    $region39: #{discriminator_forward.8} parent=5 // pred_region
      %s1437 = ssub.s32 %s9, 2
      // Predicated region
      $region41: #{discriminator_forward.8} parent=39 // pred_check
        %p1438 = pneg %p141
      $region42: #{discriminator_forward.8} parent=39 // pred_check_branch
        %1440 = sbr.rel (%p1438) target = $region44
      $region43: #{discriminator_forward.8} parent=39 // pred_region
        %s1441 = smul.u32 64, %s22
        %p1442 = scmp.lt.s32.totalorder %s1441, 1023
        %s1443 = scalar_select %p1442, %s1441, 1023
        %p1444 = scmp.lt.s32.totalorder %s23, 0
        %s1445 = scalar_select %p1444, %s23, 0
        %s1446 = sadd.s32 %s1445, %s1443
        %s1447 = smul.addr %s1446, 4
        %s1448 = scalar_lea.vmem %s3, %s1447
      $region44: #{discriminator_forward.8} parent=39 // pred_fallthru
        _
    $region40: #{discriminator_forward.8} parent=5 // pred_fallthru
      _
  $region6: #{discriminator_forward.8} parent=0 // loop_footer
    %s13 = sadd.s32 1, %s9
  $region7: #{discriminator_forward.8} parent=0 // loop_footer_branch
    %8 = sbr.rel target = $region3
  $region8: #{discriminator_forward.8} parent=0 // loop_exit
    _

// kernel: discriminator_forward.9
$region0: #{discriminator_forward.9}
  #allocation0 [shape = 'u32[]', space=smem, size = 0x4, offset = 0x4, fixed_abs, tag = 'smem constant byte address 0x4 - core index']
  #allocation1 [shape = 'u32[144,128]{1,0:T(1,128)}', space=vmem, size = 0x12000, scoped, tag = 'internal scratch']
  %s0 = inlined_call_operand.vmem [shape: bf16[2048,128], index: 0, kind: input, shape index: {}]
  %s1 = inlined_call_operand.vmem [shape: bf16[128,128], index: 1, kind: input, shape index: {}]
  %s2 = inlined_call_operand.vmem [shape: f32[1,128], index: 2, kind: input, shape index: {}]
  %s3 = inlined_call_operand.vmem [shape: bf16[2048,128], index: 3, kind: output, shape index: {}]
  %s4 = sld [smem:[#allocation0]]
  $region45: #{discriminator_forward.9} parent=0
    _
  %s6 = ssub.s32 1, %s4
  %s7 = scalar_select 0, %s6, %s4
  loop: start=0, step=1, limit=6
  $region2: #{discriminator_forward.9} parent=0 // loop_pre_header
    _
  $region3: #{discriminator_forward.9} parent=0 // loop_header
    %s9 = sphi 0, %s13
    %p10 = scmp.ge.s32.totalorder %s9, 6
    %s16 = sphi 0, %s35
    %s17 = sphi 0, %s31
    %s18 = sphi 0, %s27
    %s19 = sphi 0, %s16
    %s20 = sphi 0, %s17
    %s21 = sphi 0, %s18
    %s22 = sphi 0, %s19
    %s23 = sphi 0, %s20
    %s24 = sphi 0, %s21
    %s40 = sphi 0, %s42
    %s43 = sphi 0, %s40
    %s44 = sphi 0, %s43
    %s60 = sphi 0, %s44
    %s68 = sphi 0, %s70
    %s71 = sphi 0, %s68
    %s72 = sphi 0, %s71
    %s88 = sphi 0, %s72
    %s94 = sphi 0, %s96
    %s97 = sphi 0, %s94
    %s98 = sphi 0, %s97
    %s114 = sphi 0, %s98
    %s122 = sphi 0, %s124
    %s125 = sphi 0, %s122
    %s126 = sphi 0, %s125
    %s142 = sphi 0, %s126
  $region4: #{discriminator_forward.9} parent=0 // loop_header_branch
    %12 = sbr.rel (%p10) target = $region8
  $region5: #{discriminator_forward.9} parent=0 // loop_body
    %s14 = ssub.s32 %s9, 1
    %s15 = ssub.s32 %s9, 2
    %s25 = sadd.s32 1, %s18
    %p26 = scmp.ge.s32.totalorder %s25, 1
    %s27 = scalar_select %p26, 0, %s25
    %s28 = sadd.s32 1, %s17
    %s29 = scalar_select %p26, %s28, %s17
    %p30 = scmp.ge.s32.totalorder %s29, 1
    %s31 = scalar_select %p30, 0, %s29
    %s32 = sadd.s32 1, %s16
    %s33 = scalar_select %p30, %s32, %s16
    %p34 = scmp.ge.s32.totalorder %s33, 4
    %s35 = scalar_select %p34, 0, %s33
    %s36 = ssub.s32 %s16, %s35
    %s37 = ssub.s32 %s18, %s27
    %s38 = sor.u32 %s36, %s37
    %p39 = scmp.eq.s32.totalorder %s38, 0
    %s41 = sadd.s32 %s40, 1
    %s42 = scalar_select %p39, %s40, %s41
    %p45 = pneg %p39
    %p46 = scmp.eq.s32.totalorder %s9, 3
    %p47 = por %p45, %p46
    %p48 = scmp.ne.s32.totalorder %s40, %s43
    %p49 = scmp.eq.s32.totalorder %s9, 0
    %p50 = por %p48, %p49
    %p51 = scmp.ne.s32.totalorder %s40, %s43
    %p52 = scmp.eq.s32.totalorder %s14, 3
    %p53 = por %p51, %p52
    %p54 = scmp.ne.s32.totalorder %s43, %s44
    %p55 = scmp.eq.s32.totalorder %s14, 0
    %p56 = por %p54, %p55
    %p57 = scmp.ne.s32.totalorder %s43, %s44
    %p58 = scmp.eq.s32.totalorder %s15, 3
    %p59 = por %p57, %p58
    %p61 = scmp.ne.s32.totalorder %s44, %s60
    %p62 = scmp.eq.s32.totalorder %s15, 0
    %p63 = por %p61, %p62
    %s64 = ssub.s32 %s18, %s27
    %s65 = ssub.s32 %s17, %s31
    %s66 = sor.u32 %s64, %s65
    %p67 = scmp.eq.s32.totalorder %s66, 0
    %s69 = sadd.s32 %s68, 1
    %s70 = scalar_select %p67, %s68, %s69
    %p73 = pneg %p67
    %p74 = scmp.eq.s32.totalorder %s9, 3
    %p75 = por %p73, %p74
    %p76 = scmp.ne.s32.totalorder %s68, %s71
    %p77 = scmp.eq.s32.totalorder %s9, 0
    %p78 = por %p76, %p77
    %p79 = scmp.ne.s32.totalorder %s68, %s71
    %p80 = scmp.eq.s32.totalorder %s14, 3
    %p81 = por %p79, %p80
    %p82 = scmp.ne.s32.totalorder %s71, %s72
    %p83 = scmp.eq.s32.totalorder %s14, 0
    %p84 = por %p82, %p83
    %p85 = scmp.ne.s32.totalorder %s71, %s72
    %p86 = scmp.eq.s32.totalorder %s15, 3
    %p87 = por %p85, %p86
    %p89 = scmp.ne.s32.totalorder %s72, %s88
    %p90 = scmp.eq.s32.totalorder %s15, 0
    %p91 = por %p89, %p90
    %s92 = ssub.s32 %s17, %s31
    %p93 = scmp.eq.s32.totalorder %s92, 0
    %s95 = sadd.s32 %s94, 1
    %s96 = scalar_select %p93, %s94, %s95
    %p99 = pneg %p93
    %p100 = scmp.eq.s32.totalorder %s9, 3
    %p101 = por %p99, %p100
    %p102 = scmp.ne.s32.totalorder %s94, %s97
    %p103 = scmp.eq.s32.totalorder %s9, 0
    %p104 = por %p102, %p103
    %p105 = scmp.ne.s32.totalorder %s94, %s97
    %p106 = scmp.eq.s32.totalorder %s14, 3
    %p107 = por %p105, %p106
    %p108 = scmp.ne.s32.totalorder %s97, %s98
    %p109 = scmp.eq.s32.totalorder %s14, 0
    %p110 = por %p108, %p109
    %p111 = scmp.ne.s32.totalorder %s97, %s98
    %p112 = scmp.eq.s32.totalorder %s15, 3
    %p113 = por %p111, %p112
    %p115 = scmp.ne.s32.totalorder %s98, %s114
    %p116 = scmp.eq.s32.totalorder %s15, 0
    %p117 = por %p115, %p116
    %s118 = ssub.s32 %s16, %s35
    %s119 = ssub.s32 %s17, %s31
    %s120 = sor.u32 %s118, %s119
    %p121 = scmp.eq.s32.totalorder %s120, 0
    %s123 = sadd.s32 %s122, 1
    %s124 = scalar_select %p121, %s122, %s123
    %p127 = pneg %p121
    %p128 = scmp.eq.s32.totalorder %s9, 3
    %p129 = por %p127, %p128
    %p130 = scmp.ne.s32.totalorder %s122, %s125
    %p131 = scmp.eq.s32.totalorder %s9, 0
    %p132 = por %p130, %p131
    %p133 = scmp.ne.s32.totalorder %s122, %s125
    %p134 = scmp.eq.s32.totalorder %s14, 3
    %p135 = por %p133, %p134
    %p136 = scmp.ne.s32.totalorder %s125, %s126
    %p137 = scmp.eq.s32.totalorder %s14, 0
    %p138 = por %p136, %p137
    %p139 = scmp.ne.s32.totalorder %s125, %s126
    %p140 = scmp.eq.s32.totalorder %s15, 3
    %p141 = por %p139, %p140
    %p143 = scmp.ne.s32.totalorder %s126, %s142
    %p144 = scmp.eq.s32.totalorder %s15, 0
    %p145 = por %p143, %p144
    %p146 = scmp.le.s32.totalorder 1, %s9
    %p147 = scmp.lt.s32.totalorder %s9, 5
    %p148 = pnand %p146, %p147
    %p149 = pneg %p148
    // Predicated region
    $region9: #{discriminator_forward.9} parent=5 // pred_check
      _
    $region10: #{discriminator_forward.9} parent=5 // pred_check_branch
      %151 = sbr.rel (%p148) target = $region12
    $region11: #{discriminator_forward.9} parent=5 // pred_region
      %s152 = ssub.s32 %s9, 1
      // Predicated region
      $region13: #{discriminator_forward.9} parent=11 // pred_check
        %p153 = pneg %p84
      $region14: #{discriminator_forward.9} parent=11 // pred_check_branch
        %155 = sbr.rel (%p153) target = $region16
      $region15: #{discriminator_forward.9} parent=11 // pred_region
        %s156 = smul.u32 16, %s21
        %p157 = scmp.lt.s32.totalorder %s156, 15
        %s158 = scalar_select %p157, %s156, 15
        %p159 = scmp.lt.s32.totalorder %s20, 0
        %s160 = scalar_select %p159, %s20, 0
        %s161 = sadd.s32 %s160, %s158
        %s162 = smul.addr %s161, 4
        %s163 = scalar_lea.vmem %s1, %s162
        %s164 = smul.u32 16, %s21
      $region16: #{discriminator_forward.9} parent=11 // pred_fallthru
        _
      // Predicated region
      $region17: #{discriminator_forward.9} parent=11 // pred_check
        %p165 = pneg %p110
      $region18: #{discriminator_forward.9} parent=11 // pred_check_branch
        %167 = sbr.rel (%p165) target = $region20
      $region19: #{discriminator_forward.9} parent=11 // pred_region
        %p168 = scmp.lt.s32.totalorder %s20, 0
        %s169 = scalar_select %p168, %s20, 0
        %s170 = scalar_lea.vmem %s2, %s169
      $region20: #{discriminator_forward.9} parent=11 // pred_fallthru
        _
    $region12: #{discriminator_forward.9} parent=5 // pred_fallthru
      _
    %p171 = scmp.lt.s32.totalorder %s9, 4
    // Predicated region
    $region21: #{discriminator_forward.9} parent=5 // pred_check
      %p172 = pneg %p171
    $region22: #{discriminator_forward.9} parent=5 // pred_check_branch
      %174 = sbr.rel (%p172) target = $region24
    $region23: #{discriminator_forward.9} parent=5 // pred_region
      // Predicated region
      $region25: #{discriminator_forward.9} parent=23 // pred_check
        %p175 = pneg %p50
      $region26: #{discriminator_forward.9} parent=23 // pred_check_branch
        %177 = sbr.rel (%p175) target = $region28
      $region27: #{discriminator_forward.9} parent=23 // pred_region
        %s178 = smul.u32 64, %s16
        %p179 = scmp.lt.s32.totalorder %s178, 255
        %s180 = scalar_select %p179, %s178, 255
        %p181 = scmp.lt.s32.totalorder %s18, 0
        %s182 = scalar_select %p181, %s18, 0
        %s183 = sadd.s32 %s182, %s180
        %s184 = smul.addr %s183, 4
        %s185 = scalar_lea.vmem %s0, %s184
        %s186 = smul.u32 64, %s16
      $region28: #{discriminator_forward.9} parent=23 // pred_fallthru
        _
    $region24: #{discriminator_forward.9} parent=5 // pred_fallthru
      _
    %p187 = scmp.le.s32.totalorder 1, %s9
    %p188 = scmp.lt.s32.totalorder %s9, 5
    %p189 = pnand %p187, %p188
    %p190 = pneg %p189
    // Predicated region
    $region29: #{discriminator_forward.9} parent=5 // pred_check
      _
    $region30: #{discriminator_forward.9} parent=5 // pred_check_branch
      %192 = sbr.rel (%p189) target = $region32
    $region31: #{discriminator_forward.9} parent=5 // pred_region
      %s193 = ssub.s32 %s9, 1
      %s194 = smul.u32 64, %s19
      %p195 = scmp.lt.s32.totalorder %s194, 255
      %s196 = scalar_select %p195, %s194, 255
      %p197 = scmp.lt.s32.totalorder %s21, 0
      %s198 = scalar_select %p197, %s21, 0
      %s199 = sadd.s32 %s198, %s196
      %s200 = smul.addr %s199, 4
      %s201 = scalar_lea.vmem %s0, %s200
      %p202 = pneg %p56
      %p203 = pneg %p53
      %s204 = smul.u32 16, %s21
      %p205 = scmp.lt.s32.totalorder %s204, 15
      %s206 = scalar_select %p205, %s204, 15
      %p207 = scmp.lt.s32.totalorder %s20, 0
      %s208 = scalar_select %p207, %s20, 0
      %s209 = sadd.s32 %s208, %s206
      %s210 = smul.addr %s209, 4
      %s211 = scalar_lea.vmem %s1, %s210
      %p212 = pneg %p84
      %p213 = pneg %p81
      %p214 = scmp.lt.s32.totalorder %s20, 0
      %s215 = scalar_select %p214, %s20, 0
      %s216 = scalar_lea.vmem %s2, %s215
      %p217 = pneg %p110
      %p218 = pneg %p107
      %p219 = pneg %p138
      %p220 = pneg %p135
      %s221 = smul.u32 64, %s19
      %p222 = scmp.lt.s32.totalorder %s221, 255
      %s223 = scalar_select %p222, %s221, 255
      %p224 = scmp.lt.s32.totalorder %s20, 0
      %s225 = scalar_select %p224, %s20, 0
      %s226 = sadd.s32 %s225, %s223
      %s227 = smul.addr %s226, 4
      %s228 = scalar_lea.vmem %s3, %s227
      %s229 = smul.u32 64, %s19
      %p230 = scmp.lt.s32.totalorder %s229, 255
      %s231 = scalar_select %p230, %s229, 255
      %p232 = scmp.lt.s32.totalorder %s21, 0
      %s233 = scalar_select %p232, %s21, 0
      %s234 = sadd.s32 %s233, %s231
      %s235 = smul.addr %s234, 4
      %s236 = scalar_lea.vmem %s0, %s235
      %s237 = smul.u32 64, %s19
      %s238 = smul.u32 16, %s21
      %p239 = scmp.lt.s32.totalorder %s238, 15
      %s240 = scalar_select %p239, %s238, 15
      %p241 = scmp.lt.s32.totalorder %s20, 0
      %s242 = scalar_select %p241, %s20, 0
      %s243 = sadd.s32 %s242, %s240
      %s244 = smul.addr %s243, 4
      %s245 = scalar_lea.vmem %s1, %s244
      %s246 = smul.u32 16, %s21
      %p247 = scmp.lt.s32.totalorder %s20, 0
      %s248 = scalar_select %p247, %s20, 0
      %s249 = scalar_lea.vmem %s2, %s248
      %s250 = smul.u32 64, %s19
      %p251 = scmp.lt.s32.totalorder %s250, 255
      %s252 = scalar_select %p251, %s250, 255
      %p253 = scmp.lt.s32.totalorder %s20, 0
      %s254 = scalar_select %p253, %s20, 0
      %s255 = sadd.s32 %s254, %s252
      %s256 = smul.addr %s255, 4
      %s257 = scalar_lea.vmem %s3, %s256
      %s258 = smul.u32 64, %s19
      %v260 = vld [vmem:[%s236] sm:$0xf]
      %v261 = vld [vmem:[%s236 + $0x4] sm:$0xf]
      %v262 = vld [vmem:[%s236 + $0x8] sm:$0xf]
      %v263 = vld [vmem:[%s236 + $0xc] sm:$0xf]
      %v264 = vld [vmem:[%s236 + $0x10] sm:$0xf]
      %v265 = vld [vmem:[%s236 + $0x14] sm:$0xf]
      %v266 = vld [vmem:[%s236 + $0x18] sm:$0xf]
      %v267 = vld [vmem:[%s236 + $0x1c] sm:$0xf]
      %v268 = vld [vmem:[%s236 + $0x20] sm:$0xf]
      %v269 = vld [vmem:[%s236 + $0x24] sm:$0xf]
      %v270 = vld [vmem:[%s236 + $0x28] sm:$0xf]
      %v271 = vld [vmem:[%s236 + $0x2c] sm:$0xf]
      %v272 = vld [vmem:[%s236 + $0x30] sm:$0xf]
      %v273 = vld [vmem:[%s236 + $0x34] sm:$0xf]
      %v274 = vld [vmem:[%s236 + $0x38] sm:$0xf]
      %v275 = vld [vmem:[%s236 + $0x3c] sm:$0xf]
      %v276 = vld [vmem:[%s236 + $0x40] sm:$0xf]
      %v277 = vld [vmem:[%s236 + $0x44] sm:$0xf]
      %v278 = vld [vmem:[%s236 + $0x48] sm:$0xf]
      %v279 = vld [vmem:[%s236 + $0x4c] sm:$0xf]
      %v280 = vld [vmem:[%s236 + $0x50] sm:$0xf]
      %v281 = vld [vmem:[%s236 + $0x54] sm:$0xf]
      %v282 = vld [vmem:[%s236 + $0x58] sm:$0xf]
      %v283 = vld [vmem:[%s236 + $0x5c] sm:$0xf]
      %v284 = vld [vmem:[%s236 + $0x60] sm:$0xf]
      %v285 = vld [vmem:[%s236 + $0x64] sm:$0xf]
      %v286 = vld [vmem:[%s236 + $0x68] sm:$0xf]
      %v287 = vld [vmem:[%s236 + $0x6c] sm:$0xf]
      %v288 = vld [vmem:[%s236 + $0x70] sm:$0xf]
      %v289 = vld [vmem:[%s236 + $0x74] sm:$0xf]
      %v290 = vld [vmem:[%s236 + $0x78] sm:$0xf]
      %v291 = vld [vmem:[%s236 + $0x7c] sm:$0xf]
      %v292 = vld [vmem:[%s236 + $0x80] sm:$0xf]
      %v293 = vld [vmem:[%s236 + $0x84] sm:$0xf]
      %v294 = vld [vmem:[%s236 + $0x88] sm:$0xf]
      %v295 = vld [vmem:[%s236 + $0x8c] sm:$0xf]
      %v296 = vld [vmem:[%s236 + $0x90] sm:$0xf]
      %v297 = vld [vmem:[%s236 + $0x94] sm:$0xf]
      %v298 = vld [vmem:[%s236 + $0x98] sm:$0xf]
      %v299 = vld [vmem:[%s236 + $0x9c] sm:$0xf]
      %v300 = vld [vmem:[%s236 + $0xa0] sm:$0xf]
      %v301 = vld [vmem:[%s236 + $0xa4] sm:$0xf]
      %v302 = vld [vmem:[%s236 + $0xa8] sm:$0xf]
      %v303 = vld [vmem:[%s236 + $0xac] sm:$0xf]
      %v304 = vld [vmem:[%s236 + $0xb0] sm:$0xf]
      %v305 = vld [vmem:[%s236 + $0xb4] sm:$0xf]
      %v306 = vld [vmem:[%s236 + $0xb8] sm:$0xf]
      %v307 = vld [vmem:[%s236 + $0xbc] sm:$0xf]
      %v308 = vld [vmem:[%s236 + $0xc0] sm:$0xf]
      %v309 = vld [vmem:[%s236 + $0xc4] sm:$0xf]
      %v310 = vld [vmem:[%s236 + $0xc8] sm:$0xf]
      %v311 = vld [vmem:[%s236 + $0xcc] sm:$0xf]
      %v312 = vld [vmem:[%s236 + $0xd0] sm:$0xf]
      %v313 = vld [vmem:[%s236 + $0xd4] sm:$0xf]
      %v314 = vld [vmem:[%s236 + $0xd8] sm:$0xf]
      %v315 = vld [vmem:[%s236 + $0xdc] sm:$0xf]
      %v316 = vld [vmem:[%s236 + $0xe0] sm:$0xf]
      %v317 = vld [vmem:[%s236 + $0xe4] sm:$0xf]
      %v318 = vld [vmem:[%s236 + $0xe8] sm:$0xf]
      %v319 = vld [vmem:[%s236 + $0xec] sm:$0xf]
      %v320 = vld [vmem:[%s236 + $0xf0] sm:$0xf]
      %v321 = vld [vmem:[%s236 + $0xf4] sm:$0xf]
      %v322 = vld [vmem:[%s236 + $0xf8] sm:$0xf]
      %v323 = vld [vmem:[%s236 + $0xfc] sm:$0xf]
      %v324 = vld [vmem:[%s245] sm:$0xf]
      %v325 = vld [vmem:[%s245 + $0x4] sm:$0xf]
      %v326 = vld [vmem:[%s245 + $0x8] sm:$0xf]
      %v327 = vld [vmem:[%s245 + $0xc] sm:$0xf]
      %v328 = vld [vmem:[%s245 + $0x10] sm:$0xf]
      %v329 = vld [vmem:[%s245 + $0x14] sm:$0xf]
      %v330 = vld [vmem:[%s245 + $0x18] sm:$0xf]
      %v331 = vld [vmem:[%s245 + $0x1c] sm:$0xf]
      %v332 = vld [vmem:[%s245 + $0x20] sm:$0xf]
      %v333 = vld [vmem:[%s245 + $0x24] sm:$0xf]
      %v334 = vld [vmem:[%s245 + $0x28] sm:$0xf]
      %v335 = vld [vmem:[%s245 + $0x2c] sm:$0xf]
      %v336 = vld [vmem:[%s245 + $0x30] sm:$0xf]
      %v337 = vld [vmem:[%s245 + $0x34] sm:$0xf]
      %v338 = vld [vmem:[%s245 + $0x38] sm:$0xf]
      %v339 = vld [vmem:[%s245 + $0x3c] sm:$0xf]
      %v340 = vld [vmem:[%s249] sm:$0x1]
      %v342 = vlaneseq
      %v343 = vshrl.u32 %v342, 7
      %v344 = vsub.s32 0, %v343
      %v345 = vrot.slane %v340, %v344
      %v411 = vunpack.c.l.b16 %v260
      %v412 = vunpack.c.l.b16 %v261
      %v413 = vunpack.c.l.b16 %v262
      %v414 = vunpack.c.l.b16 %v263
      %v415 = vunpack.c.l.b16 %v264
      %v416 = vunpack.c.l.b16 %v265
      %v417 = vunpack.c.l.b16 %v266
      %v418 = vunpack.c.l.b16 %v267
      %v419 = vunpack.c.l.b16 %v268
      %v420 = vunpack.c.l.b16 %v269
      %v421 = vunpack.c.l.b16 %v270
      %v422 = vunpack.c.l.b16 %v271
      %v423 = vunpack.c.l.b16 %v272
      %v424 = vunpack.c.l.b16 %v273
      %v425 = vunpack.c.l.b16 %v274
      %v426 = vunpack.c.l.b16 %v275
      %v427 = vunpack.c.l.b16 %v276
      %v428 = vunpack.c.l.b16 %v277
      %v429 = vunpack.c.l.b16 %v278
      %v430 = vunpack.c.l.b16 %v279
      %v431 = vunpack.c.l.b16 %v280
      %v432 = vunpack.c.l.b16 %v281
      %v433 = vunpack.c.l.b16 %v282
      %v434 = vunpack.c.l.b16 %v283
      %v435 = vunpack.c.l.b16 %v284
      %v436 = vunpack.c.l.b16 %v285
      %v437 = vunpack.c.l.b16 %v286
      %v438 = vunpack.c.l.b16 %v287
      %v439 = vunpack.c.l.b16 %v288
      %v440 = vunpack.c.l.b16 %v289
      %v441 = vunpack.c.l.b16 %v290
      %v442 = vunpack.c.l.b16 %v291
      %v443 = vunpack.c.l.b16 %v292
      %v444 = vunpack.c.l.b16 %v293
      %v445 = vunpack.c.l.b16 %v294
      %v446 = vunpack.c.l.b16 %v295
      %v447 = vunpack.c.l.b16 %v296
      %v448 = vunpack.c.l.b16 %v297
      %v449 = vunpack.c.l.b16 %v298
      %v450 = vunpack.c.l.b16 %v299
      %v451 = vunpack.c.l.b16 %v300
      %v452 = vunpack.c.l.b16 %v301
      %v453 = vunpack.c.l.b16 %v302
      %v454 = vunpack.c.l.b16 %v303
      %v455 = vunpack.c.l.b16 %v304
      %v456 = vunpack.c.l.b16 %v305
      %v457 = vunpack.c.l.b16 %v306
      %v458 = vunpack.c.l.b16 %v307
      %v459 = vunpack.c.l.b16 %v308
      %v460 = vunpack.c.l.b16 %v309
      %v461 = vunpack.c.l.b16 %v310
      %v462 = vunpack.c.l.b16 %v311
      %v463 = vunpack.c.l.b16 %v312
      %v464 = vunpack.c.l.b16 %v313
      %v465 = vunpack.c.l.b16 %v314
      %v466 = vunpack.c.l.b16 %v315
      %v467 = vunpack.c.l.b16 %v316
      %v468 = vunpack.c.l.b16 %v317
      %v469 = vunpack.c.l.b16 %v318
      %v470 = vunpack.c.l.b16 %v319
      %v471 = vunpack.c.l.b16 %v320
      %v472 = vunpack.c.l.b16 %v321
      %v473 = vunpack.c.l.b16 %v322
      %v474 = vunpack.c.l.b16 %v323
      %v475 = vpack.c.b16 %v412, %v411
      %v476 = vpack.c.b16 %v414, %v413
      %v477 = vpack.c.b16 %v416, %v415
      %v478 = vpack.c.b16 %v418, %v417
      %v479 = vpack.c.b16 %v420, %v419
      %v480 = vpack.c.b16 %v422, %v421
      %v481 = vpack.c.b16 %v424, %v423
      %v482 = vpack.c.b16 %v426, %v425
      %v483 = vpack.c.b16 %v428, %v427
      %v484 = vpack.c.b16 %v430, %v429
      %v485 = vpack.c.b16 %v432, %v431
      %v486 = vpack.c.b16 %v434, %v433
      %v487 = vpack.c.b16 %v436, %v435
      %v488 = vpack.c.b16 %v438, %v437
      %v489 = vpack.c.b16 %v440, %v439
      %v490 = vpack.c.b16 %v442, %v441
      %v491 = vpack.c.b16 %v444, %v443
      %v492 = vpack.c.b16 %v446, %v445
      %v493 = vpack.c.b16 %v448, %v447
      %v494 = vpack.c.b16 %v450, %v449
      %v495 = vpack.c.b16 %v452, %v451
      %v496 = vpack.c.b16 %v454, %v453
      %v497 = vpack.c.b16 %v456, %v455
      %v498 = vpack.c.b16 %v458, %v457
      %v499 = vpack.c.b16 %v460, %v459
      %v500 = vpack.c.b16 %v462, %v461
      %v501 = vpack.c.b16 %v464, %v463
      %v502 = vpack.c.b16 %v466, %v465
      %v503 = vpack.c.b16 %v468, %v467
      %v504 = vpack.c.b16 %v470, %v469
      %v505 = vpack.c.b16 %v472, %v471
      %v506 = vpack.c.b16 %v474, %v473
      %v555 = vunpack.c.l.b16 %v324
      %v556 = vunpack.c.l.b16 %v325
      %v557 = vunpack.c.l.b16 %v326
      %v558 = vunpack.c.l.b16 %v327
      %v559 = vunpack.c.l.b16 %v328
      %v560 = vunpack.c.l.b16 %v329
      %v561 = vunpack.c.l.b16 %v330
      %v562 = vunpack.c.l.b16 %v331
      %v563 = vunpack.c.l.b16 %v332
      %v564 = vunpack.c.l.b16 %v333
      %v565 = vunpack.c.l.b16 %v334
      %v566 = vunpack.c.l.b16 %v335
      %v567 = vunpack.c.l.b16 %v336
      %v568 = vunpack.c.l.b16 %v337
      %v569 = vunpack.c.l.b16 %v338
      %v570 = vunpack.c.l.b16 %v339
      %v571 = vpack.c.b16 %v556, %v555
      %v572 = vpack.c.b16 %v558, %v557
      %v573 = vpack.c.b16 %v560, %v559
      %v574 = vpack.c.b16 %v562, %v561
      %v575 = vpack.c.b16 %v564, %v563
      %v576 = vpack.c.b16 %v566, %v565
      %v577 = vpack.c.b16 %v568, %v567
      %v578 = vpack.c.b16 %v570, %v569
      %587 = vmatprep.subr.bf16.mxu0 0
      %588 = vmatpush1.bf16.msra.mxu0 %v578
      %589 = vmatprep.subr.bf16.mxu0 0
      %590 = vmatpush1.bf16.msra.mxu0 %v577
      %591 = vmatprep.subr.bf16.mxu0 0
      %592 = vmatpush1.bf16.msra.mxu0 %v576
      %593 = vmatprep.subr.bf16.mxu0 0
      %594 = vmatpush1.bf16.msra.mxu0 %v575
      %595 = vmatprep.subr.bf16.mxu0 0
      %596 = vmatpush1.bf16.msra.mxu0 %v574
      %597 = vmatprep.subr.bf16.mxu0 0
      %598 = vmatpush1.bf16.msra.mxu0 %v573
      %599 = vmatprep.subr.bf16.mxu0 0
      %600 = vmatpush1.bf16.msra.mxu0 %v572
      %601 = vmatprep.subr.bf16.mxu0 0
      %602 = vmatpush1.bf16.msra.mxu0 %v571
      %603 = vmatprep.subr.bf16.mxu0 0
      %604 = vmatpush2.bf16.msra.mxu0 0
      %605 = vmatprep.subr.bf16.mxu0 0
      %606 = vmatpush2.bf16.msra.mxu0 0
      %607 = vmatprep.subr.bf16.mxu0 0
      %608 = vmatpush2.bf16.msra.mxu0 0
      %609 = vmatprep.subr.bf16.mxu0 0
      %610 = vmatpush2.bf16.msra.mxu0 0
      %611 = vmatprep.subr.bf16.mxu0 0
      %612 = vmatpush2.bf16.msra.mxu0 0
      %613 = vmatprep.subr.bf16.mxu0 0
      %614 = vmatpush2.bf16.msra.mxu0 0
      %615 = vmatprep.subr.bf16.mxu0 0
      %616 = vmatpush2.bf16.msra.mxu0 0
      %617 = vmatprep.subr.bf16.mxu0 0
      %618 = vmatpush2.bf16.msra.mxu0 0
      %619 = vmatprep.mubr.bf16.mxu0 0
      %620 = vmatmul.mubr.bf16.gmra.mxu0 %v475
      %v621 = vpop.f32.mrf.mxu0
      %v622 = vadd.f32 %v345, %v621
      %v623 = vpop.f32.mrf.mxu0
      %v624 = vpop.f32.mrf.mxu0
      %v625 = vadd.f32 %v345, %v624
      %v626 = vpop.f32.mrf.mxu0
      %627 = vmatprep.mubr.bf16.mxu0 0
      %628 = vmatmul.mubr.bf16.gmra.mxu0 %v476
      %v629 = vpop.f32.mrf.mxu0
      %v630 = vadd.f32 %v345, %v629
      %v631 = vpop.f32.mrf.mxu0
      %v632 = vpop.f32.mrf.mxu0
      %v633 = vadd.f32 %v345, %v632
      %v634 = vpop.f32.mrf.mxu0
      %635 = vmatprep.mubr.bf16.mxu0 0
      %636 = vmatmul.mubr.bf16.gmra.mxu0 %v477
      %v637 = vpop.f32.mrf.mxu0
      %v638 = vadd.f32 %v345, %v637
      %v639 = vpop.f32.mrf.mxu0
      %v640 = vpop.f32.mrf.mxu0
      %v641 = vadd.f32 %v345, %v640
      %v642 = vpop.f32.mrf.mxu0
      %643 = vmatprep.mubr.bf16.mxu0 0
      %644 = vmatmul.mubr.bf16.gmra.mxu0 %v478
      %v645 = vpop.f32.mrf.mxu0
      %v646 = vadd.f32 %v345, %v645
      %v647 = vpop.f32.mrf.mxu0
      %v648 = vpop.f32.mrf.mxu0
      %v649 = vadd.f32 %v345, %v648
      %v650 = vpop.f32.mrf.mxu0
      %651 = vmatprep.mubr.bf16.mxu0 0
      %652 = vmatmul.mubr.bf16.gmra.mxu0 %v479
      %v653 = vpop.f32.mrf.mxu0
      %v654 = vadd.f32 %v345, %v653
      %v655 = vpop.f32.mrf.mxu0
      %v656 = vpop.f32.mrf.mxu0
      %v657 = vadd.f32 %v345, %v656
      %v658 = vpop.f32.mrf.mxu0
      %659 = vmatprep.mubr.bf16.mxu0 0
      %660 = vmatmul.mubr.bf16.gmra.mxu0 %v480
      %v661 = vpop.f32.mrf.mxu0
      %v662 = vadd.f32 %v345, %v661
      %v663 = vpop.f32.mrf.mxu0
      %v664 = vpop.f32.mrf.mxu0
      %v665 = vadd.f32 %v345, %v664
      %v666 = vpop.f32.mrf.mxu0
      %667 = vmatprep.mubr.bf16.mxu0 0
      %668 = vmatmul.mubr.bf16.gmra.mxu0 %v481
      %v669 = vpop.f32.mrf.mxu0
      %v670 = vadd.f32 %v345, %v669
      %v671 = vpop.f32.mrf.mxu0
      %v672 = vpop.f32.mrf.mxu0
      %v673 = vadd.f32 %v345, %v672
      %v674 = vpop.f32.mrf.mxu0
      %675 = vmatprep.mubr.bf16.mxu0 0
      %676 = vmatmul.mubr.bf16.gmra.mxu0 %v482
      %v677 = vpop.f32.mrf.mxu0
      %v678 = vadd.f32 %v345, %v677
      %v679 = vpop.f32.mrf.mxu0
      %v680 = vpop.f32.mrf.mxu0
      %v681 = vadd.f32 %v345, %v680
      %v682 = vpop.f32.mrf.mxu0
      %683 = vmatprep.mubr.bf16.mxu0 0
      %684 = vmatmul.mubr.bf16.gmra.mxu0 %v483
      %v685 = vpop.f32.mrf.mxu0
      %v686 = vadd.f32 %v345, %v685
      %v687 = vpop.f32.mrf.mxu0
      %v688 = vpop.f32.mrf.mxu0
      %v689 = vadd.f32 %v345, %v688
      %v690 = vpop.f32.mrf.mxu0
      %691 = vmatprep.mubr.bf16.mxu0 0
      %692 = vmatmul.mubr.bf16.gmra.mxu0 %v484
      %v693 = vpop.f32.mrf.mxu0
      %v694 = vadd.f32 %v345, %v693
      %v695 = vpop.f32.mrf.mxu0
      %v696 = vpop.f32.mrf.mxu0
      %v697 = vadd.f32 %v345, %v696
      %v698 = vpop.f32.mrf.mxu0
      %699 = vmatprep.mubr.bf16.mxu0 0
      %700 = vmatmul.mubr.bf16.gmra.mxu0 %v485
      %v701 = vpop.f32.mrf.mxu0
      %v702 = vadd.f32 %v345, %v701
      %v703 = vpop.f32.mrf.mxu0
      %v704 = vpop.f32.mrf.mxu0
      %v705 = vadd.f32 %v345, %v704
      %v706 = vpop.f32.mrf.mxu0
      %707 = vmatprep.mubr.bf16.mxu0 0
      %708 = vmatmul.mubr.bf16.gmra.mxu0 %v486
      %v709 = vpop.f32.mrf.mxu0
      %v710 = vadd.f32 %v345, %v709
      %v711 = vpop.f32.mrf.mxu0
      %v712 = vpop.f32.mrf.mxu0
      %v713 = vadd.f32 %v345, %v712
      %v714 = vpop.f32.mrf.mxu0
      %715 = vmatprep.mubr.bf16.mxu0 0
      %716 = vmatmul.mubr.bf16.gmra.mxu0 %v487
      %v717 = vpop.f32.mrf.mxu0
      %v718 = vadd.f32 %v345, %v717
      %v719 = vpop.f32.mrf.mxu0
      %v720 = vpop.f32.mrf.mxu0
      %v721 = vadd.f32 %v345, %v720
      %v722 = vpop.f32.mrf.mxu0
      %723 = vmatprep.mubr.bf16.mxu0 0
      %724 = vmatmul.mubr.bf16.gmra.mxu0 %v488
      %v725 = vpop.f32.mrf.mxu0
      %v726 = vadd.f32 %v345, %v725
      %v727 = vpop.f32.mrf.mxu0
      %v728 = vpop.f32.mrf.mxu0
      %v729 = vadd.f32 %v345, %v728
      %v730 = vpop.f32.mrf.mxu0
      %731 = vmatprep.mubr.bf16.mxu0 0
      %732 = vmatmul.mubr.bf16.gmra.mxu0 %v489
      %v733 = vpop.f32.mrf.mxu0
      %v734 = vadd.f32 %v345, %v733
      %v735 = vpop.f32.mrf.mxu0
      %v736 = vpop.f32.mrf.mxu0
      %v737 = vadd.f32 %v345, %v736
      %v738 = vpop.f32.mrf.mxu0
      %739 = vmatprep.mubr.bf16.mxu0 0
      %740 = vmatmul.mubr.bf16.gmra.mxu0 %v490
      %v741 = vpop.f32.mrf.mxu0
      %v742 = vadd.f32 %v345, %v741
      %v743 = vpop.f32.mrf.mxu0
      %v744 = vpop.f32.mrf.mxu0
      %v745 = vadd.f32 %v345, %v744
      %v746 = vpop.f32.mrf.mxu0
      %747 = vmatprep.mubr.bf16.mxu0 0
      %748 = vmatmul.mubr.bf16.gmra.mxu0 %v491
      %v749 = vpop.f32.mrf.mxu0
      %v750 = vadd.f32 %v345, %v749
      %v751 = vpop.f32.mrf.mxu0
      %v752 = vpop.f32.mrf.mxu0
      %v753 = vadd.f32 %v345, %v752
      %v754 = vpop.f32.mrf.mxu0
      %755 = vmatprep.mubr.bf16.mxu0 0
      %756 = vmatmul.mubr.bf16.gmra.mxu0 %v492
      %v757 = vpop.f32.mrf.mxu0
      %v758 = vadd.f32 %v345, %v757
      %v759 = vpop.f32.mrf.mxu0
      %v760 = vpop.f32.mrf.mxu0
      %v761 = vadd.f32 %v345, %v760
      %v762 = vpop.f32.mrf.mxu0
      %763 = vmatprep.mubr.bf16.mxu0 0
      %764 = vmatmul.mubr.bf16.gmra.mxu0 %v493
      %v765 = vpop.f32.mrf.mxu0
      %v766 = vadd.f32 %v345, %v765
      %v767 = vpop.f32.mrf.mxu0
      %v768 = vpop.f32.mrf.mxu0
      %v769 = vadd.f32 %v345, %v768
      %v770 = vpop.f32.mrf.mxu0
      %771 = vmatprep.mubr.bf16.mxu0 0
      %772 = vmatmul.mubr.bf16.gmra.mxu0 %v494
      %v773 = vpop.f32.mrf.mxu0
      %v774 = vadd.f32 %v345, %v773
      %v775 = vpop.f32.mrf.mxu0
      %v776 = vpop.f32.mrf.mxu0
      %v777 = vadd.f32 %v345, %v776
      %v778 = vpop.f32.mrf.mxu0
      %779 = vmatprep.mubr.bf16.mxu0 0
      %780 = vmatmul.mubr.bf16.gmra.mxu0 %v495
      %v781 = vpop.f32.mrf.mxu0
      %v782 = vadd.f32 %v345, %v781
      %v783 = vpop.f32.mrf.mxu0
      %v784 = vpop.f32.mrf.mxu0
      %v785 = vadd.f32 %v345, %v784
      %v786 = vpop.f32.mrf.mxu0
      %787 = vmatprep.mubr.bf16.mxu0 0
      %788 = vmatmul.mubr.bf16.gmra.mxu0 %v496
      %v789 = vpop.f32.mrf.mxu0
      %v790 = vadd.f32 %v345, %v789
      %v791 = vpop.f32.mrf.mxu0
      %v792 = vpop.f32.mrf.mxu0
      %v793 = vadd.f32 %v345, %v792
      %v794 = vpop.f32.mrf.mxu0
      %795 = vmatprep.mubr.bf16.mxu0 0
      %796 = vmatmul.mubr.bf16.gmra.mxu0 %v497
      %v797 = vpop.f32.mrf.mxu0
      %v798 = vadd.f32 %v345, %v797
      %v799 = vpop.f32.mrf.mxu0
      %v800 = vpop.f32.mrf.mxu0
      %v801 = vadd.f32 %v345, %v800
      %v802 = vpop.f32.mrf.mxu0
      %803 = vmatprep.mubr.bf16.mxu0 0
      %804 = vmatmul.mubr.bf16.gmra.mxu0 %v498
      %v805 = vpop.f32.mrf.mxu0
      %v806 = vadd.f32 %v345, %v805
      %v807 = vpop.f32.mrf.mxu0
      %v808 = vpop.f32.mrf.mxu0
      %v809 = vadd.f32 %v345, %v808
      %v810 = vpop.f32.mrf.mxu0
      %811 = vmatprep.mubr.bf16.mxu0 0
      %812 = vmatmul.mubr.bf16.gmra.mxu0 %v499
      %v813 = vpop.f32.mrf.mxu0
      %v814 = vadd.f32 %v345, %v813
      %v815 = vpop.f32.mrf.mxu0
      %v816 = vpop.f32.mrf.mxu0
      %v817 = vadd.f32 %v345, %v816
      %v818 = vpop.f32.mrf.mxu0
      %819 = vmatprep.mubr.bf16.mxu0 0
      %820 = vmatmul.mubr.bf16.gmra.mxu0 %v500
      %v821 = vpop.f32.mrf.mxu0
      %v822 = vadd.f32 %v345, %v821
      %v823 = vpop.f32.mrf.mxu0
      %v824 = vpop.f32.mrf.mxu0
      %v825 = vadd.f32 %v345, %v824
      %v826 = vpop.f32.mrf.mxu0
      %827 = vmatprep.mubr.bf16.mxu0 0
      %828 = vmatmul.mubr.bf16.gmra.mxu0 %v501
      %v829 = vpop.f32.mrf.mxu0
      %v830 = vadd.f32 %v345, %v829
      %v831 = vpop.f32.mrf.mxu0
      %v832 = vpop.f32.mrf.mxu0
      %v833 = vadd.f32 %v345, %v832
      %v834 = vpop.f32.mrf.mxu0
      %835 = vmatprep.mubr.bf16.mxu0 0
      %836 = vmatmul.mubr.bf16.gmra.mxu0 %v502
      %v837 = vpop.f32.mrf.mxu0
      %v838 = vadd.f32 %v345, %v837
      %v839 = vpop.f32.mrf.mxu0
      %v840 = vpop.f32.mrf.mxu0
      %v841 = vadd.f32 %v345, %v840
      %v842 = vpop.f32.mrf.mxu0
      %843 = vmatprep.mubr.bf16.mxu0 0
      %844 = vmatmul.mubr.bf16.gmra.mxu0 %v503
      %v845 = vpop.f32.mrf.mxu0
      %v846 = vadd.f32 %v345, %v845
      %v847 = vpop.f32.mrf.mxu0
      %v848 = vpop.f32.mrf.mxu0
      %v849 = vadd.f32 %v345, %v848
      %v850 = vpop.f32.mrf.mxu0
      %851 = vmatprep.mubr.bf16.mxu0 0
      %852 = vmatmul.mubr.bf16.gmra.mxu0 %v504
      %v853 = vpop.f32.mrf.mxu0
      %v854 = vadd.f32 %v345, %v853
      %v855 = vpop.f32.mrf.mxu0
      %v856 = vpop.f32.mrf.mxu0
      %v857 = vadd.f32 %v345, %v856
      %v858 = vpop.f32.mrf.mxu0
      %859 = vmatprep.mubr.bf16.mxu0 0
      %860 = vmatmul.mubr.bf16.gmra.mxu0 %v505
      %v861 = vpop.f32.mrf.mxu0
      %v862 = vadd.f32 %v345, %v861
      %v863 = vpop.f32.mrf.mxu0
      %v864 = vpop.f32.mrf.mxu0
      %v865 = vadd.f32 %v345, %v864
      %v866 = vpop.f32.mrf.mxu0
      %867 = vmatprep.mubr.bf16.mxu0 0
      %868 = vmatmul.mubr.bf16.gmra.mxu0 %v506
      %v869 = vpop.f32.mrf.mxu0
      %v870 = vadd.f32 %v345, %v869
      %v871 = vpop.f32.mrf.mxu0
      %v872 = vpop.f32.mrf.mxu0
      %v873 = vadd.f32 %v345, %v872
      %v874 = vpop.f32.mrf.mxu0
      %875 = vdwg.mxu0
      %vm876 = vcmp.ge.f32.partialorder %v622, 0.0
      %vm877 = vcmp.ge.f32.partialorder %v625, 0.0
      %vm878 = vcmp.ge.f32.partialorder %v630, 0.0
      %vm879 = vcmp.ge.f32.partialorder %v633, 0.0
      %vm880 = vcmp.ge.f32.partialorder %v638, 0.0
      %vm881 = vcmp.ge.f32.partialorder %v641, 0.0
      %vm882 = vcmp.ge.f32.partialorder %v646, 0.0
      %vm883 = vcmp.ge.f32.partialorder %v649, 0.0
      %vm884 = vcmp.ge.f32.partialorder %v654, 0.0
      %vm885 = vcmp.ge.f32.partialorder %v657, 0.0
      %vm886 = vcmp.ge.f32.partialorder %v662, 0.0
      %vm887 = vcmp.ge.f32.partialorder %v665, 0.0
      %vm888 = vcmp.ge.f32.partialorder %v670, 0.0
      %vm889 = vcmp.ge.f32.partialorder %v673, 0.0
      %vm890 = vcmp.ge.f32.partialorder %v678, 0.0
      %vm891 = vcmp.ge.f32.partialorder %v681, 0.0
      %vm892 = vcmp.ge.f32.partialorder %v686, 0.0
      %vm893 = vcmp.ge.f32.partialorder %v689, 0.0
      %vm894 = vcmp.ge.f32.partialorder %v694, 0.0
      %vm895 = vcmp.ge.f32.partialorder %v697, 0.0
      %vm896 = vcmp.ge.f32.partialorder %v702, 0.0
      %vm897 = vcmp.ge.f32.partialorder %v705, 0.0
      %vm898 = vcmp.ge.f32.partialorder %v710, 0.0
      %vm899 = vcmp.ge.f32.partialorder %v713, 0.0
      %vm900 = vcmp.ge.f32.partialorder %v718, 0.0
      %vm901 = vcmp.ge.f32.partialorder %v721, 0.0
      %vm902 = vcmp.ge.f32.partialorder %v726, 0.0
      %vm903 = vcmp.ge.f32.partialorder %v729, 0.0
      %vm904 = vcmp.ge.f32.partialorder %v734, 0.0
      %vm905 = vcmp.ge.f32.partialorder %v737, 0.0
      %vm906 = vcmp.ge.f32.partialorder %v742, 0.0
      %vm907 = vcmp.ge.f32.partialorder %v745, 0.0
      %vm908 = vcmp.ge.f32.partialorder %v750, 0.0
      %vm909 = vcmp.ge.f32.partialorder %v753, 0.0
      %vm910 = vcmp.ge.f32.partialorder %v758, 0.0
      %vm911 = vcmp.ge.f32.partialorder %v761, 0.0
      %vm912 = vcmp.ge.f32.partialorder %v766, 0.0
      %vm913 = vcmp.ge.f32.partialorder %v769, 0.0
      %vm914 = vcmp.ge.f32.partialorder %v774, 0.0
      %vm915 = vcmp.ge.f32.partialorder %v777, 0.0
      %vm916 = vcmp.ge.f32.partialorder %v782, 0.0
      %vm917 = vcmp.ge.f32.partialorder %v785, 0.0
      %vm918 = vcmp.ge.f32.partialorder %v790, 0.0
      %vm919 = vcmp.ge.f32.partialorder %v793, 0.0
      %vm920 = vcmp.ge.f32.partialorder %v798, 0.0
      %vm921 = vcmp.ge.f32.partialorder %v801, 0.0
      %vm922 = vcmp.ge.f32.partialorder %v806, 0.0
      %vm923 = vcmp.ge.f32.partialorder %v809, 0.0
      %vm924 = vcmp.ge.f32.partialorder %v814, 0.0
      %vm925 = vcmp.ge.f32.partialorder %v817, 0.0
      %vm926 = vcmp.ge.f32.partialorder %v822, 0.0
      %vm927 = vcmp.ge.f32.partialorder %v825, 0.0
      %vm928 = vcmp.ge.f32.partialorder %v830, 0.0
      %vm929 = vcmp.ge.f32.partialorder %v833, 0.0
      %vm930 = vcmp.ge.f32.partialorder %v838, 0.0
      %vm931 = vcmp.ge.f32.partialorder %v841, 0.0
      %vm932 = vcmp.ge.f32.partialorder %v846, 0.0
      %vm933 = vcmp.ge.f32.partialorder %v849, 0.0
      %vm934 = vcmp.ge.f32.partialorder %v854, 0.0
      %vm935 = vcmp.ge.f32.partialorder %v857, 0.0
      %vm936 = vcmp.ge.f32.partialorder %v862, 0.0
      %vm937 = vcmp.ge.f32.partialorder %v865, 0.0
      %vm938 = vcmp.ge.f32.partialorder %v870, 0.0
      %vm939 = vcmp.ge.f32.partialorder %v873, 0.0
      %v940 = vmul.f32 %v622, 0.2
      %v941 = vmul.f32 %v625, 0.2
      %v942 = vmul.f32 %v630, 0.2
      %v943 = vmul.f32 %v633, 0.2
      %v944 = vmul.f32 %v638, 0.2
      %v945 = vmul.f32 %v641, 0.2
      %v946 = vmul.f32 %v646, 0.2
      %v947 = vmul.f32 %v649, 0.2
      %v948 = vmul.f32 %v654, 0.2
      %v949 = vmul.f32 %v657, 0.2
      %v950 = vmul.f32 %v662, 0.2
      %v951 = vmul.f32 %v665, 0.2
      %v952 = vmul.f32 %v670, 0.2
      %v953 = vmul.f32 %v673, 0.2
      %v954 = vmul.f32 %v678, 0.2
      %v955 = vmul.f32 %v681, 0.2
      %v956 = vmul.f32 %v686, 0.2
      %v957 = vmul.f32 %v689, 0.2
      %v958 = vmul.f32 %v694, 0.2
      %v959 = vmul.f32 %v697, 0.2
      %v960 = vmul.f32 %v702, 0.2
      %v961 = vmul.f32 %v705, 0.2
      %v962 = vmul.f32 %v710, 0.2
      %v963 = vmul.f32 %v713, 0.2
      %v964 = vmul.f32 %v718, 0.2
      %v965 = vmul.f32 %v721, 0.2
      %v966 = vmul.f32 %v726, 0.2
      %v967 = vmul.f32 %v729, 0.2
      %v968 = vmul.f32 %v734, 0.2
      %v969 = vmul.f32 %v737, 0.2
      %v970 = vmul.f32 %v742, 0.2
      %v971 = vmul.f32 %v745, 0.2
      %v972 = vmul.f32 %v750, 0.2
      %v973 = vmul.f32 %v753, 0.2
      %v974 = vmul.f32 %v758, 0.2
      %v975 = vmul.f32 %v761, 0.2
      %v976 = vmul.f32 %v766, 0.2
      %v977 = vmul.f32 %v769, 0.2
      %v978 = vmul.f32 %v774, 0.2
      %v979 = vmul.f32 %v777, 0.2
      %v980 = vmul.f32 %v782, 0.2
      %v981 = vmul.f32 %v785, 0.2
      %v982 = vmul.f32 %v790, 0.2
      %v983 = vmul.f32 %v793, 0.2
      %v984 = vmul.f32 %v798, 0.2
      %v985 = vmul.f32 %v801, 0.2
      %v986 = vmul.f32 %v806, 0.2
      %v987 = vmul.f32 %v809, 0.2
      %v988 = vmul.f32 %v814, 0.2
      %v989 = vmul.f32 %v817, 0.2
      %v990 = vmul.f32 %v822, 0.2
      %v991 = vmul.f32 %v825, 0.2
      %v992 = vmul.f32 %v830, 0.2
      %v993 = vmul.f32 %v833, 0.2
      %v994 = vmul.f32 %v838, 0.2
      %v995 = vmul.f32 %v841, 0.2
      %v996 = vmul.f32 %v846, 0.2
      %v997 = vmul.f32 %v849, 0.2
      %v998 = vmul.f32 %v854, 0.2
      %v999 = vmul.f32 %v857, 0.2
      %v1000 = vmul.f32 %v862, 0.2
      %v1001 = vmul.f32 %v865, 0.2
      %v1002 = vmul.f32 %v870, 0.2
      %v1003 = vmul.f32 %v873, 0.2
      %v1004 = vsel %vm876, %v622, %v940
      %v1005 = vsel %vm877, %v625, %v941
      %v1006 = vsel %vm878, %v630, %v942
      %v1007 = vsel %vm879, %v633, %v943
      %v1008 = vsel %vm880, %v638, %v944
      %v1009 = vsel %vm881, %v641, %v945
      %v1010 = vsel %vm882, %v646, %v946
      %v1011 = vsel %vm883, %v649, %v947
      %v1012 = vsel %vm884, %v654, %v948
      %v1013 = vsel %vm885, %v657, %v949
      %v1014 = vsel %vm886, %v662, %v950
      %v1015 = vsel %vm887, %v665, %v951
      %v1016 = vsel %vm888, %v670, %v952
      %v1017 = vsel %vm889, %v673, %v953
      %v1018 = vsel %vm890, %v678, %v954
      %v1019 = vsel %vm891, %v681, %v955
      %v1020 = vsel %vm892, %v686, %v956
      %v1021 = vsel %vm893, %v689, %v957
      %v1022 = vsel %vm894, %v694, %v958
      %v1023 = vsel %vm895, %v697, %v959
      %v1024 = vsel %vm896, %v702, %v960
      %v1025 = vsel %vm897, %v705, %v961
      %v1026 = vsel %vm898, %v710, %v962
      %v1027 = vsel %vm899, %v713, %v963
      %v1028 = vsel %vm900, %v718, %v964
      %v1029 = vsel %vm901, %v721, %v965
      %v1030 = vsel %vm902, %v726, %v966
      %v1031 = vsel %vm903, %v729, %v967
      %v1032 = vsel %vm904, %v734, %v968
      %v1033 = vsel %vm905, %v737, %v969
      %v1034 = vsel %vm906, %v742, %v970
      %v1035 = vsel %vm907, %v745, %v971
      %v1036 = vsel %vm908, %v750, %v972
      %v1037 = vsel %vm909, %v753, %v973
      %v1038 = vsel %vm910, %v758, %v974
      %v1039 = vsel %vm911, %v761, %v975
      %v1040 = vsel %vm912, %v766, %v976
      %v1041 = vsel %vm913, %v769, %v977
      %v1042 = vsel %vm914, %v774, %v978
      %v1043 = vsel %vm915, %v777, %v979
      %v1044 = vsel %vm916, %v782, %v980
      %v1045 = vsel %vm917, %v785, %v981
      %v1046 = vsel %vm918, %v790, %v982
      %v1047 = vsel %vm919, %v793, %v983
      %v1048 = vsel %vm920, %v798, %v984
      %v1049 = vsel %vm921, %v801, %v985
      %v1050 = vsel %vm922, %v806, %v986
      %v1051 = vsel %vm923, %v809, %v987
      %v1052 = vsel %vm924, %v814, %v988
      %v1053 = vsel %vm925, %v817, %v989
      %v1054 = vsel %vm926, %v822, %v990
      %v1055 = vsel %vm927, %v825, %v991
      %v1056 = vsel %vm928, %v830, %v992
      %v1057 = vsel %vm929, %v833, %v993
      %v1058 = vsel %vm930, %v838, %v994
      %v1059 = vsel %vm931, %v841, %v995
      %v1060 = vsel %vm932, %v846, %v996
      %v1061 = vsel %vm933, %v849, %v997
      %v1062 = vsel %vm934, %v854, %v998
      %v1063 = vsel %vm935, %v857, %v999
      %v1064 = vsel %vm936, %v862, %v1000
      %v1065 = vsel %vm937, %v865, %v1001
      %v1066 = vsel %vm938, %v870, %v1002
      %v1067 = vsel %vm939, %v873, %v1003
      %v1068 = vpack.c.bf16 %v1005, %v1004
      %v1069 = vpack.c.bf16 %v1007, %v1006
      %v1070 = vpack.c.bf16 %v1009, %v1008
      %v1071 = vpack.c.bf16 %v1011, %v1010
      %v1072 = vpack.c.bf16 %v1013, %v1012
      %v1073 = vpack.c.bf16 %v1015, %v1014
      %v1074 = vpack.c.bf16 %v1017, %v1016
      %v1075 = vpack.c.bf16 %v1019, %v1018
      %v1076 = vpack.c.bf16 %v1021, %v1020
      %v1077 = vpack.c.bf16 %v1023, %v1022
      %v1078 = vpack.c.bf16 %v1025, %v1024
      %v1079 = vpack.c.bf16 %v1027, %v1026
      %v1080 = vpack.c.bf16 %v1029, %v1028
      %v1081 = vpack.c.bf16 %v1031, %v1030
      %v1082 = vpack.c.bf16 %v1033, %v1032
      %v1083 = vpack.c.bf16 %v1035, %v1034
      %v1084 = vpack.c.bf16 %v1037, %v1036
      %v1085 = vpack.c.bf16 %v1039, %v1038
      %v1086 = vpack.c.bf16 %v1041, %v1040
      %v1087 = vpack.c.bf16 %v1043, %v1042
      %v1088 = vpack.c.bf16 %v1045, %v1044
      %v1089 = vpack.c.bf16 %v1047, %v1046
      %v1090 = vpack.c.bf16 %v1049, %v1048
      %v1091 = vpack.c.bf16 %v1051, %v1050
      %v1092 = vpack.c.bf16 %v1053, %v1052
      %v1093 = vpack.c.bf16 %v1055, %v1054
      %v1094 = vpack.c.bf16 %v1057, %v1056
      %v1095 = vpack.c.bf16 %v1059, %v1058
      %v1096 = vpack.c.bf16 %v1061, %v1060
      %v1097 = vpack.c.bf16 %v1063, %v1062
      %v1098 = vpack.c.bf16 %v1065, %v1064
      %v1099 = vpack.c.bf16 %v1067, %v1066
      %v1132 = vunpack.c.l.b16 %v1068
      %v1133 = vunpack.c.h.b16 %v1068
      %v1134 = vunpack.c.l.b16 %v1069
      %v1135 = vunpack.c.h.b16 %v1069
      %v1136 = vunpack.c.l.b16 %v1070
      %v1137 = vunpack.c.h.b16 %v1070
      %v1138 = vunpack.c.l.b16 %v1071
      %v1139 = vunpack.c.h.b16 %v1071
      %v1140 = vunpack.c.l.b16 %v1072
      %v1141 = vunpack.c.h.b16 %v1072
      %v1142 = vunpack.c.l.b16 %v1073
      %v1143 = vunpack.c.h.b16 %v1073
      %v1144 = vunpack.c.l.b16 %v1074
      %v1145 = vunpack.c.h.b16 %v1074
      %v1146 = vunpack.c.l.b16 %v1075
      %v1147 = vunpack.c.h.b16 %v1075
      %v1148 = vunpack.c.l.b16 %v1076
      %v1149 = vunpack.c.h.b16 %v1076
      %v1150 = vunpack.c.l.b16 %v1077
      %v1151 = vunpack.c.h.b16 %v1077
      %v1152 = vunpack.c.l.b16 %v1078
      %v1153 = vunpack.c.h.b16 %v1078
      %v1154 = vunpack.c.l.b16 %v1079
      %v1155 = vunpack.c.h.b16 %v1079
      %v1156 = vunpack.c.l.b16 %v1080
      %v1157 = vunpack.c.h.b16 %v1080
      %v1158 = vunpack.c.l.b16 %v1081
      %v1159 = vunpack.c.h.b16 %v1081
      %v1160 = vunpack.c.l.b16 %v1082
      %v1161 = vunpack.c.h.b16 %v1082
      %v1162 = vunpack.c.l.b16 %v1083
      %v1163 = vunpack.c.h.b16 %v1083
      %v1164 = vunpack.c.l.b16 %v1084
      %v1165 = vunpack.c.h.b16 %v1084
      %v1166 = vunpack.c.l.b16 %v1085
      %v1167 = vunpack.c.h.b16 %v1085
      %v1168 = vunpack.c.l.b16 %v1086
      %v1169 = vunpack.c.h.b16 %v1086
      %v1170 = vunpack.c.l.b16 %v1087
      %v1171 = vunpack.c.h.b16 %v1087
      %v1172 = vunpack.c.l.b16 %v1088
      %v1173 = vunpack.c.h.b16 %v1088
      %v1174 = vunpack.c.l.b16 %v1089
      %v1175 = vunpack.c.h.b16 %v1089
      %v1176 = vunpack.c.l.b16 %v1090
      %v1177 = vunpack.c.h.b16 %v1090
      %v1178 = vunpack.c.l.b16 %v1091
      %v1179 = vunpack.c.h.b16 %v1091
      %v1180 = vunpack.c.l.b16 %v1092
      %v1181 = vunpack.c.h.b16 %v1092
      %v1182 = vunpack.c.l.b16 %v1093
      %v1183 = vunpack.c.h.b16 %v1093
      %v1184 = vunpack.c.l.b16 %v1094
      %v1185 = vunpack.c.h.b16 %v1094
      %v1186 = vunpack.c.l.b16 %v1095
      %v1187 = vunpack.c.h.b16 %v1095
      %v1188 = vunpack.c.l.b16 %v1096
      %v1189 = vunpack.c.h.b16 %v1096
      %v1190 = vunpack.c.l.b16 %v1097
      %v1191 = vunpack.c.h.b16 %v1097
      %v1192 = vunpack.c.l.b16 %v1098
      %v1193 = vunpack.c.h.b16 %v1098
      %v1194 = vunpack.c.l.b16 %v1099
      %v1195 = vunpack.c.h.b16 %v1099
      %v1196 = vpack.c.b16 %v1132, %v1132
      %v1197 = vpack.c.b16 %v1133, %v1133
      %v1198 = vpack.c.b16 %v1134, %v1134
      %v1199 = vpack.c.b16 %v1135, %v1135
      %v1200 = vpack.c.b16 %v1136, %v1136
      %v1201 = vpack.c.b16 %v1137, %v1137
      %v1202 = vpack.c.b16 %v1138, %v1138
      %v1203 = vpack.c.b16 %v1139, %v1139
      %v1204 = vpack.c.b16 %v1140, %v1140
      %v1205 = vpack.c.b16 %v1141, %v1141
      %v1206 = vpack.c.b16 %v1142, %v1142
      %v1207 = vpack.c.b16 %v1143, %v1143
      %v1208 = vpack.c.b16 %v1144, %v1144
      %v1209 = vpack.c.b16 %v1145, %v1145
      %v1210 = vpack.c.b16 %v1146, %v1146
      %v1211 = vpack.c.b16 %v1147, %v1147
      %v1212 = vpack.c.b16 %v1148, %v1148
      %v1213 = vpack.c.b16 %v1149, %v1149
      %v1214 = vpack.c.b16 %v1150, %v1150
      %v1215 = vpack.c.b16 %v1151, %v1151
      %v1216 = vpack.c.b16 %v1152, %v1152
      %v1217 = vpack.c.b16 %v1153, %v1153
      %v1218 = vpack.c.b16 %v1154, %v1154
      %v1219 = vpack.c.b16 %v1155, %v1155
      %v1220 = vpack.c.b16 %v1156, %v1156
      %v1221 = vpack.c.b16 %v1157, %v1157
      %v1222 = vpack.c.b16 %v1158, %v1158
      %v1223 = vpack.c.b16 %v1159, %v1159
      %v1224 = vpack.c.b16 %v1160, %v1160
      %v1225 = vpack.c.b16 %v1161, %v1161
      %v1226 = vpack.c.b16 %v1162, %v1162
      %v1227 = vpack.c.b16 %v1163, %v1163
      %v1228 = vpack.c.b16 %v1164, %v1164
      %v1229 = vpack.c.b16 %v1165, %v1165
      %v1230 = vpack.c.b16 %v1166, %v1166
      %v1231 = vpack.c.b16 %v1167, %v1167
      %v1232 = vpack.c.b16 %v1168, %v1168
      %v1233 = vpack.c.b16 %v1169, %v1169
      %v1234 = vpack.c.b16 %v1170, %v1170
      %v1235 = vpack.c.b16 %v1171, %v1171
      %v1236 = vpack.c.b16 %v1172, %v1172
      %v1237 = vpack.c.b16 %v1173, %v1173
      %v1238 = vpack.c.b16 %v1174, %v1174
      %v1239 = vpack.c.b16 %v1175, %v1175
      %v1240 = vpack.c.b16 %v1176, %v1176
      %v1241 = vpack.c.b16 %v1177, %v1177
      %v1242 = vpack.c.b16 %v1178, %v1178
      %v1243 = vpack.c.b16 %v1179, %v1179
      %v1244 = vpack.c.b16 %v1180, %v1180
      %v1245 = vpack.c.b16 %v1181, %v1181
      %v1246 = vpack.c.b16 %v1182, %v1182
      %v1247 = vpack.c.b16 %v1183, %v1183
      %v1248 = vpack.c.b16 %v1184, %v1184
      %v1249 = vpack.c.b16 %v1185, %v1185
      %v1250 = vpack.c.b16 %v1186, %v1186
      %v1251 = vpack.c.b16 %v1187, %v1187
      %v1252 = vpack.c.b16 %v1188, %v1188
      %v1253 = vpack.c.b16 %v1189, %v1189
      %v1254 = vpack.c.b16 %v1190, %v1190
      %v1255 = vpack.c.b16 %v1191, %v1191
      %v1256 = vpack.c.b16 %v1192, %v1192
      %v1257 = vpack.c.b16 %v1193, %v1193
      %v1258 = vpack.c.b16 %v1194, %v1194
      %v1259 = vpack.c.b16 %v1195, %v1195
      %1324 = vst [vmem:[%s257] sm:$0xf] %v1196
      %1325 = vst [vmem:[%s257 + $0x4] sm:$0xf] %v1197
      %1326 = vst [vmem:[%s257 + $0x8] sm:$0xf] %v1198
      %1327 = vst [vmem:[%s257 + $0xc] sm:$0xf] %v1199
      %1328 = vst [vmem:[%s257 + $0x10] sm:$0xf] %v1200
      %1329 = vst [vmem:[%s257 + $0x14] sm:$0xf] %v1201
      %1330 = vst [vmem:[%s257 + $0x18] sm:$0xf] %v1202
      %1331 = vst [vmem:[%s257 + $0x1c] sm:$0xf] %v1203
      %1332 = vst [vmem:[%s257 + $0x20] sm:$0xf] %v1204
      %1333 = vst [vmem:[%s257 + $0x24] sm:$0xf] %v1205
      %1334 = vst [vmem:[%s257 + $0x28] sm:$0xf] %v1206
      %1335 = vst [vmem:[%s257 + $0x2c] sm:$0xf] %v1207
      %1336 = vst [vmem:[%s257 + $0x30] sm:$0xf] %v1208
      %1337 = vst [vmem:[%s257 + $0x34] sm:$0xf] %v1209
      %1338 = vst [vmem:[%s257 + $0x38] sm:$0xf] %v1210
      %1339 = vst [vmem:[%s257 + $0x3c] sm:$0xf] %v1211
      %1340 = vst [vmem:[%s257 + $0x40] sm:$0xf] %v1212
      %1341 = vst [vmem:[%s257 + $0x44] sm:$0xf] %v1213
      %1342 = vst [vmem:[%s257 + $0x48] sm:$0xf] %v1214
      %1343 = vst [vmem:[%s257 + $0x4c] sm:$0xf] %v1215
      %1344 = vst [vmem:[%s257 + $0x50] sm:$0xf] %v1216
      %1345 = vst [vmem:[%s257 + $0x54] sm:$0xf] %v1217
      %1346 = vst [vmem:[%s257 + $0x58] sm:$0xf] %v1218
      %1347 = vst [vmem:[%s257 + $0x5c] sm:$0xf] %v1219
      %1348 = vst [vmem:[%s257 + $0x60] sm:$0xf] %v1220
      %1349 = vst [vmem:[%s257 + $0x64] sm:$0xf] %v1221
      %1350 = vst [vmem:[%s257 + $0x68] sm:$0xf] %v1222
      %1351 = vst [vmem:[%s257 + $0x6c] sm:$0xf] %v1223
      %1352 = vst [vmem:[%s257 + $0x70] sm:$0xf] %v1224
      %1353 = vst [vmem:[%s257 + $0x74] sm:$0xf] %v1225
      %1354 = vst [vmem:[%s257 + $0x78] sm:$0xf] %v1226
      %1355 = vst [vmem:[%s257 + $0x7c] sm:$0xf] %v1227
      %1356 = vst [vmem:[%s257 + $0x80] sm:$0xf] %v1228
      %1357 = vst [vmem:[%s257 + $0x84] sm:$0xf] %v1229
      %1358 = vst [vmem:[%s257 + $0x88] sm:$0xf] %v1230
      %1359 = vst [vmem:[%s257 + $0x8c] sm:$0xf] %v1231
      %1360 = vst [vmem:[%s257 + $0x90] sm:$0xf] %v1232
      %1361 = vst [vmem:[%s257 + $0x94] sm:$0xf] %v1233
      %1362 = vst [vmem:[%s257 + $0x98] sm:$0xf] %v1234
      %1363 = vst [vmem:[%s257 + $0x9c] sm:$0xf] %v1235
      %1364 = vst [vmem:[%s257 + $0xa0] sm:$0xf] %v1236
      %1365 = vst [vmem:[%s257 + $0xa4] sm:$0xf] %v1237
      %1366 = vst [vmem:[%s257 + $0xa8] sm:$0xf] %v1238
      %1367 = vst [vmem:[%s257 + $0xac] sm:$0xf] %v1239
      %1368 = vst [vmem:[%s257 + $0xb0] sm:$0xf] %v1240
      %1369 = vst [vmem:[%s257 + $0xb4] sm:$0xf] %v1241
      %1370 = vst [vmem:[%s257 + $0xb8] sm:$0xf] %v1242
      %1371 = vst [vmem:[%s257 + $0xbc] sm:$0xf] %v1243
      %1372 = vst [vmem:[%s257 + $0xc0] sm:$0xf] %v1244
      %1373 = vst [vmem:[%s257 + $0xc4] sm:$0xf] %v1245
      %1374 = vst [vmem:[%s257 + $0xc8] sm:$0xf] %v1246
      %1375 = vst [vmem:[%s257 + $0xcc] sm:$0xf] %v1247
      %1376 = vst [vmem:[%s257 + $0xd0] sm:$0xf] %v1248
      %1377 = vst [vmem:[%s257 + $0xd4] sm:$0xf] %v1249
      %1378 = vst [vmem:[%s257 + $0xd8] sm:$0xf] %v1250
      %1379 = vst [vmem:[%s257 + $0xdc] sm:$0xf] %v1251
      %1380 = vst [vmem:[%s257 + $0xe0] sm:$0xf] %v1252
      %1381 = vst [vmem:[%s257 + $0xe4] sm:$0xf] %v1253
      %1382 = vst [vmem:[%s257 + $0xe8] sm:$0xf] %v1254
      %1383 = vst [vmem:[%s257 + $0xec] sm:$0xf] %v1255
      %1384 = vst [vmem:[%s257 + $0xf0] sm:$0xf] %v1256
      %1385 = vst [vmem:[%s257 + $0xf4] sm:$0xf] %v1257
      %1386 = vst [vmem:[%s257 + $0xf8] sm:$0xf] %v1258
      %1387 = vst [vmem:[%s257 + $0xfc] sm:$0xf] %v1259
      %s1388 = smul.u32 64, %s19
      %p1389 = scmp.lt.s32.totalorder %s1388, 255
      %s1390 = scalar_select %p1389, %s1388, 255
      %p1391 = scmp.lt.s32.totalorder %s20, 0
      %s1392 = scalar_select %p1391, %s20, 0
      %s1393 = sadd.s32 %s1392, %s1390
      %s1394 = smul.addr %s1393, 4
      %s1395 = scalar_lea.vmem %s3, %s1394
      // Predicated region
      $region33: #{discriminator_forward.9} parent=31 // pred_check
        %p1396 = pneg %p135
      $region34: #{discriminator_forward.9} parent=31 // pred_check_branch
        %1398 = sbr.rel (%p1396) target = $region36
      $region35: #{discriminator_forward.9} parent=31 // pred_region
        %s1399 = smul.u32 64, %s19
      $region36: #{discriminator_forward.9} parent=31 // pred_fallthru
        _
    $region32: #{discriminator_forward.9} parent=5 // pred_fallthru
      _
    %p1400 = scmp.le.s32.totalorder 2, %s9
    // Predicated region
    $region37: #{discriminator_forward.9} parent=5 // pred_check
      %p1401 = pneg %p1400
    $region38: #{discriminator_forward.9} parent=5 // pred_check_branch
      %1403 = sbr.rel (%p1401) target = $region40
    $region39: #{discriminator_forward.9} parent=5 // pred_region
      %s1404 = ssub.s32 %s9, 2
      // Predicated region
      $region41: #{discriminator_forward.9} parent=39 // pred_check
        %p1405 = pneg %p141
      $region42: #{discriminator_forward.9} parent=39 // pred_check_branch
        %1407 = sbr.rel (%p1405) target = $region44
      $region43: #{discriminator_forward.9} parent=39 // pred_region
        %s1408 = smul.u32 64, %s22
        %p1409 = scmp.lt.s32.totalorder %s1408, 255
        %s1410 = scalar_select %p1409, %s1408, 255
        %p1411 = scmp.lt.s32.totalorder %s23, 0
        %s1412 = scalar_select %p1411, %s23, 0
        %s1413 = sadd.s32 %s1412, %s1410
        %s1414 = smul.addr %s1413, 4
        %s1415 = scalar_lea.vmem %s3, %s1414
      $region44: #{discriminator_forward.9} parent=39 // pred_fallthru
        _
    $region40: #{discriminator_forward.9} parent=5 // pred_fallthru
      _
  $region6: #{discriminator_forward.9} parent=0 // loop_footer
    %s13 = sadd.s32 1, %s9
  $region7: #{discriminator_forward.9} parent=0 // loop_footer_branch
    %8 = sbr.rel target = $region3
  $region8: #{discriminator_forward.9} parent=0 // loop_exit
    _

// kernel: discriminator_forward.10
$region0: #{discriminator_forward.10}
  #allocation0 [shape = 'u32[]', space=smem, size = 0x4, offset = 0x4, fixed_abs, tag = 'smem constant byte address 0x4 - core index']
  #allocation1 [shape = 'u32[144,128]{1,0:T(1,128)}', space=vmem, size = 0x12000, scoped, tag = 'internal scratch']
  %s0 = inlined_call_operand.vmem [shape: bf16[512,256], index: 0, kind: input, shape index: {}]
  %s1 = inlined_call_operand.vmem [shape: bf16[256,128], index: 1, kind: input, shape index: {}]
  %s2 = inlined_call_operand.vmem [shape: f32[1,128], index: 2, kind: input, shape index: {}]
  %s3 = inlined_call_operand.vmem [shape: bf16[512,128], index: 3, kind: output, shape index: {}]
  %s4 = sld [smem:[#allocation0]]
  $region22: #{discriminator_forward.10} parent=0
    _
  %s6 = ssub.s32 1, %s4
  %s7 = scalar_select 0, %s6, %s4
  // Predicated region
  $region2: #{discriminator_forward.10} parent=0 // pred_check
    _
  $region3: #{discriminator_forward.10} parent=0 // pred_check_branch
    %9 = sbr.rel (0) target = $region5
  $region4: #{discriminator_forward.10} parent=0 // pred_region
    _
  $region5: #{discriminator_forward.10} parent=0 // pred_fallthru
    _
  // Predicated region
  $region6: #{discriminator_forward.10} parent=0 // pred_check
    _
  $region7: #{discriminator_forward.10} parent=0 // pred_check_branch
    %11 = sbr.rel (0) target = $region9
  $region8: #{discriminator_forward.10} parent=0 // pred_region
    _
  $region9: #{discriminator_forward.10} parent=0 // pred_fallthru
    _
  // Predicated region
  $region10: #{discriminator_forward.10} parent=0 // pred_check
    _
  $region11: #{discriminator_forward.10} parent=0 // pred_check_branch
    %13 = sbr.rel (0) target = $region13
  $region12: #{discriminator_forward.10} parent=0 // pred_region
    _
  $region13: #{discriminator_forward.10} parent=0 // pred_fallthru
    _
  %v15 = vld [vmem:[%s0] sm:$0xff]
  %v16 = vld [vmem:[%s0 + $0x8] sm:$0xff]
  %v17 = vld [vmem:[%s0 + $0x10] sm:$0xff]
  %v18 = vld [vmem:[%s0 + $0x18] sm:$0xff]
  %v19 = vld [vmem:[%s0 + $0x20] sm:$0xff]
  %v20 = vld [vmem:[%s0 + $0x28] sm:$0xff]
  %v21 = vld [vmem:[%s0 + $0x30] sm:$0xff]
  %v22 = vld [vmem:[%s0 + $0x38] sm:$0xff]
  %v23 = vld [vmem:[%s0 + $0x40] sm:$0xff]
  %v24 = vld [vmem:[%s0 + $0x48] sm:$0xff]
  %v25 = vld [vmem:[%s0 + $0x50] sm:$0xff]
  %v26 = vld [vmem:[%s0 + $0x58] sm:$0xff]
  %v27 = vld [vmem:[%s0 + $0x60] sm:$0xff]
  %v28 = vld [vmem:[%s0 + $0x68] sm:$0xff]
  %v29 = vld [vmem:[%s0 + $0x70] sm:$0xff]
  %v30 = vld [vmem:[%s0 + $0x78] sm:$0xff]
  %v31 = vld [vmem:[%s0 + $0x80] sm:$0xff]
  %v32 = vld [vmem:[%s0 + $0x88] sm:$0xff]
  %v33 = vld [vmem:[%s0 + $0x90] sm:$0xff]
  %v34 = vld [vmem:[%s0 + $0x98] sm:$0xff]
  %v35 = vld [vmem:[%s0 + $0xa0] sm:$0xff]
  %v36 = vld [vmem:[%s0 + $0xa8] sm:$0xff]
  %v37 = vld [vmem:[%s0 + $0xb0] sm:$0xff]
  %v38 = vld [vmem:[%s0 + $0xb8] sm:$0xff]
  %v39 = vld [vmem:[%s0 + $0xc0] sm:$0xff]
  %v40 = vld [vmem:[%s0 + $0xc8] sm:$0xff]
  %v41 = vld [vmem:[%s0 + $0xd0] sm:$0xff]
  %v42 = vld [vmem:[%s0 + $0xd8] sm:$0xff]
  %v43 = vld [vmem:[%s0 + $0xe0] sm:$0xff]
  %v44 = vld [vmem:[%s0 + $0xe8] sm:$0xff]
  %v45 = vld [vmem:[%s0 + $0xf0] sm:$0xff]
  %v46 = vld [vmem:[%s0 + $0xf8] sm:$0xff]
  %v47 = vld [vmem:[%s0 + $0x100] sm:$0xff]
  %v48 = vld [vmem:[%s0 + $0x108] sm:$0xff]
  %v49 = vld [vmem:[%s0 + $0x110] sm:$0xff]
  %v50 = vld [vmem:[%s0 + $0x118] sm:$0xff]
  %v51 = vld [vmem:[%s0 + $0x120] sm:$0xff]
  %v52 = vld [vmem:[%s0 + $0x128] sm:$0xff]
  %v53 = vld [vmem:[%s0 + $0x130] sm:$0xff]
  %v54 = vld [vmem:[%s0 + $0x138] sm:$0xff]
  %v55 = vld [vmem:[%s0 + $0x140] sm:$0xff]
  %v56 = vld [vmem:[%s0 + $0x148] sm:$0xff]
  %v57 = vld [vmem:[%s0 + $0x150] sm:$0xff]
  %v58 = vld [vmem:[%s0 + $0x158] sm:$0xff]
  %v59 = vld [vmem:[%s0 + $0x160] sm:$0xff]
  %v60 = vld [vmem:[%s0 + $0x168] sm:$0xff]
  %v61 = vld [vmem:[%s0 + $0x170] sm:$0xff]
  %v62 = vld [vmem:[%s0 + $0x178] sm:$0xff]
  %v63 = vld [vmem:[%s0 + $0x180] sm:$0xff]
  %v64 = vld [vmem:[%s0 + $0x188] sm:$0xff]
  %v65 = vld [vmem:[%s0 + $0x190] sm:$0xff]
  %v66 = vld [vmem:[%s0 + $0x198] sm:$0xff]
  %v67 = vld [vmem:[%s0 + $0x1a0] sm:$0xff]
  %v68 = vld [vmem:[%s0 + $0x1a8] sm:$0xff]
  %v69 = vld [vmem:[%s0 + $0x1b0] sm:$0xff]
  %v70 = vld [vmem:[%s0 + $0x1b8] sm:$0xff]
  %v71 = vld [vmem:[%s0 + $0x1c0] sm:$0xff]
  %v72 = vld [vmem:[%s0 + $0x1c8] sm:$0xff]
  %v73 = vld [vmem:[%s0 + $0x1d0] sm:$0xff]
  %v74 = vld [vmem:[%s0 + $0x1d8] sm:$0xff]
  %v75 = vld [vmem:[%s0 + $0x1e0] sm:$0xff]
  %v76 = vld [vmem:[%s0 + $0x1e8] sm:$0xff]
  %v77 = vld [vmem:[%s0 + $0x1f0] sm:$0xff]
  %v78 = vld [vmem:[%s0 + $0x1f8] sm:$0xff]
  %v79 = vld [vmem:[%s1] sm:$0xf]
  %v80 = vld [vmem:[%s1 + $0x4] sm:$0xf]
  %v81 = vld [vmem:[%s1 + $0x8] sm:$0xf]
  %v82 = vld [vmem:[%s1 + $0xc] sm:$0xf]
  %v83 = vld [vmem:[%s1 + $0x10] sm:$0xf]
  %v84 = vld [vmem:[%s1 + $0x14] sm:$0xf]
  %v85 = vld [vmem:[%s1 + $0x18] sm:$0xf]
  %v86 = vld [vmem:[%s1 + $0x1c] sm:$0xf]
  %v87 = vld [vmem:[%s1 + $0x20] sm:$0xf]
  %v88 = vld [vmem:[%s1 + $0x24] sm:$0xf]
  %v89 = vld [vmem:[%s1 + $0x28] sm:$0xf]
  %v90 = vld [vmem:[%s1 + $0x2c] sm:$0xf]
  %v91 = vld [vmem:[%s1 + $0x30] sm:$0xf]
  %v92 = vld [vmem:[%s1 + $0x34] sm:$0xf]
  %v93 = vld [vmem:[%s1 + $0x38] sm:$0xf]
  %v94 = vld [vmem:[%s1 + $0x3c] sm:$0xf]
  %v95 = vld [vmem:[%s1 + $0x40] sm:$0xf]
  %v96 = vld [vmem:[%s1 + $0x44] sm:$0xf]
  %v97 = vld [vmem:[%s1 + $0x48] sm:$0xf]
  %v98 = vld [vmem:[%s1 + $0x4c] sm:$0xf]
  %v99 = vld [vmem:[%s1 + $0x50] sm:$0xf]
  %v100 = vld [vmem:[%s1 + $0x54] sm:$0xf]
  %v101 = vld [vmem:[%s1 + $0x58] sm:$0xf]
  %v102 = vld [vmem:[%s1 + $0x5c] sm:$0xf]
  %v103 = vld [vmem:[%s1 + $0x60] sm:$0xf]
  %v104 = vld [vmem:[%s1 + $0x64] sm:$0xf]
  %v105 = vld [vmem:[%s1 + $0x68] sm:$0xf]
  %v106 = vld [vmem:[%s1 + $0x6c] sm:$0xf]
  %v107 = vld [vmem:[%s1 + $0x70] sm:$0xf]
  %v108 = vld [vmem:[%s1 + $0x74] sm:$0xf]
  %v109 = vld [vmem:[%s1 + $0x78] sm:$0xf]
  %v110 = vld [vmem:[%s1 + $0x7c] sm:$0xf]
  %v111 = vld [vmem:[%s2] sm:$0x1]
  %v113 = vlaneseq
  %v114 = vshrl.u32 %v113, 7
  %v115 = vsub.s32 0, %v114
  %v116 = vrot.slane %v111, %v115
  %v182 = vunpack.c.l.b16 %v15
  %v183 = vunpack.c.h.b16 %v15
  %v184 = vunpack.c.l.b16 %v16
  %v185 = vunpack.c.h.b16 %v16
  %v186 = vunpack.c.l.b16 %v17
  %v187 = vunpack.c.h.b16 %v17
  %v188 = vunpack.c.l.b16 %v18
  %v189 = vunpack.c.h.b16 %v18
  %v190 = vunpack.c.l.b16 %v19
  %v191 = vunpack.c.h.b16 %v19
  %v192 = vunpack.c.l.b16 %v20
  %v193 = vunpack.c.h.b16 %v20
  %v194 = vunpack.c.l.b16 %v21
  %v195 = vunpack.c.h.b16 %v21
  %v196 = vunpack.c.l.b16 %v22
  %v197 = vunpack.c.h.b16 %v22
  %v198 = vunpack.c.l.b16 %v23
  %v199 = vunpack.c.h.b16 %v23
  %v200 = vunpack.c.l.b16 %v24
  %v201 = vunpack.c.h.b16 %v24
  %v202 = vunpack.c.l.b16 %v25
  %v203 = vunpack.c.h.b16 %v25
  %v204 = vunpack.c.l.b16 %v26
  %v205 = vunpack.c.h.b16 %v26
  %v206 = vunpack.c.l.b16 %v27
  %v207 = vunpack.c.h.b16 %v27
  %v208 = vunpack.c.l.b16 %v28
  %v209 = vunpack.c.h.b16 %v28
  %v210 = vunpack.c.l.b16 %v29
  %v211 = vunpack.c.h.b16 %v29
  %v212 = vunpack.c.l.b16 %v30
  %v213 = vunpack.c.h.b16 %v30
  %v214 = vunpack.c.l.b16 %v31
  %v215 = vunpack.c.h.b16 %v31
  %v216 = vunpack.c.l.b16 %v32
  %v217 = vunpack.c.h.b16 %v32
  %v218 = vunpack.c.l.b16 %v33
  %v219 = vunpack.c.h.b16 %v33
  %v220 = vunpack.c.l.b16 %v34
  %v221 = vunpack.c.h.b16 %v34
  %v222 = vunpack.c.l.b16 %v35
  %v223 = vunpack.c.h.b16 %v35
  %v224 = vunpack.c.l.b16 %v36
  %v225 = vunpack.c.h.b16 %v36
  %v226 = vunpack.c.l.b16 %v37
  %v227 = vunpack.c.h.b16 %v37
  %v228 = vunpack.c.l.b16 %v38
  %v229 = vunpack.c.h.b16 %v38
  %v230 = vunpack.c.l.b16 %v39
  %v231 = vunpack.c.h.b16 %v39
  %v232 = vunpack.c.l.b16 %v40
  %v233 = vunpack.c.h.b16 %v40
  %v234 = vunpack.c.l.b16 %v41
  %v235 = vunpack.c.h.b16 %v41
  %v236 = vunpack.c.l.b16 %v42
  %v237 = vunpack.c.h.b16 %v42
  %v238 = vunpack.c.l.b16 %v43
  %v239 = vunpack.c.h.b16 %v43
  %v240 = vunpack.c.l.b16 %v44
  %v241 = vunpack.c.h.b16 %v44
  %v242 = vunpack.c.l.b16 %v45
  %v243 = vunpack.c.h.b16 %v45
  %v244 = vunpack.c.l.b16 %v46
  %v245 = vunpack.c.h.b16 %v46
  %v246 = vunpack.c.l.b16 %v47
  %v247 = vunpack.c.h.b16 %v47
  %v248 = vunpack.c.l.b16 %v48
  %v249 = vunpack.c.h.b16 %v48
  %v250 = vunpack.c.l.b16 %v49
  %v251 = vunpack.c.h.b16 %v49
  %v252 = vunpack.c.l.b16 %v50
  %v253 = vunpack.c.h.b16 %v50
  %v254 = vunpack.c.l.b16 %v51
  %v255 = vunpack.c.h.b16 %v51
  %v256 = vunpack.c.l.b16 %v52
  %v257 = vunpack.c.h.b16 %v52
  %v258 = vunpack.c.l.b16 %v53
  %v259 = vunpack.c.h.b16 %v53
  %v260 = vunpack.c.l.b16 %v54
  %v261 = vunpack.c.h.b16 %v54
  %v262 = vunpack.c.l.b16 %v55
  %v263 = vunpack.c.h.b16 %v55
  %v264 = vunpack.c.l.b16 %v56
  %v265 = vunpack.c.h.b16 %v56
  %v266 = vunpack.c.l.b16 %v57
  %v267 = vunpack.c.h.b16 %v57
  %v268 = vunpack.c.l.b16 %v58
  %v269 = vunpack.c.h.b16 %v58
  %v270 = vunpack.c.l.b16 %v59
  %v271 = vunpack.c.h.b16 %v59
  %v272 = vunpack.c.l.b16 %v60
  %v273 = vunpack.c.h.b16 %v60
  %v274 = vunpack.c.l.b16 %v61
  %v275 = vunpack.c.h.b16 %v61
  %v276 = vunpack.c.l.b16 %v62
  %v277 = vunpack.c.h.b16 %v62
  %v278 = vunpack.c.l.b16 %v63
  %v279 = vunpack.c.h.b16 %v63
  %v280 = vunpack.c.l.b16 %v64
  %v281 = vunpack.c.h.b16 %v64
  %v282 = vunpack.c.l.b16 %v65
  %v283 = vunpack.c.h.b16 %v65
  %v284 = vunpack.c.l.b16 %v66
  %v285 = vunpack.c.h.b16 %v66
  %v286 = vunpack.c.l.b16 %v67
  %v287 = vunpack.c.h.b16 %v67
  %v288 = vunpack.c.l.b16 %v68
  %v289 = vunpack.c.h.b16 %v68
  %v290 = vunpack.c.l.b16 %v69
  %v291 = vunpack.c.h.b16 %v69
  %v292 = vunpack.c.l.b16 %v70
  %v293 = vunpack.c.h.b16 %v70
  %v294 = vunpack.c.l.b16 %v71
  %v295 = vunpack.c.h.b16 %v71
  %v296 = vunpack.c.l.b16 %v72
  %v297 = vunpack.c.h.b16 %v72
  %v298 = vunpack.c.l.b16 %v73
  %v299 = vunpack.c.h.b16 %v73
  %v300 = vunpack.c.l.b16 %v74
  %v301 = vunpack.c.h.b16 %v74
  %v302 = vunpack.c.l.b16 %v75
  %v303 = vunpack.c.h.b16 %v75
  %v304 = vunpack.c.l.b16 %v76
  %v305 = vunpack.c.h.b16 %v76
  %v306 = vunpack.c.l.b16 %v77
  %v307 = vunpack.c.h.b16 %v77
  %v308 = vunpack.c.l.b16 %v78
  %v309 = vunpack.c.h.b16 %v78
  %v310 = vpack.c.b16 %v184, %v182
  %v311 = vpack.c.b16 %v185, %v183
  %v312 = vpack.c.b16 %v188, %v186
  %v313 = vpack.c.b16 %v189, %v187
  %v314 = vpack.c.b16 %v192, %v190
  %v315 = vpack.c.b16 %v193, %v191
  %v316 = vpack.c.b16 %v196, %v194
  %v317 = vpack.c.b16 %v197, %v195
  %v318 = vpack.c.b16 %v200, %v198
  %v319 = vpack.c.b16 %v201, %v199
  %v320 = vpack.c.b16 %v204, %v202
  %v321 = vpack.c.b16 %v205, %v203
  %v322 = vpack.c.b16 %v208, %v206
  %v323 = vpack.c.b16 %v209, %v207
  %v324 = vpack.c.b16 %v212, %v210
  %v325 = vpack.c.b16 %v213, %v211
  %v326 = vpack.c.b16 %v216, %v214
  %v327 = vpack.c.b16 %v217, %v215
  %v328 = vpack.c.b16 %v220, %v218
  %v329 = vpack.c.b16 %v221, %v219
  %v330 = vpack.c.b16 %v224, %v222
  %v331 = vpack.c.b16 %v225, %v223
  %v332 = vpack.c.b16 %v228, %v226
  %v333 = vpack.c.b16 %v229, %v227
  %v334 = vpack.c.b16 %v232, %v230
  %v335 = vpack.c.b16 %v233, %v231
  %v336 = vpack.c.b16 %v236, %v234
  %v337 = vpack.c.b16 %v237, %v235
  %v338 = vpack.c.b16 %v240, %v238
  %v339 = vpack.c.b16 %v241, %v239
  %v340 = vpack.c.b16 %v244, %v242
  %v341 = vpack.c.b16 %v245, %v243
  %v342 = vpack.c.b16 %v248, %v246
  %v343 = vpack.c.b16 %v249, %v247
  %v344 = vpack.c.b16 %v252, %v250
  %v345 = vpack.c.b16 %v253, %v251
  %v346 = vpack.c.b16 %v256, %v254
  %v347 = vpack.c.b16 %v257, %v255
  %v348 = vpack.c.b16 %v260, %v258
  %v349 = vpack.c.b16 %v261, %v259
  %v350 = vpack.c.b16 %v264, %v262
  %v351 = vpack.c.b16 %v265, %v263
  %v352 = vpack.c.b16 %v268, %v266
  %v353 = vpack.c.b16 %v269, %v267
  %v354 = vpack.c.b16 %v272, %v270
  %v355 = vpack.c.b16 %v273, %v271
  %v356 = vpack.c.b16 %v276, %v274
  %v357 = vpack.c.b16 %v277, %v275
  %v358 = vpack.c.b16 %v280, %v278
  %v359 = vpack.c.b16 %v281, %v279
  %v360 = vpack.c.b16 %v284, %v282
  %v361 = vpack.c.b16 %v285, %v283
  %v362 = vpack.c.b16 %v288, %v286
  %v363 = vpack.c.b16 %v289, %v287
  %v364 = vpack.c.b16 %v292, %v290
  %v365 = vpack.c.b16 %v293, %v291
  %v366 = vpack.c.b16 %v296, %v294
  %v367 = vpack.c.b16 %v297, %v295
  %v368 = vpack.c.b16 %v300, %v298
  %v369 = vpack.c.b16 %v301, %v299
  %v370 = vpack.c.b16 %v304, %v302
  %v371 = vpack.c.b16 %v305, %v303
  %v372 = vpack.c.b16 %v308, %v306
  %v373 = vpack.c.b16 %v309, %v307
  %v470 = vunpack.c.l.b16 %v79
  %v471 = vunpack.c.l.b16 %v80
  %v472 = vunpack.c.l.b16 %v81
  %v473 = vunpack.c.l.b16 %v82
  %v474 = vunpack.c.l.b16 %v83
  %v475 = vunpack.c.l.b16 %v84
  %v476 = vunpack.c.l.b16 %v85
  %v477 = vunpack.c.l.b16 %v86
  %v478 = vunpack.c.l.b16 %v87
  %v479 = vunpack.c.l.b16 %v88
  %v480 = vunpack.c.l.b16 %v89
  %v481 = vunpack.c.l.b16 %v90
  %v482 = vunpack.c.l.b16 %v91
  %v483 = vunpack.c.l.b16 %v92
  %v484 = vunpack.c.l.b16 %v93
  %v485 = vunpack.c.l.b16 %v94
  %v486 = vunpack.c.l.b16 %v95
  %v487 = vunpack.c.l.b16 %v96
  %v488 = vunpack.c.l.b16 %v97
  %v489 = vunpack.c.l.b16 %v98
  %v490 = vunpack.c.l.b16 %v99
  %v491 = vunpack.c.l.b16 %v100
  %v492 = vunpack.c.l.b16 %v101
  %v493 = vunpack.c.l.b16 %v102
  %v494 = vunpack.c.l.b16 %v103
  %v495 = vunpack.c.l.b16 %v104
  %v496 = vunpack.c.l.b16 %v105
  %v497 = vunpack.c.l.b16 %v106
  %v498 = vunpack.c.l.b16 %v107
  %v499 = vunpack.c.l.b16 %v108
  %v500 = vunpack.c.l.b16 %v109
  %v501 = vunpack.c.l.b16 %v110
  %v502 = vpack.c.b16 %v471, %v470
  %v503 = vpack.c.b16 %v473, %v472
  %v504 = vpack.c.b16 %v475, %v474
  %v505 = vpack.c.b16 %v477, %v476
  %v506 = vpack.c.b16 %v479, %v478
  %v507 = vpack.c.b16 %v481, %v480
  %v508 = vpack.c.b16 %v483, %v482
  %v509 = vpack.c.b16 %v485, %v484
  %v510 = vpack.c.b16 %v487, %v486
  %v511 = vpack.c.b16 %v489, %v488
  %v512 = vpack.c.b16 %v491, %v490
  %v513 = vpack.c.b16 %v493, %v492
  %v514 = vpack.c.b16 %v495, %v494
  %v515 = vpack.c.b16 %v497, %v496
  %v516 = vpack.c.b16 %v499, %v498
  %v517 = vpack.c.b16 %v501, %v500
  %534 = vmatprep.subr.bf16.mxu0 0
  %535 = vmatpush1.bf16.msra.mxu0 %v509
  %536 = vmatprep.subr.bf16.mxu0 0
  %537 = vmatpush1.bf16.msra.mxu0 %v508
  %538 = vmatprep.subr.bf16.mxu0 0
  %539 = vmatpush1.bf16.msra.mxu0 %v507
  %540 = vmatprep.subr.bf16.mxu0 0
  %541 = vmatpush1.bf16.msra.mxu0 %v506
  %542 = vmatprep.subr.bf16.mxu0 0
  %543 = vmatpush1.bf16.msra.mxu0 %v505
  %544 = vmatprep.subr.bf16.mxu0 0
  %545 = vmatpush1.bf16.msra.mxu0 %v504
  %546 = vmatprep.subr.bf16.mxu0 0
  %547 = vmatpush1.bf16.msra.mxu0 %v503
  %548 = vmatprep.subr.bf16.mxu0 0
  %549 = vmatpush1.bf16.msra.mxu0 %v502
  %550 = vmatprep.subr.bf16.mxu0 0
  %551 = vmatpush2.bf16.msra.mxu0 %v517
  %552 = vmatprep.subr.bf16.mxu0 0
  %553 = vmatpush2.bf16.msra.mxu0 %v516
  %554 = vmatprep.subr.bf16.mxu0 0
  %555 = vmatpush2.bf16.msra.mxu0 %v515
  %556 = vmatprep.subr.bf16.mxu0 0
  %557 = vmatpush2.bf16.msra.mxu0 %v514
  %558 = vmatprep.subr.bf16.mxu0 0
  %559 = vmatpush2.bf16.msra.mxu0 %v513
  %560 = vmatprep.subr.bf16.mxu0 0
  %561 = vmatpush2.bf16.msra.mxu0 %v512
  %562 = vmatprep.subr.bf16.mxu0 0
  %563 = vmatpush2.bf16.msra.mxu0 %v511
  %564 = vmatprep.subr.bf16.mxu0 0
  %565 = vmatpush2.bf16.msra.mxu0 %v510
  %566 = vmatprep.mubr.bf16.mxu0 %v311
  %567 = vmatmul.mubr.bf16.gmra.mxu0 %v310
  %v568 = vpop.f32.mrf.mxu0
  %v569 = vadd.f32 %v116, %v568
  %v570 = vpop.f32.mrf.mxu0
  %v571 = vpop.f32.mrf.mxu0
  %v572 = vadd.f32 %v116, %v571
  %v573 = vpop.f32.mrf.mxu0
  %574 = vmatprep.mubr.bf16.mxu0 %v313
  %575 = vmatmul.mubr.bf16.gmra.mxu0 %v312
  %v576 = vpop.f32.mrf.mxu0
  %v577 = vadd.f32 %v116, %v576
  %v578 = vpop.f32.mrf.mxu0
  %v579 = vpop.f32.mrf.mxu0
  %v580 = vadd.f32 %v116, %v579
  %v581 = vpop.f32.mrf.mxu0
  %582 = vmatprep.mubr.bf16.mxu0 %v315
  %583 = vmatmul.mubr.bf16.gmra.mxu0 %v314
  %v584 = vpop.f32.mrf.mxu0
  %v585 = vadd.f32 %v116, %v584
  %v586 = vpop.f32.mrf.mxu0
  %v587 = vpop.f32.mrf.mxu0
  %v588 = vadd.f32 %v116, %v587
  %v589 = vpop.f32.mrf.mxu0
  %590 = vmatprep.mubr.bf16.mxu0 %v317
  %591 = vmatmul.mubr.bf16.gmra.mxu0 %v316
  %v592 = vpop.f32.mrf.mxu0
  %v593 = vadd.f32 %v116, %v592
  %v594 = vpop.f32.mrf.mxu0
  %v595 = vpop.f32.mrf.mxu0
  %v596 = vadd.f32 %v116, %v595
  %v597 = vpop.f32.mrf.mxu0
  %598 = vmatprep.mubr.bf16.mxu0 %v319
  %599 = vmatmul.mubr.bf16.gmra.mxu0 %v318
  %v600 = vpop.f32.mrf.mxu0
  %v601 = vadd.f32 %v116, %v600
  %v602 = vpop.f32.mrf.mxu0
  %v603 = vpop.f32.mrf.mxu0
  %v604 = vadd.f32 %v116, %v603
  %v605 = vpop.f32.mrf.mxu0
  %606 = vmatprep.mubr.bf16.mxu0 %v321
  %607 = vmatmul.mubr.bf16.gmra.mxu0 %v320
  %v608 = vpop.f32.mrf.mxu0
  %v609 = vadd.f32 %v116, %v608
  %v610 = vpop.f32.mrf.mxu0
  %v611 = vpop.f32.mrf.mxu0
  %v612 = vadd.f32 %v116, %v611
  %v613 = vpop.f32.mrf.mxu0
  %614 = vmatprep.mubr.bf16.mxu0 %v323
  %615 = vmatmul.mubr.bf16.gmra.mxu0 %v322
  %v616 = vpop.f32.mrf.mxu0
  %v617 = vadd.f32 %v116, %v616
  %v618 = vpop.f32.mrf.mxu0
  %v619 = vpop.f32.mrf.mxu0
  %v620 = vadd.f32 %v116, %v619
  %v621 = vpop.f32.mrf.mxu0
  %622 = vmatprep.mubr.bf16.mxu0 %v325
  %623 = vmatmul.mubr.bf16.gmra.mxu0 %v324
  %v624 = vpop.f32.mrf.mxu0
  %v625 = vadd.f32 %v116, %v624
  %v626 = vpop.f32.mrf.mxu0
  %v627 = vpop.f32.mrf.mxu0
  %v628 = vadd.f32 %v116, %v627
  %v629 = vpop.f32.mrf.mxu0
  %630 = vmatprep.mubr.bf16.mxu0 %v327
  %631 = vmatmul.mubr.bf16.gmra.mxu0 %v326
  %v632 = vpop.f32.mrf.mxu0
  %v633 = vadd.f32 %v116, %v632
  %v634 = vpop.f32.mrf.mxu0
  %v635 = vpop.f32.mrf.mxu0
  %v636 = vadd.f32 %v116, %v635
  %v637 = vpop.f32.mrf.mxu0
  %638 = vmatprep.mubr.bf16.mxu0 %v329
  %639 = vmatmul.mubr.bf16.gmra.mxu0 %v328
  %v640 = vpop.f32.mrf.mxu0
  %v641 = vadd.f32 %v116, %v640
  %v642 = vpop.f32.mrf.mxu0
  %v643 = vpop.f32.mrf.mxu0
  %v644 = vadd.f32 %v116, %v643
  %v645 = vpop.f32.mrf.mxu0
  %646 = vmatprep.mubr.bf16.mxu0 %v331
  %647 = vmatmul.mubr.bf16.gmra.mxu0 %v330
  %v648 = vpop.f32.mrf.mxu0
  %v649 = vadd.f32 %v116, %v648
  %v650 = vpop.f32.mrf.mxu0
  %v651 = vpop.f32.mrf.mxu0
  %v652 = vadd.f32 %v116, %v651
  %v653 = vpop.f32.mrf.mxu0
  %654 = vmatprep.mubr.bf16.mxu0 %v333
  %655 = vmatmul.mubr.bf16.gmra.mxu0 %v332
  %v656 = vpop.f32.mrf.mxu0
  %v657 = vadd.f32 %v116, %v656
  %v658 = vpop.f32.mrf.mxu0
  %v659 = vpop.f32.mrf.mxu0
  %v660 = vadd.f32 %v116, %v659
  %v661 = vpop.f32.mrf.mxu0
  %662 = vmatprep.mubr.bf16.mxu0 %v335
  %663 = vmatmul.mubr.bf16.gmra.mxu0 %v334
  %v664 = vpop.f32.mrf.mxu0
  %v665 = vadd.f32 %v116, %v664
  %v666 = vpop.f32.mrf.mxu0
  %v667 = vpop.f32.mrf.mxu0
  %v668 = vadd.f32 %v116, %v667
  %v669 = vpop.f32.mrf.mxu0
  %670 = vmatprep.mubr.bf16.mxu0 %v337
  %671 = vmatmul.mubr.bf16.gmra.mxu0 %v336
  %v672 = vpop.f32.mrf.mxu0
  %v673 = vadd.f32 %v116, %v672
  %v674 = vpop.f32.mrf.mxu0
  %v675 = vpop.f32.mrf.mxu0
  %v676 = vadd.f32 %v116, %v675
  %v677 = vpop.f32.mrf.mxu0
  %678 = vmatprep.mubr.bf16.mxu0 %v339
  %679 = vmatmul.mubr.bf16.gmra.mxu0 %v338
  %v680 = vpop.f32.mrf.mxu0
  %v681 = vadd.f32 %v116, %v680
  %v682 = vpop.f32.mrf.mxu0
  %v683 = vpop.f32.mrf.mxu0
  %v684 = vadd.f32 %v116, %v683
  %v685 = vpop.f32.mrf.mxu0
  %686 = vmatprep.mubr.bf16.mxu0 %v341
  %687 = vmatmul.mubr.bf16.gmra.mxu0 %v340
  %v688 = vpop.f32.mrf.mxu0
  %v689 = vadd.f32 %v116, %v688
  %v690 = vpop.f32.mrf.mxu0
  %v691 = vpop.f32.mrf.mxu0
  %v692 = vadd.f32 %v116, %v691
  %v693 = vpop.f32.mrf.mxu0
  %694 = vmatprep.mubr.bf16.mxu0 %v343
  %695 = vmatmul.mubr.bf16.gmra.mxu0 %v342
  %v696 = vpop.f32.mrf.mxu0
  %v697 = vadd.f32 %v116, %v696
  %v698 = vpop.f32.mrf.mxu0
  %v699 = vpop.f32.mrf.mxu0
  %v700 = vadd.f32 %v116, %v699
  %v701 = vpop.f32.mrf.mxu0
  %702 = vmatprep.mubr.bf16.mxu0 %v345
  %703 = vmatmul.mubr.bf16.gmra.mxu0 %v344
  %v704 = vpop.f32.mrf.mxu0
  %v705 = vadd.f32 %v116, %v704
  %v706 = vpop.f32.mrf.mxu0
  %v707 = vpop.f32.mrf.mxu0
  %v708 = vadd.f32 %v116, %v707
  %v709 = vpop.f32.mrf.mxu0
  %710 = vmatprep.mubr.bf16.mxu0 %v347
  %711 = vmatmul.mubr.bf16.gmra.mxu0 %v346
  %v712 = vpop.f32.mrf.mxu0
  %v713 = vadd.f32 %v116, %v712
  %v714 = vpop.f32.mrf.mxu0
  %v715 = vpop.f32.mrf.mxu0
  %v716 = vadd.f32 %v116, %v715
  %v717 = vpop.f32.mrf.mxu0
  %718 = vmatprep.mubr.bf16.mxu0 %v349
  %719 = vmatmul.mubr.bf16.gmra.mxu0 %v348
  %v720 = vpop.f32.mrf.mxu0
  %v721 = vadd.f32 %v116, %v720
  %v722 = vpop.f32.mrf.mxu0
  %v723 = vpop.f32.mrf.mxu0
  %v724 = vadd.f32 %v116, %v723
  %v725 = vpop.f32.mrf.mxu0
  %726 = vmatprep.mubr.bf16.mxu0 %v351
  %727 = vmatmul.mubr.bf16.gmra.mxu0 %v350
  %v728 = vpop.f32.mrf.mxu0
  %v729 = vadd.f32 %v116, %v728
  %v730 = vpop.f32.mrf.mxu0
  %v731 = vpop.f32.mrf.mxu0
  %v732 = vadd.f32 %v116, %v731
  %v733 = vpop.f32.mrf.mxu0
  %734 = vmatprep.mubr.bf16.mxu0 %v353
  %735 = vmatmul.mubr.bf16.gmra.mxu0 %v352
  %v736 = vpop.f32.mrf.mxu0
  %v737 = vadd.f32 %v116, %v736
  %v738 = vpop.f32.mrf.mxu0
  %v739 = vpop.f32.mrf.mxu0
  %v740 = vadd.f32 %v116, %v739
  %v741 = vpop.f32.mrf.mxu0
  %742 = vmatprep.mubr.bf16.mxu0 %v355
  %743 = vmatmul.mubr.bf16.gmra.mxu0 %v354
  %v744 = vpop.f32.mrf.mxu0
  %v745 = vadd.f32 %v116, %v744
  %v746 = vpop.f32.mrf.mxu0
  %v747 = vpop.f32.mrf.mxu0
  %v748 = vadd.f32 %v116, %v747
  %v749 = vpop.f32.mrf.mxu0
  %750 = vmatprep.mubr.bf16.mxu0 %v357
  %751 = vmatmul.mubr.bf16.gmra.mxu0 %v356
  %v752 = vpop.f32.mrf.mxu0
  %v753 = vadd.f32 %v116, %v752
  %v754 = vpop.f32.mrf.mxu0
  %v755 = vpop.f32.mrf.mxu0
  %v756 = vadd.f32 %v116, %v755
  %v757 = vpop.f32.mrf.mxu0
  %758 = vmatprep.mubr.bf16.mxu0 %v359
  %759 = vmatmul.mubr.bf16.gmra.mxu0 %v358
  %v760 = vpop.f32.mrf.mxu0
  %v761 = vadd.f32 %v116, %v760
  %v762 = vpop.f32.mrf.mxu0
  %v763 = vpop.f32.mrf.mxu0
  %v764 = vadd.f32 %v116, %v763
  %v765 = vpop.f32.mrf.mxu0
  %766 = vmatprep.mubr.bf16.mxu0 %v361
  %767 = vmatmul.mubr.bf16.gmra.mxu0 %v360
  %v768 = vpop.f32.mrf.mxu0
  %v769 = vadd.f32 %v116, %v768
  %v770 = vpop.f32.mrf.mxu0
  %v771 = vpop.f32.mrf.mxu0
  %v772 = vadd.f32 %v116, %v771
  %v773 = vpop.f32.mrf.mxu0
  %774 = vmatprep.mubr.bf16.mxu0 %v363
  %775 = vmatmul.mubr.bf16.gmra.mxu0 %v362
  %v776 = vpop.f32.mrf.mxu0
  %v777 = vadd.f32 %v116, %v776
  %v778 = vpop.f32.mrf.mxu0
  %v779 = vpop.f32.mrf.mxu0
  %v780 = vadd.f32 %v116, %v779
  %v781 = vpop.f32.mrf.mxu0
  %782 = vmatprep.mubr.bf16.mxu0 %v365
  %783 = vmatmul.mubr.bf16.gmra.mxu0 %v364
  %v784 = vpop.f32.mrf.mxu0
  %v785 = vadd.f32 %v116, %v784
  %v786 = vpop.f32.mrf.mxu0
  %v787 = vpop.f32.mrf.mxu0
  %v788 = vadd.f32 %v116, %v787
  %v789 = vpop.f32.mrf.mxu0
  %790 = vmatprep.mubr.bf16.mxu0 %v367
  %791 = vmatmul.mubr.bf16.gmra.mxu0 %v366
  %v792 = vpop.f32.mrf.mxu0
  %v793 = vadd.f32 %v116, %v792
  %v794 = vpop.f32.mrf.mxu0
  %v795 = vpop.f32.mrf.mxu0
  %v796 = vadd.f32 %v116, %v795
  %v797 = vpop.f32.mrf.mxu0
  %798 = vmatprep.mubr.bf16.mxu0 %v369
  %799 = vmatmul.mubr.bf16.gmra.mxu0 %v368
  %v800 = vpop.f32.mrf.mxu0
  %v801 = vadd.f32 %v116, %v800
  %v802 = vpop.f32.mrf.mxu0
  %v803 = vpop.f32.mrf.mxu0
  %v804 = vadd.f32 %v116, %v803
  %v805 = vpop.f32.mrf.mxu0
  %806 = vmatprep.mubr.bf16.mxu0 %v371
  %807 = vmatmul.mubr.bf16.gmra.mxu0 %v370
  %v808 = vpop.f32.mrf.mxu0
  %v809 = vadd.f32 %v116, %v808
  %v810 = vpop.f32.mrf.mxu0
  %v811 = vpop.f32.mrf.mxu0
  %v812 = vadd.f32 %v116, %v811
  %v813 = vpop.f32.mrf.mxu0
  %814 = vmatprep.mubr.bf16.mxu0 %v373
  %815 = vmatmul.mubr.bf16.gmra.mxu0 %v372
  %v816 = vpop.f32.mrf.mxu0
  %v817 = vadd.f32 %v116, %v816
  %v818 = vpop.f32.mrf.mxu0
  %v819 = vpop.f32.mrf.mxu0
  %v820 = vadd.f32 %v116, %v819
  %v821 = vpop.f32.mrf.mxu0
  %822 = vdwg.mxu0
  %vm823 = vcmp.ge.f32.partialorder %v569, 0.0
  %vm824 = vcmp.ge.f32.partialorder %v572, 0.0
  %vm825 = vcmp.ge.f32.partialorder %v577, 0.0
  %vm826 = vcmp.ge.f32.partialorder %v580, 0.0
  %vm827 = vcmp.ge.f32.partialorder %v585, 0.0
  %vm828 = vcmp.ge.f32.partialorder %v588, 0.0
  %vm829 = vcmp.ge.f32.partialorder %v593, 0.0
  %vm830 = vcmp.ge.f32.partialorder %v596, 0.0
  %vm831 = vcmp.ge.f32.partialorder %v601, 0.0
  %vm832 = vcmp.ge.f32.partialorder %v604, 0.0
  %vm833 = vcmp.ge.f32.partialorder %v609, 0.0
  %vm834 = vcmp.ge.f32.partialorder %v612, 0.0
  %vm835 = vcmp.ge.f32.partialorder %v617, 0.0
  %vm836 = vcmp.ge.f32.partialorder %v620, 0.0
  %vm837 = vcmp.ge.f32.partialorder %v625, 0.0
  %vm838 = vcmp.ge.f32.partialorder %v628, 0.0
  %vm839 = vcmp.ge.f32.partialorder %v633, 0.0
  %vm840 = vcmp.ge.f32.partialorder %v636, 0.0
  %vm841 = vcmp.ge.f32.partialorder %v641, 0.0
  %vm842 = vcmp.ge.f32.partialorder %v644, 0.0
  %vm843 = vcmp.ge.f32.partialorder %v649, 0.0
  %vm844 = vcmp.ge.f32.partialorder %v652, 0.0
  %vm845 = vcmp.ge.f32.partialorder %v657, 0.0
  %vm846 = vcmp.ge.f32.partialorder %v660, 0.0
  %vm847 = vcmp.ge.f32.partialorder %v665, 0.0
  %vm848 = vcmp.ge.f32.partialorder %v668, 0.0
  %vm849 = vcmp.ge.f32.partialorder %v673, 0.0
  %vm850 = vcmp.ge.f32.partialorder %v676, 0.0
  %vm851 = vcmp.ge.f32.partialorder %v681, 0.0
  %vm852 = vcmp.ge.f32.partialorder %v684, 0.0
  %vm853 = vcmp.ge.f32.partialorder %v689, 0.0
  %vm854 = vcmp.ge.f32.partialorder %v692, 0.0
  %vm855 = vcmp.ge.f32.partialorder %v697, 0.0
  %vm856 = vcmp.ge.f32.partialorder %v700, 0.0
  %vm857 = vcmp.ge.f32.partialorder %v705, 0.0
  %vm858 = vcmp.ge.f32.partialorder %v708, 0.0
  %vm859 = vcmp.ge.f32.partialorder %v713, 0.0
  %vm860 = vcmp.ge.f32.partialorder %v716, 0.0
  %vm861 = vcmp.ge.f32.partialorder %v721, 0.0
  %vm862 = vcmp.ge.f32.partialorder %v724, 0.0
  %vm863 = vcmp.ge.f32.partialorder %v729, 0.0
  %vm864 = vcmp.ge.f32.partialorder %v732, 0.0
  %vm865 = vcmp.ge.f32.partialorder %v737, 0.0
  %vm866 = vcmp.ge.f32.partialorder %v740, 0.0
  %vm867 = vcmp.ge.f32.partialorder %v745, 0.0
  %vm868 = vcmp.ge.f32.partialorder %v748, 0.0
  %vm869 = vcmp.ge.f32.partialorder %v753, 0.0
  %vm870 = vcmp.ge.f32.partialorder %v756, 0.0
  %vm871 = vcmp.ge.f32.partialorder %v761, 0.0
  %vm872 = vcmp.ge.f32.partialorder %v764, 0.0
  %vm873 = vcmp.ge.f32.partialorder %v769, 0.0
  %vm874 = vcmp.ge.f32.partialorder %v772, 0.0
  %vm875 = vcmp.ge.f32.partialorder %v777, 0.0
  %vm876 = vcmp.ge.f32.partialorder %v780, 0.0
  %vm877 = vcmp.ge.f32.partialorder %v785, 0.0
  %vm878 = vcmp.ge.f32.partialorder %v788, 0.0
  %vm879 = vcmp.ge.f32.partialorder %v793, 0.0
  %vm880 = vcmp.ge.f32.partialorder %v796, 0.0
  %vm881 = vcmp.ge.f32.partialorder %v801, 0.0
  %vm882 = vcmp.ge.f32.partialorder %v804, 0.0
  %vm883 = vcmp.ge.f32.partialorder %v809, 0.0
  %vm884 = vcmp.ge.f32.partialorder %v812, 0.0
  %vm885 = vcmp.ge.f32.partialorder %v817, 0.0
  %vm886 = vcmp.ge.f32.partialorder %v820, 0.0
  %v887 = vmul.f32 %v569, 0.2
  %v888 = vmul.f32 %v572, 0.2
  %v889 = vmul.f32 %v577, 0.2
  %v890 = vmul.f32 %v580, 0.2
  %v891 = vmul.f32 %v585, 0.2
  %v892 = vmul.f32 %v588, 0.2
  %v893 = vmul.f32 %v593, 0.2
  %v894 = vmul.f32 %v596, 0.2
  %v895 = vmul.f32 %v601, 0.2
  %v896 = vmul.f32 %v604, 0.2
  %v897 = vmul.f32 %v609, 0.2
  %v898 = vmul.f32 %v612, 0.2
  %v899 = vmul.f32 %v617, 0.2
  %v900 = vmul.f32 %v620, 0.2
  %v901 = vmul.f32 %v625, 0.2
  %v902 = vmul.f32 %v628, 0.2
  %v903 = vmul.f32 %v633, 0.2
  %v904 = vmul.f32 %v636, 0.2
  %v905 = vmul.f32 %v641, 0.2
  %v906 = vmul.f32 %v644, 0.2
  %v907 = vmul.f32 %v649, 0.2
  %v908 = vmul.f32 %v652, 0.2
  %v909 = vmul.f32 %v657, 0.2
  %v910 = vmul.f32 %v660, 0.2
  %v911 = vmul.f32 %v665, 0.2
  %v912 = vmul.f32 %v668, 0.2
  %v913 = vmul.f32 %v673, 0.2
  %v914 = vmul.f32 %v676, 0.2
  %v915 = vmul.f32 %v681, 0.2
  %v916 = vmul.f32 %v684, 0.2
  %v917 = vmul.f32 %v689, 0.2
  %v918 = vmul.f32 %v692, 0.2
  %v919 = vmul.f32 %v697, 0.2
  %v920 = vmul.f32 %v700, 0.2
  %v921 = vmul.f32 %v705, 0.2
  %v922 = vmul.f32 %v708, 0.2
  %v923 = vmul.f32 %v713, 0.2
  %v924 = vmul.f32 %v716, 0.2
  %v925 = vmul.f32 %v721, 0.2
  %v926 = vmul.f32 %v724, 0.2
  %v927 = vmul.f32 %v729, 0.2
  %v928 = vmul.f32 %v732, 0.2
  %v929 = vmul.f32 %v737, 0.2
  %v930 = vmul.f32 %v740, 0.2
  %v931 = vmul.f32 %v745, 0.2
  %v932 = vmul.f32 %v748, 0.2
  %v933 = vmul.f32 %v753, 0.2
  %v934 = vmul.f32 %v756, 0.2
  %v935 = vmul.f32 %v761, 0.2
  %v936 = vmul.f32 %v764, 0.2
  %v937 = vmul.f32 %v769, 0.2
  %v938 = vmul.f32 %v772, 0.2
  %v939 = vmul.f32 %v777, 0.2
  %v940 = vmul.f32 %v780, 0.2
  %v941 = vmul.f32 %v785, 0.2
  %v942 = vmul.f32 %v788, 0.2
  %v943 = vmul.f32 %v793, 0.2
  %v944 = vmul.f32 %v796, 0.2
  %v945 = vmul.f32 %v801, 0.2
  %v946 = vmul.f32 %v804, 0.2
  %v947 = vmul.f32 %v809, 0.2
  %v948 = vmul.f32 %v812, 0.2
  %v949 = vmul.f32 %v817, 0.2
  %v950 = vmul.f32 %v820, 0.2
  %v951 = vsel %vm823, %v569, %v887
  %v952 = vsel %vm824, %v572, %v888
  %v953 = vsel %vm825, %v577, %v889
  %v954 = vsel %vm826, %v580, %v890
  %v955 = vsel %vm827, %v585, %v891
  %v956 = vsel %vm828, %v588, %v892
  %v957 = vsel %vm829, %v593, %v893
  %v958 = vsel %vm830, %v596, %v894
  %v959 = vsel %vm831, %v601, %v895
  %v960 = vsel %vm832, %v604, %v896
  %v961 = vsel %vm833, %v609, %v897
  %v962 = vsel %vm834, %v612, %v898
  %v963 = vsel %vm835, %v617, %v899
  %v964 = vsel %vm836, %v620, %v900
  %v965 = vsel %vm837, %v625, %v901
  %v966 = vsel %vm838, %v628, %v902
  %v967 = vsel %vm839, %v633, %v903
  %v968 = vsel %vm840, %v636, %v904
  %v969 = vsel %vm841, %v641, %v905
  %v970 = vsel %vm842, %v644, %v906
  %v971 = vsel %vm843, %v649, %v907
  %v972 = vsel %vm844, %v652, %v908
  %v973 = vsel %vm845, %v657, %v909
  %v974 = vsel %vm846, %v660, %v910
  %v975 = vsel %vm847, %v665, %v911
  %v976 = vsel %vm848, %v668, %v912
  %v977 = vsel %vm849, %v673, %v913
  %v978 = vsel %vm850, %v676, %v914
  %v979 = vsel %vm851, %v681, %v915
  %v980 = vsel %vm852, %v684, %v916
  %v981 = vsel %vm853, %v689, %v917
  %v982 = vsel %vm854, %v692, %v918
  %v983 = vsel %vm855, %v697, %v919
  %v984 = vsel %vm856, %v700, %v920
  %v985 = vsel %vm857, %v705, %v921
  %v986 = vsel %vm858, %v708, %v922
  %v987 = vsel %vm859, %v713, %v923
  %v988 = vsel %vm860, %v716, %v924
  %v989 = vsel %vm861, %v721, %v925
  %v990 = vsel %vm862, %v724, %v926
  %v991 = vsel %vm863, %v729, %v927
  %v992 = vsel %vm864, %v732, %v928
  %v993 = vsel %vm865, %v737, %v929
  %v994 = vsel %vm866, %v740, %v930
  %v995 = vsel %vm867, %v745, %v931
  %v996 = vsel %vm868, %v748, %v932
  %v997 = vsel %vm869, %v753, %v933
  %v998 = vsel %vm870, %v756, %v934
  %v999 = vsel %vm871, %v761, %v935
  %v1000 = vsel %vm872, %v764, %v936
  %v1001 = vsel %vm873, %v769, %v937
  %v1002 = vsel %vm874, %v772, %v938
  %v1003 = vsel %vm875, %v777, %v939
  %v1004 = vsel %vm876, %v780, %v940
  %v1005 = vsel %vm877, %v785, %v941
  %v1006 = vsel %vm878, %v788, %v942
  %v1007 = vsel %vm879, %v793, %v943
  %v1008 = vsel %vm880, %v796, %v944
  %v1009 = vsel %vm881, %v801, %v945
  %v1010 = vsel %vm882, %v804, %v946
  %v1011 = vsel %vm883, %v809, %v947
  %v1012 = vsel %vm884, %v812, %v948
  %v1013 = vsel %vm885, %v817, %v949
  %v1014 = vsel %vm886, %v820, %v950
  %v1015 = vpack.c.bf16 %v952, %v951
  %v1016 = vpack.c.bf16 %v954, %v953
  %v1017 = vpack.c.bf16 %v956, %v955
  %v1018 = vpack.c.bf16 %v958, %v957
  %v1019 = vpack.c.bf16 %v960, %v959
  %v1020 = vpack.c.bf16 %v962, %v961
  %v1021 = vpack.c.bf16 %v964, %v963
  %v1022 = vpack.c.bf16 %v966, %v965
  %v1023 = vpack.c.bf16 %v968, %v967
  %v1024 = vpack.c.bf16 %v970, %v969
  %v1025 = vpack.c.bf16 %v972, %v971
  %v1026 = vpack.c.bf16 %v974, %v973
  %v1027 = vpack.c.bf16 %v976, %v975
  %v1028 = vpack.c.bf16 %v978, %v977
  %v1029 = vpack.c.bf16 %v980, %v979
  %v1030 = vpack.c.bf16 %v982, %v981
  %v1031 = vpack.c.bf16 %v984, %v983
  %v1032 = vpack.c.bf16 %v986, %v985
  %v1033 = vpack.c.bf16 %v988, %v987
  %v1034 = vpack.c.bf16 %v990, %v989
  %v1035 = vpack.c.bf16 %v992, %v991
  %v1036 = vpack.c.bf16 %v994, %v993
  %v1037 = vpack.c.bf16 %v996, %v995
  %v1038 = vpack.c.bf16 %v998, %v997
  %v1039 = vpack.c.bf16 %v1000, %v999
  %v1040 = vpack.c.bf16 %v1002, %v1001
  %v1041 = vpack.c.bf16 %v1004, %v1003
  %v1042 = vpack.c.bf16 %v1006, %v1005
  %v1043 = vpack.c.bf16 %v1008, %v1007
  %v1044 = vpack.c.bf16 %v1010, %v1009
  %v1045 = vpack.c.bf16 %v1012, %v1011
  %v1046 = vpack.c.bf16 %v1014, %v1013
  %v1079 = vunpack.c.l.b16 %v1015
  %v1080 = vunpack.c.h.b16 %v1015
  %v1081 = vunpack.c.l.b16 %v1016
  %v1082 = vunpack.c.h.b16 %v1016
  %v1083 = vunpack.c.l.b16 %v1017
  %v1084 = vunpack.c.h.b16 %v1017
  %v1085 = vunpack.c.l.b16 %v1018
  %v1086 = vunpack.c.h.b16 %v1018
  %v1087 = vunpack.c.l.b16 %v1019
  %v1088 = vunpack.c.h.b16 %v1019
  %v1089 = vunpack.c.l.b16 %v1020
  %v1090 = vunpack.c.h.b16 %v1020
  %v1091 = vunpack.c.l.b16 %v1021
  %v1092 = vunpack.c.h.b16 %v1021
  %v1093 = vunpack.c.l.b16 %v1022
  %v1094 = vunpack.c.h.b16 %v1022
  %v1095 = vunpack.c.l.b16 %v1023
  %v1096 = vunpack.c.h.b16 %v1023
  %v1097 = vunpack.c.l.b16 %v1024
  %v1098 = vunpack.c.h.b16 %v1024
  %v1099 = vunpack.c.l.b16 %v1025
  %v1100 = vunpack.c.h.b16 %v1025
  %v1101 = vunpack.c.l.b16 %v1026
  %v1102 = vunpack.c.h.b16 %v1026
  %v1103 = vunpack.c.l.b16 %v1027
  %v1104 = vunpack.c.h.b16 %v1027
  %v1105 = vunpack.c.l.b16 %v1028
  %v1106 = vunpack.c.h.b16 %v1028
  %v1107 = vunpack.c.l.b16 %v1029
  %v1108 = vunpack.c.h.b16 %v1029
  %v1109 = vunpack.c.l.b16 %v1030
  %v1110 = vunpack.c.h.b16 %v1030
  %v1111 = vunpack.c.l.b16 %v1031
  %v1112 = vunpack.c.h.b16 %v1031
  %v1113 = vunpack.c.l.b16 %v1032
  %v1114 = vunpack.c.h.b16 %v1032
  %v1115 = vunpack.c.l.b16 %v1033
  %v1116 = vunpack.c.h.b16 %v1033
  %v1117 = vunpack.c.l.b16 %v1034
  %v1118 = vunpack.c.h.b16 %v1034
  %v1119 = vunpack.c.l.b16 %v1035
  %v1120 = vunpack.c.h.b16 %v1035
  %v1121 = vunpack.c.l.b16 %v1036
  %v1122 = vunpack.c.h.b16 %v1036
  %v1123 = vunpack.c.l.b16 %v1037
  %v1124 = vunpack.c.h.b16 %v1037
  %v1125 = vunpack.c.l.b16 %v1038
  %v1126 = vunpack.c.h.b16 %v1038
  %v1127 = vunpack.c.l.b16 %v1039
  %v1128 = vunpack.c.h.b16 %v1039
  %v1129 = vunpack.c.l.b16 %v1040
  %v1130 = vunpack.c.h.b16 %v1040
  %v1131 = vunpack.c.l.b16 %v1041
  %v1132 = vunpack.c.h.b16 %v1041
  %v1133 = vunpack.c.l.b16 %v1042
  %v1134 = vunpack.c.h.b16 %v1042
  %v1135 = vunpack.c.l.b16 %v1043
  %v1136 = vunpack.c.h.b16 %v1043
  %v1137 = vunpack.c.l.b16 %v1044
  %v1138 = vunpack.c.h.b16 %v1044
  %v1139 = vunpack.c.l.b16 %v1045
  %v1140 = vunpack.c.h.b16 %v1045
  %v1141 = vunpack.c.l.b16 %v1046
  %v1142 = vunpack.c.h.b16 %v1046
  %v1143 = vpack.c.b16 %v1079, %v1079
  %v1144 = vpack.c.b16 %v1080, %v1080
  %v1145 = vpack.c.b16 %v1081, %v1081
  %v1146 = vpack.c.b16 %v1082, %v1082
  %v1147 = vpack.c.b16 %v1083, %v1083
  %v1148 = vpack.c.b16 %v1084, %v1084
  %v1149 = vpack.c.b16 %v1085, %v1085
  %v1150 = vpack.c.b16 %v1086, %v1086
  %v1151 = vpack.c.b16 %v1087, %v1087
  %v1152 = vpack.c.b16 %v1088, %v1088
  %v1153 = vpack.c.b16 %v1089, %v1089
  %v1154 = vpack.c.b16 %v1090, %v1090
  %v1155 = vpack.c.b16 %v1091, %v1091
  %v1156 = vpack.c.b16 %v1092, %v1092
  %v1157 = vpack.c.b16 %v1093, %v1093
  %v1158 = vpack.c.b16 %v1094, %v1094
  %v1159 = vpack.c.b16 %v1095, %v1095
  %v1160 = vpack.c.b16 %v1096, %v1096
  %v1161 = vpack.c.b16 %v1097, %v1097
  %v1162 = vpack.c.b16 %v1098, %v1098
  %v1163 = vpack.c.b16 %v1099, %v1099
  %v1164 = vpack.c.b16 %v1100, %v1100
  %v1165 = vpack.c.b16 %v1101, %v1101
  %v1166 = vpack.c.b16 %v1102, %v1102
  %v1167 = vpack.c.b16 %v1103, %v1103
  %v1168 = vpack.c.b16 %v1104, %v1104
  %v1169 = vpack.c.b16 %v1105, %v1105
  %v1170 = vpack.c.b16 %v1106, %v1106
  %v1171 = vpack.c.b16 %v1107, %v1107
  %v1172 = vpack.c.b16 %v1108, %v1108
  %v1173 = vpack.c.b16 %v1109, %v1109
  %v1174 = vpack.c.b16 %v1110, %v1110
  %v1175 = vpack.c.b16 %v1111, %v1111
  %v1176 = vpack.c.b16 %v1112, %v1112
  %v1177 = vpack.c.b16 %v1113, %v1113
  %v1178 = vpack.c.b16 %v1114, %v1114
  %v1179 = vpack.c.b16 %v1115, %v1115
  %v1180 = vpack.c.b16 %v1116, %v1116
  %v1181 = vpack.c.b16 %v1117, %v1117
  %v1182 = vpack.c.b16 %v1118, %v1118
  %v1183 = vpack.c.b16 %v1119, %v1119
  %v1184 = vpack.c.b16 %v1120, %v1120
  %v1185 = vpack.c.b16 %v1121, %v1121
  %v1186 = vpack.c.b16 %v1122, %v1122
  %v1187 = vpack.c.b16 %v1123, %v1123
  %v1188 = vpack.c.b16 %v1124, %v1124
  %v1189 = vpack.c.b16 %v1125, %v1125
  %v1190 = vpack.c.b16 %v1126, %v1126
  %v1191 = vpack.c.b16 %v1127, %v1127
  %v1192 = vpack.c.b16 %v1128, %v1128
  %v1193 = vpack.c.b16 %v1129, %v1129
  %v1194 = vpack.c.b16 %v1130, %v1130
  %v1195 = vpack.c.b16 %v1131, %v1131
  %v1196 = vpack.c.b16 %v1132, %v1132
  %v1197 = vpack.c.b16 %v1133, %v1133
  %v1198 = vpack.c.b16 %v1134, %v1134
  %v1199 = vpack.c.b16 %v1135, %v1135
  %v1200 = vpack.c.b16 %v1136, %v1136
  %v1201 = vpack.c.b16 %v1137, %v1137
  %v1202 = vpack.c.b16 %v1138, %v1138
  %v1203 = vpack.c.b16 %v1139, %v1139
  %v1204 = vpack.c.b16 %v1140, %v1140
  %v1205 = vpack.c.b16 %v1141, %v1141
  %v1206 = vpack.c.b16 %v1142, %v1142
  %1271 = vst [vmem:[%s3] sm:$0xf] %v1143
  %1272 = vst [vmem:[%s3 + $0x4] sm:$0xf] %v1144
  %1273 = vst [vmem:[%s3 + $0x8] sm:$0xf] %v1145
  %1274 = vst [vmem:[%s3 + $0xc] sm:$0xf] %v1146
  %1275 = vst [vmem:[%s3 + $0x10] sm:$0xf] %v1147
  %1276 = vst [vmem:[%s3 + $0x14] sm:$0xf] %v1148
  %1277 = vst [vmem:[%s3 + $0x18] sm:$0xf] %v1149
  %1278 = vst [vmem:[%s3 + $0x1c] sm:$0xf] %v1150
  %1279 = vst [vmem:[%s3 + $0x20] sm:$0xf] %v1151
  %1280 = vst [vmem:[%s3 + $0x24] sm:$0xf] %v1152
  %1281 = vst [vmem:[%s3 + $0x28] sm:$0xf] %v1153
  %1282 = vst [vmem:[%s3 + $0x2c] sm:$0xf] %v1154
  %1283 = vst [vmem:[%s3 + $0x30] sm:$0xf] %v1155
  %1284 = vst [vmem:[%s3 + $0x34] sm:$0xf] %v1156
  %1285 = vst [vmem:[%s3 + $0x38] sm:$0xf] %v1157
  %1286 = vst [vmem:[%s3 + $0x3c] sm:$0xf] %v1158
  %1287 = vst [vmem:[%s3 + $0x40] sm:$0xf] %v1159
  %1288 = vst [vmem:[%s3 + $0x44] sm:$0xf] %v1160
  %1289 = vst [vmem:[%s3 + $0x48] sm:$0xf] %v1161
  %1290 = vst [vmem:[%s3 + $0x4c] sm:$0xf] %v1162
  %1291 = vst [vmem:[%s3 + $0x50] sm:$0xf] %v1163
  %1292 = vst [vmem:[%s3 + $0x54] sm:$0xf] %v1164
  %1293 = vst [vmem:[%s3 + $0x58] sm:$0xf] %v1165
  %1294 = vst [vmem:[%s3 + $0x5c] sm:$0xf] %v1166
  %1295 = vst [vmem:[%s3 + $0x60] sm:$0xf] %v1167
  %1296 = vst [vmem:[%s3 + $0x64] sm:$0xf] %v1168
  %1297 = vst [vmem:[%s3 + $0x68] sm:$0xf] %v1169
  %1298 = vst [vmem:[%s3 + $0x6c] sm:$0xf] %v1170
  %1299 = vst [vmem:[%s3 + $0x70] sm:$0xf] %v1171
  %1300 = vst [vmem:[%s3 + $0x74] sm:$0xf] %v1172
  %1301 = vst [vmem:[%s3 + $0x78] sm:$0xf] %v1173
  %1302 = vst [vmem:[%s3 + $0x7c] sm:$0xf] %v1174
  %1303 = vst [vmem:[%s3 + $0x80] sm:$0xf] %v1175
  %1304 = vst [vmem:[%s3 + $0x84] sm:$0xf] %v1176
  %1305 = vst [vmem:[%s3 + $0x88] sm:$0xf] %v1177
  %1306 = vst [vmem:[%s3 + $0x8c] sm:$0xf] %v1178
  %1307 = vst [vmem:[%s3 + $0x90] sm:$0xf] %v1179
  %1308 = vst [vmem:[%s3 + $0x94] sm:$0xf] %v1180
  %1309 = vst [vmem:[%s3 + $0x98] sm:$0xf] %v1181
  %1310 = vst [vmem:[%s3 + $0x9c] sm:$0xf] %v1182
  %1311 = vst [vmem:[%s3 + $0xa0] sm:$0xf] %v1183
  %1312 = vst [vmem:[%s3 + $0xa4] sm:$0xf] %v1184
  %1313 = vst [vmem:[%s3 + $0xa8] sm:$0xf] %v1185
  %1314 = vst [vmem:[%s3 + $0xac] sm:$0xf] %v1186
  %1315 = vst [vmem:[%s3 + $0xb0] sm:$0xf] %v1187
  %1316 = vst [vmem:[%s3 + $0xb4] sm:$0xf] %v1188
  %1317 = vst [vmem:[%s3 + $0xb8] sm:$0xf] %v1189
  %1318 = vst [vmem:[%s3 + $0xbc] sm:$0xf] %v1190
  %1319 = vst [vmem:[%s3 + $0xc0] sm:$0xf] %v1191
  %1320 = vst [vmem:[%s3 + $0xc4] sm:$0xf] %v1192
  %1321 = vst [vmem:[%s3 + $0xc8] sm:$0xf] %v1193
  %1322 = vst [vmem:[%s3 + $0xcc] sm:$0xf] %v1194
  %1323 = vst [vmem:[%s3 + $0xd0] sm:$0xf] %v1195
  %1324 = vst [vmem:[%s3 + $0xd4] sm:$0xf] %v1196
  %1325 = vst [vmem:[%s3 + $0xd8] sm:$0xf] %v1197
  %1326 = vst [vmem:[%s3 + $0xdc] sm:$0xf] %v1198
  %1327 = vst [vmem:[%s3 + $0xe0] sm:$0xf] %v1199
  %1328 = vst [vmem:[%s3 + $0xe4] sm:$0xf] %v1200
  %1329 = vst [vmem:[%s3 + $0xe8] sm:$0xf] %v1201
  %1330 = vst [vmem:[%s3 + $0xec] sm:$0xf] %v1202
  %1331 = vst [vmem:[%s3 + $0xf0] sm:$0xf] %v1203
  %1332 = vst [vmem:[%s3 + $0xf4] sm:$0xf] %v1204
  %1333 = vst [vmem:[%s3 + $0xf8] sm:$0xf] %v1205
  %1334 = vst [vmem:[%s3 + $0xfc] sm:$0xf] %v1206
  // Predicated region
  $region14: #{discriminator_forward.10} parent=0 // pred_check
    _
  $region15: #{discriminator_forward.10} parent=0 // pred_check_branch
    %1336 = sbr.rel (0) target = $region17
  $region16: #{discriminator_forward.10} parent=0 // pred_region
    _
  $region17: #{discriminator_forward.10} parent=0 // pred_fallthru
    _
  // Predicated region
  $region18: #{discriminator_forward.10} parent=0 // pred_check
    _
  $region19: #{discriminator_forward.10} parent=0 // pred_check_branch
    %1338 = sbr.rel (0) target = $region21
  $region20: #{discriminator_forward.10} parent=0 // pred_region
    _
  $region21: #{discriminator_forward.10} parent=0 // pred_fallthru
    _

// kernel: discriminator_forward.11
$region0: #{discriminator_forward.11}
  #allocation0 [shape = 'u32[]', space=smem, size = 0x4, offset = 0x4, fixed_abs, tag = 'smem constant byte address 0x4 - core index']
  #allocation1 [shape = 'u32[144,128]{1,0:T(1,128)}', space=vmem, size = 0x12000, scoped, tag = 'internal scratch']
  %s0 = inlined_call_operand.vmem [shape: bf16[128,512], index: 0, kind: input, shape index: {}]
  %s1 = inlined_call_operand.vmem [shape: bf16[512,128], index: 1, kind: input, shape index: {}]
  %s2 = inlined_call_operand.vmem [shape: f32[1,128], index: 2, kind: input, shape index: {}]
  %s3 = inlined_call_operand.vmem [shape: bf16[128,128], index: 3, kind: output, shape index: {}]
  %s4 = sld [smem:[#allocation0]]
  $region22: #{discriminator_forward.11} parent=0
    _
  %s6 = ssub.s32 1, %s4
  %s7 = scalar_select 0, %s6, %s4
  // Predicated region
  $region2: #{discriminator_forward.11} parent=0 // pred_check
    _
  $region3: #{discriminator_forward.11} parent=0 // pred_check_branch
    %9 = sbr.rel (0) target = $region5
  $region4: #{discriminator_forward.11} parent=0 // pred_region
    _
  $region5: #{discriminator_forward.11} parent=0 // pred_fallthru
    _
  // Predicated region
  $region6: #{discriminator_forward.11} parent=0 // pred_check
    _
  $region7: #{discriminator_forward.11} parent=0 // pred_check_branch
    %11 = sbr.rel (0) target = $region9
  $region8: #{discriminator_forward.11} parent=0 // pred_region
    _
  $region9: #{discriminator_forward.11} parent=0 // pred_fallthru
    _
  // Predicated region
  $region10: #{discriminator_forward.11} parent=0 // pred_check
    _
  $region11: #{discriminator_forward.11} parent=0 // pred_check_branch
    %13 = sbr.rel (0) target = $region13
  $region12: #{discriminator_forward.11} parent=0 // pred_region
    _
  $region13: #{discriminator_forward.11} parent=0 // pred_fallthru
    _
  %v15 = vld [vmem:[%s0] sm:$0xff]
  %v16 = vld [vmem:[%s0 + $0x8] sm:$0xff]
  %v17 = vld [vmem:[%s0 + $0x10] sm:$0xff]
  %v18 = vld [vmem:[%s0 + $0x18] sm:$0xff]
  %v19 = vld [vmem:[%s0 + $0x20] sm:$0xff]
  %v20 = vld [vmem:[%s0 + $0x28] sm:$0xff]
  %v21 = vld [vmem:[%s0 + $0x30] sm:$0xff]
  %v22 = vld [vmem:[%s0 + $0x38] sm:$0xff]
  %v23 = vld [vmem:[%s0 + $0x40] sm:$0xff]
  %v24 = vld [vmem:[%s0 + $0x48] sm:$0xff]
  %v25 = vld [vmem:[%s0 + $0x50] sm:$0xff]
  %v26 = vld [vmem:[%s0 + $0x58] sm:$0xff]
  %v27 = vld [vmem:[%s0 + $0x60] sm:$0xff]
  %v28 = vld [vmem:[%s0 + $0x68] sm:$0xff]
  %v29 = vld [vmem:[%s0 + $0x70] sm:$0xff]
  %v30 = vld [vmem:[%s0 + $0x78] sm:$0xff]
  %v31 = vld [vmem:[%s0 + $0x80] sm:$0xff]
  %v32 = vld [vmem:[%s0 + $0x88] sm:$0xff]
  %v33 = vld [vmem:[%s0 + $0x90] sm:$0xff]
  %v34 = vld [vmem:[%s0 + $0x98] sm:$0xff]
  %v35 = vld [vmem:[%s0 + $0xa0] sm:$0xff]
  %v36 = vld [vmem:[%s0 + $0xa8] sm:$0xff]
  %v37 = vld [vmem:[%s0 + $0xb0] sm:$0xff]
  %v38 = vld [vmem:[%s0 + $0xb8] sm:$0xff]
  %v39 = vld [vmem:[%s0 + $0xc0] sm:$0xff]
  %v40 = vld [vmem:[%s0 + $0xc8] sm:$0xff]
  %v41 = vld [vmem:[%s0 + $0xd0] sm:$0xff]
  %v42 = vld [vmem:[%s0 + $0xd8] sm:$0xff]
  %v43 = vld [vmem:[%s0 + $0xe0] sm:$0xff]
  %v44 = vld [vmem:[%s0 + $0xe8] sm:$0xff]
  %v45 = vld [vmem:[%s0 + $0xf0] sm:$0xff]
  %v46 = vld [vmem:[%s0 + $0xf8] sm:$0xff]
  %v47 = vld [vmem:[%s1] sm:$0xf]
  %v48 = vld [vmem:[%s1 + $0x4] sm:$0xf]
  %v49 = vld [vmem:[%s1 + $0x8] sm:$0xf]
  %v50 = vld [vmem:[%s1 + $0xc] sm:$0xf]
  %v51 = vld [vmem:[%s1 + $0x10] sm:$0xf]
  %v52 = vld [vmem:[%s1 + $0x14] sm:$0xf]
  %v53 = vld [vmem:[%s1 + $0x18] sm:$0xf]
  %v54 = vld [vmem:[%s1 + $0x1c] sm:$0xf]
  %v55 = vld [vmem:[%s1 + $0x20] sm:$0xf]
  %v56 = vld [vmem:[%s1 + $0x24] sm:$0xf]
  %v57 = vld [vmem:[%s1 + $0x28] sm:$0xf]
  %v58 = vld [vmem:[%s1 + $0x2c] sm:$0xf]
  %v59 = vld [vmem:[%s1 + $0x30] sm:$0xf]
  %v60 = vld [vmem:[%s1 + $0x34] sm:$0xf]
  %v61 = vld [vmem:[%s1 + $0x38] sm:$0xf]
  %v62 = vld [vmem:[%s1 + $0x3c] sm:$0xf]
  %v63 = vld [vmem:[%s1 + $0x40] sm:$0xf]
  %v64 = vld [vmem:[%s1 + $0x44] sm:$0xf]
  %v65 = vld [vmem:[%s1 + $0x48] sm:$0xf]
  %v66 = vld [vmem:[%s1 + $0x4c] sm:$0xf]
  %v67 = vld [vmem:[%s1 + $0x50] sm:$0xf]
  %v68 = vld [vmem:[%s1 + $0x54] sm:$0xf]
  %v69 = vld [vmem:[%s1 + $0x58] sm:$0xf]
  %v70 = vld [vmem:[%s1 + $0x5c] sm:$0xf]
  %v71 = vld [vmem:[%s1 + $0x60] sm:$0xf]
  %v72 = vld [vmem:[%s1 + $0x64] sm:$0xf]
  %v73 = vld [vmem:[%s1 + $0x68] sm:$0xf]
  %v74 = vld [vmem:[%s1 + $0x6c] sm:$0xf]
  %v75 = vld [vmem:[%s1 + $0x70] sm:$0xf]
  %v76 = vld [vmem:[%s1 + $0x74] sm:$0xf]
  %v77 = vld [vmem:[%s1 + $0x78] sm:$0xf]
  %v78 = vld [vmem:[%s1 + $0x7c] sm:$0xf]
  %v79 = vld [vmem:[%s1 + $0x80] sm:$0xf]
  %v80 = vld [vmem:[%s1 + $0x84] sm:$0xf]
  %v81 = vld [vmem:[%s1 + $0x88] sm:$0xf]
  %v82 = vld [vmem:[%s1 + $0x8c] sm:$0xf]
  %v83 = vld [vmem:[%s1 + $0x90] sm:$0xf]
  %v84 = vld [vmem:[%s1 + $0x94] sm:$0xf]
  %v85 = vld [vmem:[%s1 + $0x98] sm:$0xf]
  %v86 = vld [vmem:[%s1 + $0x9c] sm:$0xf]
  %v87 = vld [vmem:[%s1 + $0xa0] sm:$0xf]
  %v88 = vld [vmem:[%s1 + $0xa4] sm:$0xf]
  %v89 = vld [vmem:[%s1 + $0xa8] sm:$0xf]
  %v90 = vld [vmem:[%s1 + $0xac] sm:$0xf]
  %v91 = vld [vmem:[%s1 + $0xb0] sm:$0xf]
  %v92 = vld [vmem:[%s1 + $0xb4] sm:$0xf]
  %v93 = vld [vmem:[%s1 + $0xb8] sm:$0xf]
  %v94 = vld [vmem:[%s1 + $0xbc] sm:$0xf]
  %v95 = vld [vmem:[%s1 + $0xc0] sm:$0xf]
  %v96 = vld [vmem:[%s1 + $0xc4] sm:$0xf]
  %v97 = vld [vmem:[%s1 + $0xc8] sm:$0xf]
  %v98 = vld [vmem:[%s1 + $0xcc] sm:$0xf]
  %v99 = vld [vmem:[%s1 + $0xd0] sm:$0xf]
  %v100 = vld [vmem:[%s1 + $0xd4] sm:$0xf]
  %v101 = vld [vmem:[%s1 + $0xd8] sm:$0xf]
  %v102 = vld [vmem:[%s1 + $0xdc] sm:$0xf]
  %v103 = vld [vmem:[%s1 + $0xe0] sm:$0xf]
  %v104 = vld [vmem:[%s1 + $0xe4] sm:$0xf]
  %v105 = vld [vmem:[%s1 + $0xe8] sm:$0xf]
  %v106 = vld [vmem:[%s1 + $0xec] sm:$0xf]
  %v107 = vld [vmem:[%s1 + $0xf0] sm:$0xf]
  %v108 = vld [vmem:[%s1 + $0xf4] sm:$0xf]
  %v109 = vld [vmem:[%s1 + $0xf8] sm:$0xf]
  %v110 = vld [vmem:[%s1 + $0xfc] sm:$0xf]
  %v111 = vld [vmem:[%s2] sm:$0x1]
  %v113 = vlaneseq
  %v114 = vshrl.u32 %v113, 7
  %v115 = vsub.s32 0, %v114
  %v116 = vrot.slane %v111, %v115
  %v150 = vunpack.c.l.b16 %v15
  %v151 = vunpack.c.h.b16 %v15
  %v152 = vunpack.c.l.b16 %v16
  %v153 = vunpack.c.h.b16 %v16
  %v154 = vunpack.c.l.b16 %v17
  %v155 = vunpack.c.h.b16 %v17
  %v156 = vunpack.c.l.b16 %v18
  %v157 = vunpack.c.h.b16 %v18
  %v158 = vunpack.c.l.b16 %v19
  %v159 = vunpack.c.h.b16 %v19
  %v160 = vunpack.c.l.b16 %v20
  %v161 = vunpack.c.h.b16 %v20
  %v162 = vunpack.c.l.b16 %v21
  %v163 = vunpack.c.h.b16 %v21
  %v164 = vunpack.c.l.b16 %v22
  %v165 = vunpack.c.h.b16 %v22
  %v166 = vunpack.c.l.b16 %v23
  %v167 = vunpack.c.h.b16 %v23
  %v168 = vunpack.c.l.b16 %v24
  %v169 = vunpack.c.h.b16 %v24
  %v170 = vunpack.c.l.b16 %v25
  %v171 = vunpack.c.h.b16 %v25
  %v172 = vunpack.c.l.b16 %v26
  %v173 = vunpack.c.h.b16 %v26
  %v174 = vunpack.c.l.b16 %v27
  %v175 = vunpack.c.h.b16 %v27
  %v176 = vunpack.c.l.b16 %v28
  %v177 = vunpack.c.h.b16 %v28
  %v178 = vunpack.c.l.b16 %v29
  %v179 = vunpack.c.h.b16 %v29
  %v180 = vunpack.c.l.b16 %v30
  %v181 = vunpack.c.h.b16 %v30
  %v182 = vunpack.c.l.b16 %v31
  %v183 = vunpack.c.h.b16 %v31
  %v184 = vunpack.c.l.b16 %v32
  %v185 = vunpack.c.h.b16 %v32
  %v186 = vunpack.c.l.b16 %v33
  %v187 = vunpack.c.h.b16 %v33
  %v188 = vunpack.c.l.b16 %v34
  %v189 = vunpack.c.h.b16 %v34
  %v190 = vunpack.c.l.b16 %v35
  %v191 = vunpack.c.h.b16 %v35
  %v192 = vunpack.c.l.b16 %v36
  %v193 = vunpack.c.h.b16 %v36
  %v194 = vunpack.c.l.b16 %v37
  %v195 = vunpack.c.h.b16 %v37
  %v196 = vunpack.c.l.b16 %v38
  %v197 = vunpack.c.h.b16 %v38
  %v198 = vunpack.c.l.b16 %v39
  %v199 = vunpack.c.h.b16 %v39
  %v200 = vunpack.c.l.b16 %v40
  %v201 = vunpack.c.h.b16 %v40
  %v202 = vunpack.c.l.b16 %v41
  %v203 = vunpack.c.h.b16 %v41
  %v204 = vunpack.c.l.b16 %v42
  %v205 = vunpack.c.h.b16 %v42
  %v206 = vunpack.c.l.b16 %v43
  %v207 = vunpack.c.h.b16 %v43
  %v208 = vunpack.c.l.b16 %v44
  %v209 = vunpack.c.h.b16 %v44
  %v210 = vunpack.c.l.b16 %v45
  %v211 = vunpack.c.h.b16 %v45
  %v212 = vunpack.c.l.b16 %v46
  %v213 = vunpack.c.h.b16 %v46
  %v214 = vpack.c.b16 %v154, %v150
  %v215 = vpack.c.b16 %v155, %v151
  %v216 = vpack.c.b16 %v156, %v152
  %v217 = vpack.c.b16 %v157, %v153
  %v218 = vpack.c.b16 %v162, %v158
  %v219 = vpack.c.b16 %v163, %v159
  %v220 = vpack.c.b16 %v164, %v160
  %v221 = vpack.c.b16 %v165, %v161
  %v222 = vpack.c.b16 %v170, %v166
  %v223 = vpack.c.b16 %v171, %v167
  %v224 = vpack.c.b16 %v172, %v168
  %v225 = vpack.c.b16 %v173, %v169
  %v226 = vpack.c.b16 %v178, %v174
  %v227 = vpack.c.b16 %v179, %v175
  %v228 = vpack.c.b16 %v180, %v176
  %v229 = vpack.c.b16 %v181, %v177
  %v230 = vpack.c.b16 %v186, %v182
  %v231 = vpack.c.b16 %v187, %v183
  %v232 = vpack.c.b16 %v188, %v184
  %v233 = vpack.c.b16 %v189, %v185
  %v234 = vpack.c.b16 %v194, %v190
  %v235 = vpack.c.b16 %v195, %v191
  %v236 = vpack.c.b16 %v196, %v192
  %v237 = vpack.c.b16 %v197, %v193
  %v238 = vpack.c.b16 %v202, %v198
  %v239 = vpack.c.b16 %v203, %v199
  %v240 = vpack.c.b16 %v204, %v200
  %v241 = vpack.c.b16 %v205, %v201
  %v242 = vpack.c.b16 %v210, %v206
  %v243 = vpack.c.b16 %v211, %v207
  %v244 = vpack.c.b16 %v212, %v208
  %v245 = vpack.c.b16 %v213, %v209
  %v342 = vunpack.c.l.b16 %v47
  %v343 = vunpack.c.l.b16 %v48
  %v344 = vunpack.c.l.b16 %v49
  %v345 = vunpack.c.l.b16 %v50
  %v346 = vunpack.c.l.b16 %v51
  %v347 = vunpack.c.l.b16 %v52
  %v348 = vunpack.c.l.b16 %v53
  %v349 = vunpack.c.l.b16 %v54
  %v350 = vunpack.c.l.b16 %v55
  %v351 = vunpack.c.l.b16 %v56
  %v352 = vunpack.c.l.b16 %v57
  %v353 = vunpack.c.l.b16 %v58
  %v354 = vunpack.c.l.b16 %v59
  %v355 = vunpack.c.l.b16 %v60
  %v356 = vunpack.c.l.b16 %v61
  %v357 = vunpack.c.l.b16 %v62
  %v358 = vunpack.c.l.b16 %v63
  %v359 = vunpack.c.l.b16 %v64
  %v360 = vunpack.c.l.b16 %v65
  %v361 = vunpack.c.l.b16 %v66
  %v362 = vunpack.c.l.b16 %v67
  %v363 = vunpack.c.l.b16 %v68
  %v364 = vunpack.c.l.b16 %v69
  %v365 = vunpack.c.l.b16 %v70
  %v366 = vunpack.c.l.b16 %v71
  %v367 = vunpack.c.l.b16 %v72
  %v368 = vunpack.c.l.b16 %v73
  %v369 = vunpack.c.l.b16 %v74
  %v370 = vunpack.c.l.b16 %v75
  %v371 = vunpack.c.l.b16 %v76
  %v372 = vunpack.c.l.b16 %v77
  %v373 = vunpack.c.l.b16 %v78
  %v374 = vunpack.c.l.b16 %v79
  %v375 = vunpack.c.l.b16 %v80
  %v376 = vunpack.c.l.b16 %v81
  %v377 = vunpack.c.l.b16 %v82
  %v378 = vunpack.c.l.b16 %v83
  %v379 = vunpack.c.l.b16 %v84
  %v380 = vunpack.c.l.b16 %v85
  %v381 = vunpack.c.l.b16 %v86
  %v382 = vunpack.c.l.b16 %v87
  %v383 = vunpack.c.l.b16 %v88
  %v384 = vunpack.c.l.b16 %v89
  %v385 = vunpack.c.l.b16 %v90
  %v386 = vunpack.c.l.b16 %v91
  %v387 = vunpack.c.l.b16 %v92
  %v388 = vunpack.c.l.b16 %v93
  %v389 = vunpack.c.l.b16 %v94
  %v390 = vunpack.c.l.b16 %v95
  %v391 = vunpack.c.l.b16 %v96
  %v392 = vunpack.c.l.b16 %v97
  %v393 = vunpack.c.l.b16 %v98
  %v394 = vunpack.c.l.b16 %v99
  %v395 = vunpack.c.l.b16 %v100
  %v396 = vunpack.c.l.b16 %v101
  %v397 = vunpack.c.l.b16 %v102
  %v398 = vunpack.c.l.b16 %v103
  %v399 = vunpack.c.l.b16 %v104
  %v400 = vunpack.c.l.b16 %v105
  %v401 = vunpack.c.l.b16 %v106
  %v402 = vunpack.c.l.b16 %v107
  %v403 = vunpack.c.l.b16 %v108
  %v404 = vunpack.c.l.b16 %v109
  %v405 = vunpack.c.l.b16 %v110
  %v406 = vpack.c.b16 %v343, %v342
  %v407 = vpack.c.b16 %v345, %v344
  %v408 = vpack.c.b16 %v347, %v346
  %v409 = vpack.c.b16 %v349, %v348
  %v410 = vpack.c.b16 %v351, %v350
  %v411 = vpack.c.b16 %v353, %v352
  %v412 = vpack.c.b16 %v355, %v354
  %v413 = vpack.c.b16 %v357, %v356
  %v414 = vpack.c.b16 %v359, %v358
  %v415 = vpack.c.b16 %v361, %v360
  %v416 = vpack.c.b16 %v363, %v362
  %v417 = vpack.c.b16 %v365, %v364
  %v418 = vpack.c.b16 %v367, %v366
  %v419 = vpack.c.b16 %v369, %v368
  %v420 = vpack.c.b16 %v371, %v370
  %v421 = vpack.c.b16 %v373, %v372
  %v422 = vpack.c.b16 %v375, %v374
  %v423 = vpack.c.b16 %v377, %v376
  %v424 = vpack.c.b16 %v379, %v378
  %v425 = vpack.c.b16 %v381, %v380
  %v426 = vpack.c.b16 %v383, %v382
  %v427 = vpack.c.b16 %v385, %v384
  %v428 = vpack.c.b16 %v387, %v386
  %v429 = vpack.c.b16 %v389, %v388
  %v430 = vpack.c.b16 %v391, %v390
  %v431 = vpack.c.b16 %v393, %v392
  %v432 = vpack.c.b16 %v395, %v394
  %v433 = vpack.c.b16 %v397, %v396
  %v434 = vpack.c.b16 %v399, %v398
  %v435 = vpack.c.b16 %v401, %v400
  %v436 = vpack.c.b16 %v403, %v402
  %v437 = vpack.c.b16 %v405, %v404
  %470 = vmatprep.subr.bf16.mxu0 0
  %471 = vmatpush1.bf16.msra.mxu0 %v413
  %472 = vmatprep.subr.bf16.mxu0 0
  %473 = vmatpush1.bf16.msra.mxu0 %v412
  %474 = vmatprep.subr.bf16.mxu0 0
  %475 = vmatpush1.bf16.msra.mxu0 %v411
  %476 = vmatprep.subr.bf16.mxu0 0
  %477 = vmatpush1.bf16.msra.mxu0 %v410
  %478 = vmatprep.subr.bf16.mxu0 0
  %479 = vmatpush1.bf16.msra.mxu0 %v409
  %480 = vmatprep.subr.bf16.mxu0 0
  %481 = vmatpush1.bf16.msra.mxu0 %v408
  %482 = vmatprep.subr.bf16.mxu0 0
  %483 = vmatpush1.bf16.msra.mxu0 %v407
  %484 = vmatprep.subr.bf16.mxu0 0
  %485 = vmatpush1.bf16.msra.mxu0 %v406
  %486 = vmatprep.subr.bf16.mxu0 0
  %487 = vmatpush2.bf16.msra.mxu0 %v421
  %488 = vmatprep.subr.bf16.mxu0 0
  %489 = vmatpush2.bf16.msra.mxu0 %v420
  %490 = vmatprep.subr.bf16.mxu0 0
  %491 = vmatpush2.bf16.msra.mxu0 %v419
  %492 = vmatprep.subr.bf16.mxu0 0
  %493 = vmatpush2.bf16.msra.mxu0 %v418
  %494 = vmatprep.subr.bf16.mxu0 0
  %495 = vmatpush2.bf16.msra.mxu0 %v417
  %496 = vmatprep.subr.bf16.mxu0 0
  %497 = vmatpush2.bf16.msra.mxu0 %v416
  %498 = vmatprep.subr.bf16.mxu0 0
  %499 = vmatpush2.bf16.msra.mxu0 %v415
  %500 = vmatprep.subr.bf16.mxu0 0
  %501 = vmatpush2.bf16.msra.mxu0 %v414
  %502 = vmatprep.mubr.bf16.mxu0 %v215
  %503 = vmatmul.mubr.bf16.gmra.mxu0 %v214
  %v504 = vpop.f32.mrf.mxu0
  %v505 = vadd.f32 %v116, %v504
  %v506 = vpop.f32.mrf.mxu0
  %v507 = vpop.f32.mrf.mxu0
  %v508 = vadd.f32 %v116, %v507
  %v509 = vpop.f32.mrf.mxu0
  %510 = vmatprep.mubr.bf16.mxu0 %v219
  %511 = vmatmul.mubr.bf16.gmra.mxu0 %v218
  %v512 = vpop.f32.mrf.mxu0
  %v513 = vadd.f32 %v116, %v512
  %v514 = vpop.f32.mrf.mxu0
  %v515 = vpop.f32.mrf.mxu0
  %v516 = vadd.f32 %v116, %v515
  %v517 = vpop.f32.mrf.mxu0
  %518 = vmatprep.mubr.bf16.mxu0 %v223
  %519 = vmatmul.mubr.bf16.gmra.mxu0 %v222
  %v520 = vpop.f32.mrf.mxu0
  %v521 = vadd.f32 %v116, %v520
  %v522 = vpop.f32.mrf.mxu0
  %v523 = vpop.f32.mrf.mxu0
  %v524 = vadd.f32 %v116, %v523
  %v525 = vpop.f32.mrf.mxu0
  %526 = vmatprep.mubr.bf16.mxu0 %v227
  %527 = vmatmul.mubr.bf16.gmra.mxu0 %v226
  %v528 = vpop.f32.mrf.mxu0
  %v529 = vadd.f32 %v116, %v528
  %v530 = vpop.f32.mrf.mxu0
  %v531 = vpop.f32.mrf.mxu0
  %v532 = vadd.f32 %v116, %v531
  %v533 = vpop.f32.mrf.mxu0
  %534 = vmatprep.mubr.bf16.mxu0 %v231
  %535 = vmatmul.mubr.bf16.gmra.mxu0 %v230
  %v536 = vpop.f32.mrf.mxu0
  %v537 = vadd.f32 %v116, %v536
  %v538 = vpop.f32.mrf.mxu0
  %v539 = vpop.f32.mrf.mxu0
  %v540 = vadd.f32 %v116, %v539
  %v541 = vpop.f32.mrf.mxu0
  %542 = vmatprep.mubr.bf16.mxu0 %v235
  %543 = vmatmul.mubr.bf16.gmra.mxu0 %v234
  %v544 = vpop.f32.mrf.mxu0
  %v545 = vadd.f32 %v116, %v544
  %v546 = vpop.f32.mrf.mxu0
  %v547 = vpop.f32.mrf.mxu0
  %v548 = vadd.f32 %v116, %v547
  %v549 = vpop.f32.mrf.mxu0
  %550 = vmatprep.mubr.bf16.mxu0 %v239
  %551 = vmatmul.mubr.bf16.gmra.mxu0 %v238
  %v552 = vpop.f32.mrf.mxu0
  %v553 = vadd.f32 %v116, %v552
  %v554 = vpop.f32.mrf.mxu0
  %v555 = vpop.f32.mrf.mxu0
  %v556 = vadd.f32 %v116, %v555
  %v557 = vpop.f32.mrf.mxu0
  %558 = vmatprep.mubr.bf16.mxu0 %v243
  %559 = vmatmul.mubr.bf16.gmra.mxu0 %v242
  %v560 = vpop.f32.mrf.mxu0
  %v561 = vadd.f32 %v116, %v560
  %v562 = vpop.f32.mrf.mxu0
  %v563 = vpop.f32.mrf.mxu0
  %v564 = vadd.f32 %v116, %v563
  %v565 = vpop.f32.mrf.mxu0
  %566 = vdwg.mxu0
  %567 = vmatprep.subr.bf16.mxu0 0
  %568 = vmatpush1.bf16.msra.mxu0 %v429
  %569 = vmatprep.subr.bf16.mxu0 0
  %570 = vmatpush1.bf16.msra.mxu0 %v428
  %571 = vmatprep.subr.bf16.mxu0 0
  %572 = vmatpush1.bf16.msra.mxu0 %v427
  %573 = vmatprep.subr.bf16.mxu0 0
  %574 = vmatpush1.bf16.msra.mxu0 %v426
  %575 = vmatprep.subr.bf16.mxu0 0
  %576 = vmatpush1.bf16.msra.mxu0 %v425
  %577 = vmatprep.subr.bf16.mxu0 0
  %578 = vmatpush1.bf16.msra.mxu0 %v424
  %579 = vmatprep.subr.bf16.mxu0 0
  %580 = vmatpush1.bf16.msra.mxu0 %v423
  %581 = vmatprep.subr.bf16.mxu0 0
  %582 = vmatpush1.bf16.msra.mxu0 %v422
  %583 = vmatprep.subr.bf16.mxu0 0
  %584 = vmatpush2.bf16.msra.mxu0 %v437
  %585 = vmatprep.subr.bf16.mxu0 0
  %586 = vmatpush2.bf16.msra.mxu0 %v436
  %587 = vmatprep.subr.bf16.mxu0 0
  %588 = vmatpush2.bf16.msra.mxu0 %v435
  %589 = vmatprep.subr.bf16.mxu0 0
  %590 = vmatpush2.bf16.msra.mxu0 %v434
  %591 = vmatprep.subr.bf16.mxu0 0
  %592 = vmatpush2.bf16.msra.mxu0 %v433
  %593 = vmatprep.subr.bf16.mxu0 0
  %594 = vmatpush2.bf16.msra.mxu0 %v432
  %595 = vmatprep.subr.bf16.mxu0 0
  %596 = vmatpush2.bf16.msra.mxu0 %v431
  %597 = vmatprep.subr.bf16.mxu0 0
  %598 = vmatpush2.bf16.msra.mxu0 %v430
  %599 = vmatprep.mubr.bf16.mxu0 %v217
  %600 = vmatmul.mubr.bf16.gmra.mxu0 %v216
  %v601 = vpop.f32.mrf.mxu0
  %v602 = vadd.f32 %v505, %v601
  %v603 = vpop.f32.mrf.mxu0
  %v604 = vpop.f32.mrf.mxu0
  %v605 = vadd.f32 %v508, %v604
  %v606 = vpop.f32.mrf.mxu0
  %607 = vmatprep.mubr.bf16.mxu0 %v221
  %608 = vmatmul.mubr.bf16.gmra.mxu0 %v220
  %v609 = vpop.f32.mrf.mxu0
  %v610 = vadd.f32 %v513, %v609
  %v611 = vpop.f32.mrf.mxu0
  %v612 = vpop.f32.mrf.mxu0
  %v613 = vadd.f32 %v516, %v612
  %v614 = vpop.f32.mrf.mxu0
  %615 = vmatprep.mubr.bf16.mxu0 %v225
  %616 = vmatmul.mubr.bf16.gmra.mxu0 %v224
  %v617 = vpop.f32.mrf.mxu0
  %v618 = vadd.f32 %v521, %v617
  %v619 = vpop.f32.mrf.mxu0
  %v620 = vpop.f32.mrf.mxu0
  %v621 = vadd.f32 %v524, %v620
  %v622 = vpop.f32.mrf.mxu0
  %623 = vmatprep.mubr.bf16.mxu0 %v229
  %624 = vmatmul.mubr.bf16.gmra.mxu0 %v228
  %v625 = vpop.f32.mrf.mxu0
  %v626 = vadd.f32 %v529, %v625
  %v627 = vpop.f32.mrf.mxu0
  %v628 = vpop.f32.mrf.mxu0
  %v629 = vadd.f32 %v532, %v628
  %v630 = vpop.f32.mrf.mxu0
  %631 = vmatprep.mubr.bf16.mxu0 %v233
  %632 = vmatmul.mubr.bf16.gmra.mxu0 %v232
  %v633 = vpop.f32.mrf.mxu0
  %v634 = vadd.f32 %v537, %v633
  %v635 = vpop.f32.mrf.mxu0
  %v636 = vpop.f32.mrf.mxu0
  %v637 = vadd.f32 %v540, %v636
  %v638 = vpop.f32.mrf.mxu0
  %639 = vmatprep.mubr.bf16.mxu0 %v237
  %640 = vmatmul.mubr.bf16.gmra.mxu0 %v236
  %v641 = vpop.f32.mrf.mxu0
  %v642 = vadd.f32 %v545, %v641
  %v643 = vpop.f32.mrf.mxu0
  %v644 = vpop.f32.mrf.mxu0
  %v645 = vadd.f32 %v548, %v644
  %v646 = vpop.f32.mrf.mxu0
  %647 = vmatprep.mubr.bf16.mxu0 %v241
  %648 = vmatmul.mubr.bf16.gmra.mxu0 %v240
  %v649 = vpop.f32.mrf.mxu0
  %v650 = vadd.f32 %v553, %v649
  %v651 = vpop.f32.mrf.mxu0
  %v652 = vpop.f32.mrf.mxu0
  %v653 = vadd.f32 %v556, %v652
  %v654 = vpop.f32.mrf.mxu0
  %655 = vmatprep.mubr.bf16.mxu0 %v245
  %656 = vmatmul.mubr.bf16.gmra.mxu0 %v244
  %v657 = vpop.f32.mrf.mxu0
  %v658 = vadd.f32 %v561, %v657
  %v659 = vpop.f32.mrf.mxu0
  %v660 = vpop.f32.mrf.mxu0
  %v661 = vadd.f32 %v564, %v660
  %v662 = vpop.f32.mrf.mxu0
  %663 = vdwg.mxu0
  %vm664 = vcmp.ge.f32.partialorder %v602, 0.0
  %vm665 = vcmp.ge.f32.partialorder %v605, 0.0
  %vm666 = vcmp.ge.f32.partialorder %v610, 0.0
  %vm667 = vcmp.ge.f32.partialorder %v613, 0.0
  %vm668 = vcmp.ge.f32.partialorder %v618, 0.0
  %vm669 = vcmp.ge.f32.partialorder %v621, 0.0
  %vm670 = vcmp.ge.f32.partialorder %v626, 0.0
  %vm671 = vcmp.ge.f32.partialorder %v629, 0.0
  %vm672 = vcmp.ge.f32.partialorder %v634, 0.0
  %vm673 = vcmp.ge.f32.partialorder %v637, 0.0
  %vm674 = vcmp.ge.f32.partialorder %v642, 0.0
  %vm675 = vcmp.ge.f32.partialorder %v645, 0.0
  %vm676 = vcmp.ge.f32.partialorder %v650, 0.0
  %vm677 = vcmp.ge.f32.partialorder %v653, 0.0
  %vm678 = vcmp.ge.f32.partialorder %v658, 0.0
  %vm679 = vcmp.ge.f32.partialorder %v661, 0.0
  %v680 = vmul.f32 %v602, 0.2
  %v681 = vmul.f32 %v605, 0.2
  %v682 = vmul.f32 %v610, 0.2
  %v683 = vmul.f32 %v613, 0.2
  %v684 = vmul.f32 %v618, 0.2
  %v685 = vmul.f32 %v621, 0.2
  %v686 = vmul.f32 %v626, 0.2
  %v687 = vmul.f32 %v629, 0.2
  %v688 = vmul.f32 %v634, 0.2
  %v689 = vmul.f32 %v637, 0.2
  %v690 = vmul.f32 %v642, 0.2
  %v691 = vmul.f32 %v645, 0.2
  %v692 = vmul.f32 %v650, 0.2
  %v693 = vmul.f32 %v653, 0.2
  %v694 = vmul.f32 %v658, 0.2
  %v695 = vmul.f32 %v661, 0.2
  %v696 = vsel %vm664, %v602, %v680
  %v697 = vsel %vm665, %v605, %v681
  %v698 = vsel %vm666, %v610, %v682
  %v699 = vsel %vm667, %v613, %v683
  %v700 = vsel %vm668, %v618, %v684
  %v701 = vsel %vm669, %v621, %v685
  %v702 = vsel %vm670, %v626, %v686
  %v703 = vsel %vm671, %v629, %v687
  %v704 = vsel %vm672, %v634, %v688
  %v705 = vsel %vm673, %v637, %v689
  %v706 = vsel %vm674, %v642, %v690
  %v707 = vsel %vm675, %v645, %v691
  %v708 = vsel %vm676, %v650, %v692
  %v709 = vsel %vm677, %v653, %v693
  %v710 = vsel %vm678, %v658, %v694
  %v711 = vsel %vm679, %v661, %v695
  %v712 = vpack.c.bf16 %v697, %v696
  %v713 = vpack.c.bf16 %v699, %v698
  %v714 = vpack.c.bf16 %v701, %v700
  %v715 = vpack.c.bf16 %v703, %v702
  %v716 = vpack.c.bf16 %v705, %v704
  %v717 = vpack.c.bf16 %v707, %v706
  %v718 = vpack.c.bf16 %v709, %v708
  %v719 = vpack.c.bf16 %v711, %v710
  %v728 = vunpack.c.l.b16 %v712
  %v729 = vunpack.c.h.b16 %v712
  %v730 = vunpack.c.l.b16 %v713
  %v731 = vunpack.c.h.b16 %v713
  %v732 = vunpack.c.l.b16 %v714
  %v733 = vunpack.c.h.b16 %v714
  %v734 = vunpack.c.l.b16 %v715
  %v735 = vunpack.c.h.b16 %v715
  %v736 = vunpack.c.l.b16 %v716
  %v737 = vunpack.c.h.b16 %v716
  %v738 = vunpack.c.l.b16 %v717
  %v739 = vunpack.c.h.b16 %v717
  %v740 = vunpack.c.l.b16 %v718
  %v741 = vunpack.c.h.b16 %v718
  %v742 = vunpack.c.l.b16 %v719
  %v743 = vunpack.c.h.b16 %v719
  %v744 = vpack.c.b16 %v728, %v728
  %v745 = vpack.c.b16 %v729, %v729
  %v746 = vpack.c.b16 %v730, %v730
  %v747 = vpack.c.b16 %v731, %v731
  %v748 = vpack.c.b16 %v732, %v732
  %v749 = vpack.c.b16 %v733, %v733
  %v750 = vpack.c.b16 %v734, %v734
  %v751 = vpack.c.b16 %v735, %v735
  %v752 = vpack.c.b16 %v736, %v736
  %v753 = vpack.c.b16 %v737, %v737
  %v754 = vpack.c.b16 %v738, %v738
  %v755 = vpack.c.b16 %v739, %v739
  %v756 = vpack.c.b16 %v740, %v740
  %v757 = vpack.c.b16 %v741, %v741
  %v758 = vpack.c.b16 %v742, %v742
  %v759 = vpack.c.b16 %v743, %v743
  %776 = vst [vmem:[%s3] sm:$0xf] %v744
  %777 = vst [vmem:[%s3 + $0x4] sm:$0xf] %v745
  %778 = vst [vmem:[%s3 + $0x8] sm:$0xf] %v746
  %779 = vst [vmem:[%s3 + $0xc] sm:$0xf] %v747
  %780 = vst [vmem:[%s3 + $0x10] sm:$0xf] %v748
  %781 = vst [vmem:[%s3 + $0x14] sm:$0xf] %v749
  %782 = vst [vmem:[%s3 + $0x18] sm:$0xf] %v750
  %783 = vst [vmem:[%s3 + $0x1c] sm:$0xf] %v751
  %784 = vst [vmem:[%s3 + $0x20] sm:$0xf] %v752
  %785 = vst [vmem:[%s3 + $0x24] sm:$0xf] %v753
  %786 = vst [vmem:[%s3 + $0x28] sm:$0xf] %v754
  %787 = vst [vmem:[%s3 + $0x2c] sm:$0xf] %v755
  %788 = vst [vmem:[%s3 + $0x30] sm:$0xf] %v756
  %789 = vst [vmem:[%s3 + $0x34] sm:$0xf] %v757
  %790 = vst [vmem:[%s3 + $0x38] sm:$0xf] %v758
  %791 = vst [vmem:[%s3 + $0x3c] sm:$0xf] %v759
  // Predicated region
  $region14: #{discriminator_forward.11} parent=0 // pred_check
    _
  $region15: #{discriminator_forward.11} parent=0 // pred_check_branch
    %793 = sbr.rel (0) target = $region17
  $region16: #{discriminator_forward.11} parent=0 // pred_region
    _
  $region17: #{discriminator_forward.11} parent=0 // pred_fallthru
    _
  // Predicated region
  $region18: #{discriminator_forward.11} parent=0 // pred_check
    _
  $region19: #{discriminator_forward.11} parent=0 // pred_check_branch
    %795 = sbr.rel (0) target = $region21
  $region20: #{discriminator_forward.11} parent=0 // pred_region
    _
  $region21: #{discriminator_forward.11} parent=0 // pred_fallthru
    _

// kernel: discriminator_forward.12
$region0: #{discriminator_forward.12}
  #allocation0 [shape = 'u32[]', space=smem, size = 0x4, offset = 0x4, fixed_abs, tag = 'smem constant byte address 0x4 - core index']
  #allocation1 [shape = 'u32[144,128]{1,0:T(1,128)}', space=vmem, size = 0x12000, scoped, tag = 'internal scratch']
  %s0 = inlined_call_operand.vmem [shape: bf16[32,2048], index: 0, kind: input, shape index: {}]
  %s1 = inlined_call_operand.vmem [shape: bf16[2048,128], index: 1, kind: input, shape index: {}]
  %s2 = inlined_call_operand.vmem [shape: f32[1,128], index: 2, kind: input, shape index: {}]
  %s3 = inlined_call_operand.vmem [shape: bf16[32,128], index: 3, kind: output, shape index: {}]
  %s4 = sld [smem:[#allocation0]]
  $region22: #{discriminator_forward.12} parent=0
    _
  %s6 = ssub.s32 1, %s4
  %s7 = scalar_select 0, %s6, %s4
  // Predicated region
  $region2: #{discriminator_forward.12} parent=0 // pred_check
    _
  $region3: #{discriminator_forward.12} parent=0 // pred_check_branch
    %9 = sbr.rel (0) target = $region5
  $region4: #{discriminator_forward.12} parent=0 // pred_region
    _
  $region5: #{discriminator_forward.12} parent=0 // pred_fallthru
    _
  // Predicated region
  $region6: #{discriminator_forward.12} parent=0 // pred_check
    _
  $region7: #{discriminator_forward.12} parent=0 // pred_check_branch
    %11 = sbr.rel (0) target = $region9
  $region8: #{discriminator_forward.12} parent=0 // pred_region
    _
  $region9: #{discriminator_forward.12} parent=0 // pred_fallthru
    _
  // Predicated region
  $region10: #{discriminator_forward.12} parent=0 // pred_check
    _
  $region11: #{discriminator_forward.12} parent=0 // pred_check_branch
    %13 = sbr.rel (0) target = $region13
  $region12: #{discriminator_forward.12} parent=0 // pred_region
    _
  $region13: #{discriminator_forward.12} parent=0 // pred_fallthru
    _
  %v15 = vld [vmem:[%s0] sm:$0xff]
  %v16 = vld [vmem:[%s0 + $0x8] sm:$0xff]
  %v17 = vld [vmem:[%s0 + $0x10] sm:$0xff]
  %v18 = vld [vmem:[%s0 + $0x18] sm:$0xff]
  %v19 = vld [vmem:[%s0 + $0x20] sm:$0xff]
  %v20 = vld [vmem:[%s0 + $0x28] sm:$0xff]
  %v21 = vld [vmem:[%s0 + $0x30] sm:$0xff]
  %v22 = vld [vmem:[%s0 + $0x38] sm:$0xff]
  %v23 = vld [vmem:[%s0 + $0x40] sm:$0xff]
  %v24 = vld [vmem:[%s0 + $0x48] sm:$0xff]
  %v25 = vld [vmem:[%s0 + $0x50] sm:$0xff]
  %v26 = vld [vmem:[%s0 + $0x58] sm:$0xff]
  %v27 = vld [vmem:[%s0 + $0x60] sm:$0xff]
  %v28 = vld [vmem:[%s0 + $0x68] sm:$0xff]
  %v29 = vld [vmem:[%s0 + $0x70] sm:$0xff]
  %v30 = vld [vmem:[%s0 + $0x78] sm:$0xff]
  %v31 = vld [vmem:[%s0 + $0x80] sm:$0xff]
  %v32 = vld [vmem:[%s0 + $0x88] sm:$0xff]
  %v33 = vld [vmem:[%s0 + $0x90] sm:$0xff]
  %v34 = vld [vmem:[%s0 + $0x98] sm:$0xff]
  %v35 = vld [vmem:[%s0 + $0xa0] sm:$0xff]
  %v36 = vld [vmem:[%s0 + $0xa8] sm:$0xff]
  %v37 = vld [vmem:[%s0 + $0xb0] sm:$0xff]
  %v38 = vld [vmem:[%s0 + $0xb8] sm:$0xff]
  %v39 = vld [vmem:[%s0 + $0xc0] sm:$0xff]
  %v40 = vld [vmem:[%s0 + $0xc8] sm:$0xff]
  %v41 = vld [vmem:[%s0 + $0xd0] sm:$0xff]
  %v42 = vld [vmem:[%s0 + $0xd8] sm:$0xff]
  %v43 = vld [vmem:[%s0 + $0xe0] sm:$0xff]
  %v44 = vld [vmem:[%s0 + $0xe8] sm:$0xff]
  %v45 = vld [vmem:[%s0 + $0xf0] sm:$0xff]
  %v46 = vld [vmem:[%s0 + $0xf8] sm:$0xff]
  %v47 = vld [vmem:[%s1] sm:$0xf]
  %v48 = vld [vmem:[%s1 + $0x4] sm:$0xf]
  %v49 = vld [vmem:[%s1 + $0x8] sm:$0xf]
  %v50 = vld [vmem:[%s1 + $0xc] sm:$0xf]
  %v51 = vld [vmem:[%s1 + $0x10] sm:$0xf]
  %v52 = vld [vmem:[%s1 + $0x14] sm:$0xf]
  %v53 = vld [vmem:[%s1 + $0x18] sm:$0xf]
  %v54 = vld [vmem:[%s1 + $0x1c] sm:$0xf]
  %v55 = vld [vmem:[%s1 + $0x20] sm:$0xf]
  %v56 = vld [vmem:[%s1 + $0x24] sm:$0xf]
  %v57 = vld [vmem:[%s1 + $0x28] sm:$0xf]
  %v58 = vld [vmem:[%s1 + $0x2c] sm:$0xf]
  %v59 = vld [vmem:[%s1 + $0x30] sm:$0xf]
  %v60 = vld [vmem:[%s1 + $0x34] sm:$0xf]
  %v61 = vld [vmem:[%s1 + $0x38] sm:$0xf]
  %v62 = vld [vmem:[%s1 + $0x3c] sm:$0xf]
  %v63 = vld [vmem:[%s1 + $0x40] sm:$0xf]
  %v64 = vld [vmem:[%s1 + $0x44] sm:$0xf]
  %v65 = vld [vmem:[%s1 + $0x48] sm:$0xf]
  %v66 = vld [vmem:[%s1 + $0x4c] sm:$0xf]
  %v67 = vld [vmem:[%s1 + $0x50] sm:$0xf]
  %v68 = vld [vmem:[%s1 + $0x54] sm:$0xf]
  %v69 = vld [vmem:[%s1 + $0x58] sm:$0xf]
  %v70 = vld [vmem:[%s1 + $0x5c] sm:$0xf]
  %v71 = vld [vmem:[%s1 + $0x60] sm:$0xf]
  %v72 = vld [vmem:[%s1 + $0x64] sm:$0xf]
  %v73 = vld [vmem:[%s1 + $0x68] sm:$0xf]
  %v74 = vld [vmem:[%s1 + $0x6c] sm:$0xf]
  %v75 = vld [vmem:[%s1 + $0x70] sm:$0xf]
  %v76 = vld [vmem:[%s1 + $0x74] sm:$0xf]
  %v77 = vld [vmem:[%s1 + $0x78] sm:$0xf]
  %v78 = vld [vmem:[%s1 + $0x7c] sm:$0xf]
  %v79 = vld [vmem:[%s1 + $0x80] sm:$0xf]
  %v80 = vld [vmem:[%s1 + $0x84] sm:$0xf]
  %v81 = vld [vmem:[%s1 + $0x88] sm:$0xf]
  %v82 = vld [vmem:[%s1 + $0x8c] sm:$0xf]
  %v83 = vld [vmem:[%s1 + $0x90] sm:$0xf]
  %v84 = vld [vmem:[%s1 + $0x94] sm:$0xf]
  %v85 = vld [vmem:[%s1 + $0x98] sm:$0xf]
  %v86 = vld [vmem:[%s1 + $0x9c] sm:$0xf]
  %v87 = vld [vmem:[%s1 + $0xa0] sm:$0xf]
  %v88 = vld [vmem:[%s1 + $0xa4] sm:$0xf]
  %v89 = vld [vmem:[%s1 + $0xa8] sm:$0xf]
  %v90 = vld [vmem:[%s1 + $0xac] sm:$0xf]
  %v91 = vld [vmem:[%s1 + $0xb0] sm:$0xf]
  %v92 = vld [vmem:[%s1 + $0xb4] sm:$0xf]
  %v93 = vld [vmem:[%s1 + $0xb8] sm:$0xf]
  %v94 = vld [vmem:[%s1 + $0xbc] sm:$0xf]
  %v95 = vld [vmem:[%s1 + $0xc0] sm:$0xf]
  %v96 = vld [vmem:[%s1 + $0xc4] sm:$0xf]
  %v97 = vld [vmem:[%s1 + $0xc8] sm:$0xf]
  %v98 = vld [vmem:[%s1 + $0xcc] sm:$0xf]
  %v99 = vld [vmem:[%s1 + $0xd0] sm:$0xf]
  %v100 = vld [vmem:[%s1 + $0xd4] sm:$0xf]
  %v101 = vld [vmem:[%s1 + $0xd8] sm:$0xf]
  %v102 = vld [vmem:[%s1 + $0xdc] sm:$0xf]
  %v103 = vld [vmem:[%s1 + $0xe0] sm:$0xf]
  %v104 = vld [vmem:[%s1 + $0xe4] sm:$0xf]
  %v105 = vld [vmem:[%s1 + $0xe8] sm:$0xf]
  %v106 = vld [vmem:[%s1 + $0xec] sm:$0xf]
  %v107 = vld [vmem:[%s1 + $0xf0] sm:$0xf]
  %v108 = vld [vmem:[%s1 + $0xf4] sm:$0xf]
  %v109 = vld [vmem:[%s1 + $0xf8] sm:$0xf]
  %v110 = vld [vmem:[%s1 + $0xfc] sm:$0xf]
  %v111 = vld [vmem:[%s1 + $0x100] sm:$0xf]
  %v112 = vld [vmem:[%s1 + $0x104] sm:$0xf]
  %v113 = vld [vmem:[%s1 + $0x108] sm:$0xf]
  %v114 = vld [vmem:[%s1 + $0x10c] sm:$0xf]
  %v115 = vld [vmem:[%s1 + $0x110] sm:$0xf]
  %v116 = vld [vmem:[%s1 + $0x114] sm:$0xf]
  %v117 = vld [vmem:[%s1 + $0x118] sm:$0xf]
  %v118 = vld [vmem:[%s1 + $0x11c] sm:$0xf]
  %v119 = vld [vmem:[%s1 + $0x120] sm:$0xf]
  %v120 = vld [vmem:[%s1 + $0x124] sm:$0xf]
  %v121 = vld [vmem:[%s1 + $0x128] sm:$0xf]
  %v122 = vld [vmem:[%s1 + $0x12c] sm:$0xf]
  %v123 = vld [vmem:[%s1 + $0x130] sm:$0xf]
  %v124 = vld [vmem:[%s1 + $0x134] sm:$0xf]
  %v125 = vld [vmem:[%s1 + $0x138] sm:$0xf]
  %v126 = vld [vmem:[%s1 + $0x13c] sm:$0xf]
  %v127 = vld [vmem:[%s1 + $0x140] sm:$0xf]
  %v128 = vld [vmem:[%s1 + $0x144] sm:$0xf]
  %v129 = vld [vmem:[%s1 + $0x148] sm:$0xf]
  %v130 = vld [vmem:[%s1 + $0x14c] sm:$0xf]
  %v131 = vld [vmem:[%s1 + $0x150] sm:$0xf]
  %v132 = vld [vmem:[%s1 + $0x154] sm:$0xf]
  %v133 = vld [vmem:[%s1 + $0x158] sm:$0xf]
  %v134 = vld [vmem:[%s1 + $0x15c] sm:$0xf]
  %v135 = vld [vmem:[%s1 + $0x160] sm:$0xf]
  %v136 = vld [vmem:[%s1 + $0x164] sm:$0xf]
  %v137 = vld [vmem:[%s1 + $0x168] sm:$0xf]
  %v138 = vld [vmem:[%s1 + $0x16c] sm:$0xf]
  %v139 = vld [vmem:[%s1 + $0x170] sm:$0xf]
  %v140 = vld [vmem:[%s1 + $0x174] sm:$0xf]
  %v141 = vld [vmem:[%s1 + $0x178] sm:$0xf]
  %v142 = vld [vmem:[%s1 + $0x17c] sm:$0xf]
  %v143 = vld [vmem:[%s1 + $0x180] sm:$0xf]
  %v144 = vld [vmem:[%s1 + $0x184] sm:$0xf]
  %v145 = vld [vmem:[%s1 + $0x188] sm:$0xf]
  %v146 = vld [vmem:[%s1 + $0x18c] sm:$0xf]
  %v147 = vld [vmem:[%s1 + $0x190] sm:$0xf]
  %v148 = vld [vmem:[%s1 + $0x194] sm:$0xf]
  %v149 = vld [vmem:[%s1 + $0x198] sm:$0xf]
  %v150 = vld [vmem:[%s1 + $0x19c] sm:$0xf]
  %v151 = vld [vmem:[%s1 + $0x1a0] sm:$0xf]
  %v152 = vld [vmem:[%s1 + $0x1a4] sm:$0xf]
  %v153 = vld [vmem:[%s1 + $0x1a8] sm:$0xf]
  %v154 = vld [vmem:[%s1 + $0x1ac] sm:$0xf]
  %v155 = vld [vmem:[%s1 + $0x1b0] sm:$0xf]
  %v156 = vld [vmem:[%s1 + $0x1b4] sm:$0xf]
  %v157 = vld [vmem:[%s1 + $0x1b8] sm:$0xf]
  %v158 = vld [vmem:[%s1 + $0x1bc] sm:$0xf]
  %v159 = vld [vmem:[%s1 + $0x1c0] sm:$0xf]
  %v160 = vld [vmem:[%s1 + $0x1c4] sm:$0xf]
  %v161 = vld [vmem:[%s1 + $0x1c8] sm:$0xf]
  %v162 = vld [vmem:[%s1 + $0x1cc] sm:$0xf]
  %v163 = vld [vmem:[%s1 + $0x1d0] sm:$0xf]
  %v164 = vld [vmem:[%s1 + $0x1d4] sm:$0xf]
  %v165 = vld [vmem:[%s1 + $0x1d8] sm:$0xf]
  %v166 = vld [vmem:[%s1 + $0x1dc] sm:$0xf]
  %v167 = vld [vmem:[%s1 + $0x1e0] sm:$0xf]
  %v168 = vld [vmem:[%s1 + $0x1e4] sm:$0xf]
  %v169 = vld [vmem:[%s1 + $0x1e8] sm:$0xf]
  %v170 = vld [vmem:[%s1 + $0x1ec] sm:$0xf]
  %v171 = vld [vmem:[%s1 + $0x1f0] sm:$0xf]
  %v172 = vld [vmem:[%s1 + $0x1f4] sm:$0xf]
  %v173 = vld [vmem:[%s1 + $0x1f8] sm:$0xf]
  %v174 = vld [vmem:[%s1 + $0x1fc] sm:$0xf]
  %v175 = vld [vmem:[%s1 + $0x200] sm:$0xf]
  %v176 = vld [vmem:[%s1 + $0x204] sm:$0xf]
  %v177 = vld [vmem:[%s1 + $0x208] sm:$0xf]
  %v178 = vld [vmem:[%s1 + $0x20c] sm:$0xf]
  %v179 = vld [vmem:[%s1 + $0x210] sm:$0xf]
  %v180 = vld [vmem:[%s1 + $0x214] sm:$0xf]
  %v181 = vld [vmem:[%s1 + $0x218] sm:$0xf]
  %v182 = vld [vmem:[%s1 + $0x21c] sm:$0xf]
  %v183 = vld [vmem:[%s1 + $0x220] sm:$0xf]
  %v184 = vld [vmem:[%s1 + $0x224] sm:$0xf]
  %v185 = vld [vmem:[%s1 + $0x228] sm:$0xf]
  %v186 = vld [vmem:[%s1 + $0x22c] sm:$0xf]
  %v187 = vld [vmem:[%s1 + $0x230] sm:$0xf]
  %v188 = vld [vmem:[%s1 + $0x234] sm:$0xf]
  %v189 = vld [vmem:[%s1 + $0x238] sm:$0xf]
  %v190 = vld [vmem:[%s1 + $0x23c] sm:$0xf]
  %v191 = vld [vmem:[%s1 + $0x240] sm:$0xf]
  %v192 = vld [vmem:[%s1 + $0x244] sm:$0xf]
  %v193 = vld [vmem:[%s1 + $0x248] sm:$0xf]
  %v194 = vld [vmem:[%s1 + $0x24c] sm:$0xf]
  %v195 = vld [vmem:[%s1 + $0x250] sm:$0xf]
  %v196 = vld [vmem:[%s1 + $0x254] sm:$0xf]
  %v197 = vld [vmem:[%s1 + $0x258] sm:$0xf]
  %v198 = vld [vmem:[%s1 + $0x25c] sm:$0xf]
  %v199 = vld [vmem:[%s1 + $0x260] sm:$0xf]
  %v200 = vld [vmem:[%s1 + $0x264] sm:$0xf]
  %v201 = vld [vmem:[%s1 + $0x268] sm:$0xf]
  %v202 = vld [vmem:[%s1 + $0x26c] sm:$0xf]
  %v203 = vld [vmem:[%s1 + $0x270] sm:$0xf]
  %v204 = vld [vmem:[%s1 + $0x274] sm:$0xf]
  %v205 = vld [vmem:[%s1 + $0x278] sm:$0xf]
  %v206 = vld [vmem:[%s1 + $0x27c] sm:$0xf]
  %v207 = vld [vmem:[%s1 + $0x280] sm:$0xf]
  %v208 = vld [vmem:[%s1 + $0x284] sm:$0xf]
  %v209 = vld [vmem:[%s1 + $0x288] sm:$0xf]
  %v210 = vld [vmem:[%s1 + $0x28c] sm:$0xf]
  %v211 = vld [vmem:[%s1 + $0x290] sm:$0xf]
  %v212 = vld [vmem:[%s1 + $0x294] sm:$0xf]
  %v213 = vld [vmem:[%s1 + $0x298] sm:$0xf]
  %v214 = vld [vmem:[%s1 + $0x29c] sm:$0xf]
  %v215 = vld [vmem:[%s1 + $0x2a0] sm:$0xf]
  %v216 = vld [vmem:[%s1 + $0x2a4] sm:$0xf]
  %v217 = vld [vmem:[%s1 + $0x2a8] sm:$0xf]
  %v218 = vld [vmem:[%s1 + $0x2ac] sm:$0xf]
  %v219 = vld [vmem:[%s1 + $0x2b0] sm:$0xf]
  %v220 = vld [vmem:[%s1 + $0x2b4] sm:$0xf]
  %v221 = vld [vmem:[%s1 + $0x2b8] sm:$0xf]
  %v222 = vld [vmem:[%s1 + $0x2bc] sm:$0xf]
  %v223 = vld [vmem:[%s1 + $0x2c0] sm:$0xf]
  %v224 = vld [vmem:[%s1 + $0x2c4] sm:$0xf]
  %v225 = vld [vmem:[%s1 + $0x2c8] sm:$0xf]
  %v226 = vld [vmem:[%s1 + $0x2cc] sm:$0xf]
  %v227 = vld [vmem:[%s1 + $0x2d0] sm:$0xf]
  %v228 = vld [vmem:[%s1 + $0x2d4] sm:$0xf]
  %v229 = vld [vmem:[%s1 + $0x2d8] sm:$0xf]
  %v230 = vld [vmem:[%s1 + $0x2dc] sm:$0xf]
  %v231 = vld [vmem:[%s1 + $0x2e0] sm:$0xf]
  %v232 = vld [vmem:[%s1 + $0x2e4] sm:$0xf]
  %v233 = vld [vmem:[%s1 + $0x2e8] sm:$0xf]
  %v234 = vld [vmem:[%s1 + $0x2ec] sm:$0xf]
  %v235 = vld [vmem:[%s1 + $0x2f0] sm:$0xf]
  %v236 = vld [vmem:[%s1 + $0x2f4] sm:$0xf]
  %v237 = vld [vmem:[%s1 + $0x2f8] sm:$0xf]
  %v238 = vld [vmem:[%s1 + $0x2fc] sm:$0xf]
  %v239 = vld [vmem:[%s1 + $0x300] sm:$0xf]
  %v240 = vld [vmem:[%s1 + $0x304] sm:$0xf]
  %v241 = vld [vmem:[%s1 + $0x308] sm:$0xf]
  %v242 = vld [vmem:[%s1 + $0x30c] sm:$0xf]
  %v243 = vld [vmem:[%s1 + $0x310] sm:$0xf]
  %v244 = vld [vmem:[%s1 + $0x314] sm:$0xf]
  %v245 = vld [vmem:[%s1 + $0x318] sm:$0xf]
  %v246 = vld [vmem:[%s1 + $0x31c] sm:$0xf]
  %v247 = vld [vmem:[%s1 + $0x320] sm:$0xf]
  %v248 = vld [vmem:[%s1 + $0x324] sm:$0xf]
  %v249 = vld [vmem:[%s1 + $0x328] sm:$0xf]
  %v250 = vld [vmem:[%s1 + $0x32c] sm:$0xf]
  %v251 = vld [vmem:[%s1 + $0x330] sm:$0xf]
  %v252 = vld [vmem:[%s1 + $0x334] sm:$0xf]
  %v253 = vld [vmem:[%s1 + $0x338] sm:$0xf]
  %v254 = vld [vmem:[%s1 + $0x33c] sm:$0xf]
  %v255 = vld [vmem:[%s1 + $0x340] sm:$0xf]
  %v256 = vld [vmem:[%s1 + $0x344] sm:$0xf]
  %v257 = vld [vmem:[%s1 + $0x348] sm:$0xf]
  %v258 = vld [vmem:[%s1 + $0x34c] sm:$0xf]
  %v259 = vld [vmem:[%s1 + $0x350] sm:$0xf]
  %v260 = vld [vmem:[%s1 + $0x354] sm:$0xf]
  %v261 = vld [vmem:[%s1 + $0x358] sm:$0xf]
  %v262 = vld [vmem:[%s1 + $0x35c] sm:$0xf]
  %v263 = vld [vmem:[%s1 + $0x360] sm:$0xf]
  %v264 = vld [vmem:[%s1 + $0x364] sm:$0xf]
  %v265 = vld [vmem:[%s1 + $0x368] sm:$0xf]
  %v266 = vld [vmem:[%s1 + $0x36c] sm:$0xf]
  %v267 = vld [vmem:[%s1 + $0x370] sm:$0xf]
  %v268 = vld [vmem:[%s1 + $0x374] sm:$0xf]
  %v269 = vld [vmem:[%s1 + $0x378] sm:$0xf]
  %v270 = vld [vmem:[%s1 + $0x37c] sm:$0xf]
  %v271 = vld [vmem:[%s1 + $0x380] sm:$0xf]
  %v272 = vld [vmem:[%s1 + $0x384] sm:$0xf]
  %v273 = vld [vmem:[%s1 + $0x388] sm:$0xf]
  %v274 = vld [vmem:[%s1 + $0x38c] sm:$0xf]
  %v275 = vld [vmem:[%s1 + $0x390] sm:$0xf]
  %v276 = vld [vmem:[%s1 + $0x394] sm:$0xf]
  %v277 = vld [vmem:[%s1 + $0x398] sm:$0xf]
  %v278 = vld [vmem:[%s1 + $0x39c] sm:$0xf]
  %v279 = vld [vmem:[%s1 + $0x3a0] sm:$0xf]
  %v280 = vld [vmem:[%s1 + $0x3a4] sm:$0xf]
  %v281 = vld [vmem:[%s1 + $0x3a8] sm:$0xf]
  %v282 = vld [vmem:[%s1 + $0x3ac] sm:$0xf]
  %v283 = vld [vmem:[%s1 + $0x3b0] sm:$0xf]
  %v284 = vld [vmem:[%s1 + $0x3b4] sm:$0xf]
  %v285 = vld [vmem:[%s1 + $0x3b8] sm:$0xf]
  %v286 = vld [vmem:[%s1 + $0x3bc] sm:$0xf]
  %v287 = vld [vmem:[%s1 + $0x3c0] sm:$0xf]
  %v288 = vld [vmem:[%s1 + $0x3c4] sm:$0xf]
  %v289 = vld [vmem:[%s1 + $0x3c8] sm:$0xf]
  %v290 = vld [vmem:[%s1 + $0x3cc] sm:$0xf]
  %v291 = vld [vmem:[%s1 + $0x3d0] sm:$0xf]
  %v292 = vld [vmem:[%s1 + $0x3d4] sm:$0xf]
  %v293 = vld [vmem:[%s1 + $0x3d8] sm:$0xf]
  %v294 = vld [vmem:[%s1 + $0x3dc] sm:$0xf]
  %v295 = vld [vmem:[%s1 + $0x3e0] sm:$0xf]
  %v296 = vld [vmem:[%s1 + $0x3e4] sm:$0xf]
  %v297 = vld [vmem:[%s1 + $0x3e8] sm:$0xf]
  %v298 = vld [vmem:[%s1 + $0x3ec] sm:$0xf]
  %v299 = vld [vmem:[%s1 + $0x3f0] sm:$0xf]
  %v300 = vld [vmem:[%s1 + $0x3f4] sm:$0xf]
  %v301 = vld [vmem:[%s1 + $0x3f8] sm:$0xf]
  %v302 = vld [vmem:[%s1 + $0x3fc] sm:$0xf]
  %v303 = vld [vmem:[%s2] sm:$0x1]
  %v305 = vlaneseq
  %v306 = vshrl.u32 %v305, 7
  %v307 = vsub.s32 0, %v306
  %v308 = vrot.slane %v303, %v307
  %v342 = vunpack.c.l.b16 %v15
  %v343 = vunpack.c.h.b16 %v15
  %v344 = vunpack.c.l.b16 %v16
  %v345 = vunpack.c.h.b16 %v16
  %v346 = vunpack.c.l.b16 %v17
  %v347 = vunpack.c.h.b16 %v17
  %v348 = vunpack.c.l.b16 %v18
  %v349 = vunpack.c.h.b16 %v18
  %v350 = vunpack.c.l.b16 %v19
  %v351 = vunpack.c.h.b16 %v19
  %v352 = vunpack.c.l.b16 %v20
  %v353 = vunpack.c.h.b16 %v20
  %v354 = vunpack.c.l.b16 %v21
  %v355 = vunpack.c.h.b16 %v21
  %v356 = vunpack.c.l.b16 %v22
  %v357 = vunpack.c.h.b16 %v22
  %v358 = vunpack.c.l.b16 %v23
  %v359 = vunpack.c.h.b16 %v23
  %v360 = vunpack.c.l.b16 %v24
  %v361 = vunpack.c.h.b16 %v24
  %v362 = vunpack.c.l.b16 %v25
  %v363 = vunpack.c.h.b16 %v25
  %v364 = vunpack.c.l.b16 %v26
  %v365 = vunpack.c.h.b16 %v26
  %v366 = vunpack.c.l.b16 %v27
  %v367 = vunpack.c.h.b16 %v27
  %v368 = vunpack.c.l.b16 %v28
  %v369 = vunpack.c.h.b16 %v28
  %v370 = vunpack.c.l.b16 %v29
  %v371 = vunpack.c.h.b16 %v29
  %v372 = vunpack.c.l.b16 %v30
  %v373 = vunpack.c.h.b16 %v30
  %v374 = vunpack.c.l.b16 %v31
  %v375 = vunpack.c.h.b16 %v31
  %v376 = vunpack.c.l.b16 %v32
  %v377 = vunpack.c.h.b16 %v32
  %v378 = vunpack.c.l.b16 %v33
  %v379 = vunpack.c.h.b16 %v33
  %v380 = vunpack.c.l.b16 %v34
  %v381 = vunpack.c.h.b16 %v34
  %v382 = vunpack.c.l.b16 %v35
  %v383 = vunpack.c.h.b16 %v35
  %v384 = vunpack.c.l.b16 %v36
  %v385 = vunpack.c.h.b16 %v36
  %v386 = vunpack.c.l.b16 %v37
  %v387 = vunpack.c.h.b16 %v37
  %v388 = vunpack.c.l.b16 %v38
  %v389 = vunpack.c.h.b16 %v38
  %v390 = vunpack.c.l.b16 %v39
  %v391 = vunpack.c.h.b16 %v39
  %v392 = vunpack.c.l.b16 %v40
  %v393 = vunpack.c.h.b16 %v40
  %v394 = vunpack.c.l.b16 %v41
  %v395 = vunpack.c.h.b16 %v41
  %v396 = vunpack.c.l.b16 %v42
  %v397 = vunpack.c.h.b16 %v42
  %v398 = vunpack.c.l.b16 %v43
  %v399 = vunpack.c.h.b16 %v43
  %v400 = vunpack.c.l.b16 %v44
  %v401 = vunpack.c.h.b16 %v44
  %v402 = vunpack.c.l.b16 %v45
  %v403 = vunpack.c.h.b16 %v45
  %v404 = vunpack.c.l.b16 %v46
  %v405 = vunpack.c.h.b16 %v46
  %v406 = vpack.c.b16 %v358, %v342
  %v407 = vpack.c.b16 %v359, %v343
  %v408 = vpack.c.b16 %v360, %v344
  %v409 = vpack.c.b16 %v361, %v345
  %v410 = vpack.c.b16 %v362, %v346
  %v411 = vpack.c.b16 %v363, %v347
  %v412 = vpack.c.b16 %v364, %v348
  %v413 = vpack.c.b16 %v365, %v349
  %v414 = vpack.c.b16 %v366, %v350
  %v415 = vpack.c.b16 %v367, %v351
  %v416 = vpack.c.b16 %v368, %v352
  %v417 = vpack.c.b16 %v369, %v353
  %v418 = vpack.c.b16 %v370, %v354
  %v419 = vpack.c.b16 %v371, %v355
  %v420 = vpack.c.b16 %v372, %v356
  %v421 = vpack.c.b16 %v373, %v357
  %v422 = vpack.c.b16 %v390, %v374
  %v423 = vpack.c.b16 %v391, %v375
  %v424 = vpack.c.b16 %v392, %v376
  %v425 = vpack.c.b16 %v393, %v377
  %v426 = vpack.c.b16 %v394, %v378
  %v427 = vpack.c.b16 %v395, %v379
  %v428 = vpack.c.b16 %v396, %v380
  %v429 = vpack.c.b16 %v397, %v381
  %v430 = vpack.c.b16 %v398, %v382
  %v431 = vpack.c.b16 %v399, %v383
  %v432 = vpack.c.b16 %v400, %v384
  %v433 = vpack.c.b16 %v401, %v385
  %v434 = vpack.c.b16 %v402, %v386
  %v435 = vpack.c.b16 %v403, %v387
  %v436 = vpack.c.b16 %v404, %v388
  %v437 = vpack.c.b16 %v405, %v389
  %v726 = vunpack.c.l.b16 %v47
  %v727 = vunpack.c.l.b16 %v48
  %v728 = vunpack.c.l.b16 %v49
  %v729 = vunpack.c.l.b16 %v50
  %v730 = vunpack.c.l.b16 %v51
  %v731 = vunpack.c.l.b16 %v52
  %v732 = vunpack.c.l.b16 %v53
  %v733 = vunpack.c.l.b16 %v54
  %v734 = vunpack.c.l.b16 %v55
  %v735 = vunpack.c.l.b16 %v56
  %v736 = vunpack.c.l.b16 %v57
  %v737 = vunpack.c.l.b16 %v58
  %v738 = vunpack.c.l.b16 %v59
  %v739 = vunpack.c.l.b16 %v60
  %v740 = vunpack.c.l.b16 %v61
  %v741 = vunpack.c.l.b16 %v62
  %v742 = vunpack.c.l.b16 %v63
  %v743 = vunpack.c.l.b16 %v64
  %v744 = vunpack.c.l.b16 %v65
  %v745 = vunpack.c.l.b16 %v66
  %v746 = vunpack.c.l.b16 %v67
  %v747 = vunpack.c.l.b16 %v68
  %v748 = vunpack.c.l.b16 %v69
  %v749 = vunpack.c.l.b16 %v70
  %v750 = vunpack.c.l.b16 %v71
  %v751 = vunpack.c.l.b16 %v72
  %v752 = vunpack.c.l.b16 %v73
  %v753 = vunpack.c.l.b16 %v74
  %v754 = vunpack.c.l.b16 %v75
  %v755 = vunpack.c.l.b16 %v76
  %v756 = vunpack.c.l.b16 %v77
  %v757 = vunpack.c.l.b16 %v78
  %v758 = vunpack.c.l.b16 %v79
  %v759 = vunpack.c.l.b16 %v80
  %v760 = vunpack.c.l.b16 %v81
  %v761 = vunpack.c.l.b16 %v82
  %v762 = vunpack.c.l.b16 %v83
  %v763 = vunpack.c.l.b16 %v84
  %v764 = vunpack.c.l.b16 %v85
  %v765 = vunpack.c.l.b16 %v86
  %v766 = vunpack.c.l.b16 %v87
  %v767 = vunpack.c.l.b16 %v88
  %v768 = vunpack.c.l.b16 %v89
  %v769 = vunpack.c.l.b16 %v90
  %v770 = vunpack.c.l.b16 %v91
  %v771 = vunpack.c.l.b16 %v92
  %v772 = vunpack.c.l.b16 %v93
  %v773 = vunpack.c.l.b16 %v94
  %v774 = vunpack.c.l.b16 %v95
  %v775 = vunpack.c.l.b16 %v96
  %v776 = vunpack.c.l.b16 %v97
  %v777 = vunpack.c.l.b16 %v98
  %v778 = vunpack.c.l.b16 %v99
  %v779 = vunpack.c.l.b16 %v100
  %v780 = vunpack.c.l.b16 %v101
  %v781 = vunpack.c.l.b16 %v102
  %v782 = vunpack.c.l.b16 %v103
  %v783 = vunpack.c.l.b16 %v104
  %v784 = vunpack.c.l.b16 %v105
  %v785 = vunpack.c.l.b16 %v106
  %v786 = vunpack.c.l.b16 %v107
  %v787 = vunpack.c.l.b16 %v108
  %v788 = vunpack.c.l.b16 %v109
  %v789 = vunpack.c.l.b16 %v110
  %v790 = vunpack.c.l.b16 %v111
  %v791 = vunpack.c.l.b16 %v112
  %v792 = vunpack.c.l.b16 %v113
  %v793 = vunpack.c.l.b16 %v114
  %v794 = vunpack.c.l.b16 %v115
  %v795 = vunpack.c.l.b16 %v116
  %v796 = vunpack.c.l.b16 %v117
  %v797 = vunpack.c.l.b16 %v118
  %v798 = vunpack.c.l.b16 %v119
  %v799 = vunpack.c.l.b16 %v120
  %v800 = vunpack.c.l.b16 %v121
  %v801 = vunpack.c.l.b16 %v122
  %v802 = vunpack.c.l.b16 %v123
  %v803 = vunpack.c.l.b16 %v124
  %v804 = vunpack.c.l.b16 %v125
  %v805 = vunpack.c.l.b16 %v126
  %v806 = vunpack.c.l.b16 %v127
  %v807 = vunpack.c.l.b16 %v128
  %v808 = vunpack.c.l.b16 %v129
  %v809 = vunpack.c.l.b16 %v130
  %v810 = vunpack.c.l.b16 %v131
  %v811 = vunpack.c.l.b16 %v132
  %v812 = vunpack.c.l.b16 %v133
  %v813 = vunpack.c.l.b16 %v134
  %v814 = vunpack.c.l.b16 %v135
  %v815 = vunpack.c.l.b16 %v136
  %v816 = vunpack.c.l.b16 %v137
  %v817 = vunpack.c.l.b16 %v138
  %v818 = vunpack.c.l.b16 %v139
  %v819 = vunpack.c.l.b16 %v140
  %v820 = vunpack.c.l.b16 %v141
  %v821 = vunpack.c.l.b16 %v142
  %v822 = vunpack.c.l.b16 %v143
  %v823 = vunpack.c.l.b16 %v144
  %v824 = vunpack.c.l.b16 %v145
  %v825 = vunpack.c.l.b16 %v146
  %v826 = vunpack.c.l.b16 %v147
  %v827 = vunpack.c.l.b16 %v148
  %v828 = vunpack.c.l.b16 %v149
  %v829 = vunpack.c.l.b16 %v150
  %v830 = vunpack.c.l.b16 %v151
  %v831 = vunpack.c.l.b16 %v152
  %v832 = vunpack.c.l.b16 %v153
  %v833 = vunpack.c.l.b16 %v154
  %v834 = vunpack.c.l.b16 %v155
  %v835 = vunpack.c.l.b16 %v156
  %v836 = vunpack.c.l.b16 %v157
  %v837 = vunpack.c.l.b16 %v158
  %v838 = vunpack.c.l.b16 %v159
  %v839 = vunpack.c.l.b16 %v160
  %v840 = vunpack.c.l.b16 %v161
  %v841 = vunpack.c.l.b16 %v162
  %v842 = vunpack.c.l.b16 %v163
  %v843 = vunpack.c.l.b16 %v164
  %v844 = vunpack.c.l.b16 %v165
  %v845 = vunpack.c.l.b16 %v166
  %v846 = vunpack.c.l.b16 %v167
  %v847 = vunpack.c.l.b16 %v168
  %v848 = vunpack.c.l.b16 %v169
  %v849 = vunpack.c.l.b16 %v170
  %v850 = vunpack.c.l.b16 %v171
  %v851 = vunpack.c.l.b16 %v172
  %v852 = vunpack.c.l.b16 %v173
  %v853 = vunpack.c.l.b16 %v174
  %v854 = vunpack.c.l.b16 %v175
  %v855 = vunpack.c.l.b16 %v176
  %v856 = vunpack.c.l.b16 %v177
  %v857 = vunpack.c.l.b16 %v178
  %v858 = vunpack.c.l.b16 %v179
  %v859 = vunpack.c.l.b16 %v180
  %v860 = vunpack.c.l.b16 %v181
  %v861 = vunpack.c.l.b16 %v182
  %v862 = vunpack.c.l.b16 %v183
  %v863 = vunpack.c.l.b16 %v184
  %v864 = vunpack.c.l.b16 %v185
  %v865 = vunpack.c.l.b16 %v186
  %v866 = vunpack.c.l.b16 %v187
  %v867 = vunpack.c.l.b16 %v188
  %v868 = vunpack.c.l.b16 %v189
  %v869 = vunpack.c.l.b16 %v190
  %v870 = vunpack.c.l.b16 %v191
  %v871 = vunpack.c.l.b16 %v192
  %v872 = vunpack.c.l.b16 %v193
  %v873 = vunpack.c.l.b16 %v194
  %v874 = vunpack.c.l.b16 %v195
  %v875 = vunpack.c.l.b16 %v196
  %v876 = vunpack.c.l.b16 %v197
  %v877 = vunpack.c.l.b16 %v198
  %v878 = vunpack.c.l.b16 %v199
  %v879 = vunpack.c.l.b16 %v200
  %v880 = vunpack.c.l.b16 %v201
  %v881 = vunpack.c.l.b16 %v202
  %v882 = vunpack.c.l.b16 %v203
  %v883 = vunpack.c.l.b16 %v204
  %v884 = vunpack.c.l.b16 %v205
  %v885 = vunpack.c.l.b16 %v206
  %v886 = vunpack.c.l.b16 %v207
  %v887 = vunpack.c.l.b16 %v208
  %v888 = vunpack.c.l.b16 %v209
  %v889 = vunpack.c.l.b16 %v210
  %v890 = vunpack.c.l.b16 %v211
  %v891 = vunpack.c.l.b16 %v212
  %v892 = vunpack.c.l.b16 %v213
  %v893 = vunpack.c.l.b16 %v214
  %v894 = vunpack.c.l.b16 %v215
  %v895 = vunpack.c.l.b16 %v216
  %v896 = vunpack.c.l.b16 %v217
  %v897 = vunpack.c.l.b16 %v218
  %v898 = vunpack.c.l.b16 %v219
  %v899 = vunpack.c.l.b16 %v220
  %v900 = vunpack.c.l.b16 %v221
  %v901 = vunpack.c.l.b16 %v222
  %v902 = vunpack.c.l.b16 %v223
  %v903 = vunpack.c.l.b16 %v224
  %v904 = vunpack.c.l.b16 %v225
  %v905 = vunpack.c.l.b16 %v226
  %v906 = vunpack.c.l.b16 %v227
  %v907 = vunpack.c.l.b16 %v228
  %v908 = vunpack.c.l.b16 %v229
  %v909 = vunpack.c.l.b16 %v230
  %v910 = vunpack.c.l.b16 %v231
  %v911 = vunpack.c.l.b16 %v232
  %v912 = vunpack.c.l.b16 %v233
  %v913 = vunpack.c.l.b16 %v234
  %v914 = vunpack.c.l.b16 %v235
  %v915 = vunpack.c.l.b16 %v236
  %v916 = vunpack.c.l.b16 %v237
  %v917 = vunpack.c.l.b16 %v238
  %v918 = vunpack.c.l.b16 %v239
  %v919 = vunpack.c.l.b16 %v240
  %v920 = vunpack.c.l.b16 %v241
  %v921 = vunpack.c.l.b16 %v242
  %v922 = vunpack.c.l.b16 %v243
  %v923 = vunpack.c.l.b16 %v244
  %v924 = vunpack.c.l.b16 %v245
  %v925 = vunpack.c.l.b16 %v246
  %v926 = vunpack.c.l.b16 %v247
  %v927 = vunpack.c.l.b16 %v248
  %v928 = vunpack.c.l.b16 %v249
  %v929 = vunpack.c.l.b16 %v250
  %v930 = vunpack.c.l.b16 %v251
  %v931 = vunpack.c.l.b16 %v252
  %v932 = vunpack.c.l.b16 %v253
  %v933 = vunpack.c.l.b16 %v254
  %v934 = vunpack.c.l.b16 %v255
  %v935 = vunpack.c.l.b16 %v256
  %v936 = vunpack.c.l.b16 %v257
  %v937 = vunpack.c.l.b16 %v258
  %v938 = vunpack.c.l.b16 %v259
  %v939 = vunpack.c.l.b16 %v260
  %v940 = vunpack.c.l.b16 %v261
  %v941 = vunpack.c.l.b16 %v262
  %v942 = vunpack.c.l.b16 %v263
  %v943 = vunpack.c.l.b16 %v264
  %v944 = vunpack.c.l.b16 %v265
  %v945 = vunpack.c.l.b16 %v266
  %v946 = vunpack.c.l.b16 %v267
  %v947 = vunpack.c.l.b16 %v268
  %v948 = vunpack.c.l.b16 %v269
  %v949 = vunpack.c.l.b16 %v270
  %v950 = vunpack.c.l.b16 %v271
  %v951 = vunpack.c.l.b16 %v272
  %v952 = vunpack.c.l.b16 %v273
  %v953 = vunpack.c.l.b16 %v274
  %v954 = vunpack.c.l.b16 %v275
  %v955 = vunpack.c.l.b16 %v276
  %v956 = vunpack.c.l.b16 %v277
  %v957 = vunpack.c.l.b16 %v278
  %v958 = vunpack.c.l.b16 %v279
  %v959 = vunpack.c.l.b16 %v280
  %v960 = vunpack.c.l.b16 %v281
  %v961 = vunpack.c.l.b16 %v282
  %v962 = vunpack.c.l.b16 %v283
  %v963 = vunpack.c.l.b16 %v284
  %v964 = vunpack.c.l.b16 %v285
  %v965 = vunpack.c.l.b16 %v286
  %v966 = vunpack.c.l.b16 %v287
  %v967 = vunpack.c.l.b16 %v288
  %v968 = vunpack.c.l.b16 %v289
  %v969 = vunpack.c.l.b16 %v290
  %v970 = vunpack.c.l.b16 %v291
  %v971 = vunpack.c.l.b16 %v292
  %v972 = vunpack.c.l.b16 %v293
  %v973 = vunpack.c.l.b16 %v294
  %v974 = vunpack.c.l.b16 %v295
  %v975 = vunpack.c.l.b16 %v296
  %v976 = vunpack.c.l.b16 %v297
  %v977 = vunpack.c.l.b16 %v298
  %v978 = vunpack.c.l.b16 %v299
  %v979 = vunpack.c.l.b16 %v300
  %v980 = vunpack.c.l.b16 %v301
  %v981 = vunpack.c.l.b16 %v302
  %v982 = vpack.c.b16 %v727, %v726
  %v983 = vpack.c.b16 %v729, %v728
  %v984 = vpack.c.b16 %v731, %v730
  %v985 = vpack.c.b16 %v733, %v732
  %v986 = vpack.c.b16 %v735, %v734
  %v987 = vpack.c.b16 %v737, %v736
  %v988 = vpack.c.b16 %v739, %v738
  %v989 = vpack.c.b16 %v741, %v740
  %v990 = vpack.c.b16 %v743, %v742
  %v991 = vpack.c.b16 %v745, %v744
  %v992 = vpack.c.b16 %v747, %v746
  %v993 = vpack.c.b16 %v749, %v748
  %v994 = vpack.c.b16 %v751, %v750
  %v995 = vpack.c.b16 %v753, %v752
  %v996 = vpack.c.b16 %v755, %v754
  %v997 = vpack.c.b16 %v757, %v756
  %v998 = vpack.c.b16 %v759, %v758
  %v999 = vpack.c.b16 %v761, %v760
  %v1000 = vpack.c.b16 %v763, %v762
  %v1001 = vpack.c.b16 %v765, %v764
  %v1002 = vpack.c.b16 %v767, %v766
  %v1003 = vpack.c.b16 %v769, %v768
  %v1004 = vpack.c.b16 %v771, %v770
  %v1005 = vpack.c.b16 %v773, %v772
  %v1006 = vpack.c.b16 %v775, %v774
  %v1007 = vpack.c.b16 %v777, %v776
  %v1008 = vpack.c.b16 %v779, %v778
  %v1009 = vpack.c.b16 %v781, %v780
  %v1010 = vpack.c.b16 %v783, %v782
  %v1011 = vpack.c.b16 %v785, %v784
  %v1012 = vpack.c.b16 %v787, %v786
  %v1013 = vpack.c.b16 %v789, %v788
  %v1014 = vpack.c.b16 %v791, %v790
  %v1015 = vpack.c.b16 %v793, %v792
  %v1016 = vpack.c.b16 %v795, %v794
  %v1017 = vpack.c.b16 %v797, %v796
  %v1018 = vpack.c.b16 %v799, %v798
  %v1019 = vpack.c.b16 %v801, %v800
  %v1020 = vpack.c.b16 %v803, %v802
  %v1021 = vpack.c.b16 %v805, %v804
  %v1022 = vpack.c.b16 %v807, %v806
  %v1023 = vpack.c.b16 %v809, %v808
  %v1024 = vpack.c.b16 %v811, %v810
  %v1025 = vpack.c.b16 %v813, %v812
  %v1026 = vpack.c.b16 %v815, %v814
  %v1027 = vpack.c.b16 %v817, %v816
  %v1028 = vpack.c.b16 %v819, %v818
  %v1029 = vpack.c.b16 %v821, %v820
  %v1030 = vpack.c.b16 %v823, %v822
  %v1031 = vpack.c.b16 %v825, %v824
  %v1032 = vpack.c.b16 %v827, %v826
  %v1033 = vpack.c.b16 %v829, %v828
  %v1034 = vpack.c.b16 %v831, %v830
  %v1035 = vpack.c.b16 %v833, %v832
  %v1036 = vpack.c.b16 %v835, %v834
  %v1037 = vpack.c.b16 %v837, %v836
  %v1038 = vpack.c.b16 %v839, %v838
  %v1039 = vpack.c.b16 %v841, %v840
  %v1040 = vpack.c.b16 %v843, %v842
  %v1041 = vpack.c.b16 %v845, %v844
  %v1042 = vpack.c.b16 %v847, %v846
  %v1043 = vpack.c.b16 %v849, %v848
  %v1044 = vpack.c.b16 %v851, %v850
  %v1045 = vpack.c.b16 %v853, %v852
  %v1046 = vpack.c.b16 %v855, %v854
  %v1047 = vpack.c.b16 %v857, %v856
  %v1048 = vpack.c.b16 %v859, %v858
  %v1049 = vpack.c.b16 %v861, %v860
  %v1050 = vpack.c.b16 %v863, %v862
  %v1051 = vpack.c.b16 %v865, %v864
  %v1052 = vpack.c.b16 %v867, %v866
  %v1053 = vpack.c.b16 %v869, %v868
  %v1054 = vpack.c.b16 %v871, %v870
  %v1055 = vpack.c.b16 %v873, %v872
  %v1056 = vpack.c.b16 %v875, %v874
  %v1057 = vpack.c.b16 %v877, %v876
  %v1058 = vpack.c.b16 %v879, %v878
  %v1059 = vpack.c.b16 %v881, %v880
  %v1060 = vpack.c.b16 %v883, %v882
  %v1061 = vpack.c.b16 %v885, %v884
  %v1062 = vpack.c.b16 %v887, %v886
  %v1063 = vpack.c.b16 %v889, %v888
  %v1064 = vpack.c.b16 %v891, %v890
  %v1065 = vpack.c.b16 %v893, %v892
  %v1066 = vpack.c.b16 %v895, %v894
  %v1067 = vpack.c.b16 %v897, %v896
  %v1068 = vpack.c.b16 %v899, %v898
  %v1069 = vpack.c.b16 %v901, %v900
  %v1070 = vpack.c.b16 %v903, %v902
  %v1071 = vpack.c.b16 %v905, %v904
  %v1072 = vpack.c.b16 %v907, %v906
  %v1073 = vpack.c.b16 %v909, %v908
  %v1074 = vpack.c.b16 %v911, %v910
  %v1075 = vpack.c.b16 %v913, %v912
  %v1076 = vpack.c.b16 %v915, %v914
  %v1077 = vpack.c.b16 %v917, %v916
  %v1078 = vpack.c.b16 %v919, %v918
  %v1079 = vpack.c.b16 %v921, %v920
  %v1080 = vpack.c.b16 %v923, %v922
  %v1081 = vpack.c.b16 %v925, %v924
  %v1082 = vpack.c.b16 %v927, %v926
  %v1083 = vpack.c.b16 %v929, %v928
  %v1084 = vpack.c.b16 %v931, %v930
  %v1085 = vpack.c.b16 %v933, %v932
  %v1086 = vpack.c.b16 %v935, %v934
  %v1087 = vpack.c.b16 %v937, %v936
  %v1088 = vpack.c.b16 %v939, %v938
  %v1089 = vpack.c.b16 %v941, %v940
  %v1090 = vpack.c.b16 %v943, %v942
  %v1091 = vpack.c.b16 %v945, %v944
  %v1092 = vpack.c.b16 %v947, %v946
  %v1093 = vpack.c.b16 %v949, %v948
  %v1094 = vpack.c.b16 %v951, %v950
  %v1095 = vpack.c.b16 %v953, %v952
  %v1096 = vpack.c.b16 %v955, %v954
  %v1097 = vpack.c.b16 %v957, %v956
  %v1098 = vpack.c.b16 %v959, %v958
  %v1099 = vpack.c.b16 %v961, %v960
  %v1100 = vpack.c.b16 %v963, %v962
  %v1101 = vpack.c.b16 %v965, %v964
  %v1102 = vpack.c.b16 %v967, %v966
  %v1103 = vpack.c.b16 %v969, %v968
  %v1104 = vpack.c.b16 %v971, %v970
  %v1105 = vpack.c.b16 %v973, %v972
  %v1106 = vpack.c.b16 %v975, %v974
  %v1107 = vpack.c.b16 %v977, %v976
  %v1108 = vpack.c.b16 %v979, %v978
  %v1109 = vpack.c.b16 %v981, %v980
  %1238 = vmatprep.subr.bf16.mxu0 0
  %1239 = vmatpush1.bf16.msra.mxu0 %v989
  %1240 = vmatprep.subr.bf16.mxu0 0
  %1241 = vmatpush1.bf16.msra.mxu0 %v988
  %1242 = vmatprep.subr.bf16.mxu0 0
  %1243 = vmatpush1.bf16.msra.mxu0 %v987
  %1244 = vmatprep.subr.bf16.mxu0 0
  %1245 = vmatpush1.bf16.msra.mxu0 %v986
  %1246 = vmatprep.subr.bf16.mxu0 0
  %1247 = vmatpush1.bf16.msra.mxu0 %v985
  %1248 = vmatprep.subr.bf16.mxu0 0
  %1249 = vmatpush1.bf16.msra.mxu0 %v984
  %1250 = vmatprep.subr.bf16.mxu0 0
  %1251 = vmatpush1.bf16.msra.mxu0 %v983
  %1252 = vmatprep.subr.bf16.mxu0 0
  %1253 = vmatpush1.bf16.msra.mxu0 %v982
  %1254 = vmatprep.subr.bf16.mxu0 0
  %1255 = vmatpush2.bf16.msra.mxu0 %v997
  %1256 = vmatprep.subr.bf16.mxu0 0
  %1257 = vmatpush2.bf16.msra.mxu0 %v996
  %1258 = vmatprep.subr.bf16.mxu0 0
  %1259 = vmatpush2.bf16.msra.mxu0 %v995
  %1260 = vmatprep.subr.bf16.mxu0 0
  %1261 = vmatpush2.bf16.msra.mxu0 %v994
  %1262 = vmatprep.subr.bf16.mxu0 0
  %1263 = vmatpush2.bf16.msra.mxu0 %v993
  %1264 = vmatprep.subr.bf16.mxu0 0
  %1265 = vmatpush2.bf16.msra.mxu0 %v992
  %1266 = vmatprep.subr.bf16.mxu0 0
  %1267 = vmatpush2.bf16.msra.mxu0 %v991
  %1268 = vmatprep.subr.bf16.mxu0 0
  %1269 = vmatpush2.bf16.msra.mxu0 %v990
  %1270 = vmatprep.mubr.bf16.mxu0 %v407
  %1271 = vmatmul.mubr.bf16.gmra.mxu0 %v406
  %v1272 = vpop.f32.mrf.mxu0
  %v1273 = vadd.f32 %v308, %v1272
  %v1274 = vpop.f32.mrf.mxu0
  %v1275 = vpop.f32.mrf.mxu0
  %v1276 = vadd.f32 %v308, %v1275
  %v1277 = vpop.f32.mrf.mxu0
  %1278 = vmatprep.mubr.bf16.mxu0 %v423
  %1279 = vmatmul.mubr.bf16.gmra.mxu0 %v422
  %v1280 = vpop.f32.mrf.mxu0
  %v1281 = vadd.f32 %v308, %v1280
  %v1282 = vpop.f32.mrf.mxu0
  %v1283 = vpop.f32.mrf.mxu0
  %v1284 = vadd.f32 %v308, %v1283
  %v1285 = vpop.f32.mrf.mxu0
  %1286 = vdwg.mxu0
  %1287 = vmatprep.subr.bf16.mxu0 0
  %1288 = vmatpush1.bf16.msra.mxu0 %v1005
  %1289 = vmatprep.subr.bf16.mxu0 0
  %1290 = vmatpush1.bf16.msra.mxu0 %v1004
  %1291 = vmatprep.subr.bf16.mxu0 0
  %1292 = vmatpush1.bf16.msra.mxu0 %v1003
  %1293 = vmatprep.subr.bf16.mxu0 0
  %1294 = vmatpush1.bf16.msra.mxu0 %v1002
  %1295 = vmatprep.subr.bf16.mxu0 0
  %1296 = vmatpush1.bf16.msra.mxu0 %v1001
  %1297 = vmatprep.subr.bf16.mxu0 0
  %1298 = vmatpush1.bf16.msra.mxu0 %v1000
  %1299 = vmatprep.subr.bf16.mxu0 0
  %1300 = vmatpush1.bf16.msra.mxu0 %v999
  %1301 = vmatprep.subr.bf16.mxu0 0
  %1302 = vmatpush1.bf16.msra.mxu0 %v998
  %1303 = vmatprep.subr.bf16.mxu0 0
  %1304 = vmatpush2.bf16.msra.mxu0 %v1013
  %1305 = vmatprep.subr.bf16.mxu0 0
  %1306 = vmatpush2.bf16.msra.mxu0 %v1012
  %1307 = vmatprep.subr.bf16.mxu0 0
  %1308 = vmatpush2.bf16.msra.mxu0 %v1011
  %1309 = vmatprep.subr.bf16.mxu0 0
  %1310 = vmatpush2.bf16.msra.mxu0 %v1010
  %1311 = vmatprep.subr.bf16.mxu0 0
  %1312 = vmatpush2.bf16.msra.mxu0 %v1009
  %1313 = vmatprep.subr.bf16.mxu0 0
  %1314 = vmatpush2.bf16.msra.mxu0 %v1008
  %1315 = vmatprep.subr.bf16.mxu0 0
  %1316 = vmatpush2.bf16.msra.mxu0 %v1007
  %1317 = vmatprep.subr.bf16.mxu0 0
  %1318 = vmatpush2.bf16.msra.mxu0 %v1006
  %1319 = vmatprep.mubr.bf16.mxu0 %v409
  %1320 = vmatmul.mubr.bf16.gmra.mxu0 %v408
  %v1321 = vpop.f32.mrf.mxu0
  %v1322 = vadd.f32 %v1273, %v1321
  %v1323 = vpop.f32.mrf.mxu0
  %v1324 = vpop.f32.mrf.mxu0
  %v1325 = vadd.f32 %v1276, %v1324
  %v1326 = vpop.f32.mrf.mxu0
  %1327 = vmatprep.mubr.bf16.mxu0 %v425
  %1328 = vmatmul.mubr.bf16.gmra.mxu0 %v424
  %v1329 = vpop.f32.mrf.mxu0
  %v1330 = vadd.f32 %v1281, %v1329
  %v1331 = vpop.f32.mrf.mxu0
  %v1332 = vpop.f32.mrf.mxu0
  %v1333 = vadd.f32 %v1284, %v1332
  %v1334 = vpop.f32.mrf.mxu0
  %1335 = vdwg.mxu0
  %1336 = vmatprep.subr.bf16.mxu0 0
  %1337 = vmatpush1.bf16.msra.mxu0 %v1021
  %1338 = vmatprep.subr.bf16.mxu0 0
  %1339 = vmatpush1.bf16.msra.mxu0 %v1020
  %1340 = vmatprep.subr.bf16.mxu0 0
  %1341 = vmatpush1.bf16.msra.mxu0 %v1019
  %1342 = vmatprep.subr.bf16.mxu0 0
  %1343 = vmatpush1.bf16.msra.mxu0 %v1018
  %1344 = vmatprep.subr.bf16.mxu0 0
  %1345 = vmatpush1.bf16.msra.mxu0 %v1017
  %1346 = vmatprep.subr.bf16.mxu0 0
  %1347 = vmatpush1.bf16.msra.mxu0 %v1016
  %1348 = vmatprep.subr.bf16.mxu0 0
  %1349 = vmatpush1.bf16.msra.mxu0 %v1015
  %1350 = vmatprep.subr.bf16.mxu0 0
  %1351 = vmatpush1.bf16.msra.mxu0 %v1014
  %1352 = vmatprep.subr.bf16.mxu0 0
  %1353 = vmatpush2.bf16.msra.mxu0 %v1029
  %1354 = vmatprep.subr.bf16.mxu0 0
  %1355 = vmatpush2.bf16.msra.mxu0 %v1028
  %1356 = vmatprep.subr.bf16.mxu0 0
  %1357 = vmatpush2.bf16.msra.mxu0 %v1027
  %1358 = vmatprep.subr.bf16.mxu0 0
  %1359 = vmatpush2.bf16.msra.mxu0 %v1026
  %1360 = vmatprep.subr.bf16.mxu0 0
  %1361 = vmatpush2.bf16.msra.mxu0 %v1025
  %1362 = vmatprep.subr.bf16.mxu0 0
  %1363 = vmatpush2.bf16.msra.mxu0 %v1024
  %1364 = vmatprep.subr.bf16.mxu0 0
  %1365 = vmatpush2.bf16.msra.mxu0 %v1023
  %1366 = vmatprep.subr.bf16.mxu0 0
  %1367 = vmatpush2.bf16.msra.mxu0 %v1022
  %1368 = vmatprep.mubr.bf16.mxu0 %v411
  %1369 = vmatmul.mubr.bf16.gmra.mxu0 %v410
  %v1370 = vpop.f32.mrf.mxu0
  %v1371 = vadd.f32 %v1322, %v1370
  %v1372 = vpop.f32.mrf.mxu0
  %v1373 = vpop.f32.mrf.mxu0
  %v1374 = vadd.f32 %v1325, %v1373
  %v1375 = vpop.f32.mrf.mxu0
  %1376 = vmatprep.mubr.bf16.mxu0 %v427
  %1377 = vmatmul.mubr.bf16.gmra.mxu0 %v426
  %v1378 = vpop.f32.mrf.mxu0
  %v1379 = vadd.f32 %v1330, %v1378
  %v1380 = vpop.f32.mrf.mxu0
  %v1381 = vpop.f32.mrf.mxu0
  %v1382 = vadd.f32 %v1333, %v1381
  %v1383 = vpop.f32.mrf.mxu0
  %1384 = vdwg.mxu0
  %1385 = vmatprep.subr.bf16.mxu0 0
  %1386 = vmatpush1.bf16.msra.mxu0 %v1037
  %1387 = vmatprep.subr.bf16.mxu0 0
  %1388 = vmatpush1.bf16.msra.mxu0 %v1036
  %1389 = vmatprep.subr.bf16.mxu0 0
  %1390 = vmatpush1.bf16.msra.mxu0 %v1035
  %1391 = vmatprep.subr.bf16.mxu0 0
  %1392 = vmatpush1.bf16.msra.mxu0 %v1034
  %1393 = vmatprep.subr.bf16.mxu0 0
  %1394 = vmatpush1.bf16.msra.mxu0 %v1033
  %1395 = vmatprep.subr.bf16.mxu0 0
  %1396 = vmatpush1.bf16.msra.mxu0 %v1032
  %1397 = vmatprep.subr.bf16.mxu0 0
  %1398 = vmatpush1.bf16.msra.mxu0 %v1031
  %1399 = vmatprep.subr.bf16.mxu0 0
  %1400 = vmatpush1.bf16.msra.mxu0 %v1030
  %1401 = vmatprep.subr.bf16.mxu0 0
  %1402 = vmatpush2.bf16.msra.mxu0 %v1045
  %1403 = vmatprep.subr.bf16.mxu0 0
  %1404 = vmatpush2.bf16.msra.mxu0 %v1044
  %1405 = vmatprep.subr.bf16.mxu0 0
  %1406 = vmatpush2.bf16.msra.mxu0 %v1043
  %1407 = vmatprep.subr.bf16.mxu0 0
  %1408 = vmatpush2.bf16.msra.mxu0 %v1042
  %1409 = vmatprep.subr.bf16.mxu0 0
  %1410 = vmatpush2.bf16.msra.mxu0 %v1041
  %1411 = vmatprep.subr.bf16.mxu0 0
  %1412 = vmatpush2.bf16.msra.mxu0 %v1040
  %1413 = vmatprep.subr.bf16.mxu0 0
  %1414 = vmatpush2.bf16.msra.mxu0 %v1039
  %1415 = vmatprep.subr.bf16.mxu0 0
  %1416 = vmatpush2.bf16.msra.mxu0 %v1038
  %1417 = vmatprep.mubr.bf16.mxu0 %v413
  %1418 = vmatmul.mubr.bf16.gmra.mxu0 %v412
  %v1419 = vpop.f32.mrf.mxu0
  %v1420 = vadd.f32 %v1371, %v1419
  %v1421 = vpop.f32.mrf.mxu0
  %v1422 = vpop.f32.mrf.mxu0
  %v1423 = vadd.f32 %v1374, %v1422
  %v1424 = vpop.f32.mrf.mxu0
  %1425 = vmatprep.mubr.bf16.mxu0 %v429
  %1426 = vmatmul.mubr.bf16.gmra.mxu0 %v428
  %v1427 = vpop.f32.mrf.mxu0
  %v1428 = vadd.f32 %v1379, %v1427
  %v1429 = vpop.f32.mrf.mxu0
  %v1430 = vpop.f32.mrf.mxu0
  %v1431 = vadd.f32 %v1382, %v1430
  %v1432 = vpop.f32.mrf.mxu0
  %1433 = vdwg.mxu0
  %1434 = vmatprep.subr.bf16.mxu0 0
  %1435 = vmatpush1.bf16.msra.mxu0 %v1053
  %1436 = vmatprep.subr.bf16.mxu0 0
  %1437 = vmatpush1.bf16.msra.mxu0 %v1052
  %1438 = vmatprep.subr.bf16.mxu0 0
  %1439 = vmatpush1.bf16.msra.mxu0 %v1051
  %1440 = vmatprep.subr.bf16.mxu0 0
  %1441 = vmatpush1.bf16.msra.mxu0 %v1050
  %1442 = vmatprep.subr.bf16.mxu0 0
  %1443 = vmatpush1.bf16.msra.mxu0 %v1049
  %1444 = vmatprep.subr.bf16.mxu0 0
  %1445 = vmatpush1.bf16.msra.mxu0 %v1048
  %1446 = vmatprep.subr.bf16.mxu0 0
  %1447 = vmatpush1.bf16.msra.mxu0 %v1047
  %1448 = vmatprep.subr.bf16.mxu0 0
  %1449 = vmatpush1.bf16.msra.mxu0 %v1046
  %1450 = vmatprep.subr.bf16.mxu0 0
  %1451 = vmatpush2.bf16.msra.mxu0 %v1061
  %1452 = vmatprep.subr.bf16.mxu0 0
  %1453 = vmatpush2.bf16.msra.mxu0 %v1060
  %1454 = vmatprep.subr.bf16.mxu0 0
  %1455 = vmatpush2.bf16.msra.mxu0 %v1059
  %1456 = vmatprep.subr.bf16.mxu0 0
  %1457 = vmatpush2.bf16.msra.mxu0 %v1058
  %1458 = vmatprep.subr.bf16.mxu0 0
  %1459 = vmatpush2.bf16.msra.mxu0 %v1057
  %1460 = vmatprep.subr.bf16.mxu0 0
  %1461 = vmatpush2.bf16.msra.mxu0 %v1056
  %1462 = vmatprep.subr.bf16.mxu0 0
  %1463 = vmatpush2.bf16.msra.mxu0 %v1055
  %1464 = vmatprep.subr.bf16.mxu0 0
  %1465 = vmatpush2.bf16.msra.mxu0 %v1054
  %1466 = vmatprep.mubr.bf16.mxu0 %v415
  %1467 = vmatmul.mubr.bf16.gmra.mxu0 %v414
  %v1468 = vpop.f32.mrf.mxu0
  %v1469 = vadd.f32 %v1420, %v1468
  %v1470 = vpop.f32.mrf.mxu0
  %v1471 = vpop.f32.mrf.mxu0
  %v1472 = vadd.f32 %v1423, %v1471
  %v1473 = vpop.f32.mrf.mxu0
  %1474 = vmatprep.mubr.bf16.mxu0 %v431
  %1475 = vmatmul.mubr.bf16.gmra.mxu0 %v430
  %v1476 = vpop.f32.mrf.mxu0
  %v1477 = vadd.f32 %v1428, %v1476
  %v1478 = vpop.f32.mrf.mxu0
  %v1479 = vpop.f32.mrf.mxu0
  %v1480 = vadd.f32 %v1431, %v1479
  %v1481 = vpop.f32.mrf.mxu0
  %1482 = vdwg.mxu0
  %1483 = vmatprep.subr.bf16.mxu0 0
  %1484 = vmatpush1.bf16.msra.mxu0 %v1069
  %1485 = vmatprep.subr.bf16.mxu0 0
  %1486 = vmatpush1.bf16.msra.mxu0 %v1068
  %1487 = vmatprep.subr.bf16.mxu0 0
  %1488 = vmatpush1.bf16.msra.mxu0 %v1067
  %1489 = vmatprep.subr.bf16.mxu0 0
  %1490 = vmatpush1.bf16.msra.mxu0 %v1066
  %1491 = vmatprep.subr.bf16.mxu0 0
  %1492 = vmatpush1.bf16.msra.mxu0 %v1065
  %1493 = vmatprep.subr.bf16.mxu0 0
  %1494 = vmatpush1.bf16.msra.mxu0 %v1064
  %1495 = vmatprep.subr.bf16.mxu0 0
  %1496 = vmatpush1.bf16.msra.mxu0 %v1063
  %1497 = vmatprep.subr.bf16.mxu0 0
  %1498 = vmatpush1.bf16.msra.mxu0 %v1062
  %1499 = vmatprep.subr.bf16.mxu0 0
  %1500 = vmatpush2.bf16.msra.mxu0 %v1077
  %1501 = vmatprep.subr.bf16.mxu0 0
  %1502 = vmatpush2.bf16.msra.mxu0 %v1076
  %1503 = vmatprep.subr.bf16.mxu0 0
  %1504 = vmatpush2.bf16.msra.mxu0 %v1075
  %1505 = vmatprep.subr.bf16.mxu0 0
  %1506 = vmatpush2.bf16.msra.mxu0 %v1074
  %1507 = vmatprep.subr.bf16.mxu0 0
  %1508 = vmatpush2.bf16.msra.mxu0 %v1073
  %1509 = vmatprep.subr.bf16.mxu0 0
  %1510 = vmatpush2.bf16.msra.mxu0 %v1072
  %1511 = vmatprep.subr.bf16.mxu0 0
  %1512 = vmatpush2.bf16.msra.mxu0 %v1071
  %1513 = vmatprep.subr.bf16.mxu0 0
  %1514 = vmatpush2.bf16.msra.mxu0 %v1070
  %1515 = vmatprep.mubr.bf16.mxu0 %v417
  %1516 = vmatmul.mubr.bf16.gmra.mxu0 %v416
  %v1517 = vpop.f32.mrf.mxu0
  %v1518 = vadd.f32 %v1469, %v1517
  %v1519 = vpop.f32.mrf.mxu0
  %v1520 = vpop.f32.mrf.mxu0
  %v1521 = vadd.f32 %v1472, %v1520
  %v1522 = vpop.f32.mrf.mxu0
  %1523 = vmatprep.mubr.bf16.mxu0 %v433
  %1524 = vmatmul.mubr.bf16.gmra.mxu0 %v432
  %v1525 = vpop.f32.mrf.mxu0
  %v1526 = vadd.f32 %v1477, %v1525
  %v1527 = vpop.f32.mrf.mxu0
  %v1528 = vpop.f32.mrf.mxu0
  %v1529 = vadd.f32 %v1480, %v1528
  %v1530 = vpop.f32.mrf.mxu0
  %1531 = vdwg.mxu0
  %1532 = vmatprep.subr.bf16.mxu0 0
  %1533 = vmatpush1.bf16.msra.mxu0 %v1085
  %1534 = vmatprep.subr.bf16.mxu0 0
  %1535 = vmatpush1.bf16.msra.mxu0 %v1084
  %1536 = vmatprep.subr.bf16.mxu0 0
  %1537 = vmatpush1.bf16.msra.mxu0 %v1083
  %1538 = vmatprep.subr.bf16.mxu0 0
  %1539 = vmatpush1.bf16.msra.mxu0 %v1082
  %1540 = vmatprep.subr.bf16.mxu0 0
  %1541 = vmatpush1.bf16.msra.mxu0 %v1081
  %1542 = vmatprep.subr.bf16.mxu0 0
  %1543 = vmatpush1.bf16.msra.mxu0 %v1080
  %1544 = vmatprep.subr.bf16.mxu0 0
  %1545 = vmatpush1.bf16.msra.mxu0 %v1079
  %1546 = vmatprep.subr.bf16.mxu0 0
  %1547 = vmatpush1.bf16.msra.mxu0 %v1078
  %1548 = vmatprep.subr.bf16.mxu0 0
  %1549 = vmatpush2.bf16.msra.mxu0 %v1093
  %1550 = vmatprep.subr.bf16.mxu0 0
  %1551 = vmatpush2.bf16.msra.mxu0 %v1092
  %1552 = vmatprep.subr.bf16.mxu0 0
  %1553 = vmatpush2.bf16.msra.mxu0 %v1091
  %1554 = vmatprep.subr.bf16.mxu0 0
  %1555 = vmatpush2.bf16.msra.mxu0 %v1090
  %1556 = vmatprep.subr.bf16.mxu0 0
  %1557 = vmatpush2.bf16.msra.mxu0 %v1089
  %1558 = vmatprep.subr.bf16.mxu0 0
  %1559 = vmatpush2.bf16.msra.mxu0 %v1088
  %1560 = vmatprep.subr.bf16.mxu0 0
  %1561 = vmatpush2.bf16.msra.mxu0 %v1087
  %1562 = vmatprep.subr.bf16.mxu0 0
  %1563 = vmatpush2.bf16.msra.mxu0 %v1086
  %1564 = vmatprep.mubr.bf16.mxu0 %v419
  %1565 = vmatmul.mubr.bf16.gmra.mxu0 %v418
  %v1566 = vpop.f32.mrf.mxu0
  %v1567 = vadd.f32 %v1518, %v1566
  %v1568 = vpop.f32.mrf.mxu0
  %v1569 = vpop.f32.mrf.mxu0
  %v1570 = vadd.f32 %v1521, %v1569
  %v1571 = vpop.f32.mrf.mxu0
  %1572 = vmatprep.mubr.bf16.mxu0 %v435
  %1573 = vmatmul.mubr.bf16.gmra.mxu0 %v434
  %v1574 = vpop.f32.mrf.mxu0
  %v1575 = vadd.f32 %v1526, %v1574
  %v1576 = vpop.f32.mrf.mxu0
  %v1577 = vpop.f32.mrf.mxu0
  %v1578 = vadd.f32 %v1529, %v1577
  %v1579 = vpop.f32.mrf.mxu0
  %1580 = vdwg.mxu0
  %1581 = vmatprep.subr.bf16.mxu0 0
  %1582 = vmatpush1.bf16.msra.mxu0 %v1101
  %1583 = vmatprep.subr.bf16.mxu0 0
  %1584 = vmatpush1.bf16.msra.mxu0 %v1100
  %1585 = vmatprep.subr.bf16.mxu0 0
  %1586 = vmatpush1.bf16.msra.mxu0 %v1099
  %1587 = vmatprep.subr.bf16.mxu0 0
  %1588 = vmatpush1.bf16.msra.mxu0 %v1098
  %1589 = vmatprep.subr.bf16.mxu0 0
  %1590 = vmatpush1.bf16.msra.mxu0 %v1097
  %1591 = vmatprep.subr.bf16.mxu0 0
  %1592 = vmatpush1.bf16.msra.mxu0 %v1096
  %1593 = vmatprep.subr.bf16.mxu0 0
  %1594 = vmatpush1.bf16.msra.mxu0 %v1095
  %1595 = vmatprep.subr.bf16.mxu0 0
  %1596 = vmatpush1.bf16.msra.mxu0 %v1094
  %1597 = vmatprep.subr.bf16.mxu0 0
  %1598 = vmatpush2.bf16.msra.mxu0 %v1109
  %1599 = vmatprep.subr.bf16.mxu0 0
  %1600 = vmatpush2.bf16.msra.mxu0 %v1108
  %1601 = vmatprep.subr.bf16.mxu0 0
  %1602 = vmatpush2.bf16.msra.mxu0 %v1107
  %1603 = vmatprep.subr.bf16.mxu0 0
  %1604 = vmatpush2.bf16.msra.mxu0 %v1106
  %1605 = vmatprep.subr.bf16.mxu0 0
  %1606 = vmatpush2.bf16.msra.mxu0 %v1105
  %1607 = vmatprep.subr.bf16.mxu0 0
  %1608 = vmatpush2.bf16.msra.mxu0 %v1104
  %1609 = vmatprep.subr.bf16.mxu0 0
  %1610 = vmatpush2.bf16.msra.mxu0 %v1103
  %1611 = vmatprep.subr.bf16.mxu0 0
  %1612 = vmatpush2.bf16.msra.mxu0 %v1102
  %1613 = vmatprep.mubr.bf16.mxu0 %v421
  %1614 = vmatmul.mubr.bf16.gmra.mxu0 %v420
  %v1615 = vpop.f32.mrf.mxu0
  %v1616 = vadd.f32 %v1567, %v1615
  %v1617 = vpop.f32.mrf.mxu0
  %v1618 = vpop.f32.mrf.mxu0
  %v1619 = vadd.f32 %v1570, %v1618
  %v1620 = vpop.f32.mrf.mxu0
  %1621 = vmatprep.mubr.bf16.mxu0 %v437
  %1622 = vmatmul.mubr.bf16.gmra.mxu0 %v436
  %v1623 = vpop.f32.mrf.mxu0
  %v1624 = vadd.f32 %v1575, %v1623
  %v1625 = vpop.f32.mrf.mxu0
  %v1626 = vpop.f32.mrf.mxu0
  %v1627 = vadd.f32 %v1578, %v1626
  %v1628 = vpop.f32.mrf.mxu0
  %1629 = vdwg.mxu0
  %vm1630 = vcmp.ge.f32.partialorder %v1616, 0.0
  %vm1631 = vcmp.ge.f32.partialorder %v1619, 0.0
  %vm1632 = vcmp.ge.f32.partialorder %v1624, 0.0
  %vm1633 = vcmp.ge.f32.partialorder %v1627, 0.0
  %v1634 = vmul.f32 %v1616, 0.2
  %v1635 = vmul.f32 %v1619, 0.2
  %v1636 = vmul.f32 %v1624, 0.2
  %v1637 = vmul.f32 %v1627, 0.2
  %v1638 = vsel %vm1630, %v1616, %v1634
  %v1639 = vsel %vm1631, %v1619, %v1635
  %v1640 = vsel %vm1632, %v1624, %v1636
  %v1641 = vsel %vm1633, %v1627, %v1637
  %v1642 = vpack.c.bf16 %v1639, %v1638
  %v1643 = vpack.c.bf16 %v1641, %v1640
  %v1646 = vunpack.c.l.b16 %v1642
  %v1647 = vunpack.c.h.b16 %v1642
  %v1648 = vunpack.c.l.b16 %v1643
  %v1649 = vunpack.c.h.b16 %v1643
  %v1650 = vpack.c.b16 %v1646, %v1646
  %v1651 = vpack.c.b16 %v1647, %v1647
  %v1652 = vpack.c.b16 %v1648, %v1648
  %v1653 = vpack.c.b16 %v1649, %v1649
  %1658 = vst [vmem:[%s3] sm:$0xf] %v1650
  %1659 = vst [vmem:[%s3 + $0x4] sm:$0xf] %v1651
  %1660 = vst [vmem:[%s3 + $0x8] sm:$0xf] %v1652
  %1661 = vst [vmem:[%s3 + $0xc] sm:$0xf] %v1653
  // Predicated region
  $region14: #{discriminator_forward.12} parent=0 // pred_check
    _
  $region15: #{discriminator_forward.12} parent=0 // pred_check_branch
    %1663 = sbr.rel (0) target = $region17
  $region16: #{discriminator_forward.12} parent=0 // pred_region
    _
  $region17: #{discriminator_forward.12} parent=0 // pred_fallthru
    _
  // Predicated region
  $region18: #{discriminator_forward.12} parent=0 // pred_check
    _
  $region19: #{discriminator_forward.12} parent=0 // pred_check_branch
    %1665 = sbr.rel (0) target = $region21
  $region20: #{discriminator_forward.12} parent=0 // pred_region
    _
  $region21: #{discriminator_forward.12} parent=0 // pred_fallthru
    _

// kernel: discriminator_forward.13
$region0: #{discriminator_forward.13}
  #allocation0 [shape = 'u32[]', space=smem, size = 0x4, offset = 0x4, fixed_abs, tag = 'smem constant byte address 0x4 - core index']
  #allocation1 [shape = 'u32[144,128]{1,0:T(1,128)}', space=vmem, size = 0x12000, scoped, tag = 'internal scratch']
  #allocation2 [shape = 'f32[1,1]{1,0:T(1,128)S(1)}', space=vmem, size = 0x200, scoped, tag = 'scoped memory for discriminator_forward.13']
  %s0 = inlined_call_operand.vmem [shape: bf16[8,2048], index: 0, kind: input, shape index: {}]
  %s1 = inlined_call_operand.vmem [shape: bf16[1,2048], index: 1, kind: input, shape index: {}]
  %s2 = inlined_call_operand.<no memory space> [shape: f32[1,1], index: 2, kind: input, shape index: {}]
  %s3 = inlined_call_operand.vmem [shape: f32[8,1], index: 3, kind: output, shape index: {}]
  %s4 = sld [smem:[#allocation0]]
  $region22: #{discriminator_forward.13} parent=0
    _
  %s6 = ssub.s32 1, %s4
  %s7 = scalar_select 0, %s6, %s4
  %v8 = vstv %s2
  %9 = vst [vmem:[#allocation2] sm:$0x1] %v8
  // Predicated region
  $region2: #{discriminator_forward.13} parent=0 // pred_check
    _
  $region3: #{discriminator_forward.13} parent=0 // pred_check_branch
    %11 = sbr.rel (0) target = $region5
  $region4: #{discriminator_forward.13} parent=0 // pred_region
    _
  $region5: #{discriminator_forward.13} parent=0 // pred_fallthru
    _
  // Predicated region
  $region6: #{discriminator_forward.13} parent=0 // pred_check
    _
  $region7: #{discriminator_forward.13} parent=0 // pred_check_branch
    %13 = sbr.rel (0) target = $region9
  $region8: #{discriminator_forward.13} parent=0 // pred_region
    _
  $region9: #{discriminator_forward.13} parent=0 // pred_fallthru
    _
  // Predicated region
  $region10: #{discriminator_forward.13} parent=0 // pred_check
    _
  $region11: #{discriminator_forward.13} parent=0 // pred_check_branch
    %15 = sbr.rel (0) target = $region13
  $region12: #{discriminator_forward.13} parent=0 // pred_region
    _
  $region13: #{discriminator_forward.13} parent=0 // pred_fallthru
    _
  %v16 = vld [vmem:[%s0] sm:$0xff]
  %v17 = vld [vmem:[%s0 + $0x8] sm:$0xff]
  %v18 = vld [vmem:[%s0 + $0x10] sm:$0xff]
  %v19 = vld [vmem:[%s0 + $0x18] sm:$0xff]
  %v20 = vld [vmem:[%s0 + $0x20] sm:$0xff]
  %v21 = vld [vmem:[%s0 + $0x28] sm:$0xff]
  %v22 = vld [vmem:[%s0 + $0x30] sm:$0xff]
  %v23 = vld [vmem:[%s0 + $0x38] sm:$0xff]
  %v24 = vunpack.c.l.bf16 %v16
  %v25 = vunpack.c.h.bf16 %v16
  %v26 = vunpack.c.l.bf16 %v17
  %v27 = vunpack.c.h.bf16 %v17
  %v28 = vunpack.c.l.bf16 %v18
  %v29 = vunpack.c.h.bf16 %v18
  %v30 = vunpack.c.l.bf16 %v19
  %v31 = vunpack.c.h.bf16 %v19
  %v32 = vunpack.c.l.bf16 %v20
  %v33 = vunpack.c.h.bf16 %v20
  %v34 = vunpack.c.l.bf16 %v21
  %v35 = vunpack.c.h.bf16 %v21
  %v36 = vunpack.c.l.bf16 %v22
  %v37 = vunpack.c.h.bf16 %v22
  %v38 = vunpack.c.l.bf16 %v23
  %v39 = vunpack.c.h.bf16 %v23
  %v40 = vld [vmem:[%s1] sm:$0xff]
  %v41 = vld [vmem:[%s1 + $0x8] sm:$0xff]
  %v42 = vunpack.c.l.bf16 %v40
  %v43 = vunpack.c.h.bf16 %v40
  %v44 = vunpack.c.l.bf16 %v41
  %v45 = vunpack.c.h.bf16 %v41
  %v50 = vlaneseq
  %v51 = vshrl.u32 %v50, 7
  %v52 = vsub.s32 0, %v51
  %v53 = vrot.slane %v42, %v52
  %v54 = vlaneseq
  %v55 = vshrl.u32 %v54, 7
  %v56 = vsub.s32 2, %v55
  %v57 = vrot.slane %v42, %v56
  %v58 = vlaneseq
  %v59 = vshrl.u32 %v58, 7
  %v60 = vsub.s32 4, %v59
  %v61 = vrot.slane %v42, %v60
  %v62 = vlaneseq
  %v63 = vshrl.u32 %v62, 7
  %v64 = vsub.s32 6, %v63
  %v65 = vrot.slane %v42, %v64
  %v66 = vlaneseq
  %v67 = vshrl.u32 %v66, 7
  %v68 = vsub.s32 0, %v67
  %v69 = vrot.slane %v43, %v68
  %v70 = vlaneseq
  %v71 = vshrl.u32 %v70, 7
  %v72 = vsub.s32 2, %v71
  %v73 = vrot.slane %v43, %v72
  %v74 = vlaneseq
  %v75 = vshrl.u32 %v74, 7
  %v76 = vsub.s32 4, %v75
  %v77 = vrot.slane %v43, %v76
  %v78 = vlaneseq
  %v79 = vshrl.u32 %v78, 7
  %v80 = vsub.s32 6, %v79
  %v81 = vrot.slane %v43, %v80
  %v82 = vlaneseq
  %v83 = vshrl.u32 %v82, 7
  %v84 = vsub.s32 0, %v83
  %v85 = vrot.slane %v44, %v84
  %v86 = vlaneseq
  %v87 = vshrl.u32 %v86, 7
  %v88 = vsub.s32 2, %v87
  %v89 = vrot.slane %v44, %v88
  %v90 = vlaneseq
  %v91 = vshrl.u32 %v90, 7
  %v92 = vsub.s32 4, %v91
  %v93 = vrot.slane %v44, %v92
  %v94 = vlaneseq
  %v95 = vshrl.u32 %v94, 7
  %v96 = vsub.s32 6, %v95
  %v97 = vrot.slane %v44, %v96
  %v98 = vlaneseq
  %v99 = vshrl.u32 %v98, 7
  %v100 = vsub.s32 0, %v99
  %v101 = vrot.slane %v45, %v100
  %v102 = vlaneseq
  %v103 = vshrl.u32 %v102, 7
  %v104 = vsub.s32 2, %v103
  %v105 = vrot.slane %v45, %v104
  %v106 = vlaneseq
  %v107 = vshrl.u32 %v106, 7
  %v108 = vsub.s32 4, %v107
  %v109 = vrot.slane %v45, %v108
  %v110 = vlaneseq
  %v111 = vshrl.u32 %v110, 7
  %v112 = vsub.s32 6, %v111
  %v113 = vrot.slane %v45, %v112
  %v130 = vlaneseq
  %v131 = vshrl.u32 %v130, 7
  %v132 = vsub.s32 0, %v131
  %v133 = vrot.slane %v53, %v132
  %v134 = vlaneseq
  %v135 = vshrl.u32 %v134, 7
  %v136 = vsub.s32 0, %v135
  %v137 = vrot.slane %v57, %v136
  %v138 = vlaneseq
  %v139 = vshrl.u32 %v138, 7
  %v140 = vsub.s32 0, %v139
  %v141 = vrot.slane %v61, %v140
  %v142 = vlaneseq
  %v143 = vshrl.u32 %v142, 7
  %v144 = vsub.s32 0, %v143
  %v145 = vrot.slane %v65, %v144
  %v146 = vlaneseq
  %v147 = vshrl.u32 %v146, 7
  %v148 = vsub.s32 0, %v147
  %v149 = vrot.slane %v69, %v148
  %v150 = vlaneseq
  %v151 = vshrl.u32 %v150, 7
  %v152 = vsub.s32 0, %v151
  %v153 = vrot.slane %v73, %v152
  %v154 = vlaneseq
  %v155 = vshrl.u32 %v154, 7
  %v156 = vsub.s32 0, %v155
  %v157 = vrot.slane %v77, %v156
  %v158 = vlaneseq
  %v159 = vshrl.u32 %v158, 7
  %v160 = vsub.s32 0, %v159
  %v161 = vrot.slane %v81, %v160
  %v162 = vlaneseq
  %v163 = vshrl.u32 %v162, 7
  %v164 = vsub.s32 0, %v163
  %v165 = vrot.slane %v85, %v164
  %v166 = vlaneseq
  %v167 = vshrl.u32 %v166, 7
  %v168 = vsub.s32 0, %v167
  %v169 = vrot.slane %v89, %v168
  %v170 = vlaneseq
  %v171 = vshrl.u32 %v170, 7
  %v172 = vsub.s32 0, %v171
  %v173 = vrot.slane %v93, %v172
  %v174 = vlaneseq
  %v175 = vshrl.u32 %v174, 7
  %v176 = vsub.s32 0, %v175
  %v177 = vrot.slane %v97, %v176
  %v178 = vlaneseq
  %v179 = vshrl.u32 %v178, 7
  %v180 = vsub.s32 0, %v179
  %v181 = vrot.slane %v101, %v180
  %v182 = vlaneseq
  %v183 = vshrl.u32 %v182, 7
  %v184 = vsub.s32 0, %v183
  %v185 = vrot.slane %v105, %v184
  %v186 = vlaneseq
  %v187 = vshrl.u32 %v186, 7
  %v188 = vsub.s32 0, %v187
  %v189 = vrot.slane %v109, %v188
  %v190 = vlaneseq
  %v191 = vshrl.u32 %v190, 7
  %v192 = vsub.s32 0, %v191
  %v193 = vrot.slane %v113, %v192
  %v194 = vmul.f32 %v24, %v133
  %v195 = vmul.f32 %v25, %v137
  %v196 = vmul.f32 %v26, %v141
  %v197 = vmul.f32 %v27, %v145
  %v198 = vmul.f32 %v28, %v149
  %v199 = vmul.f32 %v29, %v153
  %v200 = vmul.f32 %v30, %v157
  %v201 = vmul.f32 %v31, %v161
  %v202 = vmul.f32 %v32, %v165
  %v203 = vmul.f32 %v33, %v169
  %v204 = vmul.f32 %v34, %v173
  %v205 = vmul.f32 %v35, %v177
  %v206 = vmul.f32 %v36, %v181
  %v207 = vmul.f32 %v37, %v185
  %v208 = vmul.f32 %v38, %v189
  %v209 = vmul.f32 %v39, %v193
  %v210 = vadd.f32 %v194, %v195
  %v211 = vadd.f32 %v210, %v196
  %v212 = vadd.f32 %v211, %v197
  %v213 = vadd.f32 %v212, %v198
  %v214 = vadd.f32 %v213, %v199
  %v215 = vadd.f32 %v214, %v200
  %v216 = vadd.f32 %v215, %v201
  %v217 = vadd.f32 %v216, %v202
  %v218 = vadd.f32 %v217, %v203
  %v219 = vadd.f32 %v218, %v204
  %v220 = vadd.f32 %v219, %v205
  %v221 = vadd.f32 %v220, %v206
  %v222 = vadd.f32 %v221, %v207
  %v223 = vadd.f32 %v222, %v208
  %v224 = vadd.f32 %v223, %v209
  %225 = vadd.xlane.f32.xlu0 %v224
  %v226 = vpop.xlane.xlu0 %225
  %v227 = vld [vmem:[#allocation2] sm:$0x1]
  %s228 = vtos %v227
  %v229 = vstv %s228
  %v230 = vadd.f32 %v226, %v229
  %vm231 = vcmask 7168
  %232 = vst.msk [vmem:[%s3] sm:$0xff] %vm231, %v230
  // Predicated region
  $region14: #{discriminator_forward.13} parent=0 // pred_check
    _
  $region15: #{discriminator_forward.13} parent=0 // pred_check_branch
    %234 = sbr.rel (0) target = $region17
  $region16: #{discriminator_forward.13} parent=0 // pred_region
    _
  $region17: #{discriminator_forward.13} parent=0 // pred_fallthru
    _
  // Predicated region
  $region18: #{discriminator_forward.13} parent=0 // pred_check
    _
  $region19: #{discriminator_forward.13} parent=0 // pred_check_branch
    %236 = sbr.rel (0) target = $region21
  $region20: #{discriminator_forward.13} parent=0 // pred_region
    _
  $region21: #{discriminator_forward.13} parent=0 // pred_fallthru
    _

</llo_original>
